<compile_context>
chip_gen: v7x
topology: tpu7x:2x2x1
jax: 0.10.0
libtpu: 0.0.40
codegen_flags: <defaults>
</compile_context>

<pallas_src>
import functools

import jax
import jax.numpy as jnp
import numpy as np
from jax.experimental import pallas as pl
from jax.experimental.pallas import tpu as pltpu

EPS = 1e-5        # PyTorch BatchNorm2d default eps
_LEFT = 8         # sublane-aligned start column of the conv2 pad interior


def _vmem_limit_bytes():
    try:
        cap = pltpu.get_tpu_info().vmem_capacity_bytes
    except Exception:                       # pragma: no cover - conservative
        cap = 64 * 1024 * 1024
    return int(min(cap - 16 * 1024 * 1024, 100 * 1024 * 1024))


# ---------------------------------------------------------------------------
# stage kernels
# ---------------------------------------------------------------------------
def _partial_stats(y, stat_ref):
    # per-tile partial BN statistics: row 0 = sum, row 1 = sum of squares
    stat_ref[0:1, :] = jnp.sum(y, axis=0, keepdims=True)
    stat_ref[1:2, :] = jnp.sum(y * y, axis=0, keepdims=True)


def conv1_kernel(x_ref, w_ref, y_ref, stat_ref):
    # conv1 (1x1, no bias) as a bf16 MXU matmul + bn1 partial statistics
    y = jnp.dot(x_ref[...], w_ref[...], preferred_element_type=jnp.float32)
    y_ref[...] = y.astype(y_ref.dtype)
    _partial_stats(y, stat_ref)


def conv2_kernel(y1_ref, s1_ref, w_ref, y2_ref, stat_ref, pad_ref, *, H, W):
    # apply bn1 (scale/shift) + ReLU, then conv2 (3x3, stride=1, pad=1) as nine
    # accumulated dots over shifted windows of a bf16 padded scratch, then bn2
    # partial statistics.
    HW, P = y1_ref.shape

    # zero only the halo, with sublane-aligned strips, every step (no
    # cross-step scratch state -> safe under "parallel"/megacore scheduling)
    pad_ref[:, 0:_LEFT, :] = jnp.zeros((H + 2, _LEFT, P), pad_ref.dtype)
    pad_ref[:, _LEFT + W:, :] = jnp.zeros((H + 2, 8, P), pad_ref.dtype)
    pad_ref[0:1, _LEFT:_LEFT + W, :] = jnp.zeros((1, W, P), pad_ref.dtype)
    pad_ref[H + 1:H + 2, _LEFT:_LEFT + W, :] = jnp.zeros((1, W, P), pad_ref.dtype)

    h = jnp.maximum(
        y1_ref[...].astype(jnp.float32) * s1_ref[0:1, :] + s1_ref[1:2, :], 0.0)
    pad_ref[1:H + 1, _LEFT:_LEFT + W, :] = (
        h.astype(pad_ref.dtype).reshape(H, W, P))

    w = w_ref[...]                       # (9, P, P) bf16, resident in VMEM
    acc = None
    for k in range(9):
        dy, dx = k // 3, k % 3
        win = pad_ref[dy:dy + H, _LEFT - 1 + dx:_LEFT - 1 + dx + W, :]
        d = jnp.dot(win.reshape(HW, P), w[k],
                    preferred_element_type=jnp.float32)
        acc = d if acc is None else acc + d

    y2_ref[...] = acc.astype(y2_ref.dtype)
    _partial_stats(acc, stat_ref)


def conv3_kernel(y2_ref, s2_ref, w_ref, y3_ref, stat_ref):
    # apply bn2 + ReLU, then conv3 (1x1, to 4*planes) + bn3 partial statistics
    h = jnp.maximum(
        y2_ref[...].astype(jnp.float32) * s2_ref[0:1, :] + s2_ref[1:2, :], 0.0)
    y = jnp.dot(h.astype(jnp.bfloat16), w_ref[...],
                preferred_element_type=jnp.float32)
    y3_ref[...] = y.astype(y3_ref.dtype)          # bf16 writeback
    _partial_stats(y, stat_ref)


def residual_kernel(y3_ref, s3_ref, x_ref, out_ref):
    # apply bn3, add identity residual, ReLU
    out_ref[...] = jnp.maximum(
        y3_ref[...].astype(jnp.float32) * s3_ref[0:1, :] + s3_ref[1:2, :]
        + x_ref[...].astype(jnp.float32), 0.0)


# ---------------------------------------------------------------------------
# wrapper
# ---------------------------------------------------------------------------
def _pick_row_tile(m, want):
    want = max(8, min(want, m))
    if m % 8 == 0:
        for t in range(want - want % 8, 7, -8):
            if m % t == 0:
                return t
    # TODO(synk): for M not divisible by 8, pad M with zero rows (BN sums are
    # unaffected) instead of falling back to a single full-M block.
    return m


def bottleneck_pallas(x_nchw, p, *, row_tile=1024):
    N, Cin, H, W = x_nchw.shape
    P = p["w1"].shape[1]          # planes
    C4 = p["w3"].shape[1]         # planes * expansion
    assert Cin == C4, "stride=1 / downsample=None needs inplanes == 4*planes"
    M = N * H * W
    HW = H * W
    inv_m = 1.0 / M

    # Single bf16 copy of x, used for conv1 AND the stage-4 residual.
    # TODO(synk): the NCHW<->NHWC transposes are full XLA-side HBM passes; drop
    # them if the surrounding graph can stay NHWC.
    x_bf16 = jnp.transpose(x_nchw, (0, 2, 3, 1)).reshape(M, Cin) \
        .astype(jnp.bfloat16)

    tm = _pick_row_tile(M, row_tile)
    gm = M // tm

    cp_par = pltpu.CompilerParams(dimension_semantics=("parallel",),
                                  vmem_limit_bytes=_vmem_limit_bytes())

    stat_spec = lambda c: pl.BlockSpec((2, c), lambda i: (0, 0))
    part_spec = lambda c: pl.BlockSpec((None, 2, c), lambda i: (i, 0, 0))
    part_shape = lambda g, c: jax.ShapeDtypeStruct((g, 2, c), jnp.float32)

    def fold_stats(parts, gamma, beta):
        # parts: (grid, 2, C) partial [sum, sum_sq] -> (2, C) [scale, shift]
        s = jnp.sum(parts, axis=0)
        mean = s[0] * inv_m
        var = jnp.maximum(s[1] * inv_m - mean * mean, 0.0)
        scale = gamma * jax.lax.rsqrt(var + EPS)
        shift = beta - mean * scale
        return jnp.stack([scale, shift], axis=0)

    # --- stage 1: conv1 (1x1) + bn1 partial stats, tiled over M ------------
    y1, p1 = pl.pallas_call(
        conv1_kernel,
        out_shape=(jax.ShapeDtypeStruct((M, P), jnp.bfloat16),
                   part_shape(gm, P)),
        grid_spec=pltpu.PrefetchScalarGridSpec(
            num_scalar_prefetch=0, grid=(gm,),
            in_specs=[pl.BlockSpec((tm, Cin), lambda i: (i, 0)),
                      pl.BlockSpec((Cin, P), lambda i: (0, 0))],
            out_specs=[pl.BlockSpec((tm, P), lambda i: (i, 0)), part_spec(P)]),
        compiler_params=cp_par,
    )(x_bf16, p["w1"])
    s1 = fold_stats(p1, p["g1"], p["b1"])

    # --- stage 2: bn1+relu, conv2 (3x3) via shifted-window dots, bn2 stats --
    # TODO(synk): (HW, P) blocks need HW % 8 == 0 (true for 56x56 / 28x28 /
    # 16x16); later ResNet resolutions (14x14, 7x7) need row-strip tiling.
    Wp = _LEFT + W + 8
    y2, p2 = pl.pallas_call(
        functools.partial(conv2_kernel, H=H, W=W),
        out_shape=(jax.ShapeDtypeStruct((M, P), jnp.bfloat16),
                   part_shape(N, P)),
        grid_spec=pltpu.PrefetchScalarGridSpec(
            num_scalar_prefetch=0, grid=(N,),
            in_specs=[pl.BlockSpec((HW, P), lambda n: (n, 0)),
                      stat_spec(P),
                      pl.BlockSpec((9, P, P), lambda n: (0, 0, 0))],
            out_specs=[pl.BlockSpec((HW, P), lambda n: (n, 0)), part_spec(P)],
            scratch_shapes=[pltpu.VMEM((H + 2, Wp, P), jnp.bfloat16)]),
        compiler_params=cp_par,
    )(y1, s1, p["w2"])
    s2 = fold_stats(p2, p["g2"], p["b2"])

    # --- stage 3: bn2+relu, conv3 (1x1 -> 4P), bn3 stats; tiled over M ------
    y3, p3 = pl.pallas_call(
        conv3_kernel,
        out_shape=(jax.ShapeDtypeStruct((M, C4), jnp.bfloat16),
                   part_shape(gm, C4)),
        grid_spec=pltpu.PrefetchScalarGridSpec(
            num_scalar_prefetch=0, grid=(gm,),
            in_specs=[pl.BlockSpec((tm, P), lambda i: (i, 0)),
                      stat_spec(P),
                      pl.BlockSpec((P, C4), lambda i: (0, 0))],
            out_specs=[pl.BlockSpec((tm, C4), lambda i: (i, 0)),
                       part_spec(C4)]),
        compiler_params=cp_par,
    )(y2, s2, p["w3"])
    s3 = fold_stats(p3, p["g3"], p["b3"])

    # --- stage 4: bn3 + identity residual + relu; fully parallel over M -----
    out_flat = pl.pallas_call(
        residual_kernel,
        out_shape=jax.ShapeDtypeStruct((M, C4), jnp.float32),
        grid_spec=pltpu.PrefetchScalarGridSpec(
            num_scalar_prefetch=0, grid=(gm,),
            in_specs=[pl.BlockSpec((tm, C4), lambda i: (i, 0)),
                      stat_spec(C4),
                      pl.BlockSpec((tm, C4), lambda i: (i, 0))],
            out_specs=pl.BlockSpec((tm, C4), lambda i: (i, 0))),
        compiler_params=cp_par,
    )(y3, s3, x_bf16)

    # TODO(synk): channel counts (4 / 16) stay lane-sparse; a layout whose
    # minor dim is >=128 lanes (folding W into the minor dim) would remove the
    # remaining masked stores without inflating HBM bytes.
    return out_flat.reshape(N, H, W, C4).transpose(0, 3, 1, 2)   # back to NCHW


# ---------------------------------------------------------------------------
# parameter prep (PyTorch OIHW -> kernel-ready layouts, matmul weights in bf16)
# ---------------------------------------------------------------------------
def prepare_params(t):
    ci = t["w2"].shape[1]
    co = t["w2"].shape[0]
    return dict(
        w1=jnp.transpose(t["w1"][:, :, 0, 0], (1, 0)).astype(jnp.bfloat16),   # (Cin, P)
        w2=jnp.transpose(t["w2"], (2, 3, 1, 0)).reshape(9, ci, co)
            .astype(jnp.bfloat16),                                            # (9, P, P)
        w3=jnp.transpose(t["w3"][:, :, 0, 0], (1, 0)).astype(jnp.bfloat16),   # (P, 4P)
        g1=t["g1"], b1=t["b1"], g2=t["g2"], b2=t["b2"], g3=t["g3"], b3=t["b3"],
    )


# ---------------- plain-JAX f32 reference (mirrors the PyTorch forward) ------
def _conv_nchw(x, w, stride=1, pad=0):
    return jax.lax.conv_general_dilated(
        x, w, (stride, stride), [(pad, pad), (pad, pad)],
        dimension_numbers=("NCHW", "OIHW", "NCHW"))


def _bn_nchw(x, gamma, beta):
    mean = x.mean(axis=(0, 2, 3), keepdims=True)
    var = ((x - mean) ** 2).mean(axis=(0, 2, 3), keepdims=True)
    return ((x - mean) / jnp.sqrt(var + EPS)) * gamma.reshape(1, -1, 1, 1) \
        + beta.reshape(1, -1, 1, 1)


def bottleneck_ref(x, t):
    out = jnp.maximum(_bn_nchw(_conv_nchw(x, t["w1"]), t["g1"], t["b1"]), 0.0)
    out = jnp.maximum(_bn_nchw(_conv_nchw(out, t["w2"], pad=1), t["g2"], t["b2"]), 0.0)
    out = _bn_nchw(_conv_nchw(out, t["w3"]), t["g3"], t["b3"])
    return jnp.maximum(out + x, 0.0)


if __name__ == "__main__":
    # Bottleneck(inplanes=16, planes=4, stride=1, downsample=None)
    N, inplanes, planes, H, W = 2, 16, 4, 16, 16
    key = jax.random.PRNGKey(0)
    ks = jax.random.split(key, 10)

    w1_t = 0.1 * jax.random.normal(ks[0], (planes, inplanes, 1, 1), jnp.float32)
    w2_t = 0.1 * jax.random.normal(ks[1], (planes, planes, 3, 3), jnp.float32)
    w3_t = 0.1 * jax.random.normal(ks[2], (planes * 4, planes, 1, 1), jnp.float32)
    g1 = 1.0 + 0.1 * jax.random.normal(ks[3], (planes,), jnp.float32)
    b1 = 0.1 * jax.random.normal(ks[4], (planes,), jnp.float32)
    g2 = 1.0 + 0.1 * jax.random.normal(ks[5], (planes,), jnp.float32)
    b2 = 0.1 * jax.random.normal(ks[6], (planes,), jnp.float32)
    g3 = 1.0 + 0.1 * jax.random.normal(ks[7], (planes * 4,), jnp.float32)
    b3 = 0.1 * jax.random.normal(ks[8], (planes * 4,), jnp.float32)
    x = jax.random.normal(ks[9], (N, inplanes, H, W), jnp.float32)

    torch_params = dict(w1=w1_t, w2=w2_t, w3=w3_t,
                        g1=g1, b1=b1, g2=g2, b2=b2, g3=g3, b3=b3)
    kernel_params = prepare_params(torch_params)

    # row_tile=256 -> 2 row tiles and 2 images, exercising the multi-tile
    # partial BatchNorm-statistics fold.
    fwd = jax.jit(functools.partial(bottleneck_pallas, row_tile=256))
    out = jax.block_until_ready(fwd(x, kernel_params))
    ref = jax.block_until_ready(bottleneck_ref(x, torch_params))

    # bf16 matmul operands / intermediates (f32 accumulation and BN stats) =>
    # slightly looser tolerance than a pure-f32 kernel.
    np.testing.assert_allclose(np.asarray(out), np.asarray(ref),
                               rtol=5e-2, atol=5e-2)
    print("KERNEL_OK")
</pallas_src>

<mosaic_0001>
module attributes {stable_mosaic.version = 11 : i64} {
  func.func @conv1_kernel(%arg0: i32, %arg1: memref<256x16xbf16, #tpu.memory_space<vmem>>, %arg2: memref<16x4xbf16, #tpu.memory_space<vmem>>, %arg3: memref<256x4xbf16, #tpu.memory_space<vmem>>, %arg4: memref<1x2x4xf32, #tpu.memory_space<vmem>>) attributes {dimension_semantics = [#tpu.dimension_semantics<parallel>], iteration_bounds = array<i64: 2>, scalar_prefetch = 0 : i64, scratch_operands = 0 : i64, tpu.core_type = #tpu.core_type<tc>, window_params = [{transform_indices = @transform_0, window_bounds = array<i64: 256, 16>}, {pipeline_mode = #tpu.pipeline_mode<synchronous>, transform_indices = @transform_1, window_bounds = array<i64: 16, 4>}, {transform_indices = @transform_2, window_bounds = array<i64: 256, 4>}, {transform_indices = @transform_3, window_bounds = array<i64: 1, 2, 4>}]} {
    %c0 = arith.constant 0 : index
    %c0_0 = arith.constant 0 : index
    %0 = vector.load %arg1[%c0, %c0_0] : memref<256x16xbf16, #tpu.memory_space<vmem>>, vector<256x16xbf16>
    %c0_1 = arith.constant 0 : index
    %c0_2 = arith.constant 0 : index
    %1 = vector.load %arg2[%c0_1, %c0_2] : memref<16x4xbf16, #tpu.memory_space<vmem>>, vector<16x4xbf16>
    %cst = arith.constant dense<0.000000e+00> : vector<256x4xf32>
    %2 = tpu.matmul %0, %1, %cst {dimension_numbers = #tpu.dot_dimension_numbers<[1], [0], [0], [1], [0, 0, 1, 1], [], []>} : vector<256x16xbf16>, vector<16x4xbf16>, vector<256x4xf32> -> vector<256x4xf32>
    %3 = arith.truncf %2 : vector<256x4xf32> to vector<256x4xbf16>
    %c0_3 = arith.constant 0 : index
    %c0_4 = arith.constant 0 : index
    %4 = vector.load %arg3[%c0_3, %c0_4] : memref<256x4xbf16, #tpu.memory_space<vmem>>, vector<256x4xbf16>
    tpu.vector_store %arg3[%c0_3, %c0_4], %3 {strides = array<i32>} : memref<256x4xbf16, #tpu.memory_space<vmem>>, vector<256x4xbf16>,
    %cst_5 = arith.constant dense<0.000000e+00> : vector<4xf32>
    %5 = vector.multi_reduction <add>, %2, %cst_5 [0] : vector<256x4xf32> to vector<4xf32>
    %6 = vector.shape_cast %5 : vector<4xf32> to vector<1x4xf32>
    %c0_6 = arith.constant 0 : index
    %c0_7 = arith.constant 0 : index
    %c0_8 = arith.constant 0 : index
    %7 = vector.load %arg4[%c0_6, %c0_7, %c0_8] : memref<1x2x4xf32, #tpu.memory_space<vmem>>, vector<1x1x4xf32>
    %8 = vector.shape_cast %7 : vector<1x1x4xf32> to vector<1x4xf32>
    %9 = vector.shape_cast %6 : vector<1x4xf32> to vector<1x1x4xf32>
    tpu.vector_store %arg4[%c0_6, %c0_7, %c0_8], %9 {strides = array<i32>} : memref<1x2x4xf32, #tpu.memory_space<vmem>>, vector<1x1x4xf32>,
    %10 = arith.mulf %2, %2 : vector<256x4xf32>
    %cst_9 = arith.constant dense<0.000000e+00> : vector<4xf32>
    %11 = vector.multi_reduction <add>, %10, %cst_9 [0] : vector<256x4xf32> to vector<4xf32>
    %12 = vector.shape_cast %11 : vector<4xf32> to vector<1x4xf32>
    %c0_10 = arith.constant 0 : index
    %c1 = arith.constant 1 : index
    %c0_11 = arith.constant 0 : index
    %13 = vector.load %arg4[%c0_10, %c1, %c0_11] : memref<1x2x4xf32, #tpu.memory_space<vmem>>, vector<1x1x4xf32>
    %14 = vector.shape_cast %13 : vector<1x1x4xf32> to vector<1x4xf32>
    %15 = vector.shape_cast %12 : vector<1x4xf32> to vector<1x1x4xf32>
    tpu.vector_store %arg4[%c0_10, %c1, %c0_11], %15 {strides = array<i32>} : memref<1x2x4xf32, #tpu.memory_space<vmem>>, vector<1x1x4xf32>,
    return
  }
  func.func @transform_0(%arg0: i32) -> (i32, i32) {
    %c0_i32 = arith.constant 0 : i32
    %c0_i32_0 = arith.constant 0 : i32
    return %arg0, %c0_i32 : i32, i32
  }
  func.func @transform_1(%arg0: i32) -> (i32, i32) {
    %c0_i32 = arith.constant 0 : i32
    %c0_i32_0 = arith.constant 0 : i32
    %c0_i32_1 = arith.constant 0 : i32
    return %c0_i32, %c0_i32_0 : i32, i32
  }
  func.func @transform_2(%arg0: i32) -> (i32, i32) {
    %c0_i32 = arith.constant 0 : i32
    %c0_i32_0 = arith.constant 0 : i32
    return %arg0, %c0_i32 : i32, i32
  }
  func.func @transform_3(%arg0: i32) -> (i32, i32, i32) {
    %c0_i32 = arith.constant 0 : i32
    %c0_i32_0 = arith.constant 0 : i32
    %c0_i32_1 = arith.constant 0 : i32
    return %arg0, %c0_i32, %c0_i32_0 : i32, i32, i32
  }
}

module attributes {stable_mosaic.version = 11 : i64} {
  func.func @conv3_kernel(%arg0: i32, %arg1: memref<256x4xbf16, #tpu.memory_space<vmem>>, %arg2: memref<2x4xf32, #tpu.memory_space<vmem>>, %arg3: memref<4x16xbf16, #tpu.memory_space<vmem>>, %arg4: memref<256x16xbf16, #tpu.memory_space<vmem>>, %arg5: memref<1x2x16xf32, #tpu.memory_space<vmem>>) attributes {dimension_semantics = [#tpu.dimension_semantics<parallel>], iteration_bounds = array<i64: 2>, scalar_prefetch = 0 : i64, scratch_operands = 0 : i64, tpu.core_type = #tpu.core_type<tc>, window_params = [{transform_indices = @transform_0, window_bounds = array<i64: 256, 4>}, {pipeline_mode = #tpu.pipeline_mode<synchronous>, transform_indices = @transform_1, window_bounds = array<i64: 2, 4>}, {pipeline_mode = #tpu.pipeline_mode<synchronous>, transform_indices = @transform_2, window_bounds = array<i64: 4, 16>}, {transform_indices = @transform_3, window_bounds = array<i64: 256, 16>}, {transform_indices = @transform_4, window_bounds = array<i64: 1, 2, 16>}]} {
    %c0 = arith.constant 0 : index
    %c0_0 = arith.constant 0 : index
    %0 = vector.load %arg1[%c0, %c0_0] : memref<256x4xbf16, #tpu.memory_space<vmem>>, vector<256x4xbf16>
    %1 = arith.extf %0 : vector<256x4xbf16> to vector<256x4xf32>
    %c0_1 = arith.constant 0 : index
    %c0_2 = arith.constant 0 : index
    %2 = vector.load %arg2[%c0_1, %c0_2] : memref<2x4xf32, #tpu.memory_space<vmem>>, vector<1x4xf32>
    %3 = vector.broadcast %2 : vector<1x4xf32> to vector<256x4xf32>
    %4 = arith.mulf %1, %3 : vector<256x4xf32>
    %c1 = arith.constant 1 : index
    %c0_3 = arith.constant 0 : index
    %5 = vector.load %arg2[%c1, %c0_3] : memref<2x4xf32, #tpu.memory_space<vmem>>, vector<1x4xf32>
    %6 = vector.broadcast %5 : vector<1x4xf32> to vector<256x4xf32>
    %7 = arith.addf %4, %6 : vector<256x4xf32>
    %cst = arith.constant 0.000000e+00 : f32
    %8 = vector.broadcast %cst : f32 to vector<256x4xf32>
    %9 = arith.maximumf %7, %8 : vector<256x4xf32>
    %10 = arith.truncf %9 : vector<256x4xf32> to vector<256x4xbf16>
    %c0_4 = arith.constant 0 : index
    %c0_5 = arith.constant 0 : index
    %11 = vector.load %arg3[%c0_4, %c0_5] : memref<4x16xbf16, #tpu.memory_space<vmem>>, vector<4x16xbf16>
    %cst_6 = arith.constant dense<0.000000e+00> : vector<256x16xf32>
    %12 = tpu.matmul %10, %11, %cst_6 {dimension_numbers = #tpu.dot_dimension_numbers<[1], [0], [0], [1], [0, 0, 1, 1], [], []>} : vector<256x4xbf16>, vector<4x16xbf16>, vector<256x16xf32> -> vector<256x16xf32>
    %13 = arith.truncf %12 : vector<256x16xf32> to vector<256x16xbf16>
    %c0_7 = arith.constant 0 : index
    %c0_8 = arith.constant 0 : index
    %14 = vector.load %arg4[%c0_7, %c0_8] : memref<256x16xbf16, #tpu.memory_space<vmem>>, vector<256x16xbf16>
    tpu.vector_store %arg4[%c0_7, %c0_8], %13 {strides = array<i32>} : memref<256x16xbf16, #tpu.memory_space<vmem>>, vector<256x16xbf16>,
    %cst_9 = arith.constant dense<0.000000e+00> : vector<16xf32>
    %15 = vector.multi_reduction <add>, %12, %cst_9 [0] : vector<256x16xf32> to vector<16xf32>
    %16 = vector.shape_cast %15 : vector<16xf32> to vector<1x16xf32>
    %c0_10 = arith.constant 0 : index
    %c0_11 = arith.constant 0 : index
    %c0_12 = arith.constant 0 : index
    %17 = vector.load %arg5[%c0_10, %c0_11, %c0_12] : memref<1x2x16xf32, #tpu.memory_space<vmem>>, vector<1x1x16xf32>
    %18 = vector.shape_cast %17 : vector<1x1x16xf32> to vector<1x16xf32>
    %19 = vector.shape_cast %16 : vector<1x16xf32> to vector<1x1x16xf32>
    tpu.vector_store %arg5[%c0_10, %c0_11, %c0_12], %19 {strides = array<i32>} : memref<1x2x16xf32, #tpu.memory_space<vmem>>, vector<1x1x16xf32>,
    %20 = arith.mulf %12, %12 : vector<256x16xf32>
    %cst_13 = arith.constant dense<0.000000e+00> : vector<16xf32>
    %21 = vector.multi_reduction <add>, %20, %cst_13 [0] : vector<256x16xf32> to vector<16xf32>
    %22 = vector.shape_cast %21 : vector<16xf32> to vector<1x16xf32>
    %c0_14 = arith.constant 0 : index
    %c1_15 = arith.constant 1 : index
    %c0_16 = arith.constant 0 : index
    %23 = vector.load %arg5[%c0_14, %c1_15, %c0_16] : memref<1x2x16xf32, #tpu.memory_space<vmem>>, vector<1x1x16xf32>
    %24 = vector.shape_cast %23 : vector<1x1x16xf32> to vector<1x16xf32>
    %25 = vector.shape_cast %22 : vector<1x16xf32> to vector<1x1x16xf32>
    tpu.vector_store %arg5[%c0_14, %c1_15, %c0_16], %25 {strides = array<i32>} : memref<1x2x16xf32, #tpu.memory_space<vmem>>, vector<1x1x16xf32>,
    return
  }
  func.func @transform_0(%arg0: i32) -> (i32, i32) {
    %c0_i32 = arith.constant 0 : i32
    %c0_i32_0 = arith.constant 0 : i32
    return %arg0, %c0_i32 : i32, i32
  }
  func.func @transform_1(%arg0: i32) -> (i32, i32) {
    %c0_i32 = arith.constant 0 : i32
    %c0_i32_0 = arith.constant 0 : i32
    %c0_i32_1 = arith.constant 0 : i32
    return %c0_i32, %c0_i32_0 : i32, i32
  }
  func.func @transform_2(%arg0: i32) -> (i32, i32) {
    %c0_i32 = arith.constant 0 : i32
    %c0_i32_0 = arith.constant 0 : i32
    %c0_i32_1 = arith.constant 0 : i32
    return %c0_i32, %c0_i32_0 : i32, i32
  }
  func.func @transform_3(%arg0: i32) -> (i32, i32) {
    %c0_i32 = arith.constant 0 : i32
    %c0_i32_0 = arith.constant 0 : i32
    return %arg0, %c0_i32 : i32, i32
  }
  func.func @transform_4(%arg0: i32) -> (i32, i32, i32) {
    %c0_i32 = arith.constant 0 : i32
    %c0_i32_0 = arith.constant 0 : i32
    %c0_i32_1 = arith.constant 0 : i32
    return %arg0, %c0_i32, %c0_i32_0 : i32, i32, i32
  }
}

module attributes {stable_mosaic.version = 11 : i64} {
  func.func @conv2_kernel(%arg0: i32, %arg1: memref<256x4xbf16, #tpu.memory_space<vmem>>, %arg2: memref<2x4xf32, #tpu.memory_space<vmem>>, %arg3: memref<9x4x4xbf16, #tpu.memory_space<vmem>>, %arg4: memref<256x4xbf16, #tpu.memory_space<vmem>>, %arg5: memref<1x2x4xf32, #tpu.memory_space<vmem>>, %arg6: memref<18x32x4xbf16, #tpu.memory_space<vmem>>) attributes {dimension_semantics = [#tpu.dimension_semantics<parallel>], iteration_bounds = array<i64: 2>, scalar_prefetch = 0 : i64, scratch_operands = 1 : i64, tpu.core_type = #tpu.core_type<tc>, window_params = [{transform_indices = @transform_0, window_bounds = array<i64: 256, 4>}, {pipeline_mode = #tpu.pipeline_mode<synchronous>, transform_indices = @transform_1, window_bounds = array<i64: 2, 4>}, {pipeline_mode = #tpu.pipeline_mode<synchronous>, transform_indices = @transform_2, window_bounds = array<i64: 9, 4, 4>}, {transform_indices = @transform_3, window_bounds = array<i64: 256, 4>}, {transform_indices = @transform_4, window_bounds = array<i64: 1, 2, 4>}]} {
    %cst = arith.constant 0.000000e+00 : bf16
    %0 = vector.broadcast %cst : bf16 to vector<18x8x4xbf16>
    %c0 = arith.constant 0 : index
    %c0_0 = arith.constant 0 : index
    %c0_1 = arith.constant 0 : index
    %1 = vector.load %arg6[%c0, %c0_0, %c0_1] : memref<18x32x4xbf16, #tpu.memory_space<vmem>>, vector<18x8x4xbf16>
    tpu.vector_store %arg6[%c0, %c0_0, %c0_1], %0 {strides = array<i32>} : memref<18x32x4xbf16, #tpu.memory_space<vmem>>, vector<18x8x4xbf16>,
    %cst_2 = arith.constant 0.000000e+00 : bf16
    %2 = vector.broadcast %cst_2 : bf16 to vector<18x8x4xbf16>
    %c0_3 = arith.constant 0 : index
    %c24 = arith.constant 24 : index
    %c0_4 = arith.constant 0 : index
    %3 = vector.load %arg6[%c0_3, %c24, %c0_4] : memref<18x32x4xbf16, #tpu.memory_space<vmem>>, vector<18x8x4xbf16>
    tpu.vector_store %arg6[%c0_3, %c24, %c0_4], %2 {strides = array<i32>} : memref<18x32x4xbf16, #tpu.memory_space<vmem>>, vector<18x8x4xbf16>,
    %cst_5 = arith.constant 0.000000e+00 : bf16
    %4 = vector.broadcast %cst_5 : bf16 to vector<1x16x4xbf16>
    %c0_6 = arith.constant 0 : index
    %c8 = arith.constant 8 : index
    %c0_7 = arith.constant 0 : index
    %5 = vector.load %arg6[%c0_6, %c8, %c0_7] : memref<18x32x4xbf16, #tpu.memory_space<vmem>>, vector<1x16x4xbf16>
    tpu.vector_store %arg6[%c0_6, %c8, %c0_7], %4 {strides = array<i32>} : memref<18x32x4xbf16, #tpu.memory_space<vmem>>, vector<1x16x4xbf16>,
    %cst_8 = arith.constant 0.000000e+00 : bf16
    %6 = vector.broadcast %cst_8 : bf16 to vector<1x16x4xbf16>
    %c17 = arith.constant 17 : index
    %c8_9 = arith.constant 8 : index
    %c0_10 = arith.constant 0 : index
    %7 = vector.load %arg6[%c17, %c8_9, %c0_10] : memref<18x32x4xbf16, #tpu.memory_space<vmem>>, vector<1x16x4xbf16>
    tpu.vector_store %arg6[%c17, %c8_9, %c0_10], %6 {strides = array<i32>} : memref<18x32x4xbf16, #tpu.memory_space<vmem>>, vector<1x16x4xbf16>,
    %c0_11 = arith.constant 0 : index
    %c0_12 = arith.constant 0 : index
    %8 = vector.load %arg1[%c0_11, %c0_12] : memref<256x4xbf16, #tpu.memory_space<vmem>>, vector<256x4xbf16>
    %9 = arith.extf %8 : vector<256x4xbf16> to vector<256x4xf32>
    %c0_13 = arith.constant 0 : index
    %c0_14 = arith.constant 0 : index
    %10 = vector.load %arg2[%c0_13, %c0_14] : memref<2x4xf32, #tpu.memory_space<vmem>>, vector<1x4xf32>
    %11 = vector.broadcast %10 : vector<1x4xf32> to vector<256x4xf32>
    %12 = arith.mulf %9, %11 : vector<256x4xf32>
    %c1 = arith.constant 1 : index
    %c0_15 = arith.constant 0 : index
    %13 = vector.load %arg2[%c1, %c0_15] : memref<2x4xf32, #tpu.memory_space<vmem>>, vector<1x4xf32>
    %14 = vector.broadcast %13 : vector<1x4xf32> to vector<256x4xf32>
    %15 = arith.addf %12, %14 : vector<256x4xf32>
    %cst_16 = arith.constant 0.000000e+00 : f32
    %16 = vector.broadcast %cst_16 : f32 to vector<256x4xf32>
    %17 = arith.maximumf %15, %16 : vector<256x4xf32>
    %18 = arith.truncf %17 : vector<256x4xf32> to vector<256x4xbf16>
    %19 = vector.shape_cast %18 : vector<256x4xbf16> to vector<16x16x4xbf16>
    %c1_17 = arith.constant 1 : index
    %c8_18 = arith.constant 8 : index
    %c0_19 = arith.constant 0 : index
    %20 = vector.load %arg6[%c1_17, %c8_18, %c0_19] : memref<18x32x4xbf16, #tpu.memory_space<vmem>>, vector<16x16x4xbf16>
    tpu.vector_store %arg6[%c1_17, %c8_18, %c0_19], %19 {strides = array<i32>} : memref<18x32x4xbf16, #tpu.memory_space<vmem>>, vector<16x16x4xbf16>,
    %c0_20 = arith.constant 0 : index
    %c0_21 = arith.constant 0 : index
    %c0_22 = arith.constant 0 : index
    %21 = vector.load %arg3[%c0_20, %c0_21, %c0_22] : memref<9x4x4xbf16, #tpu.memory_space<vmem>>, vector<9x4x4xbf16>
    %c0_23 = arith.constant 0 : index
    %c7 = arith.constant 7 : index
    %c0_24 = arith.constant 0 : index
    %22 = vector.load %arg6[%c0_23, %c7, %c0_24] : memref<18x32x4xbf16, #tpu.memory_space<vmem>>, vector<16x16x4xbf16>
    %23 = vector.shape_cast %22 : vector<16x16x4xbf16> to vector<256x4xbf16>
    %24 = vector.extract_strided_slice %21 {offsets = [0, 0, 0], sizes = [1, 4, 4], strides = [1, 1, 1]} : vector<9x4x4xbf16> to vector<1x4x4xbf16>
    %25 = vector.shape_cast %24 : vector<1x4x4xbf16> to vector<4x4xbf16>
    %cst_25 = arith.constant dense<0.000000e+00> : vector<256x4xf32>
    %26 = tpu.matmul %23, %25, %cst_25 {dimension_numbers = #tpu.dot_dimension_numbers<[1], [0], [0], [1], [0, 0, 1, 1], [], []>} : vector<256x4xbf16>, vector<4x4xbf16>, vector<256x4xf32> -> vector<256x4xf32>
    %c0_26 = arith.constant 0 : index
    %c8_27 = arith.constant 8 : index
    %c0_28 = arith.constant 0 : index
    %27 = vector.load %arg6[%c0_26, %c8_27, %c0_28] : memref<18x32x4xbf16, #tpu.memory_space<vmem>>, vector<16x16x4xbf16>
    %28 = vector.shape_cast %27 : vector<16x16x4xbf16> to vector<256x4xbf16>
    %29 = vector.extract_strided_slice %21 {offsets = [1, 0, 0], sizes = [1, 4, 4], strides = [1, 1, 1]} : vector<9x4x4xbf16> to vector<1x4x4xbf16>
    %30 = vector.shape_cast %29 : vector<1x4x4xbf16> to vector<4x4xbf16>
    %cst_29 = arith.constant dense<0.000000e+00> : vector<256x4xf32>
    %31 = tpu.matmul %28, %30, %cst_29 {dimension_numbers = #tpu.dot_dimension_numbers<[1], [0], [0], [1], [0, 0, 1, 1], [], []>} : vector<256x4xbf16>, vector<4x4xbf16>, vector<256x4xf32> -> vector<256x4xf32>
    %32 = arith.addf %26, %31 : vector<256x4xf32>
    %c0_30 = arith.constant 0 : index
    %c9 = arith.constant 9 : index
    %c0_31 = arith.constant 0 : index
    %33 = vector.load %arg6[%c0_30, %c9, %c0_31] : memref<18x32x4xbf16, #tpu.memory_space<vmem>>, vector<16x16x4xbf16>
    %34 = vector.shape_cast %33 : vector<16x16x4xbf16> to vector<256x4xbf16>
    %35 = vector.extract_strided_slice %21 {offsets = [2, 0, 0], sizes = [1, 4, 4], strides = [1, 1, 1]} : vector<9x4x4xbf16> to vector<1x4x4xbf16>
    %36 = vector.shape_cast %35 : vector<1x4x4xbf16> to vector<4x4xbf16>
    %cst_32 = arith.constant dense<0.000000e+00> : vector<256x4xf32>
    %37 = tpu.matmul %34, %36, %cst_32 {dimension_numbers = #tpu.dot_dimension_numbers<[1], [0], [0], [1], [0, 0, 1, 1], [], []>} : vector<256x4xbf16>, vector<4x4xbf16>, vector<256x4xf32> -> vector<256x4xf32>
    %38 = arith.addf %32, %37 : vector<256x4xf32>
    %c1_33 = arith.constant 1 : index
    %c7_34 = arith.constant 7 : index
    %c0_35 = arith.constant 0 : index
    %39 = vector.load %arg6[%c1_33, %c7_34, %c0_35] : memref<18x32x4xbf16, #tpu.memory_space<vmem>>, vector<16x16x4xbf16>
    %40 = vector.shape_cast %39 : vector<16x16x4xbf16> to vector<256x4xbf16>
    %41 = vector.extract_strided_slice %21 {offsets = [3, 0, 0], sizes = [1, 4, 4], strides = [1, 1, 1]} : vector<9x4x4xbf16> to vector<1x4x4xbf16>
    %42 = vector.shape_cast %41 : vector<1x4x4xbf16> to vector<4x4xbf16>
    %cst_36 = arith.constant dense<0.000000e+00> : vector<256x4xf32>
    %43 = tpu.matmul %40, %42, %cst_36 {dimension_numbers = #tpu.dot_dimension_numbers<[1], [0], [0], [1], [0, 0, 1, 1], [], []>} : vector<256x4xbf16>, vector<4x4xbf16>, vector<256x4xf32> -> vector<256x4xf32>
    %44 = arith.addf %38, %43 : vector<256x4xf32>
    %c1_37 = arith.constant 1 : index
    %c8_38 = arith.constant 8 : index
    %c0_39 = arith.constant 0 : index
    %45 = vector.load %arg6[%c1_37, %c8_38, %c0_39] : memref<18x32x4xbf16, #tpu.memory_space<vmem>>, vector<16x16x4xbf16>
    %46 = vector.shape_cast %45 : vector<16x16x4xbf16> to vector<256x4xbf16>
    %47 = vector.extract_strided_slice %21 {offsets = [4, 0, 0], sizes = [1, 4, 4], strides = [1, 1, 1]} : vector<9x4x4xbf16> to vector<1x4x4xbf16>
    %48 = vector.shape_cast %47 : vector<1x4x4xbf16> to vector<4x4xbf16>
    %cst_40 = arith.constant dense<0.000000e+00> : vector<256x4xf32>
    %49 = tpu.matmul %46, %48, %cst_40 {dimension_numbers = #tpu.dot_dimension_numbers<[1], [0], [0], [1], [0, 0, 1, 1], [], []>} : vector<256x4xbf16>, vector<4x4xbf16>, vector<256x4xf32> -> vector<256x4xf32>
    %50 = arith.addf %44, %49 : vector<256x4xf32>
    %c1_41 = arith.constant 1 : index
    %c9_42 = arith.constant 9 : index
    %c0_43 = arith.constant 0 : index
    %51 = vector.load %arg6[%c1_41, %c9_42, %c0_43] : memref<18x32x4xbf16, #tpu.memory_space<vmem>>, vector<16x16x4xbf16>
    %52 = vector.shape_cast %51 : vector<16x16x4xbf16> to vector<256x4xbf16>
    %53 = vector.extract_strided_slice %21 {offsets = [5, 0, 0], sizes = [1, 4, 4], strides = [1, 1, 1]} : vector<9x4x4xbf16> to vector<1x4x4xbf16>
    %54 = vector.shape_cast %53 : vector<1x4x4xbf16> to vector<4x4xbf16>
    %cst_44 = arith.constant dense<0.000000e+00> : vector<256x4xf32>
    %55 = tpu.matmul %52, %54, %cst_44 {dimension_numbers = #tpu.dot_dimension_numbers<[1], [0], [0], [1], [0, 0, 1, 1], [], []>} : vector<256x4xbf16>, vector<4x4xbf16>, vector<256x4xf32> -> vector<256x4xf32>
    %56 = arith.addf %50, %55 : vector<256x4xf32>
    %c2 = arith.constant 2 : index
    %c7_45 = arith.constant 7 : index
    %c0_46 = arith.constant 0 : index
    %57 = vector.load %arg6[%c2, %c7_45, %c0_46] : memref<18x32x4xbf16, #tpu.memory_space<vmem>>, vector<16x16x4xbf16>
    %58 = vector.shape_cast %57 : vector<16x16x4xbf16> to vector<256x4xbf16>
    %59 = vector.extract_strided_slice %21 {offsets = [6, 0, 0], sizes = [1, 4, 4], strides = [1, 1, 1]} : vector<9x4x4xbf16> to vector<1x4x4xbf16>
    %60 = vector.shape_cast %59 : vector<1x4x4xbf16> to vector<4x4xbf16>
    %cst_47 = arith.constant dense<0.000000e+00> : vector<256x4xf32>
    %61 = tpu.matmul %58, %60, %cst_47 {dimension_numbers = #tpu.dot_dimension_numbers<[1], [0], [0], [1], [0, 0, 1, 1], [], []>} : vector<256x4xbf16>, vector<4x4xbf16>, vector<256x4xf32> -> vector<256x4xf32>
    %62 = arith.addf %56, %61 : vector<256x4xf32>
    %c2_48 = arith.constant 2 : index
    %c8_49 = arith.constant 8 : index
    %c0_50 = arith.constant 0 : index
    %63 = vector.load %arg6[%c2_48, %c8_49, %c0_50] : memref<18x32x4xbf16, #tpu.memory_space<vmem>>, vector<16x16x4xbf16>
    %64 = vector.shape_cast %63 : vector<16x16x4xbf16> to vector<256x4xbf16>
    %65 = vector.extract_strided_slice %21 {offsets = [7, 0, 0], sizes = [1, 4, 4], strides = [1, 1, 1]} : vector<9x4x4xbf16> to vector<1x4x4xbf16>
    %66 = vector.shape_cast %65 : vector<1x4x4xbf16> to vector<4x4xbf16>
    %cst_51 = arith.constant dense<0.000000e+00> : vector<256x4xf32>
    %67 = tpu.matmul %64, %66, %cst_51 {dimension_numbers = #tpu.dot_dimension_numbers<[1], [0], [0], [1], [0, 0, 1, 1], [], []>} : vector<256x4xbf16>, vector<4x4xbf16>, vector<256x4xf32> -> vector<256x4xf32>
    %68 = arith.addf %62, %67 : vector<256x4xf32>
    %c2_52 = arith.constant 2 : index
    %c9_53 = arith.constant 9 : index
    %c0_54 = arith.constant 0 : index
    %69 = vector.load %arg6[%c2_52, %c9_53, %c0_54] : memref<18x32x4xbf16, #tpu.memory_space<vmem>>, vector<16x16x4xbf16>
    %70 = vector.shape_cast %69 : vector<16x16x4xbf16> to vector<256x4xbf16>
    %71 = vector.extract_strided_slice %21 {offsets = [8, 0, 0], sizes = [1, 4, 4], strides = [1, 1, 1]} : vector<9x4x4xbf16> to vector<1x4x4xbf16>
    %72 = vector.shape_cast %71 : vector<1x4x4xbf16> to vector<4x4xbf16>
    %cst_55 = arith.constant dense<0.000000e+00> : vector<256x4xf32>
    %73 = tpu.matmul %70, %72, %cst_55 {dimension_numbers = #tpu.dot_dimension_numbers<[1], [0], [0], [1], [0, 0, 1, 1], [], []>} : vector<256x4xbf16>, vector<4x4xbf16>, vector<256x4xf32> -> vector<256x4xf32>
    %74 = arith.addf %68, %73 : vector<256x4xf32>
    %75 = arith.truncf %74 : vector<256x4xf32> to vector<256x4xbf16>
    %c0_56 = arith.constant 0 : index
    %c0_57 = arith.constant 0 : index
    %76 = vector.load %arg4[%c0_56, %c0_57] : memref<256x4xbf16, #tpu.memory_space<vmem>>, vector<256x4xbf16>
    tpu.vector_store %arg4[%c0_56, %c0_57], %75 {strides = array<i32>} : memref<256x4xbf16, #tpu.memory_space<vmem>>, vector<256x4xbf16>,
    %cst_58 = arith.constant dense<0.000000e+00> : vector<4xf32>
    %77 = vector.multi_reduction <add>, %74, %cst_58 [0] : vector<256x4xf32> to vector<4xf32>
    %78 = vector.shape_cast %77 : vector<4xf32> to vector<1x4xf32>
    %c0_59 = arith.constant 0 : index
    %c0_60 = arith.constant 0 : index
    %c0_61 = arith.constant 0 : index
    %79 = vector.load %arg5[%c0_59, %c0_60, %c0_61] : memref<1x2x4xf32, #tpu.memory_space<vmem>>, vector<1x1x4xf32>
    %80 = vector.shape_cast %79 : vector<1x1x4xf32> to vector<1x4xf32>
    %81 = vector.shape_cast %78 : vector<1x4xf32> to vector<1x1x4xf32>
    tpu.vector_store %arg5[%c0_59, %c0_60, %c0_61], %81 {strides = array<i32>} : memref<1x2x4xf32, #tpu.memory_space<vmem>>, vector<1x1x4xf32>,
    %82 = arith.mulf %74, %74 : vector<256x4xf32>
    %cst_62 = arith.constant dense<0.000000e+00> : vector<4xf32>
    %83 = vector.multi_reduction <add>, %82, %cst_62 [0] : vector<256x4xf32> to vector<4xf32>
    %84 = vector.shape_cast %83 : vector<4xf32> to vector<1x4xf32>
    %c0_63 = arith.constant 0 : index
    %c1_64 = arith.constant 1 : index
    %c0_65 = arith.constant 0 : index
    %85 = vector.load %arg5[%c0_63, %c1_64, %c0_65] : memref<1x2x4xf32, #tpu.memory_space<vmem>>, vector<1x1x4xf32>
    %86 = vector.shape_cast %85 : vector<1x1x4xf32> to vector<1x4xf32>
    %87 = vector.shape_cast %84 : vector<1x4xf32> to vector<1x1x4xf32>
    tpu.vector_store %arg5[%c0_63, %c1_64, %c0_65], %87 {strides = array<i32>} : memref<1x2x4xf32, #tpu.memory_space<vmem>>, vector<1x1x4xf32>,
    return
  }
  func.func @transform_0(%arg0: i32) -> (i32, i32) {
    %c0_i32 = arith.constant 0 : i32
    %c0_i32_0 = arith.constant 0 : i32
    return %arg0, %c0_i32 : i32, i32
  }
  func.func @transform_1(%arg0: i32) -> (i32, i32) {
    %c0_i32 = arith.constant 0 : i32
    %c0_i32_0 = arith.constant 0 : i32
    %c0_i32_1 = arith.constant 0 : i32
    return %c0_i32, %c0_i32_0 : i32, i32
  }
  func.func @transform_2(%arg0: i32) -> (i32, i32, i32) {
    %c0_i32 = arith.constant 0 : i32
    %c0_i32_0 = arith.constant 0 : i32
    %c0_i32_1 = arith.constant 0 : i32
    %c0_i32_2 = arith.constant 0 : i32
    return %c0_i32, %c0_i32_0, %c0_i32_1 : i32, i32, i32
  }
  func.func @transform_3(%arg0: i32) -> (i32, i32) {
    %c0_i32 = arith.constant 0 : i32
    %c0_i32_0 = arith.constant 0 : i32
    return %arg0, %c0_i32 : i32, i32
  }
  func.func @transform_4(%arg0: i32) -> (i32, i32, i32) {
    %c0_i32 = arith.constant 0 : i32
    %c0_i32_0 = arith.constant 0 : i32
    %c0_i32_1 = arith.constant 0 : i32
    return %arg0, %c0_i32, %c0_i32_0 : i32, i32, i32
  }
}

module attributes {stable_mosaic.version = 11 : i64} {
  func.func @residual_kernel(%arg0: i32, %arg1: memref<256x16xbf16, #tpu.memory_space<vmem>>, %arg2: memref<2x16xf32, #tpu.memory_space<vmem>>, %arg3: memref<256x16xbf16, #tpu.memory_space<vmem>>, %arg4: memref<256x16xf32, #tpu.memory_space<vmem>>) attributes {dimension_semantics = [#tpu.dimension_semantics<parallel>], iteration_bounds = array<i64: 2>, scalar_prefetch = 0 : i64, scratch_operands = 0 : i64, tpu.core_type = #tpu.core_type<tc>, window_params = [{transform_indices = @transform_0, window_bounds = array<i64: 256, 16>}, {pipeline_mode = #tpu.pipeline_mode<synchronous>, transform_indices = @transform_1, window_bounds = array<i64: 2, 16>}, {transform_indices = @transform_2, window_bounds = array<i64: 256, 16>}, {transform_indices = @transform_3, window_bounds = array<i64: 256, 16>}]} {
    %c0 = arith.constant 0 : index
    %c0_0 = arith.constant 0 : index
    %0 = vector.load %arg1[%c0, %c0_0] : memref<256x16xbf16, #tpu.memory_space<vmem>>, vector<256x16xbf16>
    %1 = arith.extf %0 : vector<256x16xbf16> to vector<256x16xf32>
    %c0_1 = arith.constant 0 : index
    %c0_2 = arith.constant 0 : index
    %2 = vector.load %arg2[%c0_1, %c0_2] : memref<2x16xf32, #tpu.memory_space<vmem>>, vector<1x16xf32>
    %3 = vector.broadcast %2 : vector<1x16xf32> to vector<256x16xf32>
    %4 = arith.mulf %1, %3 : vector<256x16xf32>
    %c1 = arith.constant 1 : index
    %c0_3 = arith.constant 0 : index
    %5 = vector.load %arg2[%c1, %c0_3] : memref<2x16xf32, #tpu.memory_space<vmem>>, vector<1x16xf32>
    %6 = vector.broadcast %5 : vector<1x16xf32> to vector<256x16xf32>
    %7 = arith.addf %4, %6 : vector<256x16xf32>
    %c0_4 = arith.constant 0 : index
    %c0_5 = arith.constant 0 : index
    %8 = vector.load %arg3[%c0_4, %c0_5] : memref<256x16xbf16, #tpu.memory_space<vmem>>, vector<256x16xbf16>
    %9 = arith.extf %8 : vector<256x16xbf16> to vector<256x16xf32>
    %10 = arith.addf %7, %9 : vector<256x16xf32>
    %cst = arith.constant 0.000000e+00 : f32
    %11 = vector.broadcast %cst : f32 to vector<256x16xf32>
    %12 = arith.maximumf %10, %11 : vector<256x16xf32>
    %c0_6 = arith.constant 0 : index
    %c0_7 = arith.constant 0 : index
    %13 = vector.load %arg4[%c0_6, %c0_7] : memref<256x16xf32, #tpu.memory_space<vmem>>, vector<256x16xf32>
    tpu.vector_store %arg4[%c0_6, %c0_7], %12 {strides = array<i32>} : memref<256x16xf32, #tpu.memory_space<vmem>>, vector<256x16xf32>,
    return
  }
  func.func @transform_0(%arg0: i32) -> (i32, i32) {
    %c0_i32 = arith.constant 0 : i32
    %c0_i32_0 = arith.constant 0 : i32
    return %arg0, %c0_i32 : i32, i32
  }
  func.func @transform_1(%arg0: i32) -> (i32, i32) {
    %c0_i32 = arith.constant 0 : i32
    %c0_i32_0 = arith.constant 0 : i32
    %c0_i32_1 = arith.constant 0 : i32
    return %c0_i32, %c0_i32_0 : i32, i32
  }
  func.func @transform_2(%arg0: i32) -> (i32, i32) {
    %c0_i32 = arith.constant 0 : i32
    %c0_i32_0 = arith.constant 0 : i32
    return %arg0, %c0_i32 : i32, i32
  }
  func.func @transform_3(%arg0: i32) -> (i32, i32) {
    %c0_i32 = arith.constant 0 : i32
    %c0_i32_0 = arith.constant 0 : i32
    return %arg0, %c0_i32 : i32, i32
  }
}

</mosaic_0001>

<llo_original>
// kernel: bottleneck_pallas.4
$region0: #{bottleneck_pallas.4}
  #allocation0 [shape = 'u32[]', space=smem, size = 0x4, offset = 0x4, fixed_abs, tag = 'smem constant byte address 0x4 - core index']
  #allocation1 [shape = 'u32[144,128]{1,0:T(1,128)}', space=vmem, size = 0x12000, scoped, tag = 'internal scratch']
  %s0 = inlined_call_operand.vmem [shape: bf16[512,16], index: 0, kind: input, shape index: {}]
  %s1 = inlined_call_operand.vmem [shape: bf16[16,4], index: 1, kind: input, shape index: {}]
  %s2 = inlined_call_operand.vmem [shape: bf16[512,4], index: 2, kind: output, shape index: {0}]
  %s3 = inlined_call_operand.vmem [shape: f32[2,2,4], index: 3, kind: output, shape index: {1}]
  %4 = xla_tuple %s2, %s3
  %s5 = sld [smem:[#allocation0]]
  $region49: #{bottleneck_pallas.4} parent=0
    _
  %s7 = ssub.s32 1, %s5
  %s8 = scalar_select 0, %s7, %s5
  loop: start=0, step=1, limit=4
  $region2: #{bottleneck_pallas.4} parent=0 // loop_pre_header
    _
  $region3: #{bottleneck_pallas.4} parent=0 // loop_header
    %s10 = sphi 0, %s14
    %p11 = scmp.ge.s32.totalorder %s10, 4
    %s20 = sphi 0, %s22
    %s23 = sphi 0, %s20
    %s24 = sphi 0, %s23
    %s40 = sphi 0, %s24
    %s44 = sphi 0, %s44
    %s46 = sphi 0, %s44
    %s47 = sphi 0, %s46
    %s61 = sphi 0, %s47
    %s67 = sphi 0, %s69
    %s70 = sphi 0, %s67
    %s71 = sphi 0, %s70
    %s87 = sphi 0, %s71
    %s93 = sphi 0, %s95
    %s96 = sphi 0, %s93
    %s97 = sphi 0, %s96
    %s113 = sphi 0, %s97
  $region4: #{bottleneck_pallas.4} parent=0 // loop_header_branch
    %13 = sbr.rel (%p11) target = $region8
  $region5: #{bottleneck_pallas.4} parent=0 // loop_body
    %s15 = ssub.s32 %s10, 1
    %s16 = ssub.s32 %s10, 2
    %s17 = sadd.s32 %s10, 1
    %s18 = ssub.s32 %s10, %s17
    %p19 = scmp.eq.s32.totalorder %s18, 0
    %s21 = sadd.s32 %s20, 1
    %s22 = scalar_select %p19, %s20, %s21
    %p25 = pneg %p19
    %p26 = scmp.eq.s32.totalorder %s10, 1
    %p27 = por %p25, %p26
    %p28 = scmp.ne.s32.totalorder %s20, %s23
    %p29 = scmp.eq.s32.totalorder %s10, 0
    %p30 = por %p28, %p29
    %p31 = scmp.ne.s32.totalorder %s20, %s23
    %p32 = scmp.eq.s32.totalorder %s15, 1
    %p33 = por %p31, %p32
    %p34 = scmp.ne.s32.totalorder %s23, %s24
    %p35 = scmp.eq.s32.totalorder %s15, 0
    %p36 = por %p34, %p35
    %p37 = scmp.ne.s32.totalorder %s23, %s24
    %p38 = scmp.eq.s32.totalorder %s16, 1
    %p39 = por %p37, %p38
    %p41 = scmp.ne.s32.totalorder %s24, %s40
    %p42 = scmp.eq.s32.totalorder %s16, 0
    %p43 = por %p41, %p42
    %s45 = sadd.s32 %s44, 1
    %p48 = scmp.eq.s32.totalorder %s10, 1
    %p49 = scmp.ne.s32.totalorder %s44, %s46
    %p50 = scmp.eq.s32.totalorder %s10, 0
    %p51 = por %p49, %p50
    %p52 = scmp.ne.s32.totalorder %s44, %s46
    %p53 = scmp.eq.s32.totalorder %s15, 1
    %p54 = por %p52, %p53
    %p55 = scmp.ne.s32.totalorder %s46, %s47
    %p56 = scmp.eq.s32.totalorder %s15, 0
    %p57 = por %p55, %p56
    %p58 = scmp.ne.s32.totalorder %s46, %s47
    %p59 = scmp.eq.s32.totalorder %s16, 1
    %p60 = por %p58, %p59
    %p62 = scmp.ne.s32.totalorder %s47, %s61
    %p63 = scmp.eq.s32.totalorder %s16, 0
    %p64 = por %p62, %p63
    %s65 = ssub.s32 %s10, %s17
    %p66 = scmp.eq.s32.totalorder %s65, 0
    %s68 = sadd.s32 %s67, 1
    %s69 = scalar_select %p66, %s67, %s68
    %p72 = pneg %p66
    %p73 = scmp.eq.s32.totalorder %s10, 1
    %p74 = por %p72, %p73
    %p75 = scmp.ne.s32.totalorder %s67, %s70
    %p76 = scmp.eq.s32.totalorder %s10, 0
    %p77 = por %p75, %p76
    %p78 = scmp.ne.s32.totalorder %s67, %s70
    %p79 = scmp.eq.s32.totalorder %s15, 1
    %p80 = por %p78, %p79
    %p81 = scmp.ne.s32.totalorder %s70, %s71
    %p82 = scmp.eq.s32.totalorder %s15, 0
    %p83 = por %p81, %p82
    %p84 = scmp.ne.s32.totalorder %s70, %s71
    %p85 = scmp.eq.s32.totalorder %s16, 1
    %p86 = por %p84, %p85
    %p88 = scmp.ne.s32.totalorder %s71, %s87
    %p89 = scmp.eq.s32.totalorder %s16, 0
    %p90 = por %p88, %p89
    %s91 = ssub.s32 %s10, %s17
    %p92 = scmp.eq.s32.totalorder %s91, 0
    %s94 = sadd.s32 %s93, 1
    %s95 = scalar_select %p92, %s93, %s94
    %p98 = pneg %p92
    %p99 = scmp.eq.s32.totalorder %s10, 1
    %p100 = por %p98, %p99
    %p101 = scmp.ne.s32.totalorder %s93, %s96
    %p102 = scmp.eq.s32.totalorder %s10, 0
    %p103 = por %p101, %p102
    %p104 = scmp.ne.s32.totalorder %s93, %s96
    %p105 = scmp.eq.s32.totalorder %s15, 1
    %p106 = por %p104, %p105
    %p107 = scmp.ne.s32.totalorder %s96, %s97
    %p108 = scmp.eq.s32.totalorder %s15, 0
    %p109 = por %p107, %p108
    %p110 = scmp.ne.s32.totalorder %s96, %s97
    %p111 = scmp.eq.s32.totalorder %s16, 1
    %p112 = por %p110, %p111
    %p114 = scmp.ne.s32.totalorder %s97, %s113
    %p115 = scmp.eq.s32.totalorder %s16, 0
    %p116 = por %p114, %p115
    %p117 = scmp.le.s32.totalorder 1, %s10
    %p118 = scmp.lt.s32.totalorder %s10, 3
    %p119 = pnand %p117, %p118
    %p120 = pneg %p119
    // Predicated region
    $region9: #{bottleneck_pallas.4} parent=5 // pred_check
      _
    $region10: #{bottleneck_pallas.4} parent=5 // pred_check_branch
      %122 = sbr.rel (%p119) target = $region12
    $region11: #{bottleneck_pallas.4} parent=5 // pred_region
      %s123 = ssub.s32 %s10, 1
      // Predicated region
      $region13: #{bottleneck_pallas.4} parent=11 // pred_check
        %p124 = pneg %p57
      $region14: #{bottleneck_pallas.4} parent=11 // pred_check_branch
        %126 = sbr.rel (%p124) target = $region16
      $region15: #{bottleneck_pallas.4} parent=11 // pred_region
        _
      $region16: #{bottleneck_pallas.4} parent=11 // pred_fallthru
        _
    $region12: #{bottleneck_pallas.4} parent=5 // pred_fallthru
      _
    %p127 = scmp.lt.s32.totalorder %s10, 2
    // Predicated region
    $region17: #{bottleneck_pallas.4} parent=5 // pred_check
      %p128 = pneg %p127
    $region18: #{bottleneck_pallas.4} parent=5 // pred_check_branch
      %130 = sbr.rel (%p128) target = $region20
    $region19: #{bottleneck_pallas.4} parent=5 // pred_region
      // Predicated region
      $region21: #{bottleneck_pallas.4} parent=19 // pred_check
        %p131 = pneg %p30
      $region22: #{bottleneck_pallas.4} parent=19 // pred_check_branch
        %133 = sbr.rel (%p131) target = $region24
      $region23: #{bottleneck_pallas.4} parent=19 // pred_region
        %s134 = smul.u32 32, %s10
        %p135 = scmp.lt.s32.totalorder %s134, 63
        %s136 = scalar_select %p135, %s134, 63
        %s137 = smul.addr %s136, 4
        %s138 = scalar_lea.vmem %s0, %s137
        %s139 = smul.u32 32, %s10
      $region24: #{bottleneck_pallas.4} parent=19 // pred_fallthru
        _
    $region20: #{bottleneck_pallas.4} parent=5 // pred_fallthru
      _
    %p140 = scmp.le.s32.totalorder 1, %s10
    %p141 = scmp.lt.s32.totalorder %s10, 3
    %p142 = pnand %p140, %p141
    %p143 = pneg %p142
    // Predicated region
    $region25: #{bottleneck_pallas.4} parent=5 // pred_check
      _
    $region26: #{bottleneck_pallas.4} parent=5 // pred_check_branch
      %145 = sbr.rel (%p142) target = $region28
    $region27: #{bottleneck_pallas.4} parent=5 // pred_region
      %s146 = ssub.s32 %s10, 1
      %s147 = smul.u32 32, %s15
      %p148 = scmp.lt.s32.totalorder %s147, 63
      %s149 = scalar_select %p148, %s147, 63
      %s150 = smul.addr %s149, 4
      %s151 = scalar_lea.vmem %s0, %s150
      %p152 = pneg %p36
      %p153 = pneg %p33
      %p154 = pneg %p57
      %p155 = pneg %p54
      %p156 = pneg %p83
      %p157 = pneg %p80
      %s158 = smul.u32 32, %s15
      %p159 = scmp.lt.s32.totalorder %s158, 63
      %s160 = scalar_select %p159, %s158, 63
      %s161 = smul.addr %s160, 4
      %s162 = scalar_lea.vmem %s2, %s161
      %p163 = pneg %p109
      %p164 = pneg %p106
      %p165 = scmp.lt.s32.totalorder %s15, 1
      %s166 = scalar_select %p165, %s15, 1
      %s167 = smul.addr %s166, 2
      %s168 = scalar_lea.vmem %s3, %s167
      %s169 = smul.u32 32, %s15
      %p170 = scmp.lt.s32.totalorder %s169, 63
      %s171 = scalar_select %p170, %s169, 63
      %s172 = smul.addr %s171, 4
      %s173 = scalar_lea.vmem %s0, %s172
      %s174 = smul.u32 32, %s15
      %s175 = smul.u32 32, %s15
      %p176 = scmp.lt.s32.totalorder %s175, 63
      %s177 = scalar_select %p176, %s175, 63
      %s178 = smul.addr %s177, 4
      %s179 = scalar_lea.vmem %s2, %s178
      %s180 = smul.u32 32, %s15
      %p181 = scmp.lt.s32.totalorder %s15, 1
      %s182 = scalar_select %p181, %s15, 1
      %s183 = smul.addr %s182, 2
      %s184 = scalar_lea.vmem %s3, %s183
      %v186 = vld [vmem:[%s173] sm:$0xf]
      %v187 = vld [vmem:[%s173 + $0x4] sm:$0xf]
      %v188 = vld [vmem:[%s173 + $0x8] sm:$0xf]
      %v189 = vld [vmem:[%s173 + $0xc] sm:$0xf]
      %v190 = vld [vmem:[%s173 + $0x10] sm:$0xf]
      %v191 = vld [vmem:[%s173 + $0x14] sm:$0xf]
      %v192 = vld [vmem:[%s173 + $0x18] sm:$0xf]
      %v193 = vld [vmem:[%s173 + $0x1c] sm:$0xf]
      %v194 = vld [vmem:[%s173 + $0x20] sm:$0xf]
      %v195 = vld [vmem:[%s173 + $0x24] sm:$0xf]
      %v196 = vld [vmem:[%s173 + $0x28] sm:$0xf]
      %v197 = vld [vmem:[%s173 + $0x2c] sm:$0xf]
      %v198 = vld [vmem:[%s173 + $0x30] sm:$0xf]
      %v199 = vld [vmem:[%s173 + $0x34] sm:$0xf]
      %v200 = vld [vmem:[%s173 + $0x38] sm:$0xf]
      %v201 = vld [vmem:[%s173 + $0x3c] sm:$0xf]
      %v202 = vld [vmem:[%s173 + $0x40] sm:$0xf]
      %v203 = vld [vmem:[%s173 + $0x44] sm:$0xf]
      %v204 = vld [vmem:[%s173 + $0x48] sm:$0xf]
      %v205 = vld [vmem:[%s173 + $0x4c] sm:$0xf]
      %v206 = vld [vmem:[%s173 + $0x50] sm:$0xf]
      %v207 = vld [vmem:[%s173 + $0x54] sm:$0xf]
      %v208 = vld [vmem:[%s173 + $0x58] sm:$0xf]
      %v209 = vld [vmem:[%s173 + $0x5c] sm:$0xf]
      %v210 = vld [vmem:[%s173 + $0x60] sm:$0xf]
      %v211 = vld [vmem:[%s173 + $0x64] sm:$0xf]
      %v212 = vld [vmem:[%s173 + $0x68] sm:$0xf]
      %v213 = vld [vmem:[%s173 + $0x6c] sm:$0xf]
      %v214 = vld [vmem:[%s173 + $0x70] sm:$0xf]
      %v215 = vld [vmem:[%s173 + $0x74] sm:$0xf]
      %v216 = vld [vmem:[%s173 + $0x78] sm:$0xf]
      %v217 = vld [vmem:[%s173 + $0x7c] sm:$0xf]
      %v218 = vld [vmem:[%s1] sm:$0xf]
      %v219 = vld [vmem:[%s1 + $0x4] sm:$0xf]
      %v252 = vunpack.c.l.b16 %v186
      %v253 = vunpack.c.l.b16 %v187
      %v254 = vunpack.c.l.b16 %v188
      %v255 = vunpack.c.l.b16 %v189
      %v256 = vunpack.c.l.b16 %v190
      %v257 = vunpack.c.l.b16 %v191
      %v258 = vunpack.c.l.b16 %v192
      %v259 = vunpack.c.l.b16 %v193
      %v260 = vunpack.c.l.b16 %v194
      %v261 = vunpack.c.l.b16 %v195
      %v262 = vunpack.c.l.b16 %v196
      %v263 = vunpack.c.l.b16 %v197
      %v264 = vunpack.c.l.b16 %v198
      %v265 = vunpack.c.l.b16 %v199
      %v266 = vunpack.c.l.b16 %v200
      %v267 = vunpack.c.l.b16 %v201
      %v268 = vunpack.c.l.b16 %v202
      %v269 = vunpack.c.l.b16 %v203
      %v270 = vunpack.c.l.b16 %v204
      %v271 = vunpack.c.l.b16 %v205
      %v272 = vunpack.c.l.b16 %v206
      %v273 = vunpack.c.l.b16 %v207
      %v274 = vunpack.c.l.b16 %v208
      %v275 = vunpack.c.l.b16 %v209
      %v276 = vunpack.c.l.b16 %v210
      %v277 = vunpack.c.l.b16 %v211
      %v278 = vunpack.c.l.b16 %v212
      %v279 = vunpack.c.l.b16 %v213
      %v280 = vunpack.c.l.b16 %v214
      %v281 = vunpack.c.l.b16 %v215
      %v282 = vunpack.c.l.b16 %v216
      %v283 = vunpack.c.l.b16 %v217
      %v284 = vpack.c.b16 %v253, %v252
      %v285 = vpack.c.b16 %v255, %v254
      %v286 = vpack.c.b16 %v257, %v256
      %v287 = vpack.c.b16 %v259, %v258
      %v288 = vpack.c.b16 %v261, %v260
      %v289 = vpack.c.b16 %v263, %v262
      %v290 = vpack.c.b16 %v265, %v264
      %v291 = vpack.c.b16 %v267, %v266
      %v292 = vpack.c.b16 %v269, %v268
      %v293 = vpack.c.b16 %v271, %v270
      %v294 = vpack.c.b16 %v273, %v272
      %v295 = vpack.c.b16 %v275, %v274
      %v296 = vpack.c.b16 %v277, %v276
      %v297 = vpack.c.b16 %v279, %v278
      %v298 = vpack.c.b16 %v281, %v280
      %v299 = vpack.c.b16 %v283, %v282
      %v302 = vunpack.c.l.b16 %v218
      %v303 = vunpack.c.l.b16 %v219
      %v304 = vpack.c.b16 %v303, %v302
      %vm306 = vcmask 130048
      %v308 = vsel %vm306, %v284, 0
      %v311 = vsel %vm306, %v285, 0
      %v314 = vsel %vm306, %v286, 0
      %v317 = vsel %vm306, %v287, 0
      %v320 = vsel %vm306, %v288, 0
      %v323 = vsel %vm306, %v289, 0
      %v326 = vsel %vm306, %v290, 0
      %v329 = vsel %vm306, %v291, 0
      %v332 = vsel %vm306, %v292, 0
      %v335 = vsel %vm306, %v293, 0
      %v338 = vsel %vm306, %v294, 0
      %v341 = vsel %vm306, %v295, 0
      %v344 = vsel %vm306, %v296, 0
      %v347 = vsel %vm306, %v297, 0
      %v350 = vsel %vm306, %v298, 0
      %v353 = vsel %vm306, %v299, 0
      %355 = vmatprep.subr.bf16.mxu0 0
      %356 = vmatpush1.bf16.msra.mxu0 %v304
      %357 = vmatprep.subr.bf16.mxu0 0
      %358 = vmatpush1.bf16.msra.mxu0 0
      %359 = vmatprep.subr.bf16.mxu0 0
      %360 = vmatpush1.bf16.msra.mxu0 0
      %361 = vmatprep.subr.bf16.mxu0 0
      %362 = vmatpush1.bf16.msra.mxu0 0
      %363 = vmatprep.subr.bf16.mxu0 0
      %364 = vmatpush1.bf16.msra.mxu0 0
      %365 = vmatprep.subr.bf16.mxu0 0
      %366 = vmatpush1.bf16.msra.mxu0 0
      %367 = vmatprep.subr.bf16.mxu0 0
      %368 = vmatpush1.bf16.msra.mxu0 0
      %369 = vmatprep.subr.bf16.mxu0 0
      %370 = vmatpush1.bf16.msra.mxu0 0
      %371 = vmatprep.subr.bf16.mxu0 0
      %372 = vmatpush1.bf16.msra.mxu0 0
      %373 = vmatprep.subr.bf16.mxu0 0
      %374 = vmatpush1.bf16.msra.mxu0 0
      %375 = vmatprep.subr.bf16.mxu0 0
      %376 = vmatpush1.bf16.msra.mxu0 0
      %377 = vmatprep.subr.bf16.mxu0 0
      %378 = vmatpush1.bf16.msra.mxu0 0
      %379 = vmatprep.subr.bf16.mxu0 0
      %380 = vmatpush1.bf16.msra.mxu0 0
      %381 = vmatprep.subr.bf16.mxu0 0
      %382 = vmatpush1.bf16.msra.mxu0 0
      %383 = vmatprep.subr.bf16.mxu0 0
      %384 = vmatpush1.bf16.msra.mxu0 0
      %385 = vmatprep.subr.bf16.mxu0 0
      %386 = vmatpush1.bf16.msra.mxu0 0
      %387 = vmatprep.mubr.bf16.mxu0 0
      %388 = vmatmul.mubr.bf16.gmra.mrb[0].mxu0 %v308
      %v389 = vpop.f32.mrb[0].mxu0
      %v390 = vadd.f32 0.0, %v389
      %v391 = vpop.f32.mrb[0].mxu0
      %v392 = vpop.f32.mrb[0].mxu0
      %v393 = vadd.f32 0.0, %v392
      %v394 = vpop.f32.mrb[0].mxu0
      %395 = vmatprep.mubr.bf16.mxu0 0
      %396 = vmatmul.mubr.bf16.gmra.mrb[0].mxu0 %v311
      %v397 = vpop.f32.mrb[0].mxu0
      %v398 = vadd.f32 0.0, %v397
      %v399 = vpop.f32.mrb[0].mxu0
      %v400 = vpop.f32.mrb[0].mxu0
      %v401 = vadd.f32 0.0, %v400
      %v402 = vpop.f32.mrb[0].mxu0
      %403 = vmatprep.mubr.bf16.mxu0 0
      %404 = vmatmul.mubr.bf16.gmra.mrb[0].mxu0 %v314
      %v405 = vpop.f32.mrb[0].mxu0
      %v406 = vadd.f32 0.0, %v405
      %v407 = vpop.f32.mrb[0].mxu0
      %v408 = vpop.f32.mrb[0].mxu0
      %v409 = vadd.f32 0.0, %v408
      %v410 = vpop.f32.mrb[0].mxu0
      %411 = vmatprep.mubr.bf16.mxu0 0
      %412 = vmatmul.mubr.bf16.gmra.mrb[0].mxu0 %v317
      %v413 = vpop.f32.mrb[0].mxu0
      %v414 = vadd.f32 0.0, %v413
      %v415 = vpop.f32.mrb[0].mxu0
      %v416 = vpop.f32.mrb[0].mxu0
      %v417 = vadd.f32 0.0, %v416
      %v418 = vpop.f32.mrb[0].mxu0
      %419 = vmatprep.mubr.bf16.mxu0 0
      %420 = vmatmul.mubr.bf16.gmra.mrb[0].mxu0 %v320
      %v421 = vpop.f32.mrb[0].mxu0
      %v422 = vadd.f32 0.0, %v421
      %v423 = vpop.f32.mrb[0].mxu0
      %v424 = vpop.f32.mrb[0].mxu0
      %v425 = vadd.f32 0.0, %v424
      %v426 = vpop.f32.mrb[0].mxu0
      %427 = vmatprep.mubr.bf16.mxu0 0
      %428 = vmatmul.mubr.bf16.gmra.mrb[0].mxu0 %v323
      %v429 = vpop.f32.mrb[0].mxu0
      %v430 = vadd.f32 0.0, %v429
      %v431 = vpop.f32.mrb[0].mxu0
      %v432 = vpop.f32.mrb[0].mxu0
      %v433 = vadd.f32 0.0, %v432
      %v434 = vpop.f32.mrb[0].mxu0
      %435 = vmatprep.mubr.bf16.mxu0 0
      %436 = vmatmul.mubr.bf16.gmra.mrb[0].mxu0 %v326
      %v437 = vpop.f32.mrb[0].mxu0
      %v438 = vadd.f32 0.0, %v437
      %v439 = vpop.f32.mrb[0].mxu0
      %v440 = vpop.f32.mrb[0].mxu0
      %v441 = vadd.f32 0.0, %v440
      %v442 = vpop.f32.mrb[0].mxu0
      %443 = vmatprep.mubr.bf16.mxu0 0
      %444 = vmatmul.mubr.bf16.gmra.mrb[0].mxu0 %v329
      %v445 = vpop.f32.mrb[0].mxu0
      %v446 = vadd.f32 0.0, %v445
      %v447 = vpop.f32.mrb[0].mxu0
      %v448 = vpop.f32.mrb[0].mxu0
      %v449 = vadd.f32 0.0, %v448
      %v450 = vpop.f32.mrb[0].mxu0
      %451 = vmatprep.mubr.bf16.mxu0 0
      %452 = vmatmul.mubr.bf16.gmra.mrb[0].mxu0 %v332
      %v453 = vpop.f32.mrb[0].mxu0
      %v454 = vadd.f32 0.0, %v453
      %v455 = vpop.f32.mrb[0].mxu0
      %v456 = vpop.f32.mrb[0].mxu0
      %v457 = vadd.f32 0.0, %v456
      %v458 = vpop.f32.mrb[0].mxu0
      %459 = vmatprep.mubr.bf16.mxu0 0
      %460 = vmatmul.mubr.bf16.gmra.mrb[0].mxu0 %v335
      %v461 = vpop.f32.mrb[0].mxu0
      %v462 = vadd.f32 0.0, %v461
      %v463 = vpop.f32.mrb[0].mxu0
      %v464 = vpop.f32.mrb[0].mxu0
      %v465 = vadd.f32 0.0, %v464
      %v466 = vpop.f32.mrb[0].mxu0
      %467 = vmatprep.mubr.bf16.mxu0 0
      %468 = vmatmul.mubr.bf16.gmra.mrb[0].mxu0 %v338
      %v469 = vpop.f32.mrb[0].mxu0
      %v470 = vadd.f32 0.0, %v469
      %v471 = vpop.f32.mrb[0].mxu0
      %v472 = vpop.f32.mrb[0].mxu0
      %v473 = vadd.f32 0.0, %v472
      %v474 = vpop.f32.mrb[0].mxu0
      %475 = vmatprep.mubr.bf16.mxu0 0
      %476 = vmatmul.mubr.bf16.gmra.mrb[0].mxu0 %v341
      %v477 = vpop.f32.mrb[0].mxu0
      %v478 = vadd.f32 0.0, %v477
      %v479 = vpop.f32.mrb[0].mxu0
      %v480 = vpop.f32.mrb[0].mxu0
      %v481 = vadd.f32 0.0, %v480
      %v482 = vpop.f32.mrb[0].mxu0
      %483 = vmatprep.mubr.bf16.mxu0 0
      %484 = vmatmul.mubr.bf16.gmra.mrb[0].mxu0 %v344
      %v485 = vpop.f32.mrb[0].mxu0
      %v486 = vadd.f32 0.0, %v485
      %v487 = vpop.f32.mrb[0].mxu0
      %v488 = vpop.f32.mrb[0].mxu0
      %v489 = vadd.f32 0.0, %v488
      %v490 = vpop.f32.mrb[0].mxu0
      %491 = vmatprep.mubr.bf16.mxu0 0
      %492 = vmatmul.mubr.bf16.gmra.mrb[0].mxu0 %v347
      %v493 = vpop.f32.mrb[0].mxu0
      %v494 = vadd.f32 0.0, %v493
      %v495 = vpop.f32.mrb[0].mxu0
      %v496 = vpop.f32.mrb[0].mxu0
      %v497 = vadd.f32 0.0, %v496
      %v498 = vpop.f32.mrb[0].mxu0
      %499 = vmatprep.mubr.bf16.mxu0 0
      %500 = vmatmul.mubr.bf16.gmra.mrb[0].mxu0 %v350
      %v501 = vpop.f32.mrb[0].mxu0
      %v502 = vadd.f32 0.0, %v501
      %v503 = vpop.f32.mrb[0].mxu0
      %v504 = vpop.f32.mrb[0].mxu0
      %v505 = vadd.f32 0.0, %v504
      %v506 = vpop.f32.mrb[0].mxu0
      %507 = vmatprep.mubr.bf16.mxu0 0
      %508 = vmatmul.mubr.bf16.gmra.mrb[0].mxu0 %v353
      %v509 = vpop.f32.mrb[0].mxu0
      %v510 = vadd.f32 0.0, %v509
      %v511 = vpop.f32.mrb[0].mxu0
      %v512 = vpop.f32.mrb[0].mxu0
      %v513 = vadd.f32 0.0, %v512
      %v514 = vpop.f32.mrb[0].mxu0
      %515 = vdwg.mxu0
      %v516 = vpack.c.bf16 %v393, %v390
      %v517 = vpack.c.bf16 %v401, %v398
      %v518 = vpack.c.bf16 %v409, %v406
      %v519 = vpack.c.bf16 %v417, %v414
      %v520 = vpack.c.bf16 %v425, %v422
      %v521 = vpack.c.bf16 %v433, %v430
      %v522 = vpack.c.bf16 %v441, %v438
      %v523 = vpack.c.bf16 %v449, %v446
      %v524 = vpack.c.bf16 %v457, %v454
      %v525 = vpack.c.bf16 %v465, %v462
      %v526 = vpack.c.bf16 %v473, %v470
      %v527 = vpack.c.bf16 %v481, %v478
      %v528 = vpack.c.bf16 %v489, %v486
      %v529 = vpack.c.bf16 %v497, %v494
      %v530 = vpack.c.bf16 %v505, %v502
      %v531 = vpack.c.bf16 %v513, %v510
      %v548 = vunpack.c.l.b16 %v516
      %v549 = vunpack.c.h.b16 %v516
      %v550 = vunpack.c.l.b16 %v517
      %v551 = vunpack.c.h.b16 %v517
      %v552 = vunpack.c.l.b16 %v518
      %v553 = vunpack.c.h.b16 %v518
      %v554 = vunpack.c.l.b16 %v519
      %v555 = vunpack.c.h.b16 %v519
      %v556 = vunpack.c.l.b16 %v520
      %v557 = vunpack.c.h.b16 %v520
      %v558 = vunpack.c.l.b16 %v521
      %v559 = vunpack.c.h.b16 %v521
      %v560 = vunpack.c.l.b16 %v522
      %v561 = vunpack.c.h.b16 %v522
      %v562 = vunpack.c.l.b16 %v523
      %v563 = vunpack.c.h.b16 %v523
      %v564 = vunpack.c.l.b16 %v524
      %v565 = vunpack.c.h.b16 %v524
      %v566 = vunpack.c.l.b16 %v525
      %v567 = vunpack.c.h.b16 %v525
      %v568 = vunpack.c.l.b16 %v526
      %v569 = vunpack.c.h.b16 %v526
      %v570 = vunpack.c.l.b16 %v527
      %v571 = vunpack.c.h.b16 %v527
      %v572 = vunpack.c.l.b16 %v528
      %v573 = vunpack.c.h.b16 %v528
      %v574 = vunpack.c.l.b16 %v529
      %v575 = vunpack.c.h.b16 %v529
      %v576 = vunpack.c.l.b16 %v530
      %v577 = vunpack.c.h.b16 %v530
      %v578 = vunpack.c.l.b16 %v531
      %v579 = vunpack.c.h.b16 %v531
      %v580 = vpack.c.b16 %v548, %v548
      %v581 = vpack.c.b16 %v549, %v549
      %v582 = vpack.c.b16 %v550, %v550
      %v583 = vpack.c.b16 %v551, %v551
      %v584 = vpack.c.b16 %v552, %v552
      %v585 = vpack.c.b16 %v553, %v553
      %v586 = vpack.c.b16 %v554, %v554
      %v587 = vpack.c.b16 %v555, %v555
      %v588 = vpack.c.b16 %v556, %v556
      %v589 = vpack.c.b16 %v557, %v557
      %v590 = vpack.c.b16 %v558, %v558
      %v591 = vpack.c.b16 %v559, %v559
      %v592 = vpack.c.b16 %v560, %v560
      %v593 = vpack.c.b16 %v561, %v561
      %v594 = vpack.c.b16 %v562, %v562
      %v595 = vpack.c.b16 %v563, %v563
      %v596 = vpack.c.b16 %v564, %v564
      %v597 = vpack.c.b16 %v565, %v565
      %v598 = vpack.c.b16 %v566, %v566
      %v599 = vpack.c.b16 %v567, %v567
      %v600 = vpack.c.b16 %v568, %v568
      %v601 = vpack.c.b16 %v569, %v569
      %v602 = vpack.c.b16 %v570, %v570
      %v603 = vpack.c.b16 %v571, %v571
      %v604 = vpack.c.b16 %v572, %v572
      %v605 = vpack.c.b16 %v573, %v573
      %v606 = vpack.c.b16 %v574, %v574
      %v607 = vpack.c.b16 %v575, %v575
      %v608 = vpack.c.b16 %v576, %v576
      %v609 = vpack.c.b16 %v577, %v577
      %v610 = vpack.c.b16 %v578, %v578
      %v611 = vpack.c.b16 %v579, %v579
      %vm644 = vcmask 27648
      %645 = vst.msk [vmem:[%s179] sm:$0xf] %vm644, %v580
      %646 = vst.msk [vmem:[%s179 + $0x4] sm:$0xf] %vm644, %v581
      %647 = vst.msk [vmem:[%s179 + $0x8] sm:$0xf] %vm644, %v582
      %648 = vst.msk [vmem:[%s179 + $0xc] sm:$0xf] %vm644, %v583
      %649 = vst.msk [vmem:[%s179 + $0x10] sm:$0xf] %vm644, %v584
      %650 = vst.msk [vmem:[%s179 + $0x14] sm:$0xf] %vm644, %v585
      %651 = vst.msk [vmem:[%s179 + $0x18] sm:$0xf] %vm644, %v586
      %652 = vst.msk [vmem:[%s179 + $0x1c] sm:$0xf] %vm644, %v587
      %653 = vst.msk [vmem:[%s179 + $0x20] sm:$0xf] %vm644, %v588
      %654 = vst.msk [vmem:[%s179 + $0x24] sm:$0xf] %vm644, %v589
      %655 = vst.msk [vmem:[%s179 + $0x28] sm:$0xf] %vm644, %v590
      %656 = vst.msk [vmem:[%s179 + $0x2c] sm:$0xf] %vm644, %v591
      %657 = vst.msk [vmem:[%s179 + $0x30] sm:$0xf] %vm644, %v592
      %658 = vst.msk [vmem:[%s179 + $0x34] sm:$0xf] %vm644, %v593
      %659 = vst.msk [vmem:[%s179 + $0x38] sm:$0xf] %vm644, %v594
      %660 = vst.msk [vmem:[%s179 + $0x3c] sm:$0xf] %vm644, %v595
      %661 = vst.msk [vmem:[%s179 + $0x40] sm:$0xf] %vm644, %v596
      %662 = vst.msk [vmem:[%s179 + $0x44] sm:$0xf] %vm644, %v597
      %663 = vst.msk [vmem:[%s179 + $0x48] sm:$0xf] %vm644, %v598
      %664 = vst.msk [vmem:[%s179 + $0x4c] sm:$0xf] %vm644, %v599
      %665 = vst.msk [vmem:[%s179 + $0x50] sm:$0xf] %vm644, %v600
      %666 = vst.msk [vmem:[%s179 + $0x54] sm:$0xf] %vm644, %v601
      %667 = vst.msk [vmem:[%s179 + $0x58] sm:$0xf] %vm644, %v602
      %668 = vst.msk [vmem:[%s179 + $0x5c] sm:$0xf] %vm644, %v603
      %669 = vst.msk [vmem:[%s179 + $0x60] sm:$0xf] %vm644, %v604
      %670 = vst.msk [vmem:[%s179 + $0x64] sm:$0xf] %vm644, %v605
      %671 = vst.msk [vmem:[%s179 + $0x68] sm:$0xf] %vm644, %v606
      %672 = vst.msk [vmem:[%s179 + $0x6c] sm:$0xf] %vm644, %v607
      %673 = vst.msk [vmem:[%s179 + $0x70] sm:$0xf] %vm644, %v608
      %674 = vst.msk [vmem:[%s179 + $0x74] sm:$0xf] %vm644, %v609
      %675 = vst.msk [vmem:[%s179 + $0x78] sm:$0xf] %vm644, %v610
      %676 = vst.msk [vmem:[%s179 + $0x7c] sm:$0xf] %vm644, %v611
      %vm677 = vcmask 31744
      %v678 = vsel %vm677, %v390, 0.0
      %v679 = vsel %vm677, %v393, 0.0
      %v680 = vadd.f32 %v678, %v679
      %v681 = vsel %vm677, %v398, 0.0
      %v682 = vadd.f32 %v680, %v681
      %v683 = vsel %vm677, %v401, 0.0
      %v684 = vadd.f32 %v682, %v683
      %v685 = vsel %vm677, %v406, 0.0
      %v686 = vadd.f32 %v684, %v685
      %v687 = vsel %vm677, %v409, 0.0
      %v688 = vadd.f32 %v686, %v687
      %v689 = vsel %vm677, %v414, 0.0
      %v690 = vadd.f32 %v688, %v689
      %v691 = vsel %vm677, %v417, 0.0
      %v692 = vadd.f32 %v690, %v691
      %v693 = vsel %vm677, %v422, 0.0
      %v694 = vadd.f32 %v692, %v693
      %v695 = vsel %vm677, %v425, 0.0
      %v696 = vadd.f32 %v694, %v695
      %v697 = vsel %vm677, %v430, 0.0
      %v698 = vadd.f32 %v696, %v697
      %v699 = vsel %vm677, %v433, 0.0
      %v700 = vadd.f32 %v698, %v699
      %v701 = vsel %vm677, %v438, 0.0
      %v702 = vadd.f32 %v700, %v701
      %v703 = vsel %vm677, %v441, 0.0
      %v704 = vadd.f32 %v702, %v703
      %v705 = vsel %vm677, %v446, 0.0
      %v706 = vadd.f32 %v704, %v705
      %v707 = vsel %vm677, %v449, 0.0
      %v708 = vadd.f32 %v706, %v707
      %v709 = vsel %vm677, %v454, 0.0
      %v710 = vadd.f32 %v708, %v709
      %v711 = vsel %vm677, %v457, 0.0
      %v712 = vadd.f32 %v710, %v711
      %v713 = vsel %vm677, %v462, 0.0
      %v714 = vadd.f32 %v712, %v713
      %v715 = vsel %vm677, %v465, 0.0
      %v716 = vadd.f32 %v714, %v715
      %v717 = vsel %vm677, %v470, 0.0
      %v718 = vadd.f32 %v716, %v717
      %v719 = vsel %vm677, %v473, 0.0
      %v720 = vadd.f32 %v718, %v719
      %v721 = vsel %vm677, %v478, 0.0
      %v722 = vadd.f32 %v720, %v721
      %v723 = vsel %vm677, %v481, 0.0
      %v724 = vadd.f32 %v722, %v723
      %v725 = vsel %vm677, %v486, 0.0
      %v726 = vadd.f32 %v724, %v725
      %v727 = vsel %vm677, %v489, 0.0
      %v728 = vadd.f32 %v726, %v727
      %v729 = vsel %vm677, %v494, 0.0
      %v730 = vadd.f32 %v728, %v729
      %v731 = vsel %vm677, %v497, 0.0
      %v732 = vadd.f32 %v730, %v731
      %v733 = vsel %vm677, %v502, 0.0
      %v734 = vadd.f32 %v732, %v733
      %v735 = vsel %vm677, %v505, 0.0
      %v736 = vadd.f32 %v734, %v735
      %v737 = vsel %vm677, %v510, 0.0
      %v738 = vadd.f32 %v736, %v737
      %v739 = vsel %vm677, %v513, 0.0
      %v740 = vadd.f32 %v738, %v739
      %v741 = vrot.slane %v740, 4
      %v742 = vadd.f32 %v740, %v741
      %v743 = vrot.slane %v742, 2
      %v744 = vadd.f32 %v742, %v743
      %v745 = vrot.slane %v744, 1
      %v746 = vadd.f32 %v744, %v745
      %vm747 = vcmask 24576
      %748 = vst.msk [vmem:[%s184] sm:$0x1] %vm747, %v746
      %v749 = vmul.f32 %v390, %v390
      %v750 = vmul.f32 %v393, %v393
      %v751 = vmul.f32 %v398, %v398
      %v752 = vmul.f32 %v401, %v401
      %v753 = vmul.f32 %v406, %v406
      %v754 = vmul.f32 %v409, %v409
      %v755 = vmul.f32 %v414, %v414
      %v756 = vmul.f32 %v417, %v417
      %v757 = vmul.f32 %v422, %v422
      %v758 = vmul.f32 %v425, %v425
      %v759 = vmul.f32 %v430, %v430
      %v760 = vmul.f32 %v433, %v433
      %v761 = vmul.f32 %v438, %v438
      %v762 = vmul.f32 %v441, %v441
      %v763 = vmul.f32 %v446, %v446
      %v764 = vmul.f32 %v449, %v449
      %v765 = vmul.f32 %v454, %v454
      %v766 = vmul.f32 %v457, %v457
      %v767 = vmul.f32 %v462, %v462
      %v768 = vmul.f32 %v465, %v465
      %v769 = vmul.f32 %v470, %v470
      %v770 = vmul.f32 %v473, %v473
      %v771 = vmul.f32 %v478, %v478
      %v772 = vmul.f32 %v481, %v481
      %v773 = vmul.f32 %v486, %v486
      %v774 = vmul.f32 %v489, %v489
      %v775 = vmul.f32 %v494, %v494
      %v776 = vmul.f32 %v497, %v497
      %v777 = vmul.f32 %v502, %v502
      %v778 = vmul.f32 %v505, %v505
      %v779 = vmul.f32 %v510, %v510
      %v780 = vmul.f32 %v513, %v513
      %v781 = vsel %vm677, %v749, 0.0
      %v782 = vsel %vm677, %v750, 0.0
      %v783 = vadd.f32 %v781, %v782
      %v784 = vsel %vm677, %v751, 0.0
      %v785 = vadd.f32 %v783, %v784
      %v786 = vsel %vm677, %v752, 0.0
      %v787 = vadd.f32 %v785, %v786
      %v788 = vsel %vm677, %v753, 0.0
      %v789 = vadd.f32 %v787, %v788
      %v790 = vsel %vm677, %v754, 0.0
      %v791 = vadd.f32 %v789, %v790
      %v792 = vsel %vm677, %v755, 0.0
      %v793 = vadd.f32 %v791, %v792
      %v794 = vsel %vm677, %v756, 0.0
      %v795 = vadd.f32 %v793, %v794
      %v796 = vsel %vm677, %v757, 0.0
      %v797 = vadd.f32 %v795, %v796
      %v798 = vsel %vm677, %v758, 0.0
      %v799 = vadd.f32 %v797, %v798
      %v800 = vsel %vm677, %v759, 0.0
      %v801 = vadd.f32 %v799, %v800
      %v802 = vsel %vm677, %v760, 0.0
      %v803 = vadd.f32 %v801, %v802
      %v804 = vsel %vm677, %v761, 0.0
      %v805 = vadd.f32 %v803, %v804
      %v806 = vsel %vm677, %v762, 0.0
      %v807 = vadd.f32 %v805, %v806
      %v808 = vsel %vm677, %v763, 0.0
      %v809 = vadd.f32 %v807, %v808
      %v810 = vsel %vm677, %v764, 0.0
      %v811 = vadd.f32 %v809, %v810
      %v812 = vsel %vm677, %v765, 0.0
      %v813 = vadd.f32 %v811, %v812
      %v814 = vsel %vm677, %v766, 0.0
      %v815 = vadd.f32 %v813, %v814
      %v816 = vsel %vm677, %v767, 0.0
      %v817 = vadd.f32 %v815, %v816
      %v818 = vsel %vm677, %v768, 0.0
      %v819 = vadd.f32 %v817, %v818
      %v820 = vsel %vm677, %v769, 0.0
      %v821 = vadd.f32 %v819, %v820
      %v822 = vsel %vm677, %v770, 0.0
      %v823 = vadd.f32 %v821, %v822
      %v824 = vsel %vm677, %v771, 0.0
      %v825 = vadd.f32 %v823, %v824
      %v826 = vsel %vm677, %v772, 0.0
      %v827 = vadd.f32 %v825, %v826
      %v828 = vsel %vm677, %v773, 0.0
      %v829 = vadd.f32 %v827, %v828
      %v830 = vsel %vm677, %v774, 0.0
      %v831 = vadd.f32 %v829, %v830
      %v832 = vsel %vm677, %v775, 0.0
      %v833 = vadd.f32 %v831, %v832
      %v834 = vsel %vm677, %v776, 0.0
      %v835 = vadd.f32 %v833, %v834
      %v836 = vsel %vm677, %v777, 0.0
      %v837 = vadd.f32 %v835, %v836
      %v838 = vsel %vm677, %v778, 0.0
      %v839 = vadd.f32 %v837, %v838
      %v840 = vsel %vm677, %v779, 0.0
      %v841 = vadd.f32 %v839, %v840
      %v842 = vsel %vm677, %v780, 0.0
      %v843 = vadd.f32 %v841, %v842
      %v844 = vrot.slane %v843, 4
      %v845 = vadd.f32 %v843, %v844
      %v846 = vrot.slane %v845, 2
      %v847 = vadd.f32 %v845, %v846
      %v848 = vrot.slane %v847, 1
      %v849 = vadd.f32 %v847, %v848
      %850 = vst.msk [vmem:[%s184 + $0x1] sm:$0x1] %vm747, %v849
      %s851 = smul.u32 32, %s15
      %p852 = scmp.lt.s32.totalorder %s851, 63
      %s853 = scalar_select %p852, %s851, 63
      %s854 = smul.addr %s853, 4
      %s855 = scalar_lea.vmem %s2, %s854
      %p856 = scmp.lt.s32.totalorder %s15, 1
      %s857 = scalar_select %p856, %s15, 1
      %s858 = smul.addr %s857, 2
      %s859 = scalar_lea.vmem %s3, %s858
      // Predicated region
      $region29: #{bottleneck_pallas.4} parent=27 // pred_check
        %p860 = pneg %p80
      $region30: #{bottleneck_pallas.4} parent=27 // pred_check_branch
        %862 = sbr.rel (%p860) target = $region32
      $region31: #{bottleneck_pallas.4} parent=27 // pred_region
        %s863 = smul.u32 32, %s15
      $region32: #{bottleneck_pallas.4} parent=27 // pred_fallthru
        _
      // Predicated region
      $region33: #{bottleneck_pallas.4} parent=27 // pred_check
        %p864 = pneg %p106
      $region34: #{bottleneck_pallas.4} parent=27 // pred_check_branch
        %866 = sbr.rel (%p864) target = $region36
      $region35: #{bottleneck_pallas.4} parent=27 // pred_region
        _
      $region36: #{bottleneck_pallas.4} parent=27 // pred_fallthru
        _
    $region28: #{bottleneck_pallas.4} parent=5 // pred_fallthru
      _
    %p867 = scmp.le.s32.totalorder 2, %s10
    // Predicated region
    $region37: #{bottleneck_pallas.4} parent=5 // pred_check
      %p868 = pneg %p867
    $region38: #{bottleneck_pallas.4} parent=5 // pred_check_branch
      %870 = sbr.rel (%p868) target = $region40
    $region39: #{bottleneck_pallas.4} parent=5 // pred_region
      %s871 = ssub.s32 %s10, 2
      // Predicated region
      $region41: #{bottleneck_pallas.4} parent=39 // pred_check
        %p872 = pneg %p86
      $region42: #{bottleneck_pallas.4} parent=39 // pred_check_branch
        %874 = sbr.rel (%p872) target = $region44
      $region43: #{bottleneck_pallas.4} parent=39 // pred_region
        %s875 = smul.u32 32, %s16
        %p876 = scmp.lt.s32.totalorder %s875, 63
        %s877 = scalar_select %p876, %s875, 63
        %s878 = smul.addr %s877, 4
        %s879 = scalar_lea.vmem %s2, %s878
      $region44: #{bottleneck_pallas.4} parent=39 // pred_fallthru
        _
      // Predicated region
      $region45: #{bottleneck_pallas.4} parent=39 // pred_check
        %p880 = pneg %p112
      $region46: #{bottleneck_pallas.4} parent=39 // pred_check_branch
        %882 = sbr.rel (%p880) target = $region48
      $region47: #{bottleneck_pallas.4} parent=39 // pred_region
        %p883 = scmp.lt.s32.totalorder %s16, 1
        %s884 = scalar_select %p883, %s16, 1
        %s885 = smul.addr %s884, 2
        %s886 = scalar_lea.vmem %s3, %s885
      $region48: #{bottleneck_pallas.4} parent=39 // pred_fallthru
        _
    $region40: #{bottleneck_pallas.4} parent=5 // pred_fallthru
      _
  $region6: #{bottleneck_pallas.4} parent=0 // loop_footer
    %s14 = sadd.s32 1, %s10
  $region7: #{bottleneck_pallas.4} parent=0 // loop_footer_branch
    %9 = sbr.rel target = $region3
  $region8: #{bottleneck_pallas.4} parent=0 // loop_exit
    _

// kernel: bottleneck_pallas.6
$region0: #{bottleneck_pallas.6}
  #allocation0 [shape = 'u32[]', space=smem, size = 0x4, offset = 0x4, fixed_abs, tag = 'smem constant byte address 0x4 - core index']
  #allocation1 [shape = 'u32[144,128]{1,0:T(1,128)}', space=vmem, size = 0x12000, scoped, tag = 'internal scratch']
  %s0 = inlined_call_operand.vmem [shape: bf16[512,4], index: 0, kind: input, shape index: {}]
  %s1 = inlined_call_operand.vmem [shape: f32[2,4], index: 1, kind: input, shape index: {}]
  %s2 = inlined_call_operand.vmem [shape: bf16[4,16], index: 2, kind: input, shape index: {}]
  %s3 = inlined_call_operand.vmem [shape: bf16[512,16], index: 3, kind: output, shape index: {0}]
  %s4 = inlined_call_operand.vmem [shape: f32[2,2,16], index: 4, kind: output, shape index: {1}]
  %5 = xla_tuple %s3, %s4
  %s6 = sld [smem:[#allocation0]]
  $region53: #{bottleneck_pallas.6} parent=0
    _
  %s8 = ssub.s32 1, %s6
  %s9 = scalar_select 0, %s8, %s6
  loop: start=0, step=1, limit=4
  $region2: #{bottleneck_pallas.6} parent=0 // loop_pre_header
    _
  $region3: #{bottleneck_pallas.6} parent=0 // loop_header
    %s11 = sphi 0, %s15
    %p12 = scmp.ge.s32.totalorder %s11, 4
    %s21 = sphi 0, %s23
    %s24 = sphi 0, %s21
    %s25 = sphi 0, %s24
    %s41 = sphi 0, %s25
    %s45 = sphi 0, %s45
    %s47 = sphi 0, %s45
    %s48 = sphi 0, %s47
    %s62 = sphi 0, %s48
    %s66 = sphi 0, %s66
    %s68 = sphi 0, %s66
    %s69 = sphi 0, %s68
    %s83 = sphi 0, %s69
    %s89 = sphi 0, %s91
    %s92 = sphi 0, %s89
    %s93 = sphi 0, %s92
    %s109 = sphi 0, %s93
    %s115 = sphi 0, %s117
    %s118 = sphi 0, %s115
    %s119 = sphi 0, %s118
    %s135 = sphi 0, %s119
  $region4: #{bottleneck_pallas.6} parent=0 // loop_header_branch
    %14 = sbr.rel (%p12) target = $region8
  $region5: #{bottleneck_pallas.6} parent=0 // loop_body
    %s16 = ssub.s32 %s11, 1
    %s17 = ssub.s32 %s11, 2
    %s18 = sadd.s32 %s11, 1
    %s19 = ssub.s32 %s11, %s18
    %p20 = scmp.eq.s32.totalorder %s19, 0
    %s22 = sadd.s32 %s21, 1
    %s23 = scalar_select %p20, %s21, %s22
    %p26 = pneg %p20
    %p27 = scmp.eq.s32.totalorder %s11, 1
    %p28 = por %p26, %p27
    %p29 = scmp.ne.s32.totalorder %s21, %s24
    %p30 = scmp.eq.s32.totalorder %s11, 0
    %p31 = por %p29, %p30
    %p32 = scmp.ne.s32.totalorder %s21, %s24
    %p33 = scmp.eq.s32.totalorder %s16, 1
    %p34 = por %p32, %p33
    %p35 = scmp.ne.s32.totalorder %s24, %s25
    %p36 = scmp.eq.s32.totalorder %s16, 0
    %p37 = por %p35, %p36
    %p38 = scmp.ne.s32.totalorder %s24, %s25
    %p39 = scmp.eq.s32.totalorder %s17, 1
    %p40 = por %p38, %p39
    %p42 = scmp.ne.s32.totalorder %s25, %s41
    %p43 = scmp.eq.s32.totalorder %s17, 0
    %p44 = por %p42, %p43
    %s46 = sadd.s32 %s45, 1
    %p49 = scmp.eq.s32.totalorder %s11, 1
    %p50 = scmp.ne.s32.totalorder %s45, %s47
    %p51 = scmp.eq.s32.totalorder %s11, 0
    %p52 = por %p50, %p51
    %p53 = scmp.ne.s32.totalorder %s45, %s47
    %p54 = scmp.eq.s32.totalorder %s16, 1
    %p55 = por %p53, %p54
    %p56 = scmp.ne.s32.totalorder %s47, %s48
    %p57 = scmp.eq.s32.totalorder %s16, 0
    %p58 = por %p56, %p57
    %p59 = scmp.ne.s32.totalorder %s47, %s48
    %p60 = scmp.eq.s32.totalorder %s17, 1
    %p61 = por %p59, %p60
    %p63 = scmp.ne.s32.totalorder %s48, %s62
    %p64 = scmp.eq.s32.totalorder %s17, 0
    %p65 = por %p63, %p64
    %s67 = sadd.s32 %s66, 1
    %p70 = scmp.eq.s32.totalorder %s11, 1
    %p71 = scmp.ne.s32.totalorder %s66, %s68
    %p72 = scmp.eq.s32.totalorder %s11, 0
    %p73 = por %p71, %p72
    %p74 = scmp.ne.s32.totalorder %s66, %s68
    %p75 = scmp.eq.s32.totalorder %s16, 1
    %p76 = por %p74, %p75
    %p77 = scmp.ne.s32.totalorder %s68, %s69
    %p78 = scmp.eq.s32.totalorder %s16, 0
    %p79 = por %p77, %p78
    %p80 = scmp.ne.s32.totalorder %s68, %s69
    %p81 = scmp.eq.s32.totalorder %s17, 1
    %p82 = por %p80, %p81
    %p84 = scmp.ne.s32.totalorder %s69, %s83
    %p85 = scmp.eq.s32.totalorder %s17, 0
    %p86 = por %p84, %p85
    %s87 = ssub.s32 %s11, %s18
    %p88 = scmp.eq.s32.totalorder %s87, 0
    %s90 = sadd.s32 %s89, 1
    %s91 = scalar_select %p88, %s89, %s90
    %p94 = pneg %p88
    %p95 = scmp.eq.s32.totalorder %s11, 1
    %p96 = por %p94, %p95
    %p97 = scmp.ne.s32.totalorder %s89, %s92
    %p98 = scmp.eq.s32.totalorder %s11, 0
    %p99 = por %p97, %p98
    %p100 = scmp.ne.s32.totalorder %s89, %s92
    %p101 = scmp.eq.s32.totalorder %s16, 1
    %p102 = por %p100, %p101
    %p103 = scmp.ne.s32.totalorder %s92, %s93
    %p104 = scmp.eq.s32.totalorder %s16, 0
    %p105 = por %p103, %p104
    %p106 = scmp.ne.s32.totalorder %s92, %s93
    %p107 = scmp.eq.s32.totalorder %s17, 1
    %p108 = por %p106, %p107
    %p110 = scmp.ne.s32.totalorder %s93, %s109
    %p111 = scmp.eq.s32.totalorder %s17, 0
    %p112 = por %p110, %p111
    %s113 = ssub.s32 %s11, %s18
    %p114 = scmp.eq.s32.totalorder %s113, 0
    %s116 = sadd.s32 %s115, 1
    %s117 = scalar_select %p114, %s115, %s116
    %p120 = pneg %p114
    %p121 = scmp.eq.s32.totalorder %s11, 1
    %p122 = por %p120, %p121
    %p123 = scmp.ne.s32.totalorder %s115, %s118
    %p124 = scmp.eq.s32.totalorder %s11, 0
    %p125 = por %p123, %p124
    %p126 = scmp.ne.s32.totalorder %s115, %s118
    %p127 = scmp.eq.s32.totalorder %s16, 1
    %p128 = por %p126, %p127
    %p129 = scmp.ne.s32.totalorder %s118, %s119
    %p130 = scmp.eq.s32.totalorder %s16, 0
    %p131 = por %p129, %p130
    %p132 = scmp.ne.s32.totalorder %s118, %s119
    %p133 = scmp.eq.s32.totalorder %s17, 1
    %p134 = por %p132, %p133
    %p136 = scmp.ne.s32.totalorder %s119, %s135
    %p137 = scmp.eq.s32.totalorder %s17, 0
    %p138 = por %p136, %p137
    %p139 = scmp.le.s32.totalorder 1, %s11
    %p140 = scmp.lt.s32.totalorder %s11, 3
    %p141 = pnand %p139, %p140
    %p142 = pneg %p141
    // Predicated region
    $region9: #{bottleneck_pallas.6} parent=5 // pred_check
      _
    $region10: #{bottleneck_pallas.6} parent=5 // pred_check_branch
      %144 = sbr.rel (%p141) target = $region12
    $region11: #{bottleneck_pallas.6} parent=5 // pred_region
      %s145 = ssub.s32 %s11, 1
      // Predicated region
      $region13: #{bottleneck_pallas.6} parent=11 // pred_check
        %p146 = pneg %p58
      $region14: #{bottleneck_pallas.6} parent=11 // pred_check_branch
        %148 = sbr.rel (%p146) target = $region16
      $region15: #{bottleneck_pallas.6} parent=11 // pred_region
        _
      $region16: #{bottleneck_pallas.6} parent=11 // pred_fallthru
        _
      // Predicated region
      $region17: #{bottleneck_pallas.6} parent=11 // pred_check
        %p149 = pneg %p79
      $region18: #{bottleneck_pallas.6} parent=11 // pred_check_branch
        %151 = sbr.rel (%p149) target = $region20
      $region19: #{bottleneck_pallas.6} parent=11 // pred_region
        _
      $region20: #{bottleneck_pallas.6} parent=11 // pred_fallthru
        _
    $region12: #{bottleneck_pallas.6} parent=5 // pred_fallthru
      _
    %p152 = scmp.lt.s32.totalorder %s11, 2
    // Predicated region
    $region21: #{bottleneck_pallas.6} parent=5 // pred_check
      %p153 = pneg %p152
    $region22: #{bottleneck_pallas.6} parent=5 // pred_check_branch
      %155 = sbr.rel (%p153) target = $region24
    $region23: #{bottleneck_pallas.6} parent=5 // pred_region
      // Predicated region
      $region25: #{bottleneck_pallas.6} parent=23 // pred_check
        %p156 = pneg %p31
      $region26: #{bottleneck_pallas.6} parent=23 // pred_check_branch
        %158 = sbr.rel (%p156) target = $region28
      $region27: #{bottleneck_pallas.6} parent=23 // pred_region
        %s159 = smul.u32 32, %s11
        %p160 = scmp.lt.s32.totalorder %s159, 63
        %s161 = scalar_select %p160, %s159, 63
        %s162 = smul.addr %s161, 4
        %s163 = scalar_lea.vmem %s0, %s162
        %s164 = smul.u32 32, %s11
      $region28: #{bottleneck_pallas.6} parent=23 // pred_fallthru
        _
    $region24: #{bottleneck_pallas.6} parent=5 // pred_fallthru
      _
    %p165 = scmp.le.s32.totalorder 1, %s11
    %p166 = scmp.lt.s32.totalorder %s11, 3
    %p167 = pnand %p165, %p166
    %p168 = pneg %p167
    // Predicated region
    $region29: #{bottleneck_pallas.6} parent=5 // pred_check
      _
    $region30: #{bottleneck_pallas.6} parent=5 // pred_check_branch
      %170 = sbr.rel (%p167) target = $region32
    $region31: #{bottleneck_pallas.6} parent=5 // pred_region
      %s171 = ssub.s32 %s11, 1
      %s172 = smul.u32 32, %s16
      %p173 = scmp.lt.s32.totalorder %s172, 63
      %s174 = scalar_select %p173, %s172, 63
      %s175 = smul.addr %s174, 4
      %s176 = scalar_lea.vmem %s0, %s175
      %p177 = pneg %p37
      %p178 = pneg %p34
      %p179 = pneg %p58
      %p180 = pneg %p55
      %p181 = pneg %p79
      %p182 = pneg %p76
      %p183 = pneg %p105
      %p184 = pneg %p102
      %s185 = smul.u32 32, %s16
      %p186 = scmp.lt.s32.totalorder %s185, 63
      %s187 = scalar_select %p186, %s185, 63
      %s188 = smul.addr %s187, 4
      %s189 = scalar_lea.vmem %s3, %s188
      %p190 = pneg %p131
      %p191 = pneg %p128
      %p192 = scmp.lt.s32.totalorder %s16, 1
      %s193 = scalar_select %p192, %s16, 1
      %s194 = smul.addr %s193, 2
      %s195 = scalar_lea.vmem %s4, %s194
      %s196 = smul.u32 32, %s16
      %p197 = scmp.lt.s32.totalorder %s196, 63
      %s198 = scalar_select %p197, %s196, 63
      %s199 = smul.addr %s198, 4
      %s200 = scalar_lea.vmem %s0, %s199
      %s201 = smul.u32 32, %s16
      %s202 = smul.u32 32, %s16
      %p203 = scmp.lt.s32.totalorder %s202, 63
      %s204 = scalar_select %p203, %s202, 63
      %s205 = smul.addr %s204, 4
      %s206 = scalar_lea.vmem %s3, %s205
      %s207 = smul.u32 32, %s16
      %p208 = scmp.lt.s32.totalorder %s16, 1
      %s209 = scalar_select %p208, %s16, 1
      %s210 = smul.addr %s209, 2
      %s211 = scalar_lea.vmem %s4, %s210
      %v213 = vld [vmem:[%s200] sm:$0xf]
      %v214 = vld [vmem:[%s200 + $0x4] sm:$0xf]
      %v215 = vld [vmem:[%s200 + $0x8] sm:$0xf]
      %v216 = vld [vmem:[%s200 + $0xc] sm:$0xf]
      %v217 = vld [vmem:[%s200 + $0x10] sm:$0xf]
      %v218 = vld [vmem:[%s200 + $0x14] sm:$0xf]
      %v219 = vld [vmem:[%s200 + $0x18] sm:$0xf]
      %v220 = vld [vmem:[%s200 + $0x1c] sm:$0xf]
      %v221 = vld [vmem:[%s200 + $0x20] sm:$0xf]
      %v222 = vld [vmem:[%s200 + $0x24] sm:$0xf]
      %v223 = vld [vmem:[%s200 + $0x28] sm:$0xf]
      %v224 = vld [vmem:[%s200 + $0x2c] sm:$0xf]
      %v225 = vld [vmem:[%s200 + $0x30] sm:$0xf]
      %v226 = vld [vmem:[%s200 + $0x34] sm:$0xf]
      %v227 = vld [vmem:[%s200 + $0x38] sm:$0xf]
      %v228 = vld [vmem:[%s200 + $0x3c] sm:$0xf]
      %v229 = vld [vmem:[%s200 + $0x40] sm:$0xf]
      %v230 = vld [vmem:[%s200 + $0x44] sm:$0xf]
      %v231 = vld [vmem:[%s200 + $0x48] sm:$0xf]
      %v232 = vld [vmem:[%s200 + $0x4c] sm:$0xf]
      %v233 = vld [vmem:[%s200 + $0x50] sm:$0xf]
      %v234 = vld [vmem:[%s200 + $0x54] sm:$0xf]
      %v235 = vld [vmem:[%s200 + $0x58] sm:$0xf]
      %v236 = vld [vmem:[%s200 + $0x5c] sm:$0xf]
      %v237 = vld [vmem:[%s200 + $0x60] sm:$0xf]
      %v238 = vld [vmem:[%s200 + $0x64] sm:$0xf]
      %v239 = vld [vmem:[%s200 + $0x68] sm:$0xf]
      %v240 = vld [vmem:[%s200 + $0x6c] sm:$0xf]
      %v241 = vld [vmem:[%s200 + $0x70] sm:$0xf]
      %v242 = vld [vmem:[%s200 + $0x74] sm:$0xf]
      %v243 = vld [vmem:[%s200 + $0x78] sm:$0xf]
      %v244 = vld [vmem:[%s200 + $0x7c] sm:$0xf]
      %v245 = vunpack.c.l.bf16 %v213
      %v246 = vunpack.c.l.bf16 %v214
      %v247 = vunpack.c.l.bf16 %v215
      %v248 = vunpack.c.l.bf16 %v216
      %v249 = vunpack.c.l.bf16 %v217
      %v250 = vunpack.c.l.bf16 %v218
      %v251 = vunpack.c.l.bf16 %v219
      %v252 = vunpack.c.l.bf16 %v220
      %v253 = vunpack.c.l.bf16 %v221
      %v254 = vunpack.c.l.bf16 %v222
      %v255 = vunpack.c.l.bf16 %v223
      %v256 = vunpack.c.l.bf16 %v224
      %v257 = vunpack.c.l.bf16 %v225
      %v258 = vunpack.c.l.bf16 %v226
      %v259 = vunpack.c.l.bf16 %v227
      %v260 = vunpack.c.l.bf16 %v228
      %v261 = vunpack.c.l.bf16 %v229
      %v262 = vunpack.c.l.bf16 %v230
      %v263 = vunpack.c.l.bf16 %v231
      %v264 = vunpack.c.l.bf16 %v232
      %v265 = vunpack.c.l.bf16 %v233
      %v266 = vunpack.c.l.bf16 %v234
      %v267 = vunpack.c.l.bf16 %v235
      %v268 = vunpack.c.l.bf16 %v236
      %v269 = vunpack.c.l.bf16 %v237
      %v270 = vunpack.c.l.bf16 %v238
      %v271 = vunpack.c.l.bf16 %v239
      %v272 = vunpack.c.l.bf16 %v240
      %v273 = vunpack.c.l.bf16 %v241
      %v274 = vunpack.c.l.bf16 %v242
      %v275 = vunpack.c.l.bf16 %v243
      %v276 = vunpack.c.l.bf16 %v244
      %v277 = vld [vmem:[%s1] sm:$0x1]
      %v278 = vlaneseq
      %v279 = vshrl.u32 %v278, 7
      %v280 = vsub.s32 0, %v279
      %v281 = vrot.slane %v277, %v280
      %v282 = vmul.f32 %v245, %v281
      %v283 = vmul.f32 %v246, %v281
      %v284 = vmul.f32 %v247, %v281
      %v285 = vmul.f32 %v248, %v281
      %v286 = vmul.f32 %v249, %v281
      %v287 = vmul.f32 %v250, %v281
      %v288 = vmul.f32 %v251, %v281
      %v289 = vmul.f32 %v252, %v281
      %v290 = vmul.f32 %v253, %v281
      %v291 = vmul.f32 %v254, %v281
      %v292 = vmul.f32 %v255, %v281
      %v293 = vmul.f32 %v256, %v281
      %v294 = vmul.f32 %v257, %v281
      %v295 = vmul.f32 %v258, %v281
      %v296 = vmul.f32 %v259, %v281
      %v297 = vmul.f32 %v260, %v281
      %v298 = vmul.f32 %v261, %v281
      %v299 = vmul.f32 %v262, %v281
      %v300 = vmul.f32 %v263, %v281
      %v301 = vmul.f32 %v264, %v281
      %v302 = vmul.f32 %v265, %v281
      %v303 = vmul.f32 %v266, %v281
      %v304 = vmul.f32 %v267, %v281
      %v305 = vmul.f32 %v268, %v281
      %v306 = vmul.f32 %v269, %v281
      %v307 = vmul.f32 %v270, %v281
      %v308 = vmul.f32 %v271, %v281
      %v309 = vmul.f32 %v272, %v281
      %v310 = vmul.f32 %v273, %v281
      %v311 = vmul.f32 %v274, %v281
      %v312 = vmul.f32 %v275, %v281
      %v313 = vmul.f32 %v276, %v281
      %v314 = vld [vmem:[%s1 + $0x1] sm:$0x1]
      %v315 = vlaneseq
      %v316 = vshrl.u32 %v315, 7
      %v317 = vsub.s32 0, %v316
      %v318 = vrot.slane %v314, %v317
      %v319 = vadd.f32 %v282, %v318
      %v320 = vadd.f32 %v283, %v318
      %v321 = vadd.f32 %v284, %v318
      %v322 = vadd.f32 %v285, %v318
      %v323 = vadd.f32 %v286, %v318
      %v324 = vadd.f32 %v287, %v318
      %v325 = vadd.f32 %v288, %v318
      %v326 = vadd.f32 %v289, %v318
      %v327 = vadd.f32 %v290, %v318
      %v328 = vadd.f32 %v291, %v318
      %v329 = vadd.f32 %v292, %v318
      %v330 = vadd.f32 %v293, %v318
      %v331 = vadd.f32 %v294, %v318
      %v332 = vadd.f32 %v295, %v318
      %v333 = vadd.f32 %v296, %v318
      %v334 = vadd.f32 %v297, %v318
      %v335 = vadd.f32 %v298, %v318
      %v336 = vadd.f32 %v299, %v318
      %v337 = vadd.f32 %v300, %v318
      %v338 = vadd.f32 %v301, %v318
      %v339 = vadd.f32 %v302, %v318
      %v340 = vadd.f32 %v303, %v318
      %v341 = vadd.f32 %v304, %v318
      %v342 = vadd.f32 %v305, %v318
      %v343 = vadd.f32 %v306, %v318
      %v344 = vadd.f32 %v307, %v318
      %v345 = vadd.f32 %v308, %v318
      %v346 = vadd.f32 %v309, %v318
      %v347 = vadd.f32 %v310, %v318
      %v348 = vadd.f32 %v311, %v318
      %v349 = vadd.f32 %v312, %v318
      %v350 = vadd.f32 %v313, %v318
      %v351 = vmax.f32 %v319, 0.0
      %v352 = vmax.f32 %v320, 0.0
      %v353 = vmax.f32 %v321, 0.0
      %v354 = vmax.f32 %v322, 0.0
      %v355 = vmax.f32 %v323, 0.0
      %v356 = vmax.f32 %v324, 0.0
      %v357 = vmax.f32 %v325, 0.0
      %v358 = vmax.f32 %v326, 0.0
      %v359 = vmax.f32 %v327, 0.0
      %v360 = vmax.f32 %v328, 0.0
      %v361 = vmax.f32 %v329, 0.0
      %v362 = vmax.f32 %v330, 0.0
      %v363 = vmax.f32 %v331, 0.0
      %v364 = vmax.f32 %v332, 0.0
      %v365 = vmax.f32 %v333, 0.0
      %v366 = vmax.f32 %v334, 0.0
      %v367 = vmax.f32 %v335, 0.0
      %v368 = vmax.f32 %v336, 0.0
      %v369 = vmax.f32 %v337, 0.0
      %v370 = vmax.f32 %v338, 0.0
      %v371 = vmax.f32 %v339, 0.0
      %v372 = vmax.f32 %v340, 0.0
      %v373 = vmax.f32 %v341, 0.0
      %v374 = vmax.f32 %v342, 0.0
      %v375 = vmax.f32 %v343, 0.0
      %v376 = vmax.f32 %v344, 0.0
      %v377 = vmax.f32 %v345, 0.0
      %v378 = vmax.f32 %v346, 0.0
      %v379 = vmax.f32 %v347, 0.0
      %v380 = vmax.f32 %v348, 0.0
      %v381 = vmax.f32 %v349, 0.0
      %v382 = vmax.f32 %v350, 0.0
      %v383 = vpack.c.bf16 %v352, %v351
      %v384 = vpack.c.bf16 %v354, %v353
      %v385 = vpack.c.bf16 %v356, %v355
      %v386 = vpack.c.bf16 %v358, %v357
      %v387 = vpack.c.bf16 %v360, %v359
      %v388 = vpack.c.bf16 %v362, %v361
      %v389 = vpack.c.bf16 %v364, %v363
      %v390 = vpack.c.bf16 %v366, %v365
      %v391 = vpack.c.bf16 %v368, %v367
      %v392 = vpack.c.bf16 %v370, %v369
      %v393 = vpack.c.bf16 %v372, %v371
      %v394 = vpack.c.bf16 %v374, %v373
      %v395 = vpack.c.bf16 %v376, %v375
      %v396 = vpack.c.bf16 %v378, %v377
      %v397 = vpack.c.bf16 %v380, %v379
      %v398 = vpack.c.bf16 %v382, %v381
      %v399 = vld [vmem:[%s2] sm:$0x3]
      %vm400 = vcmask 31744
      %v402 = vsel %vm400, %v383, 0
      %v405 = vsel %vm400, %v384, 0
      %v408 = vsel %vm400, %v385, 0
      %v411 = vsel %vm400, %v386, 0
      %v414 = vsel %vm400, %v387, 0
      %v417 = vsel %vm400, %v388, 0
      %v420 = vsel %vm400, %v389, 0
      %v423 = vsel %vm400, %v390, 0
      %v426 = vsel %vm400, %v391, 0
      %v429 = vsel %vm400, %v392, 0
      %v432 = vsel %vm400, %v393, 0
      %v435 = vsel %vm400, %v394, 0
      %v438 = vsel %vm400, %v395, 0
      %v441 = vsel %vm400, %v396, 0
      %v444 = vsel %vm400, %v397, 0
      %v447 = vsel %vm400, %v398, 0
      %vm449 = vcmask 1041408
      %v451 = vsel %vm449, %v399, 0
      %453 = vmatprep.subr.bf16.mxu0 0
      %454 = vmatpush1.bf16.msra.mxu0 %v451
      %455 = vmatprep.subr.bf16.mxu0 0
      %456 = vmatpush1.bf16.msra.mxu0 0
      %457 = vmatprep.subr.bf16.mxu0 0
      %458 = vmatpush1.bf16.msra.mxu0 0
      %459 = vmatprep.subr.bf16.mxu0 0
      %460 = vmatpush1.bf16.msra.mxu0 0
      %461 = vmatprep.subr.bf16.mxu0 0
      %462 = vmatpush1.bf16.msra.mxu0 0
      %463 = vmatprep.subr.bf16.mxu0 0
      %464 = vmatpush1.bf16.msra.mxu0 0
      %465 = vmatprep.subr.bf16.mxu0 0
      %466 = vmatpush1.bf16.msra.mxu0 0
      %467 = vmatprep.subr.bf16.mxu0 0
      %468 = vmatpush1.bf16.msra.mxu0 0
      %469 = vmatprep.subr.bf16.mxu0 0
      %470 = vmatpush1.bf16.msra.mxu0 0
      %471 = vmatprep.subr.bf16.mxu0 0
      %472 = vmatpush1.bf16.msra.mxu0 0
      %473 = vmatprep.subr.bf16.mxu0 0
      %474 = vmatpush1.bf16.msra.mxu0 0
      %475 = vmatprep.subr.bf16.mxu0 0
      %476 = vmatpush1.bf16.msra.mxu0 0
      %477 = vmatprep.subr.bf16.mxu0 0
      %478 = vmatpush1.bf16.msra.mxu0 0
      %479 = vmatprep.subr.bf16.mxu0 0
      %480 = vmatpush1.bf16.msra.mxu0 0
      %481 = vmatprep.subr.bf16.mxu0 0
      %482 = vmatpush1.bf16.msra.mxu0 0
      %483 = vmatprep.subr.bf16.mxu0 0
      %484 = vmatpush1.bf16.msra.mxu0 0
      %485 = vmatprep.mubr.bf16.mxu0 0
      %486 = vmatmul.mubr.bf16.gmra.mrb[0].mxu0 %v402
      %v487 = vpop.f32.mrb[0].mxu0
      %v488 = vadd.f32 0.0, %v487
      %v489 = vpop.f32.mrb[0].mxu0
      %v490 = vpop.f32.mrb[0].mxu0
      %v491 = vadd.f32 0.0, %v490
      %v492 = vpop.f32.mrb[0].mxu0
      %493 = vmatprep.mubr.bf16.mxu0 0
      %494 = vmatmul.mubr.bf16.gmra.mrb[0].mxu0 %v405
      %v495 = vpop.f32.mrb[0].mxu0
      %v496 = vadd.f32 0.0, %v495
      %v497 = vpop.f32.mrb[0].mxu0
      %v498 = vpop.f32.mrb[0].mxu0
      %v499 = vadd.f32 0.0, %v498
      %v500 = vpop.f32.mrb[0].mxu0
      %501 = vmatprep.mubr.bf16.mxu0 0
      %502 = vmatmul.mubr.bf16.gmra.mrb[0].mxu0 %v408
      %v503 = vpop.f32.mrb[0].mxu0
      %v504 = vadd.f32 0.0, %v503
      %v505 = vpop.f32.mrb[0].mxu0
      %v506 = vpop.f32.mrb[0].mxu0
      %v507 = vadd.f32 0.0, %v506
      %v508 = vpop.f32.mrb[0].mxu0
      %509 = vmatprep.mubr.bf16.mxu0 0
      %510 = vmatmul.mubr.bf16.gmra.mrb[0].mxu0 %v411
      %v511 = vpop.f32.mrb[0].mxu0
      %v512 = vadd.f32 0.0, %v511
      %v513 = vpop.f32.mrb[0].mxu0
      %v514 = vpop.f32.mrb[0].mxu0
      %v515 = vadd.f32 0.0, %v514
      %v516 = vpop.f32.mrb[0].mxu0
      %517 = vmatprep.mubr.bf16.mxu0 0
      %518 = vmatmul.mubr.bf16.gmra.mrb[0].mxu0 %v414
      %v519 = vpop.f32.mrb[0].mxu0
      %v520 = vadd.f32 0.0, %v519
      %v521 = vpop.f32.mrb[0].mxu0
      %v522 = vpop.f32.mrb[0].mxu0
      %v523 = vadd.f32 0.0, %v522
      %v524 = vpop.f32.mrb[0].mxu0
      %525 = vmatprep.mubr.bf16.mxu0 0
      %526 = vmatmul.mubr.bf16.gmra.mrb[0].mxu0 %v417
      %v527 = vpop.f32.mrb[0].mxu0
      %v528 = vadd.f32 0.0, %v527
      %v529 = vpop.f32.mrb[0].mxu0
      %v530 = vpop.f32.mrb[0].mxu0
      %v531 = vadd.f32 0.0, %v530
      %v532 = vpop.f32.mrb[0].mxu0
      %533 = vmatprep.mubr.bf16.mxu0 0
      %534 = vmatmul.mubr.bf16.gmra.mrb[0].mxu0 %v420
      %v535 = vpop.f32.mrb[0].mxu0
      %v536 = vadd.f32 0.0, %v535
      %v537 = vpop.f32.mrb[0].mxu0
      %v538 = vpop.f32.mrb[0].mxu0
      %v539 = vadd.f32 0.0, %v538
      %v540 = vpop.f32.mrb[0].mxu0
      %541 = vmatprep.mubr.bf16.mxu0 0
      %542 = vmatmul.mubr.bf16.gmra.mrb[0].mxu0 %v423
      %v543 = vpop.f32.mrb[0].mxu0
      %v544 = vadd.f32 0.0, %v543
      %v545 = vpop.f32.mrb[0].mxu0
      %v546 = vpop.f32.mrb[0].mxu0
      %v547 = vadd.f32 0.0, %v546
      %v548 = vpop.f32.mrb[0].mxu0
      %549 = vmatprep.mubr.bf16.mxu0 0
      %550 = vmatmul.mubr.bf16.gmra.mrb[0].mxu0 %v426
      %v551 = vpop.f32.mrb[0].mxu0
      %v552 = vadd.f32 0.0, %v551
      %v553 = vpop.f32.mrb[0].mxu0
      %v554 = vpop.f32.mrb[0].mxu0
      %v555 = vadd.f32 0.0, %v554
      %v556 = vpop.f32.mrb[0].mxu0
      %557 = vmatprep.mubr.bf16.mxu0 0
      %558 = vmatmul.mubr.bf16.gmra.mrb[0].mxu0 %v429
      %v559 = vpop.f32.mrb[0].mxu0
      %v560 = vadd.f32 0.0, %v559
      %v561 = vpop.f32.mrb[0].mxu0
      %v562 = vpop.f32.mrb[0].mxu0
      %v563 = vadd.f32 0.0, %v562
      %v564 = vpop.f32.mrb[0].mxu0
      %565 = vmatprep.mubr.bf16.mxu0 0
      %566 = vmatmul.mubr.bf16.gmra.mrb[0].mxu0 %v432
      %v567 = vpop.f32.mrb[0].mxu0
      %v568 = vadd.f32 0.0, %v567
      %v569 = vpop.f32.mrb[0].mxu0
      %v570 = vpop.f32.mrb[0].mxu0
      %v571 = vadd.f32 0.0, %v570
      %v572 = vpop.f32.mrb[0].mxu0
      %573 = vmatprep.mubr.bf16.mxu0 0
      %574 = vmatmul.mubr.bf16.gmra.mrb[0].mxu0 %v435
      %v575 = vpop.f32.mrb[0].mxu0
      %v576 = vadd.f32 0.0, %v575
      %v577 = vpop.f32.mrb[0].mxu0
      %v578 = vpop.f32.mrb[0].mxu0
      %v579 = vadd.f32 0.0, %v578
      %v580 = vpop.f32.mrb[0].mxu0
      %581 = vmatprep.mubr.bf16.mxu0 0
      %582 = vmatmul.mubr.bf16.gmra.mrb[0].mxu0 %v438
      %v583 = vpop.f32.mrb[0].mxu0
      %v584 = vadd.f32 0.0, %v583
      %v585 = vpop.f32.mrb[0].mxu0
      %v586 = vpop.f32.mrb[0].mxu0
      %v587 = vadd.f32 0.0, %v586
      %v588 = vpop.f32.mrb[0].mxu0
      %589 = vmatprep.mubr.bf16.mxu0 0
      %590 = vmatmul.mubr.bf16.gmra.mrb[0].mxu0 %v441
      %v591 = vpop.f32.mrb[0].mxu0
      %v592 = vadd.f32 0.0, %v591
      %v593 = vpop.f32.mrb[0].mxu0
      %v594 = vpop.f32.mrb[0].mxu0
      %v595 = vadd.f32 0.0, %v594
      %v596 = vpop.f32.mrb[0].mxu0
      %597 = vmatprep.mubr.bf16.mxu0 0
      %598 = vmatmul.mubr.bf16.gmra.mrb[0].mxu0 %v444
      %v599 = vpop.f32.mrb[0].mxu0
      %v600 = vadd.f32 0.0, %v599
      %v601 = vpop.f32.mrb[0].mxu0
      %v602 = vpop.f32.mrb[0].mxu0
      %v603 = vadd.f32 0.0, %v602
      %v604 = vpop.f32.mrb[0].mxu0
      %605 = vmatprep.mubr.bf16.mxu0 0
      %606 = vmatmul.mubr.bf16.gmra.mrb[0].mxu0 %v447
      %v607 = vpop.f32.mrb[0].mxu0
      %v608 = vadd.f32 0.0, %v607
      %v609 = vpop.f32.mrb[0].mxu0
      %v610 = vpop.f32.mrb[0].mxu0
      %v611 = vadd.f32 0.0, %v610
      %v612 = vpop.f32.mrb[0].mxu0
      %613 = vdwg.mxu0
      %v614 = vpack.c.bf16 %v491, %v488
      %v615 = vpack.c.bf16 %v499, %v496
      %v616 = vpack.c.bf16 %v507, %v504
      %v617 = vpack.c.bf16 %v515, %v512
      %v618 = vpack.c.bf16 %v523, %v520
      %v619 = vpack.c.bf16 %v531, %v528
      %v620 = vpack.c.bf16 %v539, %v536
      %v621 = vpack.c.bf16 %v547, %v544
      %v622 = vpack.c.bf16 %v555, %v552
      %v623 = vpack.c.bf16 %v563, %v560
      %v624 = vpack.c.bf16 %v571, %v568
      %v625 = vpack.c.bf16 %v579, %v576
      %v626 = vpack.c.bf16 %v587, %v584
      %v627 = vpack.c.bf16 %v595, %v592
      %v628 = vpack.c.bf16 %v603, %v600
      %v629 = vpack.c.bf16 %v611, %v608
      %v646 = vunpack.c.l.b16 %v614
      %v647 = vunpack.c.h.b16 %v614
      %v648 = vunpack.c.l.b16 %v615
      %v649 = vunpack.c.h.b16 %v615
      %v650 = vunpack.c.l.b16 %v616
      %v651 = vunpack.c.h.b16 %v616
      %v652 = vunpack.c.l.b16 %v617
      %v653 = vunpack.c.h.b16 %v617
      %v654 = vunpack.c.l.b16 %v618
      %v655 = vunpack.c.h.b16 %v618
      %v656 = vunpack.c.l.b16 %v619
      %v657 = vunpack.c.h.b16 %v619
      %v658 = vunpack.c.l.b16 %v620
      %v659 = vunpack.c.h.b16 %v620
      %v660 = vunpack.c.l.b16 %v621
      %v661 = vunpack.c.h.b16 %v621
      %v662 = vunpack.c.l.b16 %v622
      %v663 = vunpack.c.h.b16 %v622
      %v664 = vunpack.c.l.b16 %v623
      %v665 = vunpack.c.h.b16 %v623
      %v666 = vunpack.c.l.b16 %v624
      %v667 = vunpack.c.h.b16 %v624
      %v668 = vunpack.c.l.b16 %v625
      %v669 = vunpack.c.h.b16 %v625
      %v670 = vunpack.c.l.b16 %v626
      %v671 = vunpack.c.h.b16 %v626
      %v672 = vunpack.c.l.b16 %v627
      %v673 = vunpack.c.h.b16 %v627
      %v674 = vunpack.c.l.b16 %v628
      %v675 = vunpack.c.h.b16 %v628
      %v676 = vunpack.c.l.b16 %v629
      %v677 = vunpack.c.h.b16 %v629
      %v678 = vpack.c.b16 %v646, %v646
      %v679 = vpack.c.b16 %v647, %v647
      %v680 = vpack.c.b16 %v648, %v648
      %v681 = vpack.c.b16 %v649, %v649
      %v682 = vpack.c.b16 %v650, %v650
      %v683 = vpack.c.b16 %v651, %v651
      %v684 = vpack.c.b16 %v652, %v652
      %v685 = vpack.c.b16 %v653, %v653
      %v686 = vpack.c.b16 %v654, %v654
      %v687 = vpack.c.b16 %v655, %v655
      %v688 = vpack.c.b16 %v656, %v656
      %v689 = vpack.c.b16 %v657, %v657
      %v690 = vpack.c.b16 %v658, %v658
      %v691 = vpack.c.b16 %v659, %v659
      %v692 = vpack.c.b16 %v660, %v660
      %v693 = vpack.c.b16 %v661, %v661
      %v694 = vpack.c.b16 %v662, %v662
      %v695 = vpack.c.b16 %v663, %v663
      %v696 = vpack.c.b16 %v664, %v664
      %v697 = vpack.c.b16 %v665, %v665
      %v698 = vpack.c.b16 %v666, %v666
      %v699 = vpack.c.b16 %v667, %v667
      %v700 = vpack.c.b16 %v668, %v668
      %v701 = vpack.c.b16 %v669, %v669
      %v702 = vpack.c.b16 %v670, %v670
      %v703 = vpack.c.b16 %v671, %v671
      %v704 = vpack.c.b16 %v672, %v672
      %v705 = vpack.c.b16 %v673, %v673
      %v706 = vpack.c.b16 %v674, %v674
      %v707 = vpack.c.b16 %v675, %v675
      %v708 = vpack.c.b16 %v676, %v676
      %v709 = vpack.c.b16 %v677, %v677
      %vm742 = vcmask 125952
      %743 = vst.msk [vmem:[%s206] sm:$0xf] %vm742, %v678
      %744 = vst.msk [vmem:[%s206 + $0x4] sm:$0xf] %vm742, %v679
      %745 = vst.msk [vmem:[%s206 + $0x8] sm:$0xf] %vm742, %v680
      %746 = vst.msk [vmem:[%s206 + $0xc] sm:$0xf] %vm742, %v681
      %747 = vst.msk [vmem:[%s206 + $0x10] sm:$0xf] %vm742, %v682
      %748 = vst.msk [vmem:[%s206 + $0x14] sm:$0xf] %vm742, %v683
      %749 = vst.msk [vmem:[%s206 + $0x18] sm:$0xf] %vm742, %v684
      %750 = vst.msk [vmem:[%s206 + $0x1c] sm:$0xf] %vm742, %v685
      %751 = vst.msk [vmem:[%s206 + $0x20] sm:$0xf] %vm742, %v686
      %752 = vst.msk [vmem:[%s206 + $0x24] sm:$0xf] %vm742, %v687
      %753 = vst.msk [vmem:[%s206 + $0x28] sm:$0xf] %vm742, %v688
      %754 = vst.msk [vmem:[%s206 + $0x2c] sm:$0xf] %vm742, %v689
      %755 = vst.msk [vmem:[%s206 + $0x30] sm:$0xf] %vm742, %v690
      %756 = vst.msk [vmem:[%s206 + $0x34] sm:$0xf] %vm742, %v691
      %757 = vst.msk [vmem:[%s206 + $0x38] sm:$0xf] %vm742, %v692
      %758 = vst.msk [vmem:[%s206 + $0x3c] sm:$0xf] %vm742, %v693
      %759 = vst.msk [vmem:[%s206 + $0x40] sm:$0xf] %vm742, %v694
      %760 = vst.msk [vmem:[%s206 + $0x44] sm:$0xf] %vm742, %v695
      %761 = vst.msk [vmem:[%s206 + $0x48] sm:$0xf] %vm742, %v696
      %762 = vst.msk [vmem:[%s206 + $0x4c] sm:$0xf] %vm742, %v697
      %763 = vst.msk [vmem:[%s206 + $0x50] sm:$0xf] %vm742, %v698
      %764 = vst.msk [vmem:[%s206 + $0x54] sm:$0xf] %vm742, %v699
      %765 = vst.msk [vmem:[%s206 + $0x58] sm:$0xf] %vm742, %v700
      %766 = vst.msk [vmem:[%s206 + $0x5c] sm:$0xf] %vm742, %v701
      %767 = vst.msk [vmem:[%s206 + $0x60] sm:$0xf] %vm742, %v702
      %768 = vst.msk [vmem:[%s206 + $0x64] sm:$0xf] %vm742, %v703
      %769 = vst.msk [vmem:[%s206 + $0x68] sm:$0xf] %vm742, %v704
      %770 = vst.msk [vmem:[%s206 + $0x6c] sm:$0xf] %vm742, %v705
      %771 = vst.msk [vmem:[%s206 + $0x70] sm:$0xf] %vm742, %v706
      %772 = vst.msk [vmem:[%s206 + $0x74] sm:$0xf] %vm742, %v707
      %773 = vst.msk [vmem:[%s206 + $0x78] sm:$0xf] %vm742, %v708
      %774 = vst.msk [vmem:[%s206 + $0x7c] sm:$0xf] %vm742, %v709
      %vm775 = vcmask 130048
      %v776 = vsel %vm775, %v488, 0.0
      %v777 = vsel %vm775, %v491, 0.0
      %v778 = vadd.f32 %v776, %v777
      %v779 = vsel %vm775, %v496, 0.0
      %v780 = vadd.f32 %v778, %v779
      %v781 = vsel %vm775, %v499, 0.0
      %v782 = vadd.f32 %v780, %v781
      %v783 = vsel %vm775, %v504, 0.0
      %v784 = vadd.f32 %v782, %v783
      %v785 = vsel %vm775, %v507, 0.0
      %v786 = vadd.f32 %v784, %v785
      %v787 = vsel %vm775, %v512, 0.0
      %v788 = vadd.f32 %v786, %v787
      %v789 = vsel %vm775, %v515, 0.0
      %v790 = vadd.f32 %v788, %v789
      %v791 = vsel %vm775, %v520, 0.0
      %v792 = vadd.f32 %v790, %v791
      %v793 = vsel %vm775, %v523, 0.0
      %v794 = vadd.f32 %v792, %v793
      %v795 = vsel %vm775, %v528, 0.0
      %v796 = vadd.f32 %v794, %v795
      %v797 = vsel %vm775, %v531, 0.0
      %v798 = vadd.f32 %v796, %v797
      %v799 = vsel %vm775, %v536, 0.0
      %v800 = vadd.f32 %v798, %v799
      %v801 = vsel %vm775, %v539, 0.0
      %v802 = vadd.f32 %v800, %v801
      %v803 = vsel %vm775, %v544, 0.0
      %v804 = vadd.f32 %v802, %v803
      %v805 = vsel %vm775, %v547, 0.0
      %v806 = vadd.f32 %v804, %v805
      %v807 = vsel %vm775, %v552, 0.0
      %v808 = vadd.f32 %v806, %v807
      %v809 = vsel %vm775, %v555, 0.0
      %v810 = vadd.f32 %v808, %v809
      %v811 = vsel %vm775, %v560, 0.0
      %v812 = vadd.f32 %v810, %v811
      %v813 = vsel %vm775, %v563, 0.0
      %v814 = vadd.f32 %v812, %v813
      %v815 = vsel %vm775, %v568, 0.0
      %v816 = vadd.f32 %v814, %v815
      %v817 = vsel %vm775, %v571, 0.0
      %v818 = vadd.f32 %v816, %v817
      %v819 = vsel %vm775, %v576, 0.0
      %v820 = vadd.f32 %v818, %v819
      %v821 = vsel %vm775, %v579, 0.0
      %v822 = vadd.f32 %v820, %v821
      %v823 = vsel %vm775, %v584, 0.0
      %v824 = vadd.f32 %v822, %v823
      %v825 = vsel %vm775, %v587, 0.0
      %v826 = vadd.f32 %v824, %v825
      %v827 = vsel %vm775, %v592, 0.0
      %v828 = vadd.f32 %v826, %v827
      %v829 = vsel %vm775, %v595, 0.0
      %v830 = vadd.f32 %v828, %v829
      %v831 = vsel %vm775, %v600, 0.0
      %v832 = vadd.f32 %v830, %v831
      %v833 = vsel %vm775, %v603, 0.0
      %v834 = vadd.f32 %v832, %v833
      %v835 = vsel %vm775, %v608, 0.0
      %v836 = vadd.f32 %v834, %v835
      %v837 = vsel %vm775, %v611, 0.0
      %v838 = vadd.f32 %v836, %v837
      %v839 = vrot.slane %v838, 4
      %v840 = vadd.f32 %v838, %v839
      %v841 = vrot.slane %v840, 2
      %v842 = vadd.f32 %v840, %v841
      %v843 = vrot.slane %v842, 1
      %v844 = vadd.f32 %v842, %v843
      %vm845 = vcmask 122880
      %846 = vst.msk [vmem:[%s211] sm:$0x1] %vm845, %v844
      %v847 = vmul.f32 %v488, %v488
      %v848 = vmul.f32 %v491, %v491
      %v849 = vmul.f32 %v496, %v496
      %v850 = vmul.f32 %v499, %v499
      %v851 = vmul.f32 %v504, %v504
      %v852 = vmul.f32 %v507, %v507
      %v853 = vmul.f32 %v512, %v512
      %v854 = vmul.f32 %v515, %v515
      %v855 = vmul.f32 %v520, %v520
      %v856 = vmul.f32 %v523, %v523
      %v857 = vmul.f32 %v528, %v528
      %v858 = vmul.f32 %v531, %v531
      %v859 = vmul.f32 %v536, %v536
      %v860 = vmul.f32 %v539, %v539
      %v861 = vmul.f32 %v544, %v544
      %v862 = vmul.f32 %v547, %v547
      %v863 = vmul.f32 %v552, %v552
      %v864 = vmul.f32 %v555, %v555
      %v865 = vmul.f32 %v560, %v560
      %v866 = vmul.f32 %v563, %v563
      %v867 = vmul.f32 %v568, %v568
      %v868 = vmul.f32 %v571, %v571
      %v869 = vmul.f32 %v576, %v576
      %v870 = vmul.f32 %v579, %v579
      %v871 = vmul.f32 %v584, %v584
      %v872 = vmul.f32 %v587, %v587
      %v873 = vmul.f32 %v592, %v592
      %v874 = vmul.f32 %v595, %v595
      %v875 = vmul.f32 %v600, %v600
      %v876 = vmul.f32 %v603, %v603
      %v877 = vmul.f32 %v608, %v608
      %v878 = vmul.f32 %v611, %v611
      %v879 = vsel %vm775, %v847, 0.0
      %v880 = vsel %vm775, %v848, 0.0
      %v881 = vadd.f32 %v879, %v880
      %v882 = vsel %vm775, %v849, 0.0
      %v883 = vadd.f32 %v881, %v882
      %v884 = vsel %vm775, %v850, 0.0
      %v885 = vadd.f32 %v883, %v884
      %v886 = vsel %vm775, %v851, 0.0
      %v887 = vadd.f32 %v885, %v886
      %v888 = vsel %vm775, %v852, 0.0
      %v889 = vadd.f32 %v887, %v888
      %v890 = vsel %vm775, %v853, 0.0
      %v891 = vadd.f32 %v889, %v890
      %v892 = vsel %vm775, %v854, 0.0
      %v893 = vadd.f32 %v891, %v892
      %v894 = vsel %vm775, %v855, 0.0
      %v895 = vadd.f32 %v893, %v894
      %v896 = vsel %vm775, %v856, 0.0
      %v897 = vadd.f32 %v895, %v896
      %v898 = vsel %vm775, %v857, 0.0
      %v899 = vadd.f32 %v897, %v898
      %v900 = vsel %vm775, %v858, 0.0
      %v901 = vadd.f32 %v899, %v900
      %v902 = vsel %vm775, %v859, 0.0
      %v903 = vadd.f32 %v901, %v902
      %v904 = vsel %vm775, %v860, 0.0
      %v905 = vadd.f32 %v903, %v904
      %v906 = vsel %vm775, %v861, 0.0
      %v907 = vadd.f32 %v905, %v906
      %v908 = vsel %vm775, %v862, 0.0
      %v909 = vadd.f32 %v907, %v908
      %v910 = vsel %vm775, %v863, 0.0
      %v911 = vadd.f32 %v909, %v910
      %v912 = vsel %vm775, %v864, 0.0
      %v913 = vadd.f32 %v911, %v912
      %v914 = vsel %vm775, %v865, 0.0
      %v915 = vadd.f32 %v913, %v914
      %v916 = vsel %vm775, %v866, 0.0
      %v917 = vadd.f32 %v915, %v916
      %v918 = vsel %vm775, %v867, 0.0
      %v919 = vadd.f32 %v917, %v918
      %v920 = vsel %vm775, %v868, 0.0
      %v921 = vadd.f32 %v919, %v920
      %v922 = vsel %vm775, %v869, 0.0
      %v923 = vadd.f32 %v921, %v922
      %v924 = vsel %vm775, %v870, 0.0
      %v925 = vadd.f32 %v923, %v924
      %v926 = vsel %vm775, %v871, 0.0
      %v927 = vadd.f32 %v925, %v926
      %v928 = vsel %vm775, %v872, 0.0
      %v929 = vadd.f32 %v927, %v928
      %v930 = vsel %vm775, %v873, 0.0
      %v931 = vadd.f32 %v929, %v930
      %v932 = vsel %vm775, %v874, 0.0
      %v933 = vadd.f32 %v931, %v932
      %v934 = vsel %vm775, %v875, 0.0
      %v935 = vadd.f32 %v933, %v934
      %v936 = vsel %vm775, %v876, 0.0
      %v937 = vadd.f32 %v935, %v936
      %v938 = vsel %vm775, %v877, 0.0
      %v939 = vadd.f32 %v937, %v938
      %v940 = vsel %vm775, %v878, 0.0
      %v941 = vadd.f32 %v939, %v940
      %v942 = vrot.slane %v941, 4
      %v943 = vadd.f32 %v941, %v942
      %v944 = vrot.slane %v943, 2
      %v945 = vadd.f32 %v943, %v944
      %v946 = vrot.slane %v945, 1
      %v947 = vadd.f32 %v945, %v946
      %948 = vst.msk [vmem:[%s211 + $0x1] sm:$0x1] %vm845, %v947
      %s949 = smul.u32 32, %s16
      %p950 = scmp.lt.s32.totalorder %s949, 63
      %s951 = scalar_select %p950, %s949, 63
      %s952 = smul.addr %s951, 4
      %s953 = scalar_lea.vmem %s3, %s952
      %p954 = scmp.lt.s32.totalorder %s16, 1
      %s955 = scalar_select %p954, %s16, 1
      %s956 = smul.addr %s955, 2
      %s957 = scalar_lea.vmem %s4, %s956
      // Predicated region
      $region33: #{bottleneck_pallas.6} parent=31 // pred_check
        %p958 = pneg %p102
      $region34: #{bottleneck_pallas.6} parent=31 // pred_check_branch
        %960 = sbr.rel (%p958) target = $region36
      $region35: #{bottleneck_pallas.6} parent=31 // pred_region
        %s961 = smul.u32 32, %s16
      $region36: #{bottleneck_pallas.6} parent=31 // pred_fallthru
        _
      // Predicated region
      $region37: #{bottleneck_pallas.6} parent=31 // pred_check
        %p962 = pneg %p128
      $region38: #{bottleneck_pallas.6} parent=31 // pred_check_branch
        %964 = sbr.rel (%p962) target = $region40
      $region39: #{bottleneck_pallas.6} parent=31 // pred_region
        _
      $region40: #{bottleneck_pallas.6} parent=31 // pred_fallthru
        _
    $region32: #{bottleneck_pallas.6} parent=5 // pred_fallthru
      _
    %p965 = scmp.le.s32.totalorder 2, %s11
    // Predicated region
    $region41: #{bottleneck_pallas.6} parent=5 // pred_check
      %p966 = pneg %p965
    $region42: #{bottleneck_pallas.6} parent=5 // pred_check_branch
      %968 = sbr.rel (%p966) target = $region44
    $region43: #{bottleneck_pallas.6} parent=5 // pred_region
      %s969 = ssub.s32 %s11, 2
      // Predicated region
      $region45: #{bottleneck_pallas.6} parent=43 // pred_check
        %p970 = pneg %p108
      $region46: #{bottleneck_pallas.6} parent=43 // pred_check_branch
        %972 = sbr.rel (%p970) target = $region48
      $region47: #{bottleneck_pallas.6} parent=43 // pred_region
        %s973 = smul.u32 32, %s17
        %p974 = scmp.lt.s32.totalorder %s973, 63
        %s975 = scalar_select %p974, %s973, 63
        %s976 = smul.addr %s975, 4
        %s977 = scalar_lea.vmem %s3, %s976
      $region48: #{bottleneck_pallas.6} parent=43 // pred_fallthru
        _
      // Predicated region
      $region49: #{bottleneck_pallas.6} parent=43 // pred_check
        %p978 = pneg %p134
      $region50: #{bottleneck_pallas.6} parent=43 // pred_check_branch
        %980 = sbr.rel (%p978) target = $region52
      $region51: #{bottleneck_pallas.6} parent=43 // pred_region
        %p981 = scmp.lt.s32.totalorder %s17, 1
        %s982 = scalar_select %p981, %s17, 1
        %s983 = smul.addr %s982, 2
        %s984 = scalar_lea.vmem %s4, %s983
      $region52: #{bottleneck_pallas.6} parent=43 // pred_fallthru
        _
    $region44: #{bottleneck_pallas.6} parent=5 // pred_fallthru
      _
  $region6: #{bottleneck_pallas.6} parent=0 // loop_footer
    %s15 = sadd.s32 1, %s11
  $region7: #{bottleneck_pallas.6} parent=0 // loop_footer_branch
    %10 = sbr.rel target = $region3
  $region8: #{bottleneck_pallas.6} parent=0 // loop_exit
    _

// kernel: bottleneck_pallas.7
$region0: #{bottleneck_pallas.7}
  #allocation0 [shape = 'u32[]', space=smem, size = 0x4, offset = 0x4, fixed_abs, tag = 'smem constant byte address 0x4 - core index']
  #allocation1 [shape = 'u32[144,128]{1,0:T(1,128)}', space=vmem, size = 0x12000, scoped, tag = 'internal scratch']
  %s0 = inlined_call_operand.vmem [shape: bf16[512,16], index: 0, kind: input, shape index: {}]
  %s1 = inlined_call_operand.vmem [shape: f32[2,16], index: 1, kind: input, shape index: {}]
  %s2 = inlined_call_operand.vmem [shape: bf16[512,16], index: 2, kind: input, shape index: {}]
  %s3 = inlined_call_operand.vmem [shape: f32[512,16], index: 3, kind: output, shape index: {}]
  %s4 = sld [smem:[#allocation0]]
  $region45: #{bottleneck_pallas.7} parent=0
    _
  %s6 = ssub.s32 1, %s4
  %s7 = scalar_select 0, %s6, %s4
  loop: start=0, step=1, limit=4
  $region2: #{bottleneck_pallas.7} parent=0 // loop_pre_header
    _
  $region3: #{bottleneck_pallas.7} parent=0 // loop_header
    %s9 = sphi 0, %s13
    %p10 = scmp.ge.s32.totalorder %s9, 4
    %s19 = sphi 0, %s21
    %s22 = sphi 0, %s19
    %s23 = sphi 0, %s22
    %s39 = sphi 0, %s23
    %s43 = sphi 0, %s43
    %s45 = sphi 0, %s43
    %s46 = sphi 0, %s45
    %s60 = sphi 0, %s46
    %s66 = sphi 0, %s68
    %s69 = sphi 0, %s66
    %s70 = sphi 0, %s69
    %s86 = sphi 0, %s70
    %s92 = sphi 0, %s94
    %s95 = sphi 0, %s92
    %s96 = sphi 0, %s95
    %s112 = sphi 0, %s96
  $region4: #{bottleneck_pallas.7} parent=0 // loop_header_branch
    %12 = sbr.rel (%p10) target = $region8
  $region5: #{bottleneck_pallas.7} parent=0 // loop_body
    %s14 = ssub.s32 %s9, 1
    %s15 = ssub.s32 %s9, 2
    %s16 = sadd.s32 %s9, 1
    %s17 = ssub.s32 %s9, %s16
    %p18 = scmp.eq.s32.totalorder %s17, 0
    %s20 = sadd.s32 %s19, 1
    %s21 = scalar_select %p18, %s19, %s20
    %p24 = pneg %p18
    %p25 = scmp.eq.s32.totalorder %s9, 1
    %p26 = por %p24, %p25
    %p27 = scmp.ne.s32.totalorder %s19, %s22
    %p28 = scmp.eq.s32.totalorder %s9, 0
    %p29 = por %p27, %p28
    %p30 = scmp.ne.s32.totalorder %s19, %s22
    %p31 = scmp.eq.s32.totalorder %s14, 1
    %p32 = por %p30, %p31
    %p33 = scmp.ne.s32.totalorder %s22, %s23
    %p34 = scmp.eq.s32.totalorder %s14, 0
    %p35 = por %p33, %p34
    %p36 = scmp.ne.s32.totalorder %s22, %s23
    %p37 = scmp.eq.s32.totalorder %s15, 1
    %p38 = por %p36, %p37
    %p40 = scmp.ne.s32.totalorder %s23, %s39
    %p41 = scmp.eq.s32.totalorder %s15, 0
    %p42 = por %p40, %p41
    %s44 = sadd.s32 %s43, 1
    %p47 = scmp.eq.s32.totalorder %s9, 1
    %p48 = scmp.ne.s32.totalorder %s43, %s45
    %p49 = scmp.eq.s32.totalorder %s9, 0
    %p50 = por %p48, %p49
    %p51 = scmp.ne.s32.totalorder %s43, %s45
    %p52 = scmp.eq.s32.totalorder %s14, 1
    %p53 = por %p51, %p52
    %p54 = scmp.ne.s32.totalorder %s45, %s46
    %p55 = scmp.eq.s32.totalorder %s14, 0
    %p56 = por %p54, %p55
    %p57 = scmp.ne.s32.totalorder %s45, %s46
    %p58 = scmp.eq.s32.totalorder %s15, 1
    %p59 = por %p57, %p58
    %p61 = scmp.ne.s32.totalorder %s46, %s60
    %p62 = scmp.eq.s32.totalorder %s15, 0
    %p63 = por %p61, %p62
    %s64 = ssub.s32 %s9, %s16
    %p65 = scmp.eq.s32.totalorder %s64, 0
    %s67 = sadd.s32 %s66, 1
    %s68 = scalar_select %p65, %s66, %s67
    %p71 = pneg %p65
    %p72 = scmp.eq.s32.totalorder %s9, 1
    %p73 = por %p71, %p72
    %p74 = scmp.ne.s32.totalorder %s66, %s69
    %p75 = scmp.eq.s32.totalorder %s9, 0
    %p76 = por %p74, %p75
    %p77 = scmp.ne.s32.totalorder %s66, %s69
    %p78 = scmp.eq.s32.totalorder %s14, 1
    %p79 = por %p77, %p78
    %p80 = scmp.ne.s32.totalorder %s69, %s70
    %p81 = scmp.eq.s32.totalorder %s14, 0
    %p82 = por %p80, %p81
    %p83 = scmp.ne.s32.totalorder %s69, %s70
    %p84 = scmp.eq.s32.totalorder %s15, 1
    %p85 = por %p83, %p84
    %p87 = scmp.ne.s32.totalorder %s70, %s86
    %p88 = scmp.eq.s32.totalorder %s15, 0
    %p89 = por %p87, %p88
    %s90 = ssub.s32 %s9, %s16
    %p91 = scmp.eq.s32.totalorder %s90, 0
    %s93 = sadd.s32 %s92, 1
    %s94 = scalar_select %p91, %s92, %s93
    %p97 = pneg %p91
    %p98 = scmp.eq.s32.totalorder %s9, 1
    %p99 = por %p97, %p98
    %p100 = scmp.ne.s32.totalorder %s92, %s95
    %p101 = scmp.eq.s32.totalorder %s9, 0
    %p102 = por %p100, %p101
    %p103 = scmp.ne.s32.totalorder %s92, %s95
    %p104 = scmp.eq.s32.totalorder %s14, 1
    %p105 = por %p103, %p104
    %p106 = scmp.ne.s32.totalorder %s95, %s96
    %p107 = scmp.eq.s32.totalorder %s14, 0
    %p108 = por %p106, %p107
    %p109 = scmp.ne.s32.totalorder %s95, %s96
    %p110 = scmp.eq.s32.totalorder %s15, 1
    %p111 = por %p109, %p110
    %p113 = scmp.ne.s32.totalorder %s96, %s112
    %p114 = scmp.eq.s32.totalorder %s15, 0
    %p115 = por %p113, %p114
    %p116 = scmp.le.s32.totalorder 1, %s9
    %p117 = scmp.lt.s32.totalorder %s9, 3
    %p118 = pnand %p116, %p117
    %p119 = pneg %p118
    // Predicated region
    $region9: #{bottleneck_pallas.7} parent=5 // pred_check
      _
    $region10: #{bottleneck_pallas.7} parent=5 // pred_check_branch
      %121 = sbr.rel (%p118) target = $region12
    $region11: #{bottleneck_pallas.7} parent=5 // pred_region
      %s122 = ssub.s32 %s9, 1
      // Predicated region
      $region13: #{bottleneck_pallas.7} parent=11 // pred_check
        %p123 = pneg %p56
      $region14: #{bottleneck_pallas.7} parent=11 // pred_check_branch
        %125 = sbr.rel (%p123) target = $region16
      $region15: #{bottleneck_pallas.7} parent=11 // pred_region
        _
      $region16: #{bottleneck_pallas.7} parent=11 // pred_fallthru
        _
    $region12: #{bottleneck_pallas.7} parent=5 // pred_fallthru
      _
    %p126 = scmp.lt.s32.totalorder %s9, 2
    // Predicated region
    $region17: #{bottleneck_pallas.7} parent=5 // pred_check
      %p127 = pneg %p126
    $region18: #{bottleneck_pallas.7} parent=5 // pred_check_branch
      %129 = sbr.rel (%p127) target = $region20
    $region19: #{bottleneck_pallas.7} parent=5 // pred_region
      // Predicated region
      $region21: #{bottleneck_pallas.7} parent=19 // pred_check
        %p130 = pneg %p29
      $region22: #{bottleneck_pallas.7} parent=19 // pred_check_branch
        %132 = sbr.rel (%p130) target = $region24
      $region23: #{bottleneck_pallas.7} parent=19 // pred_region
        %s133 = smul.u32 32, %s9
        %p134 = scmp.lt.s32.totalorder %s133, 63
        %s135 = scalar_select %p134, %s133, 63
        %s136 = smul.addr %s135, 4
        %s137 = scalar_lea.vmem %s0, %s136
        %s138 = smul.u32 32, %s9
      $region24: #{bottleneck_pallas.7} parent=19 // pred_fallthru
        _
      // Predicated region
      $region25: #{bottleneck_pallas.7} parent=19 // pred_check
        %p139 = pneg %p76
      $region26: #{bottleneck_pallas.7} parent=19 // pred_check_branch
        %141 = sbr.rel (%p139) target = $region28
      $region27: #{bottleneck_pallas.7} parent=19 // pred_region
        %s142 = smul.u32 32, %s9
        %p143 = scmp.lt.s32.totalorder %s142, 63
        %s144 = scalar_select %p143, %s142, 63
        %s145 = smul.addr %s144, 4
        %s146 = scalar_lea.vmem %s2, %s145
        %s147 = smul.u32 32, %s9
      $region28: #{bottleneck_pallas.7} parent=19 // pred_fallthru
        _
    $region20: #{bottleneck_pallas.7} parent=5 // pred_fallthru
      _
    %p148 = scmp.le.s32.totalorder 1, %s9
    %p149 = scmp.lt.s32.totalorder %s9, 3
    %p150 = pnand %p148, %p149
    %p151 = pneg %p150
    // Predicated region
    $region29: #{bottleneck_pallas.7} parent=5 // pred_check
      _
    $region30: #{bottleneck_pallas.7} parent=5 // pred_check_branch
      %153 = sbr.rel (%p150) target = $region32
    $region31: #{bottleneck_pallas.7} parent=5 // pred_region
      %s154 = ssub.s32 %s9, 1
      %s155 = smul.u32 32, %s14
      %p156 = scmp.lt.s32.totalorder %s155, 63
      %s157 = scalar_select %p156, %s155, 63
      %s158 = smul.addr %s157, 4
      %s159 = scalar_lea.vmem %s0, %s158
      %p160 = pneg %p35
      %p161 = pneg %p32
      %p162 = pneg %p56
      %p163 = pneg %p53
      %s164 = smul.u32 32, %s14
      %p165 = scmp.lt.s32.totalorder %s164, 63
      %s166 = scalar_select %p165, %s164, 63
      %s167 = smul.addr %s166, 4
      %s168 = scalar_lea.vmem %s2, %s167
      %p169 = pneg %p82
      %p170 = pneg %p79
      %p171 = pneg %p108
      %p172 = pneg %p105
      %s173 = smul.u32 32, %s14
      %p174 = scmp.lt.s32.totalorder %s173, 63
      %s175 = scalar_select %p174, %s173, 63
      %s176 = smul.addr %s175, 8
      %s177 = scalar_lea.vmem %s3, %s176
      %s178 = smul.u32 32, %s14
      %p179 = scmp.lt.s32.totalorder %s178, 63
      %s180 = scalar_select %p179, %s178, 63
      %s181 = smul.addr %s180, 4
      %s182 = scalar_lea.vmem %s0, %s181
      %s183 = smul.u32 32, %s14
      %s184 = smul.u32 32, %s14
      %p185 = scmp.lt.s32.totalorder %s184, 63
      %s186 = scalar_select %p185, %s184, 63
      %s187 = smul.addr %s186, 4
      %s188 = scalar_lea.vmem %s2, %s187
      %s189 = smul.u32 32, %s14
      %s190 = smul.u32 32, %s14
      %p191 = scmp.lt.s32.totalorder %s190, 63
      %s192 = scalar_select %p191, %s190, 63
      %s193 = smul.addr %s192, 8
      %s194 = scalar_lea.vmem %s3, %s193
      %s195 = smul.u32 32, %s14
      %v196 = vld [vmem:[%s182] sm:$0xf]
      %v197 = vld [vmem:[%s182 + $0x4] sm:$0xf]
      %v198 = vld [vmem:[%s182 + $0x8] sm:$0xf]
      %v199 = vld [vmem:[%s182 + $0xc] sm:$0xf]
      %v200 = vld [vmem:[%s182 + $0x10] sm:$0xf]
      %v201 = vld [vmem:[%s182 + $0x14] sm:$0xf]
      %v202 = vld [vmem:[%s182 + $0x18] sm:$0xf]
      %v203 = vld [vmem:[%s182 + $0x1c] sm:$0xf]
      %v204 = vld [vmem:[%s182 + $0x20] sm:$0xf]
      %v205 = vld [vmem:[%s182 + $0x24] sm:$0xf]
      %v206 = vld [vmem:[%s182 + $0x28] sm:$0xf]
      %v207 = vld [vmem:[%s182 + $0x2c] sm:$0xf]
      %v208 = vld [vmem:[%s182 + $0x30] sm:$0xf]
      %v209 = vld [vmem:[%s182 + $0x34] sm:$0xf]
      %v210 = vld [vmem:[%s182 + $0x38] sm:$0xf]
      %v211 = vld [vmem:[%s182 + $0x3c] sm:$0xf]
      %v212 = vld [vmem:[%s182 + $0x40] sm:$0xf]
      %v213 = vld [vmem:[%s182 + $0x44] sm:$0xf]
      %v214 = vld [vmem:[%s182 + $0x48] sm:$0xf]
      %v215 = vld [vmem:[%s182 + $0x4c] sm:$0xf]
      %v216 = vld [vmem:[%s182 + $0x50] sm:$0xf]
      %v217 = vld [vmem:[%s182 + $0x54] sm:$0xf]
      %v218 = vld [vmem:[%s182 + $0x58] sm:$0xf]
      %v219 = vld [vmem:[%s182 + $0x5c] sm:$0xf]
      %v220 = vld [vmem:[%s182 + $0x60] sm:$0xf]
      %v221 = vld [vmem:[%s182 + $0x64] sm:$0xf]
      %v222 = vld [vmem:[%s182 + $0x68] sm:$0xf]
      %v223 = vld [vmem:[%s182 + $0x6c] sm:$0xf]
      %v224 = vld [vmem:[%s182 + $0x70] sm:$0xf]
      %v225 = vld [vmem:[%s182 + $0x74] sm:$0xf]
      %v226 = vld [vmem:[%s182 + $0x78] sm:$0xf]
      %v227 = vld [vmem:[%s182 + $0x7c] sm:$0xf]
      %v228 = vunpack.c.l.bf16 %v196
      %v229 = vunpack.c.l.bf16 %v197
      %v230 = vunpack.c.l.bf16 %v198
      %v231 = vunpack.c.l.bf16 %v199
      %v232 = vunpack.c.l.bf16 %v200
      %v233 = vunpack.c.l.bf16 %v201
      %v234 = vunpack.c.l.bf16 %v202
      %v235 = vunpack.c.l.bf16 %v203
      %v236 = vunpack.c.l.bf16 %v204
      %v237 = vunpack.c.l.bf16 %v205
      %v238 = vunpack.c.l.bf16 %v206
      %v239 = vunpack.c.l.bf16 %v207
      %v240 = vunpack.c.l.bf16 %v208
      %v241 = vunpack.c.l.bf16 %v209
      %v242 = vunpack.c.l.bf16 %v210
      %v243 = vunpack.c.l.bf16 %v211
      %v244 = vunpack.c.l.bf16 %v212
      %v245 = vunpack.c.l.bf16 %v213
      %v246 = vunpack.c.l.bf16 %v214
      %v247 = vunpack.c.l.bf16 %v215
      %v248 = vunpack.c.l.bf16 %v216
      %v249 = vunpack.c.l.bf16 %v217
      %v250 = vunpack.c.l.bf16 %v218
      %v251 = vunpack.c.l.bf16 %v219
      %v252 = vunpack.c.l.bf16 %v220
      %v253 = vunpack.c.l.bf16 %v221
      %v254 = vunpack.c.l.bf16 %v222
      %v255 = vunpack.c.l.bf16 %v223
      %v256 = vunpack.c.l.bf16 %v224
      %v257 = vunpack.c.l.bf16 %v225
      %v258 = vunpack.c.l.bf16 %v226
      %v259 = vunpack.c.l.bf16 %v227
      %v260 = vld [vmem:[%s1] sm:$0x1]
      %v261 = vlaneseq
      %v262 = vshrl.u32 %v261, 7
      %v263 = vsub.s32 0, %v262
      %v264 = vrot.slane %v260, %v263
      %v265 = vmul.f32 %v228, %v264
      %v266 = vmul.f32 %v229, %v264
      %v267 = vmul.f32 %v230, %v264
      %v268 = vmul.f32 %v231, %v264
      %v269 = vmul.f32 %v232, %v264
      %v270 = vmul.f32 %v233, %v264
      %v271 = vmul.f32 %v234, %v264
      %v272 = vmul.f32 %v235, %v264
      %v273 = vmul.f32 %v236, %v264
      %v274 = vmul.f32 %v237, %v264
      %v275 = vmul.f32 %v238, %v264
      %v276 = vmul.f32 %v239, %v264
      %v277 = vmul.f32 %v240, %v264
      %v278 = vmul.f32 %v241, %v264
      %v279 = vmul.f32 %v242, %v264
      %v280 = vmul.f32 %v243, %v264
      %v281 = vmul.f32 %v244, %v264
      %v282 = vmul.f32 %v245, %v264
      %v283 = vmul.f32 %v246, %v264
      %v284 = vmul.f32 %v247, %v264
      %v285 = vmul.f32 %v248, %v264
      %v286 = vmul.f32 %v249, %v264
      %v287 = vmul.f32 %v250, %v264
      %v288 = vmul.f32 %v251, %v264
      %v289 = vmul.f32 %v252, %v264
      %v290 = vmul.f32 %v253, %v264
      %v291 = vmul.f32 %v254, %v264
      %v292 = vmul.f32 %v255, %v264
      %v293 = vmul.f32 %v256, %v264
      %v294 = vmul.f32 %v257, %v264
      %v295 = vmul.f32 %v258, %v264
      %v296 = vmul.f32 %v259, %v264
      %v297 = vld [vmem:[%s1 + $0x1] sm:$0x1]
      %v298 = vlaneseq
      %v299 = vshrl.u32 %v298, 7
      %v300 = vsub.s32 0, %v299
      %v301 = vrot.slane %v297, %v300
      %v302 = vadd.f32 %v265, %v301
      %v303 = vadd.f32 %v266, %v301
      %v304 = vadd.f32 %v267, %v301
      %v305 = vadd.f32 %v268, %v301
      %v306 = vadd.f32 %v269, %v301
      %v307 = vadd.f32 %v270, %v301
      %v308 = vadd.f32 %v271, %v301
      %v309 = vadd.f32 %v272, %v301
      %v310 = vadd.f32 %v273, %v301
      %v311 = vadd.f32 %v274, %v301
      %v312 = vadd.f32 %v275, %v301
      %v313 = vadd.f32 %v276, %v301
      %v314 = vadd.f32 %v277, %v301
      %v315 = vadd.f32 %v278, %v301
      %v316 = vadd.f32 %v279, %v301
      %v317 = vadd.f32 %v280, %v301
      %v318 = vadd.f32 %v281, %v301
      %v319 = vadd.f32 %v282, %v301
      %v320 = vadd.f32 %v283, %v301
      %v321 = vadd.f32 %v284, %v301
      %v322 = vadd.f32 %v285, %v301
      %v323 = vadd.f32 %v286, %v301
      %v324 = vadd.f32 %v287, %v301
      %v325 = vadd.f32 %v288, %v301
      %v326 = vadd.f32 %v289, %v301
      %v327 = vadd.f32 %v290, %v301
      %v328 = vadd.f32 %v291, %v301
      %v329 = vadd.f32 %v292, %v301
      %v330 = vadd.f32 %v293, %v301
      %v331 = vadd.f32 %v294, %v301
      %v332 = vadd.f32 %v295, %v301
      %v333 = vadd.f32 %v296, %v301
      %v334 = vld [vmem:[%s188] sm:$0xf]
      %v335 = vld [vmem:[%s188 + $0x4] sm:$0xf]
      %v336 = vld [vmem:[%s188 + $0x8] sm:$0xf]
      %v337 = vld [vmem:[%s188 + $0xc] sm:$0xf]
      %v338 = vld [vmem:[%s188 + $0x10] sm:$0xf]
      %v339 = vld [vmem:[%s188 + $0x14] sm:$0xf]
      %v340 = vld [vmem:[%s188 + $0x18] sm:$0xf]
      %v341 = vld [vmem:[%s188 + $0x1c] sm:$0xf]
      %v342 = vld [vmem:[%s188 + $0x20] sm:$0xf]
      %v343 = vld [vmem:[%s188 + $0x24] sm:$0xf]
      %v344 = vld [vmem:[%s188 + $0x28] sm:$0xf]
      %v345 = vld [vmem:[%s188 + $0x2c] sm:$0xf]
      %v346 = vld [vmem:[%s188 + $0x30] sm:$0xf]
      %v347 = vld [vmem:[%s188 + $0x34] sm:$0xf]
      %v348 = vld [vmem:[%s188 + $0x38] sm:$0xf]
      %v349 = vld [vmem:[%s188 + $0x3c] sm:$0xf]
      %v350 = vld [vmem:[%s188 + $0x40] sm:$0xf]
      %v351 = vld [vmem:[%s188 + $0x44] sm:$0xf]
      %v352 = vld [vmem:[%s188 + $0x48] sm:$0xf]
      %v353 = vld [vmem:[%s188 + $0x4c] sm:$0xf]
      %v354 = vld [vmem:[%s188 + $0x50] sm:$0xf]
      %v355 = vld [vmem:[%s188 + $0x54] sm:$0xf]
      %v356 = vld [vmem:[%s188 + $0x58] sm:$0xf]
      %v357 = vld [vmem:[%s188 + $0x5c] sm:$0xf]
      %v358 = vld [vmem:[%s188 + $0x60] sm:$0xf]
      %v359 = vld [vmem:[%s188 + $0x64] sm:$0xf]
      %v360 = vld [vmem:[%s188 + $0x68] sm:$0xf]
      %v361 = vld [vmem:[%s188 + $0x6c] sm:$0xf]
      %v362 = vld [vmem:[%s188 + $0x70] sm:$0xf]
      %v363 = vld [vmem:[%s188 + $0x74] sm:$0xf]
      %v364 = vld [vmem:[%s188 + $0x78] sm:$0xf]
      %v365 = vld [vmem:[%s188 + $0x7c] sm:$0xf]
      %v366 = vunpack.c.l.bf16 %v334
      %v367 = vunpack.c.l.bf16 %v335
      %v368 = vunpack.c.l.bf16 %v336
      %v369 = vunpack.c.l.bf16 %v337
      %v370 = vunpack.c.l.bf16 %v338
      %v371 = vunpack.c.l.bf16 %v339
      %v372 = vunpack.c.l.bf16 %v340
      %v373 = vunpack.c.l.bf16 %v341
      %v374 = vunpack.c.l.bf16 %v342
      %v375 = vunpack.c.l.bf16 %v343
      %v376 = vunpack.c.l.bf16 %v344
      %v377 = vunpack.c.l.bf16 %v345
      %v378 = vunpack.c.l.bf16 %v346
      %v379 = vunpack.c.l.bf16 %v347
      %v380 = vunpack.c.l.bf16 %v348
      %v381 = vunpack.c.l.bf16 %v349
      %v382 = vunpack.c.l.bf16 %v350
      %v383 = vunpack.c.l.bf16 %v351
      %v384 = vunpack.c.l.bf16 %v352
      %v385 = vunpack.c.l.bf16 %v353
      %v386 = vunpack.c.l.bf16 %v354
      %v387 = vunpack.c.l.bf16 %v355
      %v388 = vunpack.c.l.bf16 %v356
      %v389 = vunpack.c.l.bf16 %v357
      %v390 = vunpack.c.l.bf16 %v358
      %v391 = vunpack.c.l.bf16 %v359
      %v392 = vunpack.c.l.bf16 %v360
      %v393 = vunpack.c.l.bf16 %v361
      %v394 = vunpack.c.l.bf16 %v362
      %v395 = vunpack.c.l.bf16 %v363
      %v396 = vunpack.c.l.bf16 %v364
      %v397 = vunpack.c.l.bf16 %v365
      %v398 = vadd.f32 %v302, %v366
      %v399 = vadd.f32 %v303, %v367
      %v400 = vadd.f32 %v304, %v368
      %v401 = vadd.f32 %v305, %v369
      %v402 = vadd.f32 %v306, %v370
      %v403 = vadd.f32 %v307, %v371
      %v404 = vadd.f32 %v308, %v372
      %v405 = vadd.f32 %v309, %v373
      %v406 = vadd.f32 %v310, %v374
      %v407 = vadd.f32 %v311, %v375
      %v408 = vadd.f32 %v312, %v376
      %v409 = vadd.f32 %v313, %v377
      %v410 = vadd.f32 %v314, %v378
      %v411 = vadd.f32 %v315, %v379
      %v412 = vadd.f32 %v316, %v380
      %v413 = vadd.f32 %v317, %v381
      %v414 = vadd.f32 %v318, %v382
      %v415 = vadd.f32 %v319, %v383
      %v416 = vadd.f32 %v320, %v384
      %v417 = vadd.f32 %v321, %v385
      %v418 = vadd.f32 %v322, %v386
      %v419 = vadd.f32 %v323, %v387
      %v420 = vadd.f32 %v324, %v388
      %v421 = vadd.f32 %v325, %v389
      %v422 = vadd.f32 %v326, %v390
      %v423 = vadd.f32 %v327, %v391
      %v424 = vadd.f32 %v328, %v392
      %v425 = vadd.f32 %v329, %v393
      %v426 = vadd.f32 %v330, %v394
      %v427 = vadd.f32 %v331, %v395
      %v428 = vadd.f32 %v332, %v396
      %v429 = vadd.f32 %v333, %v397
      %v430 = vmax.f32 %v398, 0.0
      %v431 = vmax.f32 %v399, 0.0
      %v432 = vmax.f32 %v400, 0.0
      %v433 = vmax.f32 %v401, 0.0
      %v434 = vmax.f32 %v402, 0.0
      %v435 = vmax.f32 %v403, 0.0
      %v436 = vmax.f32 %v404, 0.0
      %v437 = vmax.f32 %v405, 0.0
      %v438 = vmax.f32 %v406, 0.0
      %v439 = vmax.f32 %v407, 0.0
      %v440 = vmax.f32 %v408, 0.0
      %v441 = vmax.f32 %v409, 0.0
      %v442 = vmax.f32 %v410, 0.0
      %v443 = vmax.f32 %v411, 0.0
      %v444 = vmax.f32 %v412, 0.0
      %v445 = vmax.f32 %v413, 0.0
      %v446 = vmax.f32 %v414, 0.0
      %v447 = vmax.f32 %v415, 0.0
      %v448 = vmax.f32 %v416, 0.0
      %v449 = vmax.f32 %v417, 0.0
      %v450 = vmax.f32 %v418, 0.0
      %v451 = vmax.f32 %v419, 0.0
      %v452 = vmax.f32 %v420, 0.0
      %v453 = vmax.f32 %v421, 0.0
      %v454 = vmax.f32 %v422, 0.0
      %v455 = vmax.f32 %v423, 0.0
      %v456 = vmax.f32 %v424, 0.0
      %v457 = vmax.f32 %v425, 0.0
      %v458 = vmax.f32 %v426, 0.0
      %v459 = vmax.f32 %v427, 0.0
      %v460 = vmax.f32 %v428, 0.0
      %v461 = vmax.f32 %v429, 0.0
      %vm462 = vcmask 130048
      %463 = vst.msk [vmem:[%s194] sm:$0xff] %vm462, %v430
      %464 = vst.msk [vmem:[%s194 + $0x8] sm:$0xff] %vm462, %v431
      %465 = vst.msk [vmem:[%s194 + $0x10] sm:$0xff] %vm462, %v432
      %466 = vst.msk [vmem:[%s194 + $0x18] sm:$0xff] %vm462, %v433
      %467 = vst.msk [vmem:[%s194 + $0x20] sm:$0xff] %vm462, %v434
      %468 = vst.msk [vmem:[%s194 + $0x28] sm:$0xff] %vm462, %v435
      %469 = vst.msk [vmem:[%s194 + $0x30] sm:$0xff] %vm462, %v436
      %470 = vst.msk [vmem:[%s194 + $0x38] sm:$0xff] %vm462, %v437
      %471 = vst.msk [vmem:[%s194 + $0x40] sm:$0xff] %vm462, %v438
      %472 = vst.msk [vmem:[%s194 + $0x48] sm:$0xff] %vm462, %v439
      %473 = vst.msk [vmem:[%s194 + $0x50] sm:$0xff] %vm462, %v440
      %474 = vst.msk [vmem:[%s194 + $0x58] sm:$0xff] %vm462, %v441
      %475 = vst.msk [vmem:[%s194 + $0x60] sm:$0xff] %vm462, %v442
      %476 = vst.msk [vmem:[%s194 + $0x68] sm:$0xff] %vm462, %v443
      %477 = vst.msk [vmem:[%s194 + $0x70] sm:$0xff] %vm462, %v444
      %478 = vst.msk [vmem:[%s194 + $0x78] sm:$0xff] %vm462, %v445
      %479 = vst.msk [vmem:[%s194 + $0x80] sm:$0xff] %vm462, %v446
      %480 = vst.msk [vmem:[%s194 + $0x88] sm:$0xff] %vm462, %v447
      %481 = vst.msk [vmem:[%s194 + $0x90] sm:$0xff] %vm462, %v448
      %482 = vst.msk [vmem:[%s194 + $0x98] sm:$0xff] %vm462, %v449
      %483 = vst.msk [vmem:[%s194 + $0xa0] sm:$0xff] %vm462, %v450
      %484 = vst.msk [vmem:[%s194 + $0xa8] sm:$0xff] %vm462, %v451
      %485 = vst.msk [vmem:[%s194 + $0xb0] sm:$0xff] %vm462, %v452
      %486 = vst.msk [vmem:[%s194 + $0xb8] sm:$0xff] %vm462, %v453
      %487 = vst.msk [vmem:[%s194 + $0xc0] sm:$0xff] %vm462, %v454
      %488 = vst.msk [vmem:[%s194 + $0xc8] sm:$0xff] %vm462, %v455
      %489 = vst.msk [vmem:[%s194 + $0xd0] sm:$0xff] %vm462, %v456
      %490 = vst.msk [vmem:[%s194 + $0xd8] sm:$0xff] %vm462, %v457
      %491 = vst.msk [vmem:[%s194 + $0xe0] sm:$0xff] %vm462, %v458
      %492 = vst.msk [vmem:[%s194 + $0xe8] sm:$0xff] %vm462, %v459
      %493 = vst.msk [vmem:[%s194 + $0xf0] sm:$0xff] %vm462, %v460
      %494 = vst.msk [vmem:[%s194 + $0xf8] sm:$0xff] %vm462, %v461
      %s495 = smul.u32 32, %s14
      %p496 = scmp.lt.s32.totalorder %s495, 63
      %s497 = scalar_select %p496, %s495, 63
      %s498 = smul.addr %s497, 8
      %s499 = scalar_lea.vmem %s3, %s498
      // Predicated region
      $region33: #{bottleneck_pallas.7} parent=31 // pred_check
        %p500 = pneg %p105
      $region34: #{bottleneck_pallas.7} parent=31 // pred_check_branch
        %502 = sbr.rel (%p500) target = $region36
      $region35: #{bottleneck_pallas.7} parent=31 // pred_region
        %s503 = smul.u32 32, %s14
      $region36: #{bottleneck_pallas.7} parent=31 // pred_fallthru
        _
    $region32: #{bottleneck_pallas.7} parent=5 // pred_fallthru
      _
    %p504 = scmp.le.s32.totalorder 2, %s9
    // Predicated region
    $region37: #{bottleneck_pallas.7} parent=5 // pred_check
      %p505 = pneg %p504
    $region38: #{bottleneck_pallas.7} parent=5 // pred_check_branch
      %507 = sbr.rel (%p505) target = $region40
    $region39: #{bottleneck_pallas.7} parent=5 // pred_region
      %s508 = ssub.s32 %s9, 2
      // Predicated region
      $region41: #{bottleneck_pallas.7} parent=39 // pred_check
        %p509 = pneg %p111
      $region42: #{bottleneck_pallas.7} parent=39 // pred_check_branch
        %511 = sbr.rel (%p509) target = $region44
      $region43: #{bottleneck_pallas.7} parent=39 // pred_region
        %s512 = smul.u32 32, %s15
        %p513 = scmp.lt.s32.totalorder %s512, 63
        %s514 = scalar_select %p513, %s512, 63
        %s515 = smul.addr %s514, 8
        %s516 = scalar_lea.vmem %s3, %s515
      $region44: #{bottleneck_pallas.7} parent=39 // pred_fallthru
        _
    $region40: #{bottleneck_pallas.7} parent=5 // pred_fallthru
      _
  $region6: #{bottleneck_pallas.7} parent=0 // loop_footer
    %s13 = sadd.s32 1, %s9
  $region7: #{bottleneck_pallas.7} parent=0 // loop_footer_branch
    %8 = sbr.rel target = $region3
  $region8: #{bottleneck_pallas.7} parent=0 // loop_exit
    _

// kernel: bottleneck_pallas.5
$region0: #{bottleneck_pallas.5}
  #allocation0 [shape = 'u32[]', space=smem, size = 0x4, offset = 0x4, fixed_abs, tag = 'smem constant byte address 0x4 - core index']
  #allocation1 [shape = 'u32[144,128]{1,0:T(1,128)}', space=vmem, size = 0x12000, scoped, tag = 'internal scratch']
  #allocation2 [shape = 'bf16[18,32,4]{2,1,0:T(16,128)(2,1)}', space=vmem, size = 0x24000, scoped, tag = 'scratch operand']
  %s0 = inlined_call_operand.vmem [shape: bf16[512,4], index: 0, kind: input, shape index: {}]
  %s1 = inlined_call_operand.vmem [shape: f32[2,4], index: 1, kind: input, shape index: {}]
  %s2 = inlined_call_operand.vmem [shape: bf16[9,4,4], index: 2, kind: input, shape index: {}]
  %s3 = inlined_call_operand.vmem [shape: bf16[512,4], index: 3, kind: output, shape index: {0}]
  %s4 = inlined_call_operand.vmem [shape: f32[2,2,4], index: 4, kind: output, shape index: {1}]
  %5 = xla_tuple %s3, %s4
  %s6 = sld [smem:[#allocation0]]
  $region53: #{bottleneck_pallas.5} parent=0
    _
  %s8 = ssub.s32 1, %s6
  %s9 = scalar_select 0, %s8, %s6
  loop: start=0, step=1, limit=4
  $region2: #{bottleneck_pallas.5} parent=0 // loop_pre_header
    _
  $region3: #{bottleneck_pallas.5} parent=0 // loop_header
    %s11 = sphi 0, %s15
    %p12 = scmp.ge.s32.totalorder %s11, 4
    %s21 = sphi 0, %s23
    %s24 = sphi 0, %s21
    %s25 = sphi 0, %s24
    %s41 = sphi 0, %s25
    %s45 = sphi 0, %s45
    %s47 = sphi 0, %s45
    %s48 = sphi 0, %s47
    %s62 = sphi 0, %s48
    %s66 = sphi 0, %s66
    %s68 = sphi 0, %s66
    %s69 = sphi 0, %s68
    %s83 = sphi 0, %s69
    %s89 = sphi 0, %s91
    %s92 = sphi 0, %s89
    %s93 = sphi 0, %s92
    %s109 = sphi 0, %s93
    %s115 = sphi 0, %s117
    %s118 = sphi 0, %s115
    %s119 = sphi 0, %s118
    %s135 = sphi 0, %s119
  $region4: #{bottleneck_pallas.5} parent=0 // loop_header_branch
    %14 = sbr.rel (%p12) target = $region8
  $region5: #{bottleneck_pallas.5} parent=0 // loop_body
    %s16 = ssub.s32 %s11, 1
    %s17 = ssub.s32 %s11, 2
    %s18 = sadd.s32 %s11, 1
    %s19 = ssub.s32 %s11, %s18
    %p20 = scmp.eq.s32.totalorder %s19, 0
    %s22 = sadd.s32 %s21, 1
    %s23 = scalar_select %p20, %s21, %s22
    %p26 = pneg %p20
    %p27 = scmp.eq.s32.totalorder %s11, 1
    %p28 = por %p26, %p27
    %p29 = scmp.ne.s32.totalorder %s21, %s24
    %p30 = scmp.eq.s32.totalorder %s11, 0
    %p31 = por %p29, %p30
    %p32 = scmp.ne.s32.totalorder %s21, %s24
    %p33 = scmp.eq.s32.totalorder %s16, 1
    %p34 = por %p32, %p33
    %p35 = scmp.ne.s32.totalorder %s24, %s25
    %p36 = scmp.eq.s32.totalorder %s16, 0
    %p37 = por %p35, %p36
    %p38 = scmp.ne.s32.totalorder %s24, %s25
    %p39 = scmp.eq.s32.totalorder %s17, 1
    %p40 = por %p38, %p39
    %p42 = scmp.ne.s32.totalorder %s25, %s41
    %p43 = scmp.eq.s32.totalorder %s17, 0
    %p44 = por %p42, %p43
    %s46 = sadd.s32 %s45, 1
    %p49 = scmp.eq.s32.totalorder %s11, 1
    %p50 = scmp.ne.s32.totalorder %s45, %s47
    %p51 = scmp.eq.s32.totalorder %s11, 0
    %p52 = por %p50, %p51
    %p53 = scmp.ne.s32.totalorder %s45, %s47
    %p54 = scmp.eq.s32.totalorder %s16, 1
    %p55 = por %p53, %p54
    %p56 = scmp.ne.s32.totalorder %s47, %s48
    %p57 = scmp.eq.s32.totalorder %s16, 0
    %p58 = por %p56, %p57
    %p59 = scmp.ne.s32.totalorder %s47, %s48
    %p60 = scmp.eq.s32.totalorder %s17, 1
    %p61 = por %p59, %p60
    %p63 = scmp.ne.s32.totalorder %s48, %s62
    %p64 = scmp.eq.s32.totalorder %s17, 0
    %p65 = por %p63, %p64
    %s67 = sadd.s32 %s66, 1
    %p70 = scmp.eq.s32.totalorder %s11, 1
    %p71 = scmp.ne.s32.totalorder %s66, %s68
    %p72 = scmp.eq.s32.totalorder %s11, 0
    %p73 = por %p71, %p72
    %p74 = scmp.ne.s32.totalorder %s66, %s68
    %p75 = scmp.eq.s32.totalorder %s16, 1
    %p76 = por %p74, %p75
    %p77 = scmp.ne.s32.totalorder %s68, %s69
    %p78 = scmp.eq.s32.totalorder %s16, 0
    %p79 = por %p77, %p78
    %p80 = scmp.ne.s32.totalorder %s68, %s69
    %p81 = scmp.eq.s32.totalorder %s17, 1
    %p82 = por %p80, %p81
    %p84 = scmp.ne.s32.totalorder %s69, %s83
    %p85 = scmp.eq.s32.totalorder %s17, 0
    %p86 = por %p84, %p85
    %s87 = ssub.s32 %s11, %s18
    %p88 = scmp.eq.s32.totalorder %s87, 0
    %s90 = sadd.s32 %s89, 1
    %s91 = scalar_select %p88, %s89, %s90
    %p94 = pneg %p88
    %p95 = scmp.eq.s32.totalorder %s11, 1
    %p96 = por %p94, %p95
    %p97 = scmp.ne.s32.totalorder %s89, %s92
    %p98 = scmp.eq.s32.totalorder %s11, 0
    %p99 = por %p97, %p98
    %p100 = scmp.ne.s32.totalorder %s89, %s92
    %p101 = scmp.eq.s32.totalorder %s16, 1
    %p102 = por %p100, %p101
    %p103 = scmp.ne.s32.totalorder %s92, %s93
    %p104 = scmp.eq.s32.totalorder %s16, 0
    %p105 = por %p103, %p104
    %p106 = scmp.ne.s32.totalorder %s92, %s93
    %p107 = scmp.eq.s32.totalorder %s17, 1
    %p108 = por %p106, %p107
    %p110 = scmp.ne.s32.totalorder %s93, %s109
    %p111 = scmp.eq.s32.totalorder %s17, 0
    %p112 = por %p110, %p111
    %s113 = ssub.s32 %s11, %s18
    %p114 = scmp.eq.s32.totalorder %s113, 0
    %s116 = sadd.s32 %s115, 1
    %s117 = scalar_select %p114, %s115, %s116
    %p120 = pneg %p114
    %p121 = scmp.eq.s32.totalorder %s11, 1
    %p122 = por %p120, %p121
    %p123 = scmp.ne.s32.totalorder %s115, %s118
    %p124 = scmp.eq.s32.totalorder %s11, 0
    %p125 = por %p123, %p124
    %p126 = scmp.ne.s32.totalorder %s115, %s118
    %p127 = scmp.eq.s32.totalorder %s16, 1
    %p128 = por %p126, %p127
    %p129 = scmp.ne.s32.totalorder %s118, %s119
    %p130 = scmp.eq.s32.totalorder %s16, 0
    %p131 = por %p129, %p130
    %p132 = scmp.ne.s32.totalorder %s118, %s119
    %p133 = scmp.eq.s32.totalorder %s17, 1
    %p134 = por %p132, %p133
    %p136 = scmp.ne.s32.totalorder %s119, %s135
    %p137 = scmp.eq.s32.totalorder %s17, 0
    %p138 = por %p136, %p137
    %p139 = scmp.le.s32.totalorder 1, %s11
    %p140 = scmp.lt.s32.totalorder %s11, 3
    %p141 = pnand %p139, %p140
    %p142 = pneg %p141
    // Predicated region
    $region9: #{bottleneck_pallas.5} parent=5 // pred_check
      _
    $region10: #{bottleneck_pallas.5} parent=5 // pred_check_branch
      %144 = sbr.rel (%p141) target = $region12
    $region11: #{bottleneck_pallas.5} parent=5 // pred_region
      %s145 = ssub.s32 %s11, 1
      // Predicated region
      $region13: #{bottleneck_pallas.5} parent=11 // pred_check
        %p146 = pneg %p58
      $region14: #{bottleneck_pallas.5} parent=11 // pred_check_branch
        %148 = sbr.rel (%p146) target = $region16
      $region15: #{bottleneck_pallas.5} parent=11 // pred_region
        _
      $region16: #{bottleneck_pallas.5} parent=11 // pred_fallthru
        _
      // Predicated region
      $region17: #{bottleneck_pallas.5} parent=11 // pred_check
        %p149 = pneg %p79
      $region18: #{bottleneck_pallas.5} parent=11 // pred_check_branch
        %151 = sbr.rel (%p149) target = $region20
      $region19: #{bottleneck_pallas.5} parent=11 // pred_region
        _
      $region20: #{bottleneck_pallas.5} parent=11 // pred_fallthru
        _
    $region12: #{bottleneck_pallas.5} parent=5 // pred_fallthru
      _
    %p152 = scmp.lt.s32.totalorder %s11, 2
    // Predicated region
    $region21: #{bottleneck_pallas.5} parent=5 // pred_check
      %p153 = pneg %p152
    $region22: #{bottleneck_pallas.5} parent=5 // pred_check_branch
      %155 = sbr.rel (%p153) target = $region24
    $region23: #{bottleneck_pallas.5} parent=5 // pred_region
      // Predicated region
      $region25: #{bottleneck_pallas.5} parent=23 // pred_check
        %p156 = pneg %p31
      $region26: #{bottleneck_pallas.5} parent=23 // pred_check_branch
        %158 = sbr.rel (%p156) target = $region28
      $region27: #{bottleneck_pallas.5} parent=23 // pred_region
        %s159 = smul.u32 32, %s11
        %p160 = scmp.lt.s32.totalorder %s159, 63
        %s161 = scalar_select %p160, %s159, 63
        %s162 = smul.addr %s161, 4
        %s163 = scalar_lea.vmem %s0, %s162
        %s164 = smul.u32 32, %s11
      $region28: #{bottleneck_pallas.5} parent=23 // pred_fallthru
        _
    $region24: #{bottleneck_pallas.5} parent=5 // pred_fallthru
      _
    %p165 = scmp.le.s32.totalorder 1, %s11
    %p166 = scmp.lt.s32.totalorder %s11, 3
    %p167 = pnand %p165, %p166
    %p168 = pneg %p167
    // Predicated region
    $region29: #{bottleneck_pallas.5} parent=5 // pred_check
      _
    $region30: #{bottleneck_pallas.5} parent=5 // pred_check_branch
      %170 = sbr.rel (%p167) target = $region32
    $region31: #{bottleneck_pallas.5} parent=5 // pred_region
      %s171 = ssub.s32 %s11, 1
      %s172 = smul.u32 32, %s16
      %p173 = scmp.lt.s32.totalorder %s172, 63
      %s174 = scalar_select %p173, %s172, 63
      %s175 = smul.addr %s174, 4
      %s176 = scalar_lea.vmem %s0, %s175
      %p177 = pneg %p37
      %p178 = pneg %p34
      %p179 = pneg %p58
      %p180 = pneg %p55
      %p181 = pneg %p79
      %p182 = pneg %p76
      %p183 = pneg %p105
      %p184 = pneg %p102
      %s185 = smul.u32 32, %s16
      %p186 = scmp.lt.s32.totalorder %s185, 63
      %s187 = scalar_select %p186, %s185, 63
      %s188 = smul.addr %s187, 4
      %s189 = scalar_lea.vmem %s3, %s188
      %p190 = pneg %p131
      %p191 = pneg %p128
      %p192 = scmp.lt.s32.totalorder %s16, 1
      %s193 = scalar_select %p192, %s16, 1
      %s194 = smul.addr %s193, 2
      %s195 = scalar_lea.vmem %s4, %s194
      %s196 = smul.u32 32, %s16
      %p197 = scmp.lt.s32.totalorder %s196, 63
      %s198 = scalar_select %p197, %s196, 63
      %s199 = smul.addr %s198, 4
      %s200 = scalar_lea.vmem %s0, %s199
      %s201 = smul.u32 32, %s16
      %s202 = smul.u32 32, %s16
      %p203 = scmp.lt.s32.totalorder %s202, 63
      %s204 = scalar_select %p203, %s202, 63
      %s205 = smul.addr %s204, 4
      %s206 = scalar_lea.vmem %s3, %s205
      %s207 = smul.u32 32, %s16
      %p208 = scmp.lt.s32.totalorder %s16, 1
      %s209 = scalar_select %p208, %s16, 1
      %s210 = smul.addr %s209, 2
      %s211 = scalar_lea.vmem %s4, %s210
      %vm213 = vcmask 27648
      %214 = vst.msk [vmem:[#allocation2] sm:$0xf] %vm213, 0
      %215 = vst.msk [vmem:[#allocation2 + $0x10] sm:$0xf] %vm213, 0
      %216 = vst.msk [vmem:[#allocation2 + $0x20] sm:$0xf] %vm213, 0
      %217 = vst.msk [vmem:[#allocation2 + $0x30] sm:$0xf] %vm213, 0
      %218 = vst.msk [vmem:[#allocation2 + $0x40] sm:$0xf] %vm213, 0
      %219 = vst.msk [vmem:[#allocation2 + $0x50] sm:$0xf] %vm213, 0
      %220 = vst.msk [vmem:[#allocation2 + $0x60] sm:$0xf] %vm213, 0
      %221 = vst.msk [vmem:[#allocation2 + $0x70] sm:$0xf] %vm213, 0
      %222 = vst.msk [vmem:[#allocation2 + $0x80] sm:$0xf] %vm213, 0
      %223 = vst.msk [vmem:[#allocation2 + $0x90] sm:$0xf] %vm213, 0
      %224 = vst.msk [vmem:[#allocation2 + $0xa0] sm:$0xf] %vm213, 0
      %225 = vst.msk [vmem:[#allocation2 + $0xb0] sm:$0xf] %vm213, 0
      %226 = vst.msk [vmem:[#allocation2 + $0xc0] sm:$0xf] %vm213, 0
      %227 = vst.msk [vmem:[#allocation2 + $0xd0] sm:$0xf] %vm213, 0
      %228 = vst.msk [vmem:[#allocation2 + $0xe0] sm:$0xf] %vm213, 0
      %229 = vst.msk [vmem:[#allocation2 + $0xf0] sm:$0xf] %vm213, 0
      %230 = vst.msk [vmem:[#allocation2 + $0x100] sm:$0xf] %vm213, 0
      %231 = vst.msk [vmem:[#allocation2 + $0x110] sm:$0xf] %vm213, 0
      %vm232 = vcmask 31748
      %233 = vst.msk [vmem:[#allocation2 + $0x8] sm:$0xf0] %vm232, 0
      %234 = vst.msk [vmem:[#allocation2 + $0x18] sm:$0xf0] %vm232, 0
      %235 = vst.msk [vmem:[#allocation2 + $0x28] sm:$0xf0] %vm232, 0
      %236 = vst.msk [vmem:[#allocation2 + $0x38] sm:$0xf0] %vm232, 0
      %237 = vst.msk [vmem:[#allocation2 + $0x48] sm:$0xf0] %vm232, 0
      %238 = vst.msk [vmem:[#allocation2 + $0x58] sm:$0xf0] %vm232, 0
      %239 = vst.msk [vmem:[#allocation2 + $0x68] sm:$0xf0] %vm232, 0
      %240 = vst.msk [vmem:[#allocation2 + $0x78] sm:$0xf0] %vm232, 0
      %241 = vst.msk [vmem:[#allocation2 + $0x88] sm:$0xf0] %vm232, 0
      %242 = vst.msk [vmem:[#allocation2 + $0x98] sm:$0xf0] %vm232, 0
      %243 = vst.msk [vmem:[#allocation2 + $0xa8] sm:$0xf0] %vm232, 0
      %244 = vst.msk [vmem:[#allocation2 + $0xb8] sm:$0xf0] %vm232, 0
      %245 = vst.msk [vmem:[#allocation2 + $0xc8] sm:$0xf0] %vm232, 0
      %246 = vst.msk [vmem:[#allocation2 + $0xd8] sm:$0xf0] %vm232, 0
      %247 = vst.msk [vmem:[#allocation2 + $0xe8] sm:$0xf0] %vm232, 0
      %248 = vst.msk [vmem:[#allocation2 + $0xf8] sm:$0xf0] %vm232, 0
      %249 = vst.msk [vmem:[#allocation2 + $0x108] sm:$0xf0] %vm232, 0
      %250 = vst.msk [vmem:[#allocation2 + $0x118] sm:$0xf0] %vm232, 0
      %251 = vst.msk [vmem:[#allocation2] sm:$0xf0] %vm232, 0
      %252 = vst.msk [vmem:[#allocation2 + $0x8] sm:$0xf] %vm213, 0
      %s253 = scalar_lea.vmem [#allocation2], 272
      %254 = vst.msk [vmem:[%s253] sm:$0xf0] %vm232, 0
      %255 = vst.msk [vmem:[%s253 + $0x8] sm:$0xf] %vm213, 0
      %v256 = vld [vmem:[%s200] sm:$0xf]
      %v257 = vld [vmem:[%s200 + $0x4] sm:$0xf]
      %v258 = vld [vmem:[%s200 + $0x8] sm:$0xf]
      %v259 = vld [vmem:[%s200 + $0xc] sm:$0xf]
      %v260 = vld [vmem:[%s200 + $0x10] sm:$0xf]
      %v261 = vld [vmem:[%s200 + $0x14] sm:$0xf]
      %v262 = vld [vmem:[%s200 + $0x18] sm:$0xf]
      %v263 = vld [vmem:[%s200 + $0x1c] sm:$0xf]
      %v264 = vld [vmem:[%s200 + $0x20] sm:$0xf]
      %v265 = vld [vmem:[%s200 + $0x24] sm:$0xf]
      %v266 = vld [vmem:[%s200 + $0x28] sm:$0xf]
      %v267 = vld [vmem:[%s200 + $0x2c] sm:$0xf]
      %v268 = vld [vmem:[%s200 + $0x30] sm:$0xf]
      %v269 = vld [vmem:[%s200 + $0x34] sm:$0xf]
      %v270 = vld [vmem:[%s200 + $0x38] sm:$0xf]
      %v271 = vld [vmem:[%s200 + $0x3c] sm:$0xf]
      %v272 = vld [vmem:[%s200 + $0x40] sm:$0xf]
      %v273 = vld [vmem:[%s200 + $0x44] sm:$0xf]
      %v274 = vld [vmem:[%s200 + $0x48] sm:$0xf]
      %v275 = vld [vmem:[%s200 + $0x4c] sm:$0xf]
      %v276 = vld [vmem:[%s200 + $0x50] sm:$0xf]
      %v277 = vld [vmem:[%s200 + $0x54] sm:$0xf]
      %v278 = vld [vmem:[%s200 + $0x58] sm:$0xf]
      %v279 = vld [vmem:[%s200 + $0x5c] sm:$0xf]
      %v280 = vld [vmem:[%s200 + $0x60] sm:$0xf]
      %v281 = vld [vmem:[%s200 + $0x64] sm:$0xf]
      %v282 = vld [vmem:[%s200 + $0x68] sm:$0xf]
      %v283 = vld [vmem:[%s200 + $0x6c] sm:$0xf]
      %v284 = vld [vmem:[%s200 + $0x70] sm:$0xf]
      %v285 = vld [vmem:[%s200 + $0x74] sm:$0xf]
      %v286 = vld [vmem:[%s200 + $0x78] sm:$0xf]
      %v287 = vld [vmem:[%s200 + $0x7c] sm:$0xf]
      %v288 = vunpack.c.l.bf16 %v256
      %v289 = vunpack.c.l.bf16 %v257
      %v290 = vunpack.c.l.bf16 %v258
      %v291 = vunpack.c.l.bf16 %v259
      %v292 = vunpack.c.l.bf16 %v260
      %v293 = vunpack.c.l.bf16 %v261
      %v294 = vunpack.c.l.bf16 %v262
      %v295 = vunpack.c.l.bf16 %v263
      %v296 = vunpack.c.l.bf16 %v264
      %v297 = vunpack.c.l.bf16 %v265
      %v298 = vunpack.c.l.bf16 %v266
      %v299 = vunpack.c.l.bf16 %v267
      %v300 = vunpack.c.l.bf16 %v268
      %v301 = vunpack.c.l.bf16 %v269
      %v302 = vunpack.c.l.bf16 %v270
      %v303 = vunpack.c.l.bf16 %v271
      %v304 = vunpack.c.l.bf16 %v272
      %v305 = vunpack.c.l.bf16 %v273
      %v306 = vunpack.c.l.bf16 %v274
      %v307 = vunpack.c.l.bf16 %v275
      %v308 = vunpack.c.l.bf16 %v276
      %v309 = vunpack.c.l.bf16 %v277
      %v310 = vunpack.c.l.bf16 %v278
      %v311 = vunpack.c.l.bf16 %v279
      %v312 = vunpack.c.l.bf16 %v280
      %v313 = vunpack.c.l.bf16 %v281
      %v314 = vunpack.c.l.bf16 %v282
      %v315 = vunpack.c.l.bf16 %v283
      %v316 = vunpack.c.l.bf16 %v284
      %v317 = vunpack.c.l.bf16 %v285
      %v318 = vunpack.c.l.bf16 %v286
      %v319 = vunpack.c.l.bf16 %v287
      %v320 = vld [vmem:[%s1] sm:$0x1]
      %v321 = vlaneseq
      %v322 = vshrl.u32 %v321, 7
      %v323 = vsub.s32 0, %v322
      %v324 = vrot.slane %v320, %v323
      %v325 = vmul.f32 %v288, %v324
      %v326 = vmul.f32 %v289, %v324
      %v327 = vmul.f32 %v290, %v324
      %v328 = vmul.f32 %v291, %v324
      %v329 = vmul.f32 %v292, %v324
      %v330 = vmul.f32 %v293, %v324
      %v331 = vmul.f32 %v294, %v324
      %v332 = vmul.f32 %v295, %v324
      %v333 = vmul.f32 %v296, %v324
      %v334 = vmul.f32 %v297, %v324
      %v335 = vmul.f32 %v298, %v324
      %v336 = vmul.f32 %v299, %v324
      %v337 = vmul.f32 %v300, %v324
      %v338 = vmul.f32 %v301, %v324
      %v339 = vmul.f32 %v302, %v324
      %v340 = vmul.f32 %v303, %v324
      %v341 = vmul.f32 %v304, %v324
      %v342 = vmul.f32 %v305, %v324
      %v343 = vmul.f32 %v306, %v324
      %v344 = vmul.f32 %v307, %v324
      %v345 = vmul.f32 %v308, %v324
      %v346 = vmul.f32 %v309, %v324
      %v347 = vmul.f32 %v310, %v324
      %v348 = vmul.f32 %v311, %v324
      %v349 = vmul.f32 %v312, %v324
      %v350 = vmul.f32 %v313, %v324
      %v351 = vmul.f32 %v314, %v324
      %v352 = vmul.f32 %v315, %v324
      %v353 = vmul.f32 %v316, %v324
      %v354 = vmul.f32 %v317, %v324
      %v355 = vmul.f32 %v318, %v324
      %v356 = vmul.f32 %v319, %v324
      %v357 = vld [vmem:[%s1 + $0x1] sm:$0x1]
      %v358 = vlaneseq
      %v359 = vshrl.u32 %v358, 7
      %v360 = vsub.s32 0, %v359
      %v361 = vrot.slane %v357, %v360
      %v362 = vadd.f32 %v325, %v361
      %v363 = vadd.f32 %v326, %v361
      %v364 = vadd.f32 %v327, %v361
      %v365 = vadd.f32 %v328, %v361
      %v366 = vadd.f32 %v329, %v361
      %v367 = vadd.f32 %v330, %v361
      %v368 = vadd.f32 %v331, %v361
      %v369 = vadd.f32 %v332, %v361
      %v370 = vadd.f32 %v333, %v361
      %v371 = vadd.f32 %v334, %v361
      %v372 = vadd.f32 %v335, %v361
      %v373 = vadd.f32 %v336, %v361
      %v374 = vadd.f32 %v337, %v361
      %v375 = vadd.f32 %v338, %v361
      %v376 = vadd.f32 %v339, %v361
      %v377 = vadd.f32 %v340, %v361
      %v378 = vadd.f32 %v341, %v361
      %v379 = vadd.f32 %v342, %v361
      %v380 = vadd.f32 %v343, %v361
      %v381 = vadd.f32 %v344, %v361
      %v382 = vadd.f32 %v345, %v361
      %v383 = vadd.f32 %v346, %v361
      %v384 = vadd.f32 %v347, %v361
      %v385 = vadd.f32 %v348, %v361
      %v386 = vadd.f32 %v349, %v361
      %v387 = vadd.f32 %v350, %v361
      %v388 = vadd.f32 %v351, %v361
      %v389 = vadd.f32 %v352, %v361
      %v390 = vadd.f32 %v353, %v361
      %v391 = vadd.f32 %v354, %v361
      %v392 = vadd.f32 %v355, %v361
      %v393 = vadd.f32 %v356, %v361
      %v394 = vmax.f32 %v362, 0.0
      %v395 = vmax.f32 %v363, 0.0
      %v396 = vmax.f32 %v364, 0.0
      %v397 = vmax.f32 %v365, 0.0
      %v398 = vmax.f32 %v366, 0.0
      %v399 = vmax.f32 %v367, 0.0
      %v400 = vmax.f32 %v368, 0.0
      %v401 = vmax.f32 %v369, 0.0
      %v402 = vmax.f32 %v370, 0.0
      %v403 = vmax.f32 %v371, 0.0
      %v404 = vmax.f32 %v372, 0.0
      %v405 = vmax.f32 %v373, 0.0
      %v406 = vmax.f32 %v374, 0.0
      %v407 = vmax.f32 %v375, 0.0
      %v408 = vmax.f32 %v376, 0.0
      %v409 = vmax.f32 %v377, 0.0
      %v410 = vmax.f32 %v378, 0.0
      %v411 = vmax.f32 %v379, 0.0
      %v412 = vmax.f32 %v380, 0.0
      %v413 = vmax.f32 %v381, 0.0
      %v414 = vmax.f32 %v382, 0.0
      %v415 = vmax.f32 %v383, 0.0
      %v416 = vmax.f32 %v384, 0.0
      %v417 = vmax.f32 %v385, 0.0
      %v418 = vmax.f32 %v386, 0.0
      %v419 = vmax.f32 %v387, 0.0
      %v420 = vmax.f32 %v388, 0.0
      %v421 = vmax.f32 %v389, 0.0
      %v422 = vmax.f32 %v390, 0.0
      %v423 = vmax.f32 %v391, 0.0
      %v424 = vmax.f32 %v392, 0.0
      %v425 = vmax.f32 %v393, 0.0
      %v426 = vpack.c.bf16 %v395, %v394
      %v427 = vpack.c.bf16 %v397, %v396
      %v428 = vpack.c.bf16 %v399, %v398
      %v429 = vpack.c.bf16 %v401, %v400
      %v430 = vpack.c.bf16 %v403, %v402
      %v431 = vpack.c.bf16 %v405, %v404
      %v432 = vpack.c.bf16 %v407, %v406
      %v433 = vpack.c.bf16 %v409, %v408
      %v434 = vpack.c.bf16 %v411, %v410
      %v435 = vpack.c.bf16 %v413, %v412
      %v436 = vpack.c.bf16 %v415, %v414
      %v437 = vpack.c.bf16 %v417, %v416
      %v438 = vpack.c.bf16 %v419, %v418
      %v439 = vpack.c.bf16 %v421, %v420
      %v440 = vpack.c.bf16 %v423, %v422
      %v441 = vpack.c.bf16 %v425, %v424
      %v458 = vrot.slane %v426, 4
      %v459 = vrot.slane %v427, 4
      %v460 = vrot.slane %v428, 4
      %v461 = vrot.slane %v429, 4
      %v462 = vrot.slane %v430, 4
      %v463 = vrot.slane %v431, 4
      %v464 = vrot.slane %v432, 4
      %v465 = vrot.slane %v433, 4
      %v466 = vrot.slane %v434, 4
      %v467 = vrot.slane %v435, 4
      %v468 = vrot.slane %v436, 4
      %v469 = vrot.slane %v437, 4
      %v470 = vrot.slane %v438, 4
      %v471 = vrot.slane %v439, 4
      %v472 = vrot.slane %v440, 4
      %v473 = vrot.slane %v441, 4
      %s490 = scalar_lea.vmem [#allocation2], 16
      %491 = vst.msk [vmem:[%s490] sm:$0xf0] %vm232, %v458
      %492 = vst.msk [vmem:[%s490 + $0x8] sm:$0xf] %vm213, %v458
      %493 = vst.msk [vmem:[%s490 + $0x10] sm:$0xf0] %vm232, %v459
      %494 = vst.msk [vmem:[%s490 + $0x18] sm:$0xf] %vm213, %v459
      %495 = vst.msk [vmem:[%s490 + $0x20] sm:$0xf0] %vm232, %v460
      %496 = vst.msk [vmem:[%s490 + $0x28] sm:$0xf] %vm213, %v460
      %497 = vst.msk [vmem:[%s490 + $0x30] sm:$0xf0] %vm232, %v461
      %498 = vst.msk [vmem:[%s490 + $0x38] sm:$0xf] %vm213, %v461
      %499 = vst.msk [vmem:[%s490 + $0x40] sm:$0xf0] %vm232, %v462
      %500 = vst.msk [vmem:[%s490 + $0x48] sm:$0xf] %vm213, %v462
      %501 = vst.msk [vmem:[%s490 + $0x50] sm:$0xf0] %vm232, %v463
      %502 = vst.msk [vmem:[%s490 + $0x58] sm:$0xf] %vm213, %v463
      %503 = vst.msk [vmem:[%s490 + $0x60] sm:$0xf0] %vm232, %v464
      %504 = vst.msk [vmem:[%s490 + $0x68] sm:$0xf] %vm213, %v464
      %505 = vst.msk [vmem:[%s490 + $0x70] sm:$0xf0] %vm232, %v465
      %506 = vst.msk [vmem:[%s490 + $0x78] sm:$0xf] %vm213, %v465
      %507 = vst.msk [vmem:[%s490 + $0x80] sm:$0xf0] %vm232, %v466
      %508 = vst.msk [vmem:[%s490 + $0x88] sm:$0xf] %vm213, %v466
      %509 = vst.msk [vmem:[%s490 + $0x90] sm:$0xf0] %vm232, %v467
      %510 = vst.msk [vmem:[%s490 + $0x98] sm:$0xf] %vm213, %v467
      %511 = vst.msk [vmem:[%s490 + $0xa0] sm:$0xf0] %vm232, %v468
      %512 = vst.msk [vmem:[%s490 + $0xa8] sm:$0xf] %vm213, %v468
      %513 = vst.msk [vmem:[%s490 + $0xb0] sm:$0xf0] %vm232, %v469
      %514 = vst.msk [vmem:[%s490 + $0xb8] sm:$0xf] %vm213, %v469
      %515 = vst.msk [vmem:[%s490 + $0xc0] sm:$0xf0] %vm232, %v470
      %516 = vst.msk [vmem:[%s490 + $0xc8] sm:$0xf] %vm213, %v470
      %517 = vst.msk [vmem:[%s490 + $0xd0] sm:$0xf0] %vm232, %v471
      %518 = vst.msk [vmem:[%s490 + $0xd8] sm:$0xf] %vm213, %v471
      %519 = vst.msk [vmem:[%s490 + $0xe0] sm:$0xf0] %vm232, %v472
      %520 = vst.msk [vmem:[%s490 + $0xe8] sm:$0xf] %vm213, %v472
      %521 = vst.msk [vmem:[%s490 + $0xf0] sm:$0xf0] %vm232, %v473
      %522 = vst.msk [vmem:[%s490 + $0xf8] sm:$0xf] %vm213, %v473
      %v523 = vld [vmem:[%s2] sm:$0x3]
      %v524 = vld [vmem:[%s2 + $0x2] sm:$0x3]
      %v525 = vld [vmem:[%s2 + $0x4] sm:$0x3]
      %v526 = vld [vmem:[%s2 + $0x6] sm:$0x3]
      %v527 = vld [vmem:[%s2 + $0x8] sm:$0x3]
      %v528 = vld [vmem:[%s2 + $0xa] sm:$0x3]
      %v529 = vld [vmem:[%s2 + $0xc] sm:$0x3]
      %v530 = vld [vmem:[%s2 + $0xe] sm:$0x3]
      %v531 = vld [vmem:[%s2 + $0x10] sm:$0x3]
      %v532 = vld [vmem:[#allocation2] sm:$0xf8]
      %v533 = vld [vmem:[#allocation2 + $0x8] sm:$0xf]
      %v534 = vld [vmem:[#allocation2 + $0x10] sm:$0xf8]
      %v535 = vld [vmem:[#allocation2 + $0x18] sm:$0xf]
      %v536 = vld [vmem:[#allocation2 + $0x20] sm:$0xf8]
      %v537 = vld [vmem:[#allocation2 + $0x28] sm:$0xf]
      %v538 = vld [vmem:[#allocation2 + $0x30] sm:$0xf8]
      %v539 = vld [vmem:[#allocation2 + $0x38] sm:$0xf]
      %v540 = vld [vmem:[#allocation2 + $0x40] sm:$0xf8]
      %v541 = vld [vmem:[#allocation2 + $0x48] sm:$0xf]
      %v542 = vld [vmem:[#allocation2 + $0x50] sm:$0xf8]
      %v543 = vld [vmem:[#allocation2 + $0x58] sm:$0xf]
      %v544 = vld [vmem:[#allocation2 + $0x60] sm:$0xf8]
      %v545 = vld [vmem:[#allocation2 + $0x68] sm:$0xf]
      %v546 = vld [vmem:[#allocation2 + $0x70] sm:$0xf8]
      %v547 = vld [vmem:[#allocation2 + $0x78] sm:$0xf]
      %v548 = vld [vmem:[#allocation2 + $0x80] sm:$0xf8]
      %v549 = vld [vmem:[#allocation2 + $0x88] sm:$0xf]
      %v550 = vld [vmem:[#allocation2 + $0x90] sm:$0xf8]
      %v551 = vld [vmem:[#allocation2 + $0x98] sm:$0xf]
      %v552 = vld [vmem:[#allocation2 + $0xa0] sm:$0xf8]
      %v553 = vld [vmem:[#allocation2 + $0xa8] sm:$0xf]
      %v554 = vld [vmem:[#allocation2 + $0xb0] sm:$0xf8]
      %v555 = vld [vmem:[#allocation2 + $0xb8] sm:$0xf]
      %v556 = vld [vmem:[#allocation2 + $0xc0] sm:$0xf8]
      %v557 = vld [vmem:[#allocation2 + $0xc8] sm:$0xf]
      %v558 = vld [vmem:[#allocation2 + $0xd0] sm:$0xf8]
      %v559 = vld [vmem:[#allocation2 + $0xd8] sm:$0xf]
      %v560 = vld [vmem:[#allocation2 + $0xe0] sm:$0xf8]
      %v561 = vld [vmem:[#allocation2 + $0xe8] sm:$0xf]
      %v562 = vld [vmem:[#allocation2 + $0xf0] sm:$0xf8]
      %v563 = vld [vmem:[#allocation2 + $0xf8] sm:$0xf]
      %vm564 = vsmask.f32 4352
      %v566 = vshrl.u32 %v532, 16
      %v568 = vrot.slane %v566, 3
      %v569 = vshll.u32 %v532, 16
      %v571 = vrot.slane %v569, 4
      %v572 = vor.u32 %v568, %v571
      %v574 = vshrl.u32 %v533, 16
      %v576 = vrot.slane %v574, 3
      %v577 = vshll.u32 %v533, 16
      %v579 = vrot.slane %v577, 4
      %v580 = vor.u32 %v576, %v579
      %v581 = vsel %vm564, %v572, %v580
      %v583 = vshrl.u32 %v534, 16
      %v585 = vrot.slane %v583, 3
      %v586 = vshll.u32 %v534, 16
      %v588 = vrot.slane %v586, 4
      %v589 = vor.u32 %v585, %v588
      %v591 = vshrl.u32 %v535, 16
      %v593 = vrot.slane %v591, 3
      %v594 = vshll.u32 %v535, 16
      %v596 = vrot.slane %v594, 4
      %v597 = vor.u32 %v593, %v596
      %v598 = vsel %vm564, %v589, %v597
      %v600 = vshrl.u32 %v536, 16
      %v602 = vrot.slane %v600, 3
      %v603 = vshll.u32 %v536, 16
      %v605 = vrot.slane %v603, 4
      %v606 = vor.u32 %v602, %v605
      %v608 = vshrl.u32 %v537, 16
      %v610 = vrot.slane %v608, 3
      %v611 = vshll.u32 %v537, 16
      %v613 = vrot.slane %v611, 4
      %v614 = vor.u32 %v610, %v613
      %v615 = vsel %vm564, %v606, %v614
      %v617 = vshrl.u32 %v538, 16
      %v619 = vrot.slane %v617, 3
      %v620 = vshll.u32 %v538, 16
      %v622 = vrot.slane %v620, 4
      %v623 = vor.u32 %v619, %v622
      %v625 = vshrl.u32 %v539, 16
      %v627 = vrot.slane %v625, 3
      %v628 = vshll.u32 %v539, 16
      %v630 = vrot.slane %v628, 4
      %v631 = vor.u32 %v627, %v630
      %v632 = vsel %vm564, %v623, %v631
      %v634 = vshrl.u32 %v540, 16
      %v636 = vrot.slane %v634, 3
      %v637 = vshll.u32 %v540, 16
      %v639 = vrot.slane %v637, 4
      %v640 = vor.u32 %v636, %v639
      %v642 = vshrl.u32 %v541, 16
      %v644 = vrot.slane %v642, 3
      %v645 = vshll.u32 %v541, 16
      %v647 = vrot.slane %v645, 4
      %v648 = vor.u32 %v644, %v647
      %v649 = vsel %vm564, %v640, %v648
      %v651 = vshrl.u32 %v542, 16
      %v653 = vrot.slane %v651, 3
      %v654 = vshll.u32 %v542, 16
      %v656 = vrot.slane %v654, 4
      %v657 = vor.u32 %v653, %v656
      %v659 = vshrl.u32 %v543, 16
      %v661 = vrot.slane %v659, 3
      %v662 = vshll.u32 %v543, 16
      %v664 = vrot.slane %v662, 4
      %v665 = vor.u32 %v661, %v664
      %v666 = vsel %vm564, %v657, %v665
      %v668 = vshrl.u32 %v544, 16
      %v670 = vrot.slane %v668, 3
      %v671 = vshll.u32 %v544, 16
      %v673 = vrot.slane %v671, 4
      %v674 = vor.u32 %v670, %v673
      %v676 = vshrl.u32 %v545, 16
      %v678 = vrot.slane %v676, 3
      %v679 = vshll.u32 %v545, 16
      %v681 = vrot.slane %v679, 4
      %v682 = vor.u32 %v678, %v681
      %v683 = vsel %vm564, %v674, %v682
      %v685 = vshrl.u32 %v546, 16
      %v687 = vrot.slane %v685, 3
      %v688 = vshll.u32 %v546, 16
      %v690 = vrot.slane %v688, 4
      %v691 = vor.u32 %v687, %v690
      %v693 = vshrl.u32 %v547, 16
      %v695 = vrot.slane %v693, 3
      %v696 = vshll.u32 %v547, 16
      %v698 = vrot.slane %v696, 4
      %v699 = vor.u32 %v695, %v698
      %v700 = vsel %vm564, %v691, %v699
      %v702 = vshrl.u32 %v548, 16
      %v704 = vrot.slane %v702, 3
      %v705 = vshll.u32 %v548, 16
      %v707 = vrot.slane %v705, 4
      %v708 = vor.u32 %v704, %v707
      %v710 = vshrl.u32 %v549, 16
      %v712 = vrot.slane %v710, 3
      %v713 = vshll.u32 %v549, 16
      %v715 = vrot.slane %v713, 4
      %v716 = vor.u32 %v712, %v715
      %v717 = vsel %vm564, %v708, %v716
      %v719 = vshrl.u32 %v550, 16
      %v721 = vrot.slane %v719, 3
      %v722 = vshll.u32 %v550, 16
      %v724 = vrot.slane %v722, 4
      %v725 = vor.u32 %v721, %v724
      %v727 = vshrl.u32 %v551, 16
      %v729 = vrot.slane %v727, 3
      %v730 = vshll.u32 %v551, 16
      %v732 = vrot.slane %v730, 4
      %v733 = vor.u32 %v729, %v732
      %v734 = vsel %vm564, %v725, %v733
      %v736 = vshrl.u32 %v552, 16
      %v738 = vrot.slane %v736, 3
      %v739 = vshll.u32 %v552, 16
      %v741 = vrot.slane %v739, 4
      %v742 = vor.u32 %v738, %v741
      %v744 = vshrl.u32 %v553, 16
      %v746 = vrot.slane %v744, 3
      %v747 = vshll.u32 %v553, 16
      %v749 = vrot.slane %v747, 4
      %v750 = vor.u32 %v746, %v749
      %v751 = vsel %vm564, %v742, %v750
      %v753 = vshrl.u32 %v554, 16
      %v755 = vrot.slane %v753, 3
      %v756 = vshll.u32 %v554, 16
      %v758 = vrot.slane %v756, 4
      %v759 = vor.u32 %v755, %v758
      %v761 = vshrl.u32 %v555, 16
      %v763 = vrot.slane %v761, 3
      %v764 = vshll.u32 %v555, 16
      %v766 = vrot.slane %v764, 4
      %v767 = vor.u32 %v763, %v766
      %v768 = vsel %vm564, %v759, %v767
      %v770 = vshrl.u32 %v556, 16
      %v772 = vrot.slane %v770, 3
      %v773 = vshll.u32 %v556, 16
      %v775 = vrot.slane %v773, 4
      %v776 = vor.u32 %v772, %v775
      %v778 = vshrl.u32 %v557, 16
      %v780 = vrot.slane %v778, 3
      %v781 = vshll.u32 %v557, 16
      %v783 = vrot.slane %v781, 4
      %v784 = vor.u32 %v780, %v783
      %v785 = vsel %vm564, %v776, %v784
      %v787 = vshrl.u32 %v558, 16
      %v789 = vrot.slane %v787, 3
      %v790 = vshll.u32 %v558, 16
      %v792 = vrot.slane %v790, 4
      %v793 = vor.u32 %v789, %v792
      %v795 = vshrl.u32 %v559, 16
      %v797 = vrot.slane %v795, 3
      %v798 = vshll.u32 %v559, 16
      %v800 = vrot.slane %v798, 4
      %v801 = vor.u32 %v797, %v800
      %v802 = vsel %vm564, %v793, %v801
      %v804 = vshrl.u32 %v560, 16
      %v806 = vrot.slane %v804, 3
      %v807 = vshll.u32 %v560, 16
      %v809 = vrot.slane %v807, 4
      %v810 = vor.u32 %v806, %v809
      %v812 = vshrl.u32 %v561, 16
      %v814 = vrot.slane %v812, 3
      %v815 = vshll.u32 %v561, 16
      %v817 = vrot.slane %v815, 4
      %v818 = vor.u32 %v814, %v817
      %v819 = vsel %vm564, %v810, %v818
      %v821 = vshrl.u32 %v562, 16
      %v823 = vrot.slane %v821, 3
      %v824 = vshll.u32 %v562, 16
      %v826 = vrot.slane %v824, 4
      %v827 = vor.u32 %v823, %v826
      %v829 = vshrl.u32 %v563, 16
      %v831 = vrot.slane %v829, 3
      %v832 = vshll.u32 %v563, 16
      %v834 = vrot.slane %v832, 4
      %v835 = vor.u32 %v831, %v834
      %v836 = vsel %vm564, %v827, %v835
      %v837 = vld [vmem:[#allocation2] sm:$0xf0]
      %v838 = vld [vmem:[#allocation2 + $0x10] sm:$0xf0]
      %v839 = vld [vmem:[#allocation2 + $0x20] sm:$0xf0]
      %v840 = vld [vmem:[#allocation2 + $0x30] sm:$0xf0]
      %v841 = vld [vmem:[#allocation2 + $0x40] sm:$0xf0]
      %v842 = vld [vmem:[#allocation2 + $0x50] sm:$0xf0]
      %v843 = vld [vmem:[#allocation2 + $0x60] sm:$0xf0]
      %v844 = vld [vmem:[#allocation2 + $0x70] sm:$0xf0]
      %v845 = vld [vmem:[#allocation2 + $0x80] sm:$0xf0]
      %v846 = vld [vmem:[#allocation2 + $0x90] sm:$0xf0]
      %v847 = vld [vmem:[#allocation2 + $0xa0] sm:$0xf0]
      %v848 = vld [vmem:[#allocation2 + $0xb0] sm:$0xf0]
      %v849 = vld [vmem:[#allocation2 + $0xc0] sm:$0xf0]
      %v850 = vld [vmem:[#allocation2 + $0xd0] sm:$0xf0]
      %v851 = vld [vmem:[#allocation2 + $0xe0] sm:$0xf0]
      %v852 = vld [vmem:[#allocation2 + $0xf0] sm:$0xf0]
      %vm885 = vcmask 1043456
      %v886 = vrot.slane %v837, 4
      %v887 = vrot.slane %v533, 4
      %v888 = vsel %vm885, %v886, %v887
      %v889 = vrot.slane %v838, 4
      %v890 = vrot.slane %v535, 4
      %v891 = vsel %vm885, %v889, %v890
      %v892 = vrot.slane %v839, 4
      %v893 = vrot.slane %v537, 4
      %v894 = vsel %vm885, %v892, %v893
      %v895 = vrot.slane %v840, 4
      %v896 = vrot.slane %v539, 4
      %v897 = vsel %vm885, %v895, %v896
      %v898 = vrot.slane %v841, 4
      %v899 = vrot.slane %v541, 4
      %v900 = vsel %vm885, %v898, %v899
      %v901 = vrot.slane %v842, 4
      %v902 = vrot.slane %v543, 4
      %v903 = vsel %vm885, %v901, %v902
      %v904 = vrot.slane %v843, 4
      %v905 = vrot.slane %v545, 4
      %v906 = vsel %vm885, %v904, %v905
      %v907 = vrot.slane %v844, 4
      %v908 = vrot.slane %v547, 4
      %v909 = vsel %vm885, %v907, %v908
      %v910 = vrot.slane %v845, 4
      %v911 = vrot.slane %v549, 4
      %v912 = vsel %vm885, %v910, %v911
      %v913 = vrot.slane %v846, 4
      %v914 = vrot.slane %v551, 4
      %v915 = vsel %vm885, %v913, %v914
      %v916 = vrot.slane %v847, 4
      %v917 = vrot.slane %v553, 4
      %v918 = vsel %vm885, %v916, %v917
      %v919 = vrot.slane %v848, 4
      %v920 = vrot.slane %v555, 4
      %v921 = vsel %vm885, %v919, %v920
      %v922 = vrot.slane %v849, 4
      %v923 = vrot.slane %v557, 4
      %v924 = vsel %vm885, %v922, %v923
      %v925 = vrot.slane %v850, 4
      %v926 = vrot.slane %v559, 4
      %v927 = vsel %vm885, %v925, %v926
      %v928 = vrot.slane %v851, 4
      %v929 = vrot.slane %v561, 4
      %v930 = vsel %vm885, %v928, %v929
      %v931 = vrot.slane %v852, 4
      %v932 = vrot.slane %v563, 4
      %v933 = vsel %vm885, %v931, %v932
      %vm934 = vcmask 31744
      %v936 = vsel %vm934, %v888, 0
      %v939 = vsel %vm934, %v891, 0
      %v942 = vsel %vm934, %v894, 0
      %v945 = vsel %vm934, %v897, 0
      %v948 = vsel %vm934, %v900, 0
      %v951 = vsel %vm934, %v903, 0
      %v954 = vsel %vm934, %v906, 0
      %v957 = vsel %vm934, %v909, 0
      %v960 = vsel %vm934, %v912, 0
      %v963 = vsel %vm934, %v915, 0
      %v966 = vsel %vm934, %v918, 0
      %v969 = vsel %vm934, %v921, 0
      %v972 = vsel %vm934, %v924, 0
      %v975 = vsel %vm934, %v927, 0
      %v978 = vsel %vm934, %v930, 0
      %v981 = vsel %vm934, %v933, 0
      %vm983 = vcmask 1041408
      %v985 = vsel %vm983, %v524, 0
      %987 = vmatprep.subr.bf16.mxu0 0
      %988 = vmatpush1.bf16.msra.mxu0 %v985
      %989 = vmatprep.subr.bf16.mxu0 0
      %990 = vmatpush1.bf16.msra.mxu0 0
      %991 = vmatprep.subr.bf16.mxu0 0
      %992 = vmatpush1.bf16.msra.mxu0 0
      %993 = vmatprep.subr.bf16.mxu0 0
      %994 = vmatpush1.bf16.msra.mxu0 0
      %995 = vmatprep.subr.bf16.mxu0 0
      %996 = vmatpush1.bf16.msra.mxu0 0
      %997 = vmatprep.subr.bf16.mxu0 0
      %998 = vmatpush1.bf16.msra.mxu0 0
      %999 = vmatprep.subr.bf16.mxu0 0
      %1000 = vmatpush1.bf16.msra.mxu0 0
      %1001 = vmatprep.subr.bf16.mxu0 0
      %1002 = vmatpush1.bf16.msra.mxu0 0
      %1003 = vmatprep.subr.bf16.mxu0 0
      %1004 = vmatpush1.bf16.msra.mxu0 0
      %1005 = vmatprep.subr.bf16.mxu0 0
      %1006 = vmatpush1.bf16.msra.mxu0 0
      %1007 = vmatprep.subr.bf16.mxu0 0
      %1008 = vmatpush1.bf16.msra.mxu0 0
      %1009 = vmatprep.subr.bf16.mxu0 0
      %1010 = vmatpush1.bf16.msra.mxu0 0
      %1011 = vmatprep.subr.bf16.mxu0 0
      %1012 = vmatpush1.bf16.msra.mxu0 0
      %1013 = vmatprep.subr.bf16.mxu0 0
      %1014 = vmatpush1.bf16.msra.mxu0 0
      %1015 = vmatprep.subr.bf16.mxu0 0
      %1016 = vmatpush1.bf16.msra.mxu0 0
      %1017 = vmatprep.subr.bf16.mxu0 0
      %1018 = vmatpush1.bf16.msra.mxu0 0
      %1019 = vmatprep.mubr.bf16.mxu0 0
      %1020 = vmatmul.mubr.bf16.gmra.mrb[0].mxu0 %v936
      %v1021 = vpop.f32.mrb[0].mxu0
      %v1022 = vadd.f32 0.0, %v1021
      %v1023 = vpop.f32.mrb[0].mxu0
      %v1024 = vpop.f32.mrb[0].mxu0
      %v1025 = vadd.f32 0.0, %v1024
      %v1026 = vpop.f32.mrb[0].mxu0
      %1027 = vmatprep.mubr.bf16.mxu0 0
      %1028 = vmatmul.mubr.bf16.gmra.mrb[0].mxu0 %v939
      %v1029 = vpop.f32.mrb[0].mxu0
      %v1030 = vadd.f32 0.0, %v1029
      %v1031 = vpop.f32.mrb[0].mxu0
      %v1032 = vpop.f32.mrb[0].mxu0
      %v1033 = vadd.f32 0.0, %v1032
      %v1034 = vpop.f32.mrb[0].mxu0
      %1035 = vmatprep.mubr.bf16.mxu0 0
      %1036 = vmatmul.mubr.bf16.gmra.mrb[0].mxu0 %v942
      %v1037 = vpop.f32.mrb[0].mxu0
      %v1038 = vadd.f32 0.0, %v1037
      %v1039 = vpop.f32.mrb[0].mxu0
      %v1040 = vpop.f32.mrb[0].mxu0
      %v1041 = vadd.f32 0.0, %v1040
      %v1042 = vpop.f32.mrb[0].mxu0
      %1043 = vmatprep.mubr.bf16.mxu0 0
      %1044 = vmatmul.mubr.bf16.gmra.mrb[0].mxu0 %v945
      %v1045 = vpop.f32.mrb[0].mxu0
      %v1046 = vadd.f32 0.0, %v1045
      %v1047 = vpop.f32.mrb[0].mxu0
      %v1048 = vpop.f32.mrb[0].mxu0
      %v1049 = vadd.f32 0.0, %v1048
      %v1050 = vpop.f32.mrb[0].mxu0
      %1051 = vmatprep.mubr.bf16.mxu0 0
      %1052 = vmatmul.mubr.bf16.gmra.mrb[0].mxu0 %v948
      %v1053 = vpop.f32.mrb[0].mxu0
      %v1054 = vadd.f32 0.0, %v1053
      %v1055 = vpop.f32.mrb[0].mxu0
      %v1056 = vpop.f32.mrb[0].mxu0
      %v1057 = vadd.f32 0.0, %v1056
      %v1058 = vpop.f32.mrb[0].mxu0
      %1059 = vmatprep.mubr.bf16.mxu0 0
      %1060 = vmatmul.mubr.bf16.gmra.mrb[0].mxu0 %v951
      %v1061 = vpop.f32.mrb[0].mxu0
      %v1062 = vadd.f32 0.0, %v1061
      %v1063 = vpop.f32.mrb[0].mxu0
      %v1064 = vpop.f32.mrb[0].mxu0
      %v1065 = vadd.f32 0.0, %v1064
      %v1066 = vpop.f32.mrb[0].mxu0
      %1067 = vmatprep.mubr.bf16.mxu0 0
      %1068 = vmatmul.mubr.bf16.gmra.mrb[0].mxu0 %v954
      %v1069 = vpop.f32.mrb[0].mxu0
      %v1070 = vadd.f32 0.0, %v1069
      %v1071 = vpop.f32.mrb[0].mxu0
      %v1072 = vpop.f32.mrb[0].mxu0
      %v1073 = vadd.f32 0.0, %v1072
      %v1074 = vpop.f32.mrb[0].mxu0
      %1075 = vmatprep.mubr.bf16.mxu0 0
      %1076 = vmatmul.mubr.bf16.gmra.mrb[0].mxu0 %v957
      %v1077 = vpop.f32.mrb[0].mxu0
      %v1078 = vadd.f32 0.0, %v1077
      %v1079 = vpop.f32.mrb[0].mxu0
      %v1080 = vpop.f32.mrb[0].mxu0
      %v1081 = vadd.f32 0.0, %v1080
      %v1082 = vpop.f32.mrb[0].mxu0
      %1083 = vmatprep.mubr.bf16.mxu0 0
      %1084 = vmatmul.mubr.bf16.gmra.mrb[0].mxu0 %v960
      %v1085 = vpop.f32.mrb[0].mxu0
      %v1086 = vadd.f32 0.0, %v1085
      %v1087 = vpop.f32.mrb[0].mxu0
      %v1088 = vpop.f32.mrb[0].mxu0
      %v1089 = vadd.f32 0.0, %v1088
      %v1090 = vpop.f32.mrb[0].mxu0
      %1091 = vmatprep.mubr.bf16.mxu0 0
      %1092 = vmatmul.mubr.bf16.gmra.mrb[0].mxu0 %v963
      %v1093 = vpop.f32.mrb[0].mxu0
      %v1094 = vadd.f32 0.0, %v1093
      %v1095 = vpop.f32.mrb[0].mxu0
      %v1096 = vpop.f32.mrb[0].mxu0
      %v1097 = vadd.f32 0.0, %v1096
      %v1098 = vpop.f32.mrb[0].mxu0
      %1099 = vmatprep.mubr.bf16.mxu0 0
      %1100 = vmatmul.mubr.bf16.gmra.mrb[0].mxu0 %v966
      %v1101 = vpop.f32.mrb[0].mxu0
      %v1102 = vadd.f32 0.0, %v1101
      %v1103 = vpop.f32.mrb[0].mxu0
      %v1104 = vpop.f32.mrb[0].mxu0
      %v1105 = vadd.f32 0.0, %v1104
      %v1106 = vpop.f32.mrb[0].mxu0
      %1107 = vmatprep.mubr.bf16.mxu0 0
      %1108 = vmatmul.mubr.bf16.gmra.mrb[0].mxu0 %v969
      %v1109 = vpop.f32.mrb[0].mxu0
      %v1110 = vadd.f32 0.0, %v1109
      %v1111 = vpop.f32.mrb[0].mxu0
      %v1112 = vpop.f32.mrb[0].mxu0
      %v1113 = vadd.f32 0.0, %v1112
      %v1114 = vpop.f32.mrb[0].mxu0
      %1115 = vmatprep.mubr.bf16.mxu0 0
      %1116 = vmatmul.mubr.bf16.gmra.mrb[0].mxu0 %v972
      %v1117 = vpop.f32.mrb[0].mxu0
      %v1118 = vadd.f32 0.0, %v1117
      %v1119 = vpop.f32.mrb[0].mxu0
      %v1120 = vpop.f32.mrb[0].mxu0
      %v1121 = vadd.f32 0.0, %v1120
      %v1122 = vpop.f32.mrb[0].mxu0
      %1123 = vmatprep.mubr.bf16.mxu0 0
      %1124 = vmatmul.mubr.bf16.gmra.mrb[0].mxu0 %v975
      %v1125 = vpop.f32.mrb[0].mxu0
      %v1126 = vadd.f32 0.0, %v1125
      %v1127 = vpop.f32.mrb[0].mxu0
      %v1128 = vpop.f32.mrb[0].mxu0
      %v1129 = vadd.f32 0.0, %v1128
      %v1130 = vpop.f32.mrb[0].mxu0
      %1131 = vmatprep.mubr.bf16.mxu0 0
      %1132 = vmatmul.mubr.bf16.gmra.mrb[0].mxu0 %v978
      %v1133 = vpop.f32.mrb[0].mxu0
      %v1134 = vadd.f32 0.0, %v1133
      %v1135 = vpop.f32.mrb[0].mxu0
      %v1136 = vpop.f32.mrb[0].mxu0
      %v1137 = vadd.f32 0.0, %v1136
      %v1138 = vpop.f32.mrb[0].mxu0
      %1139 = vmatprep.mubr.bf16.mxu0 0
      %1140 = vmatmul.mubr.bf16.gmra.mrb[0].mxu0 %v981
      %v1141 = vpop.f32.mrb[0].mxu0
      %v1142 = vadd.f32 0.0, %v1141
      %v1143 = vpop.f32.mrb[0].mxu0
      %v1144 = vpop.f32.mrb[0].mxu0
      %v1145 = vadd.f32 0.0, %v1144
      %v1146 = vpop.f32.mrb[0].mxu0
      %1147 = vdwg.mxu0
      %v1149 = vsel %vm934, %v581, 0
      %v1152 = vsel %vm934, %v598, 0
      %v1155 = vsel %vm934, %v615, 0
      %v1158 = vsel %vm934, %v632, 0
      %v1161 = vsel %vm934, %v649, 0
      %v1164 = vsel %vm934, %v666, 0
      %v1167 = vsel %vm934, %v683, 0
      %v1170 = vsel %vm934, %v700, 0
      %v1173 = vsel %vm934, %v717, 0
      %v1176 = vsel %vm934, %v734, 0
      %v1179 = vsel %vm934, %v751, 0
      %v1182 = vsel %vm934, %v768, 0
      %v1185 = vsel %vm934, %v785, 0
      %v1188 = vsel %vm934, %v802, 0
      %v1191 = vsel %vm934, %v819, 0
      %v1194 = vsel %vm934, %v836, 0
      %v1197 = vsel %vm983, %v523, 0
      %1199 = vmatprep.subr.bf16.mxu0 0
      %1200 = vmatpush1.bf16.msra.mxu0 %v1197
      %1201 = vmatprep.subr.bf16.mxu0 0
      %1202 = vmatpush1.bf16.msra.mxu0 0
      %1203 = vmatprep.subr.bf16.mxu0 0
      %1204 = vmatpush1.bf16.msra.mxu0 0
      %1205 = vmatprep.subr.bf16.mxu0 0
      %1206 = vmatpush1.bf16.msra.mxu0 0
      %1207 = vmatprep.subr.bf16.mxu0 0
      %1208 = vmatpush1.bf16.msra.mxu0 0
      %1209 = vmatprep.subr.bf16.mxu0 0
      %1210 = vmatpush1.bf16.msra.mxu0 0
      %1211 = vmatprep.subr.bf16.mxu0 0
      %1212 = vmatpush1.bf16.msra.mxu0 0
      %1213 = vmatprep.subr.bf16.mxu0 0
      %1214 = vmatpush1.bf16.msra.mxu0 0
      %1215 = vmatprep.subr.bf16.mxu0 0
      %1216 = vmatpush1.bf16.msra.mxu0 0
      %1217 = vmatprep.subr.bf16.mxu0 0
      %1218 = vmatpush1.bf16.msra.mxu0 0
      %1219 = vmatprep.subr.bf16.mxu0 0
      %1220 = vmatpush1.bf16.msra.mxu0 0
      %1221 = vmatprep.subr.bf16.mxu0 0
      %1222 = vmatpush1.bf16.msra.mxu0 0
      %1223 = vmatprep.subr.bf16.mxu0 0
      %1224 = vmatpush1.bf16.msra.mxu0 0
      %1225 = vmatprep.subr.bf16.mxu0 0
      %1226 = vmatpush1.bf16.msra.mxu0 0
      %1227 = vmatprep.subr.bf16.mxu0 0
      %1228 = vmatpush1.bf16.msra.mxu0 0
      %1229 = vmatprep.subr.bf16.mxu0 0
      %1230 = vmatpush1.bf16.msra.mxu0 0
      %1231 = vmatprep.mubr.bf16.mxu0 0
      %1232 = vmatmul.mubr.bf16.gmra.mrb[0].mxu0 %v1149
      %v1233 = vpop.f32.mrb[0].mxu0
      %v1234 = vadd.f32 %v1022, %v1233
      %v1235 = vpop.f32.mrb[0].mxu0
      %v1236 = vpop.f32.mrb[0].mxu0
      %v1237 = vadd.f32 %v1025, %v1236
      %v1238 = vpop.f32.mrb[0].mxu0
      %1239 = vmatprep.mubr.bf16.mxu0 0
      %1240 = vmatmul.mubr.bf16.gmra.mrb[0].mxu0 %v1152
      %v1241 = vpop.f32.mrb[0].mxu0
      %v1242 = vadd.f32 %v1030, %v1241
      %v1243 = vpop.f32.mrb[0].mxu0
      %v1244 = vpop.f32.mrb[0].mxu0
      %v1245 = vadd.f32 %v1033, %v1244
      %v1246 = vpop.f32.mrb[0].mxu0
      %1247 = vmatprep.mubr.bf16.mxu0 0
      %1248 = vmatmul.mubr.bf16.gmra.mrb[0].mxu0 %v1155
      %v1249 = vpop.f32.mrb[0].mxu0
      %v1250 = vadd.f32 %v1038, %v1249
      %v1251 = vpop.f32.mrb[0].mxu0
      %v1252 = vpop.f32.mrb[0].mxu0
      %v1253 = vadd.f32 %v1041, %v1252
      %v1254 = vpop.f32.mrb[0].mxu0
      %1255 = vmatprep.mubr.bf16.mxu0 0
      %1256 = vmatmul.mubr.bf16.gmra.mrb[0].mxu0 %v1158
      %v1257 = vpop.f32.mrb[0].mxu0
      %v1258 = vadd.f32 %v1046, %v1257
      %v1259 = vpop.f32.mrb[0].mxu0
      %v1260 = vpop.f32.mrb[0].mxu0
      %v1261 = vadd.f32 %v1049, %v1260
      %v1262 = vpop.f32.mrb[0].mxu0
      %1263 = vmatprep.mubr.bf16.mxu0 0
      %1264 = vmatmul.mubr.bf16.gmra.mrb[0].mxu0 %v1161
      %v1265 = vpop.f32.mrb[0].mxu0
      %v1266 = vadd.f32 %v1054, %v1265
      %v1267 = vpop.f32.mrb[0].mxu0
      %v1268 = vpop.f32.mrb[0].mxu0
      %v1269 = vadd.f32 %v1057, %v1268
      %v1270 = vpop.f32.mrb[0].mxu0
      %1271 = vmatprep.mubr.bf16.mxu0 0
      %1272 = vmatmul.mubr.bf16.gmra.mrb[0].mxu0 %v1164
      %v1273 = vpop.f32.mrb[0].mxu0
      %v1274 = vadd.f32 %v1062, %v1273
      %v1275 = vpop.f32.mrb[0].mxu0
      %v1276 = vpop.f32.mrb[0].mxu0
      %v1277 = vadd.f32 %v1065, %v1276
      %v1278 = vpop.f32.mrb[0].mxu0
      %1279 = vmatprep.mubr.bf16.mxu0 0
      %1280 = vmatmul.mubr.bf16.gmra.mrb[0].mxu0 %v1167
      %v1281 = vpop.f32.mrb[0].mxu0
      %v1282 = vadd.f32 %v1070, %v1281
      %v1283 = vpop.f32.mrb[0].mxu0
      %v1284 = vpop.f32.mrb[0].mxu0
      %v1285 = vadd.f32 %v1073, %v1284
      %v1286 = vpop.f32.mrb[0].mxu0
      %1287 = vmatprep.mubr.bf16.mxu0 0
      %1288 = vmatmul.mubr.bf16.gmra.mrb[0].mxu0 %v1170
      %v1289 = vpop.f32.mrb[0].mxu0
      %v1290 = vadd.f32 %v1078, %v1289
      %v1291 = vpop.f32.mrb[0].mxu0
      %v1292 = vpop.f32.mrb[0].mxu0
      %v1293 = vadd.f32 %v1081, %v1292
      %v1294 = vpop.f32.mrb[0].mxu0
      %1295 = vmatprep.mubr.bf16.mxu0 0
      %1296 = vmatmul.mubr.bf16.gmra.mrb[0].mxu0 %v1173
      %v1297 = vpop.f32.mrb[0].mxu0
      %v1298 = vadd.f32 %v1086, %v1297
      %v1299 = vpop.f32.mrb[0].mxu0
      %v1300 = vpop.f32.mrb[0].mxu0
      %v1301 = vadd.f32 %v1089, %v1300
      %v1302 = vpop.f32.mrb[0].mxu0
      %1303 = vmatprep.mubr.bf16.mxu0 0
      %1304 = vmatmul.mubr.bf16.gmra.mrb[0].mxu0 %v1176
      %v1305 = vpop.f32.mrb[0].mxu0
      %v1306 = vadd.f32 %v1094, %v1305
      %v1307 = vpop.f32.mrb[0].mxu0
      %v1308 = vpop.f32.mrb[0].mxu0
      %v1309 = vadd.f32 %v1097, %v1308
      %v1310 = vpop.f32.mrb[0].mxu0
      %1311 = vmatprep.mubr.bf16.mxu0 0
      %1312 = vmatmul.mubr.bf16.gmra.mrb[0].mxu0 %v1179
      %v1313 = vpop.f32.mrb[0].mxu0
      %v1314 = vadd.f32 %v1102, %v1313
      %v1315 = vpop.f32.mrb[0].mxu0
      %v1316 = vpop.f32.mrb[0].mxu0
      %v1317 = vadd.f32 %v1105, %v1316
      %v1318 = vpop.f32.mrb[0].mxu0
      %1319 = vmatprep.mubr.bf16.mxu0 0
      %1320 = vmatmul.mubr.bf16.gmra.mrb[0].mxu0 %v1182
      %v1321 = vpop.f32.mrb[0].mxu0
      %v1322 = vadd.f32 %v1110, %v1321
      %v1323 = vpop.f32.mrb[0].mxu0
      %v1324 = vpop.f32.mrb[0].mxu0
      %v1325 = vadd.f32 %v1113, %v1324
      %v1326 = vpop.f32.mrb[0].mxu0
      %1327 = vmatprep.mubr.bf16.mxu0 0
      %1328 = vmatmul.mubr.bf16.gmra.mrb[0].mxu0 %v1185
      %v1329 = vpop.f32.mrb[0].mxu0
      %v1330 = vadd.f32 %v1118, %v1329
      %v1331 = vpop.f32.mrb[0].mxu0
      %v1332 = vpop.f32.mrb[0].mxu0
      %v1333 = vadd.f32 %v1121, %v1332
      %v1334 = vpop.f32.mrb[0].mxu0
      %1335 = vmatprep.mubr.bf16.mxu0 0
      %1336 = vmatmul.mubr.bf16.gmra.mrb[0].mxu0 %v1188
      %v1337 = vpop.f32.mrb[0].mxu0
      %v1338 = vadd.f32 %v1126, %v1337
      %v1339 = vpop.f32.mrb[0].mxu0
      %v1340 = vpop.f32.mrb[0].mxu0
      %v1341 = vadd.f32 %v1129, %v1340
      %v1342 = vpop.f32.mrb[0].mxu0
      %1343 = vmatprep.mubr.bf16.mxu0 0
      %1344 = vmatmul.mubr.bf16.gmra.mrb[0].mxu0 %v1191
      %v1345 = vpop.f32.mrb[0].mxu0
      %v1346 = vadd.f32 %v1134, %v1345
      %v1347 = vpop.f32.mrb[0].mxu0
      %v1348 = vpop.f32.mrb[0].mxu0
      %v1349 = vadd.f32 %v1137, %v1348
      %v1350 = vpop.f32.mrb[0].mxu0
      %1351 = vmatprep.mubr.bf16.mxu0 0
      %1352 = vmatmul.mubr.bf16.gmra.mrb[0].mxu0 %v1194
      %v1353 = vpop.f32.mrb[0].mxu0
      %v1354 = vadd.f32 %v1142, %v1353
      %v1355 = vpop.f32.mrb[0].mxu0
      %v1356 = vpop.f32.mrb[0].mxu0
      %v1357 = vadd.f32 %v1145, %v1356
      %v1358 = vpop.f32.mrb[0].mxu0
      %1359 = vdwg.mxu0
      %v1360 = vld [vmem:[#allocation2 + $0x8] sm:$0x1f]
      %v1361 = vld [vmem:[#allocation2 + $0x18] sm:$0x1f]
      %v1362 = vld [vmem:[#allocation2 + $0x28] sm:$0x1f]
      %v1363 = vld [vmem:[#allocation2 + $0x38] sm:$0x1f]
      %v1364 = vld [vmem:[#allocation2 + $0x48] sm:$0x1f]
      %v1365 = vld [vmem:[#allocation2 + $0x58] sm:$0x1f]
      %v1366 = vld [vmem:[#allocation2 + $0x68] sm:$0x1f]
      %v1367 = vld [vmem:[#allocation2 + $0x78] sm:$0x1f]
      %v1368 = vld [vmem:[#allocation2 + $0x88] sm:$0x1f]
      %v1369 = vld [vmem:[#allocation2 + $0x98] sm:$0x1f]
      %v1370 = vld [vmem:[#allocation2 + $0xa8] sm:$0x1f]
      %v1371 = vld [vmem:[#allocation2 + $0xb8] sm:$0x1f]
      %v1372 = vld [vmem:[#allocation2 + $0xc8] sm:$0x1f]
      %v1373 = vld [vmem:[#allocation2 + $0xd8] sm:$0x1f]
      %v1374 = vld [vmem:[#allocation2 + $0xe8] sm:$0x1f]
      %v1375 = vld [vmem:[#allocation2 + $0xf8] sm:$0x1f]
      %vm1376 = vsmask.f32 3328
      %v1378 = vshrl.u32 %v837, 16
      %v1380 = vrot.slane %v1378, 4
      %v1381 = vshll.u32 %v837, 16
      %v1383 = vrot.slane %v1381, 5
      %v1384 = vor.u32 %v1380, %v1383
      %v1386 = vshrl.u32 %v1360, 16
      %v1388 = vrot.slane %v1386, 4
      %v1389 = vshll.u32 %v1360, 16
      %v1391 = vrot.slane %v1389, 5
      %v1392 = vor.u32 %v1388, %v1391
      %v1393 = vsel %vm1376, %v1384, %v1392
      %v1395 = vshrl.u32 %v838, 16
      %v1397 = vrot.slane %v1395, 4
      %v1398 = vshll.u32 %v838, 16
      %v1400 = vrot.slane %v1398, 5
      %v1401 = vor.u32 %v1397, %v1400
      %v1403 = vshrl.u32 %v1361, 16
      %v1405 = vrot.slane %v1403, 4
      %v1406 = vshll.u32 %v1361, 16
      %v1408 = vrot.slane %v1406, 5
      %v1409 = vor.u32 %v1405, %v1408
      %v1410 = vsel %vm1376, %v1401, %v1409
      %v1412 = vshrl.u32 %v839, 16
      %v1414 = vrot.slane %v1412, 4
      %v1415 = vshll.u32 %v839, 16
      %v1417 = vrot.slane %v1415, 5
      %v1418 = vor.u32 %v1414, %v1417
      %v1420 = vshrl.u32 %v1362, 16
      %v1422 = vrot.slane %v1420, 4
      %v1423 = vshll.u32 %v1362, 16
      %v1425 = vrot.slane %v1423, 5
      %v1426 = vor.u32 %v1422, %v1425
      %v1427 = vsel %vm1376, %v1418, %v1426
      %v1429 = vshrl.u32 %v840, 16
      %v1431 = vrot.slane %v1429, 4
      %v1432 = vshll.u32 %v840, 16
      %v1434 = vrot.slane %v1432, 5
      %v1435 = vor.u32 %v1431, %v1434
      %v1437 = vshrl.u32 %v1363, 16
      %v1439 = vrot.slane %v1437, 4
      %v1440 = vshll.u32 %v1363, 16
      %v1442 = vrot.slane %v1440, 5
      %v1443 = vor.u32 %v1439, %v1442
      %v1444 = vsel %vm1376, %v1435, %v1443
      %v1446 = vshrl.u32 %v841, 16
      %v1448 = vrot.slane %v1446, 4
      %v1449 = vshll.u32 %v841, 16
      %v1451 = vrot.slane %v1449, 5
      %v1452 = vor.u32 %v1448, %v1451
      %v1454 = vshrl.u32 %v1364, 16
      %v1456 = vrot.slane %v1454, 4
      %v1457 = vshll.u32 %v1364, 16
      %v1459 = vrot.slane %v1457, 5
      %v1460 = vor.u32 %v1456, %v1459
      %v1461 = vsel %vm1376, %v1452, %v1460
      %v1463 = vshrl.u32 %v842, 16
      %v1465 = vrot.slane %v1463, 4
      %v1466 = vshll.u32 %v842, 16
      %v1468 = vrot.slane %v1466, 5
      %v1469 = vor.u32 %v1465, %v1468
      %v1471 = vshrl.u32 %v1365, 16
      %v1473 = vrot.slane %v1471, 4
      %v1474 = vshll.u32 %v1365, 16
      %v1476 = vrot.slane %v1474, 5
      %v1477 = vor.u32 %v1473, %v1476
      %v1478 = vsel %vm1376, %v1469, %v1477
      %v1480 = vshrl.u32 %v843, 16
      %v1482 = vrot.slane %v1480, 4
      %v1483 = vshll.u32 %v843, 16
      %v1485 = vrot.slane %v1483, 5
      %v1486 = vor.u32 %v1482, %v1485
      %v1488 = vshrl.u32 %v1366, 16
      %v1490 = vrot.slane %v1488, 4
      %v1491 = vshll.u32 %v1366, 16
      %v1493 = vrot.slane %v1491, 5
      %v1494 = vor.u32 %v1490, %v1493
      %v1495 = vsel %vm1376, %v1486, %v1494
      %v1497 = vshrl.u32 %v844, 16
      %v1499 = vrot.slane %v1497, 4
      %v1500 = vshll.u32 %v844, 16
      %v1502 = vrot.slane %v1500, 5
      %v1503 = vor.u32 %v1499, %v1502
      %v1505 = vshrl.u32 %v1367, 16
      %v1507 = vrot.slane %v1505, 4
      %v1508 = vshll.u32 %v1367, 16
      %v1510 = vrot.slane %v1508, 5
      %v1511 = vor.u32 %v1507, %v1510
      %v1512 = vsel %vm1376, %v1503, %v1511
      %v1514 = vshrl.u32 %v845, 16
      %v1516 = vrot.slane %v1514, 4
      %v1517 = vshll.u32 %v845, 16
      %v1519 = vrot.slane %v1517, 5
      %v1520 = vor.u32 %v1516, %v1519
      %v1522 = vshrl.u32 %v1368, 16
      %v1524 = vrot.slane %v1522, 4
      %v1525 = vshll.u32 %v1368, 16
      %v1527 = vrot.slane %v1525, 5
      %v1528 = vor.u32 %v1524, %v1527
      %v1529 = vsel %vm1376, %v1520, %v1528
      %v1531 = vshrl.u32 %v846, 16
      %v1533 = vrot.slane %v1531, 4
      %v1534 = vshll.u32 %v846, 16
      %v1536 = vrot.slane %v1534, 5
      %v1537 = vor.u32 %v1533, %v1536
      %v1539 = vshrl.u32 %v1369, 16
      %v1541 = vrot.slane %v1539, 4
      %v1542 = vshll.u32 %v1369, 16
      %v1544 = vrot.slane %v1542, 5
      %v1545 = vor.u32 %v1541, %v1544
      %v1546 = vsel %vm1376, %v1537, %v1545
      %v1548 = vshrl.u32 %v847, 16
      %v1550 = vrot.slane %v1548, 4
      %v1551 = vshll.u32 %v847, 16
      %v1553 = vrot.slane %v1551, 5
      %v1554 = vor.u32 %v1550, %v1553
      %v1556 = vshrl.u32 %v1370, 16
      %v1558 = vrot.slane %v1556, 4
      %v1559 = vshll.u32 %v1370, 16
      %v1561 = vrot.slane %v1559, 5
      %v1562 = vor.u32 %v1558, %v1561
      %v1563 = vsel %vm1376, %v1554, %v1562
      %v1565 = vshrl.u32 %v848, 16
      %v1567 = vrot.slane %v1565, 4
      %v1568 = vshll.u32 %v848, 16
      %v1570 = vrot.slane %v1568, 5
      %v1571 = vor.u32 %v1567, %v1570
      %v1573 = vshrl.u32 %v1371, 16
      %v1575 = vrot.slane %v1573, 4
      %v1576 = vshll.u32 %v1371, 16
      %v1578 = vrot.slane %v1576, 5
      %v1579 = vor.u32 %v1575, %v1578
      %v1580 = vsel %vm1376, %v1571, %v1579
      %v1582 = vshrl.u32 %v849, 16
      %v1584 = vrot.slane %v1582, 4
      %v1585 = vshll.u32 %v849, 16
      %v1587 = vrot.slane %v1585, 5
      %v1588 = vor.u32 %v1584, %v1587
      %v1590 = vshrl.u32 %v1372, 16
      %v1592 = vrot.slane %v1590, 4
      %v1593 = vshll.u32 %v1372, 16
      %v1595 = vrot.slane %v1593, 5
      %v1596 = vor.u32 %v1592, %v1595
      %v1597 = vsel %vm1376, %v1588, %v1596
      %v1599 = vshrl.u32 %v850, 16
      %v1601 = vrot.slane %v1599, 4
      %v1602 = vshll.u32 %v850, 16
      %v1604 = vrot.slane %v1602, 5
      %v1605 = vor.u32 %v1601, %v1604
      %v1607 = vshrl.u32 %v1373, 16
      %v1609 = vrot.slane %v1607, 4
      %v1610 = vshll.u32 %v1373, 16
      %v1612 = vrot.slane %v1610, 5
      %v1613 = vor.u32 %v1609, %v1612
      %v1614 = vsel %vm1376, %v1605, %v1613
      %v1616 = vshrl.u32 %v851, 16
      %v1618 = vrot.slane %v1616, 4
      %v1619 = vshll.u32 %v851, 16
      %v1621 = vrot.slane %v1619, 5
      %v1622 = vor.u32 %v1618, %v1621
      %v1624 = vshrl.u32 %v1374, 16
      %v1626 = vrot.slane %v1624, 4
      %v1627 = vshll.u32 %v1374, 16
      %v1629 = vrot.slane %v1627, 5
      %v1630 = vor.u32 %v1626, %v1629
      %v1631 = vsel %vm1376, %v1622, %v1630
      %v1633 = vshrl.u32 %v852, 16
      %v1635 = vrot.slane %v1633, 4
      %v1636 = vshll.u32 %v852, 16
      %v1638 = vrot.slane %v1636, 5
      %v1639 = vor.u32 %v1635, %v1638
      %v1641 = vshrl.u32 %v1375, 16
      %v1643 = vrot.slane %v1641, 4
      %v1644 = vshll.u32 %v1375, 16
      %v1646 = vrot.slane %v1644, 5
      %v1647 = vor.u32 %v1643, %v1646
      %v1648 = vsel %vm1376, %v1639, %v1647
      %v1650 = vsel %vm934, %v1393, 0
      %v1653 = vsel %vm934, %v1410, 0
      %v1656 = vsel %vm934, %v1427, 0
      %v1659 = vsel %vm934, %v1444, 0
      %v1662 = vsel %vm934, %v1461, 0
      %v1665 = vsel %vm934, %v1478, 0
      %v1668 = vsel %vm934, %v1495, 0
      %v1671 = vsel %vm934, %v1512, 0
      %v1674 = vsel %vm934, %v1529, 0
      %v1677 = vsel %vm934, %v1546, 0
      %v1680 = vsel %vm934, %v1563, 0
      %v1683 = vsel %vm934, %v1580, 0
      %v1686 = vsel %vm934, %v1597, 0
      %v1689 = vsel %vm934, %v1614, 0
      %v1692 = vsel %vm934, %v1631, 0
      %v1695 = vsel %vm934, %v1648, 0
      %v1698 = vsel %vm983, %v525, 0
      %1700 = vmatprep.subr.bf16.mxu0 0
      %1701 = vmatpush1.bf16.msra.mxu0 %v1698
      %1702 = vmatprep.subr.bf16.mxu0 0
      %1703 = vmatpush1.bf16.msra.mxu0 0
      %1704 = vmatprep.subr.bf16.mxu0 0
      %1705 = vmatpush1.bf16.msra.mxu0 0
      %1706 = vmatprep.subr.bf16.mxu0 0
      %1707 = vmatpush1.bf16.msra.mxu0 0
      %1708 = vmatprep.subr.bf16.mxu0 0
      %1709 = vmatpush1.bf16.msra.mxu0 0
      %1710 = vmatprep.subr.bf16.mxu0 0
      %1711 = vmatpush1.bf16.msra.mxu0 0
      %1712 = vmatprep.subr.bf16.mxu0 0
      %1713 = vmatpush1.bf16.msra.mxu0 0
      %1714 = vmatprep.subr.bf16.mxu0 0
      %1715 = vmatpush1.bf16.msra.mxu0 0
      %1716 = vmatprep.subr.bf16.mxu0 0
      %1717 = vmatpush1.bf16.msra.mxu0 0
      %1718 = vmatprep.subr.bf16.mxu0 0
      %1719 = vmatpush1.bf16.msra.mxu0 0
      %1720 = vmatprep.subr.bf16.mxu0 0
      %1721 = vmatpush1.bf16.msra.mxu0 0
      %1722 = vmatprep.subr.bf16.mxu0 0
      %1723 = vmatpush1.bf16.msra.mxu0 0
      %1724 = vmatprep.subr.bf16.mxu0 0
      %1725 = vmatpush1.bf16.msra.mxu0 0
      %1726 = vmatprep.subr.bf16.mxu0 0
      %1727 = vmatpush1.bf16.msra.mxu0 0
      %1728 = vmatprep.subr.bf16.mxu0 0
      %1729 = vmatpush1.bf16.msra.mxu0 0
      %1730 = vmatprep.subr.bf16.mxu0 0
      %1731 = vmatpush1.bf16.msra.mxu0 0
      %1732 = vmatprep.mubr.bf16.mxu0 0
      %1733 = vmatmul.mubr.bf16.gmra.mrb[0].mxu0 %v1650
      %v1734 = vpop.f32.mrb[0].mxu0
      %v1735 = vadd.f32 0.0, %v1734
      %v1736 = vpop.f32.mrb[0].mxu0
      %v1737 = vpop.f32.mrb[0].mxu0
      %v1738 = vadd.f32 0.0, %v1737
      %v1739 = vpop.f32.mrb[0].mxu0
      %1740 = vmatprep.mubr.bf16.mxu0 0
      %1741 = vmatmul.mubr.bf16.gmra.mrb[0].mxu0 %v1653
      %v1742 = vpop.f32.mrb[0].mxu0
      %v1743 = vadd.f32 0.0, %v1742
      %v1744 = vpop.f32.mrb[0].mxu0
      %v1745 = vpop.f32.mrb[0].mxu0
      %v1746 = vadd.f32 0.0, %v1745
      %v1747 = vpop.f32.mrb[0].mxu0
      %1748 = vmatprep.mubr.bf16.mxu0 0
      %1749 = vmatmul.mubr.bf16.gmra.mrb[0].mxu0 %v1656
      %v1750 = vpop.f32.mrb[0].mxu0
      %v1751 = vadd.f32 0.0, %v1750
      %v1752 = vpop.f32.mrb[0].mxu0
      %v1753 = vpop.f32.mrb[0].mxu0
      %v1754 = vadd.f32 0.0, %v1753
      %v1755 = vpop.f32.mrb[0].mxu0
      %1756 = vmatprep.mubr.bf16.mxu0 0
      %1757 = vmatmul.mubr.bf16.gmra.mrb[0].mxu0 %v1659
      %v1758 = vpop.f32.mrb[0].mxu0
      %v1759 = vadd.f32 0.0, %v1758
      %v1760 = vpop.f32.mrb[0].mxu0
      %v1761 = vpop.f32.mrb[0].mxu0
      %v1762 = vadd.f32 0.0, %v1761
      %v1763 = vpop.f32.mrb[0].mxu0
      %1764 = vmatprep.mubr.bf16.mxu0 0
      %1765 = vmatmul.mubr.bf16.gmra.mrb[0].mxu0 %v1662
      %v1766 = vpop.f32.mrb[0].mxu0
      %v1767 = vadd.f32 0.0, %v1766
      %v1768 = vpop.f32.mrb[0].mxu0
      %v1769 = vpop.f32.mrb[0].mxu0
      %v1770 = vadd.f32 0.0, %v1769
      %v1771 = vpop.f32.mrb[0].mxu0
      %1772 = vmatprep.mubr.bf16.mxu0 0
      %1773 = vmatmul.mubr.bf16.gmra.mrb[0].mxu0 %v1665
      %v1774 = vpop.f32.mrb[0].mxu0
      %v1775 = vadd.f32 0.0, %v1774
      %v1776 = vpop.f32.mrb[0].mxu0
      %v1777 = vpop.f32.mrb[0].mxu0
      %v1778 = vadd.f32 0.0, %v1777
      %v1779 = vpop.f32.mrb[0].mxu0
      %1780 = vmatprep.mubr.bf16.mxu0 0
      %1781 = vmatmul.mubr.bf16.gmra.mrb[0].mxu0 %v1668
      %v1782 = vpop.f32.mrb[0].mxu0
      %v1783 = vadd.f32 0.0, %v1782
      %v1784 = vpop.f32.mrb[0].mxu0
      %v1785 = vpop.f32.mrb[0].mxu0
      %v1786 = vadd.f32 0.0, %v1785
      %v1787 = vpop.f32.mrb[0].mxu0
      %1788 = vmatprep.mubr.bf16.mxu0 0
      %1789 = vmatmul.mubr.bf16.gmra.mrb[0].mxu0 %v1671
      %v1790 = vpop.f32.mrb[0].mxu0
      %v1791 = vadd.f32 0.0, %v1790
      %v1792 = vpop.f32.mrb[0].mxu0
      %v1793 = vpop.f32.mrb[0].mxu0
      %v1794 = vadd.f32 0.0, %v1793
      %v1795 = vpop.f32.mrb[0].mxu0
      %1796 = vmatprep.mubr.bf16.mxu0 0
      %1797 = vmatmul.mubr.bf16.gmra.mrb[0].mxu0 %v1674
      %v1798 = vpop.f32.mrb[0].mxu0
      %v1799 = vadd.f32 0.0, %v1798
      %v1800 = vpop.f32.mrb[0].mxu0
      %v1801 = vpop.f32.mrb[0].mxu0
      %v1802 = vadd.f32 0.0, %v1801
      %v1803 = vpop.f32.mrb[0].mxu0
      %1804 = vmatprep.mubr.bf16.mxu0 0
      %1805 = vmatmul.mubr.bf16.gmra.mrb[0].mxu0 %v1677
      %v1806 = vpop.f32.mrb[0].mxu0
      %v1807 = vadd.f32 0.0, %v1806
      %v1808 = vpop.f32.mrb[0].mxu0
      %v1809 = vpop.f32.mrb[0].mxu0
      %v1810 = vadd.f32 0.0, %v1809
      %v1811 = vpop.f32.mrb[0].mxu0
      %1812 = vmatprep.mubr.bf16.mxu0 0
      %1813 = vmatmul.mubr.bf16.gmra.mrb[0].mxu0 %v1680
      %v1814 = vpop.f32.mrb[0].mxu0
      %v1815 = vadd.f32 0.0, %v1814
      %v1816 = vpop.f32.mrb[0].mxu0
      %v1817 = vpop.f32.mrb[0].mxu0
      %v1818 = vadd.f32 0.0, %v1817
      %v1819 = vpop.f32.mrb[0].mxu0
      %1820 = vmatprep.mubr.bf16.mxu0 0
      %1821 = vmatmul.mubr.bf16.gmra.mrb[0].mxu0 %v1683
      %v1822 = vpop.f32.mrb[0].mxu0
      %v1823 = vadd.f32 0.0, %v1822
      %v1824 = vpop.f32.mrb[0].mxu0
      %v1825 = vpop.f32.mrb[0].mxu0
      %v1826 = vadd.f32 0.0, %v1825
      %v1827 = vpop.f32.mrb[0].mxu0
      %1828 = vmatprep.mubr.bf16.mxu0 0
      %1829 = vmatmul.mubr.bf16.gmra.mrb[0].mxu0 %v1686
      %v1830 = vpop.f32.mrb[0].mxu0
      %v1831 = vadd.f32 0.0, %v1830
      %v1832 = vpop.f32.mrb[0].mxu0
      %v1833 = vpop.f32.mrb[0].mxu0
      %v1834 = vadd.f32 0.0, %v1833
      %v1835 = vpop.f32.mrb[0].mxu0
      %1836 = vmatprep.mubr.bf16.mxu0 0
      %1837 = vmatmul.mubr.bf16.gmra.mrb[0].mxu0 %v1689
      %v1838 = vpop.f32.mrb[0].mxu0
      %v1839 = vadd.f32 0.0, %v1838
      %v1840 = vpop.f32.mrb[0].mxu0
      %v1841 = vpop.f32.mrb[0].mxu0
      %v1842 = vadd.f32 0.0, %v1841
      %v1843 = vpop.f32.mrb[0].mxu0
      %1844 = vmatprep.mubr.bf16.mxu0 0
      %1845 = vmatmul.mubr.bf16.gmra.mrb[0].mxu0 %v1692
      %v1846 = vpop.f32.mrb[0].mxu0
      %v1847 = vadd.f32 0.0, %v1846
      %v1848 = vpop.f32.mrb[0].mxu0
      %v1849 = vpop.f32.mrb[0].mxu0
      %v1850 = vadd.f32 0.0, %v1849
      %v1851 = vpop.f32.mrb[0].mxu0
      %1852 = vmatprep.mubr.bf16.mxu0 0
      %1853 = vmatmul.mubr.bf16.gmra.mrb[0].mxu0 %v1695
      %v1854 = vpop.f32.mrb[0].mxu0
      %v1855 = vadd.f32 0.0, %v1854
      %v1856 = vpop.f32.mrb[0].mxu0
      %v1857 = vpop.f32.mrb[0].mxu0
      %v1858 = vadd.f32 0.0, %v1857
      %v1859 = vpop.f32.mrb[0].mxu0
      %1860 = vdwg.mxu0
      %v1861 = vadd.f32 %v1234, %v1735
      %v1862 = vadd.f32 %v1237, %v1738
      %v1863 = vadd.f32 %v1242, %v1743
      %v1864 = vadd.f32 %v1245, %v1746
      %v1865 = vadd.f32 %v1250, %v1751
      %v1866 = vadd.f32 %v1253, %v1754
      %v1867 = vadd.f32 %v1258, %v1759
      %v1868 = vadd.f32 %v1261, %v1762
      %v1869 = vadd.f32 %v1266, %v1767
      %v1870 = vadd.f32 %v1269, %v1770
      %v1871 = vadd.f32 %v1274, %v1775
      %v1872 = vadd.f32 %v1277, %v1778
      %v1873 = vadd.f32 %v1282, %v1783
      %v1874 = vadd.f32 %v1285, %v1786
      %v1875 = vadd.f32 %v1290, %v1791
      %v1876 = vadd.f32 %v1293, %v1794
      %v1877 = vadd.f32 %v1298, %v1799
      %v1878 = vadd.f32 %v1301, %v1802
      %v1879 = vadd.f32 %v1306, %v1807
      %v1880 = vadd.f32 %v1309, %v1810
      %v1881 = vadd.f32 %v1314, %v1815
      %v1882 = vadd.f32 %v1317, %v1818
      %v1883 = vadd.f32 %v1322, %v1823
      %v1884 = vadd.f32 %v1325, %v1826
      %v1885 = vadd.f32 %v1330, %v1831
      %v1886 = vadd.f32 %v1333, %v1834
      %v1887 = vadd.f32 %v1338, %v1839
      %v1888 = vadd.f32 %v1341, %v1842
      %v1889 = vadd.f32 %v1346, %v1847
      %v1890 = vadd.f32 %v1349, %v1850
      %v1891 = vadd.f32 %v1354, %v1855
      %v1892 = vadd.f32 %v1357, %v1858
      %v1893 = vld [vmem:[%s490] sm:$0xf8]
      %v1894 = vld [vmem:[%s490 + $0x8] sm:$0xf]
      %v1895 = vld [vmem:[%s490 + $0x10] sm:$0xf8]
      %v1896 = vld [vmem:[%s490 + $0x18] sm:$0xf]
      %v1897 = vld [vmem:[%s490 + $0x20] sm:$0xf8]
      %v1898 = vld [vmem:[%s490 + $0x28] sm:$0xf]
      %v1899 = vld [vmem:[%s490 + $0x30] sm:$0xf8]
      %v1900 = vld [vmem:[%s490 + $0x38] sm:$0xf]
      %v1901 = vld [vmem:[%s490 + $0x40] sm:$0xf8]
      %v1902 = vld [vmem:[%s490 + $0x48] sm:$0xf]
      %v1903 = vld [vmem:[%s490 + $0x50] sm:$0xf8]
      %v1904 = vld [vmem:[%s490 + $0x58] sm:$0xf]
      %v1905 = vld [vmem:[%s490 + $0x60] sm:$0xf8]
      %v1906 = vld [vmem:[%s490 + $0x68] sm:$0xf]
      %v1907 = vld [vmem:[%s490 + $0x70] sm:$0xf8]
      %v1908 = vld [vmem:[%s490 + $0x78] sm:$0xf]
      %v1909 = vld [vmem:[%s490 + $0x80] sm:$0xf8]
      %v1910 = vld [vmem:[%s490 + $0x88] sm:$0xf]
      %v1911 = vld [vmem:[%s490 + $0x90] sm:$0xf8]
      %v1912 = vld [vmem:[%s490 + $0x98] sm:$0xf]
      %v1913 = vld [vmem:[%s490 + $0xa0] sm:$0xf8]
      %v1914 = vld [vmem:[%s490 + $0xa8] sm:$0xf]
      %v1915 = vld [vmem:[%s490 + $0xb0] sm:$0xf8]
      %v1916 = vld [vmem:[%s490 + $0xb8] sm:$0xf]
      %v1917 = vld [vmem:[%s490 + $0xc0] sm:$0xf8]
      %v1918 = vld [vmem:[%s490 + $0xc8] sm:$0xf]
      %v1919 = vld [vmem:[%s490 + $0xd0] sm:$0xf8]
      %v1920 = vld [vmem:[%s490 + $0xd8] sm:$0xf]
      %v1921 = vld [vmem:[%s490 + $0xe0] sm:$0xf8]
      %v1922 = vld [vmem:[%s490 + $0xe8] sm:$0xf]
      %v1923 = vld [vmem:[%s490 + $0xf0] sm:$0xf8]
      %v1924 = vld [vmem:[%s490 + $0xf8] sm:$0xf]
      %v1926 = vshrl.u32 %v1893, 16
      %v1928 = vrot.slane %v1926, 3
      %v1929 = vshll.u32 %v1893, 16
      %v1931 = vrot.slane %v1929, 4
      %v1932 = vor.u32 %v1928, %v1931
      %v1934 = vshrl.u32 %v1894, 16
      %v1936 = vrot.slane %v1934, 3
      %v1937 = vshll.u32 %v1894, 16
      %v1939 = vrot.slane %v1937, 4
      %v1940 = vor.u32 %v1936, %v1939
      %v1941 = vsel %vm564, %v1932, %v1940
      %v1943 = vshrl.u32 %v1895, 16
      %v1945 = vrot.slane %v1943, 3
      %v1946 = vshll.u32 %v1895, 16
      %v1948 = vrot.slane %v1946, 4
      %v1949 = vor.u32 %v1945, %v1948
      %v1951 = vshrl.u32 %v1896, 16
      %v1953 = vrot.slane %v1951, 3
      %v1954 = vshll.u32 %v1896, 16
      %v1956 = vrot.slane %v1954, 4
      %v1957 = vor.u32 %v1953, %v1956
      %v1958 = vsel %vm564, %v1949, %v1957
      %v1960 = vshrl.u32 %v1897, 16
      %v1962 = vrot.slane %v1960, 3
      %v1963 = vshll.u32 %v1897, 16
      %v1965 = vrot.slane %v1963, 4
      %v1966 = vor.u32 %v1962, %v1965
      %v1968 = vshrl.u32 %v1898, 16
      %v1970 = vrot.slane %v1968, 3
      %v1971 = vshll.u32 %v1898, 16
      %v1973 = vrot.slane %v1971, 4
      %v1974 = vor.u32 %v1970, %v1973
      %v1975 = vsel %vm564, %v1966, %v1974
      %v1977 = vshrl.u32 %v1899, 16
      %v1979 = vrot.slane %v1977, 3
      %v1980 = vshll.u32 %v1899, 16
      %v1982 = vrot.slane %v1980, 4
      %v1983 = vor.u32 %v1979, %v1982
      %v1985 = vshrl.u32 %v1900, 16
      %v1987 = vrot.slane %v1985, 3
      %v1988 = vshll.u32 %v1900, 16
      %v1990 = vrot.slane %v1988, 4
      %v1991 = vor.u32 %v1987, %v1990
      %v1992 = vsel %vm564, %v1983, %v1991
      %v1994 = vshrl.u32 %v1901, 16
      %v1996 = vrot.slane %v1994, 3
      %v1997 = vshll.u32 %v1901, 16
      %v1999 = vrot.slane %v1997, 4
      %v2000 = vor.u32 %v1996, %v1999
      %v2002 = vshrl.u32 %v1902, 16
      %v2004 = vrot.slane %v2002, 3
      %v2005 = vshll.u32 %v1902, 16
      %v2007 = vrot.slane %v2005, 4
      %v2008 = vor.u32 %v2004, %v2007
      %v2009 = vsel %vm564, %v2000, %v2008
      %v2011 = vshrl.u32 %v1903, 16
      %v2013 = vrot.slane %v2011, 3
      %v2014 = vshll.u32 %v1903, 16
      %v2016 = vrot.slane %v2014, 4
      %v2017 = vor.u32 %v2013, %v2016
      %v2019 = vshrl.u32 %v1904, 16
      %v2021 = vrot.slane %v2019, 3
      %v2022 = vshll.u32 %v1904, 16
      %v2024 = vrot.slane %v2022, 4
      %v2025 = vor.u32 %v2021, %v2024
      %v2026 = vsel %vm564, %v2017, %v2025
      %v2028 = vshrl.u32 %v1905, 16
      %v2030 = vrot.slane %v2028, 3
      %v2031 = vshll.u32 %v1905, 16
      %v2033 = vrot.slane %v2031, 4
      %v2034 = vor.u32 %v2030, %v2033
      %v2036 = vshrl.u32 %v1906, 16
      %v2038 = vrot.slane %v2036, 3
      %v2039 = vshll.u32 %v1906, 16
      %v2041 = vrot.slane %v2039, 4
      %v2042 = vor.u32 %v2038, %v2041
      %v2043 = vsel %vm564, %v2034, %v2042
      %v2045 = vshrl.u32 %v1907, 16
      %v2047 = vrot.slane %v2045, 3
      %v2048 = vshll.u32 %v1907, 16
      %v2050 = vrot.slane %v2048, 4
      %v2051 = vor.u32 %v2047, %v2050
      %v2053 = vshrl.u32 %v1908, 16
      %v2055 = vrot.slane %v2053, 3
      %v2056 = vshll.u32 %v1908, 16
      %v2058 = vrot.slane %v2056, 4
      %v2059 = vor.u32 %v2055, %v2058
      %v2060 = vsel %vm564, %v2051, %v2059
      %v2062 = vshrl.u32 %v1909, 16
      %v2064 = vrot.slane %v2062, 3
      %v2065 = vshll.u32 %v1909, 16
      %v2067 = vrot.slane %v2065, 4
      %v2068 = vor.u32 %v2064, %v2067
      %v2070 = vshrl.u32 %v1910, 16
      %v2072 = vrot.slane %v2070, 3
      %v2073 = vshll.u32 %v1910, 16
      %v2075 = vrot.slane %v2073, 4
      %v2076 = vor.u32 %v2072, %v2075
      %v2077 = vsel %vm564, %v2068, %v2076
      %v2079 = vshrl.u32 %v1911, 16
      %v2081 = vrot.slane %v2079, 3
      %v2082 = vshll.u32 %v1911, 16
      %v2084 = vrot.slane %v2082, 4
      %v2085 = vor.u32 %v2081, %v2084
      %v2087 = vshrl.u32 %v1912, 16
      %v2089 = vrot.slane %v2087, 3
      %v2090 = vshll.u32 %v1912, 16
      %v2092 = vrot.slane %v2090, 4
      %v2093 = vor.u32 %v2089, %v2092
      %v2094 = vsel %vm564, %v2085, %v2093
      %v2096 = vshrl.u32 %v1913, 16
      %v2098 = vrot.slane %v2096, 3
      %v2099 = vshll.u32 %v1913, 16
      %v2101 = vrot.slane %v2099, 4
      %v2102 = vor.u32 %v2098, %v2101
      %v2104 = vshrl.u32 %v1914, 16
      %v2106 = vrot.slane %v2104, 3
      %v2107 = vshll.u32 %v1914, 16
      %v2109 = vrot.slane %v2107, 4
      %v2110 = vor.u32 %v2106, %v2109
      %v2111 = vsel %vm564, %v2102, %v2110
      %v2113 = vshrl.u32 %v1915, 16
      %v2115 = vrot.slane %v2113, 3
      %v2116 = vshll.u32 %v1915, 16
      %v2118 = vrot.slane %v2116, 4
      %v2119 = vor.u32 %v2115, %v2118
      %v2121 = vshrl.u32 %v1916, 16
      %v2123 = vrot.slane %v2121, 3
      %v2124 = vshll.u32 %v1916, 16
      %v2126 = vrot.slane %v2124, 4
      %v2127 = vor.u32 %v2123, %v2126
      %v2128 = vsel %vm564, %v2119, %v2127
      %v2130 = vshrl.u32 %v1917, 16
      %v2132 = vrot.slane %v2130, 3
      %v2133 = vshll.u32 %v1917, 16
      %v2135 = vrot.slane %v2133, 4
      %v2136 = vor.u32 %v2132, %v2135
      %v2138 = vshrl.u32 %v1918, 16
      %v2140 = vrot.slane %v2138, 3
      %v2141 = vshll.u32 %v1918, 16
      %v2143 = vrot.slane %v2141, 4
      %v2144 = vor.u32 %v2140, %v2143
      %v2145 = vsel %vm564, %v2136, %v2144
      %v2147 = vshrl.u32 %v1919, 16
      %v2149 = vrot.slane %v2147, 3
      %v2150 = vshll.u32 %v1919, 16
      %v2152 = vrot.slane %v2150, 4
      %v2153 = vor.u32 %v2149, %v2152
      %v2155 = vshrl.u32 %v1920, 16
      %v2157 = vrot.slane %v2155, 3
      %v2158 = vshll.u32 %v1920, 16
      %v2160 = vrot.slane %v2158, 4
      %v2161 = vor.u32 %v2157, %v2160
      %v2162 = vsel %vm564, %v2153, %v2161
      %v2164 = vshrl.u32 %v1921, 16
      %v2166 = vrot.slane %v2164, 3
      %v2167 = vshll.u32 %v1921, 16
      %v2169 = vrot.slane %v2167, 4
      %v2170 = vor.u32 %v2166, %v2169
      %v2172 = vshrl.u32 %v1922, 16
      %v2174 = vrot.slane %v2172, 3
      %v2175 = vshll.u32 %v1922, 16
      %v2177 = vrot.slane %v2175, 4
      %v2178 = vor.u32 %v2174, %v2177
      %v2179 = vsel %vm564, %v2170, %v2178
      %v2181 = vshrl.u32 %v1923, 16
      %v2183 = vrot.slane %v2181, 3
      %v2184 = vshll.u32 %v1923, 16
      %v2186 = vrot.slane %v2184, 4
      %v2187 = vor.u32 %v2183, %v2186
      %v2189 = vshrl.u32 %v1924, 16
      %v2191 = vrot.slane %v2189, 3
      %v2192 = vshll.u32 %v1924, 16
      %v2194 = vrot.slane %v2192, 4
      %v2195 = vor.u32 %v2191, %v2194
      %v2196 = vsel %vm564, %v2187, %v2195
      %v2198 = vsel %vm934, %v1941, 0
      %v2201 = vsel %vm934, %v1958, 0
      %v2204 = vsel %vm934, %v1975, 0
      %v2207 = vsel %vm934, %v1992, 0
      %v2210 = vsel %vm934, %v2009, 0
      %v2213 = vsel %vm934, %v2026, 0
      %v2216 = vsel %vm934, %v2043, 0
      %v2219 = vsel %vm934, %v2060, 0
      %v2222 = vsel %vm934, %v2077, 0
      %v2225 = vsel %vm934, %v2094, 0
      %v2228 = vsel %vm934, %v2111, 0
      %v2231 = vsel %vm934, %v2128, 0
      %v2234 = vsel %vm934, %v2145, 0
      %v2237 = vsel %vm934, %v2162, 0
      %v2240 = vsel %vm934, %v2179, 0
      %v2243 = vsel %vm934, %v2196, 0
      %v2246 = vsel %vm983, %v526, 0
      %2248 = vmatprep.subr.bf16.mxu0 0
      %2249 = vmatpush1.bf16.msra.mxu0 %v2246
      %2250 = vmatprep.subr.bf16.mxu0 0
      %2251 = vmatpush1.bf16.msra.mxu0 0
      %2252 = vmatprep.subr.bf16.mxu0 0
      %2253 = vmatpush1.bf16.msra.mxu0 0
      %2254 = vmatprep.subr.bf16.mxu0 0
      %2255 = vmatpush1.bf16.msra.mxu0 0
      %2256 = vmatprep.subr.bf16.mxu0 0
      %2257 = vmatpush1.bf16.msra.mxu0 0
      %2258 = vmatprep.subr.bf16.mxu0 0
      %2259 = vmatpush1.bf16.msra.mxu0 0
      %2260 = vmatprep.subr.bf16.mxu0 0
      %2261 = vmatpush1.bf16.msra.mxu0 0
      %2262 = vmatprep.subr.bf16.mxu0 0
      %2263 = vmatpush1.bf16.msra.mxu0 0
      %2264 = vmatprep.subr.bf16.mxu0 0
      %2265 = vmatpush1.bf16.msra.mxu0 0
      %2266 = vmatprep.subr.bf16.mxu0 0
      %2267 = vmatpush1.bf16.msra.mxu0 0
      %2268 = vmatprep.subr.bf16.mxu0 0
      %2269 = vmatpush1.bf16.msra.mxu0 0
      %2270 = vmatprep.subr.bf16.mxu0 0
      %2271 = vmatpush1.bf16.msra.mxu0 0
      %2272 = vmatprep.subr.bf16.mxu0 0
      %2273 = vmatpush1.bf16.msra.mxu0 0
      %2274 = vmatprep.subr.bf16.mxu0 0
      %2275 = vmatpush1.bf16.msra.mxu0 0
      %2276 = vmatprep.subr.bf16.mxu0 0
      %2277 = vmatpush1.bf16.msra.mxu0 0
      %2278 = vmatprep.subr.bf16.mxu0 0
      %2279 = vmatpush1.bf16.msra.mxu0 0
      %2280 = vmatprep.mubr.bf16.mxu0 0
      %2281 = vmatmul.mubr.bf16.gmra.mrb[0].mxu0 %v2198
      %v2282 = vpop.f32.mrb[0].mxu0
      %v2283 = vadd.f32 0.0, %v2282
      %v2284 = vpop.f32.mrb[0].mxu0
      %v2285 = vpop.f32.mrb[0].mxu0
      %v2286 = vadd.f32 0.0, %v2285
      %v2287 = vpop.f32.mrb[0].mxu0
      %2288 = vmatprep.mubr.bf16.mxu0 0
      %2289 = vmatmul.mubr.bf16.gmra.mrb[0].mxu0 %v2201
      %v2290 = vpop.f32.mrb[0].mxu0
      %v2291 = vadd.f32 0.0, %v2290
      %v2292 = vpop.f32.mrb[0].mxu0
      %v2293 = vpop.f32.mrb[0].mxu0
      %v2294 = vadd.f32 0.0, %v2293
      %v2295 = vpop.f32.mrb[0].mxu0
      %2296 = vmatprep.mubr.bf16.mxu0 0
      %2297 = vmatmul.mubr.bf16.gmra.mrb[0].mxu0 %v2204
      %v2298 = vpop.f32.mrb[0].mxu0
      %v2299 = vadd.f32 0.0, %v2298
      %v2300 = vpop.f32.mrb[0].mxu0
      %v2301 = vpop.f32.mrb[0].mxu0
      %v2302 = vadd.f32 0.0, %v2301
      %v2303 = vpop.f32.mrb[0].mxu0
      %2304 = vmatprep.mubr.bf16.mxu0 0
      %2305 = vmatmul.mubr.bf16.gmra.mrb[0].mxu0 %v2207
      %v2306 = vpop.f32.mrb[0].mxu0
      %v2307 = vadd.f32 0.0, %v2306
      %v2308 = vpop.f32.mrb[0].mxu0
      %v2309 = vpop.f32.mrb[0].mxu0
      %v2310 = vadd.f32 0.0, %v2309
      %v2311 = vpop.f32.mrb[0].mxu0
      %2312 = vmatprep.mubr.bf16.mxu0 0
      %2313 = vmatmul.mubr.bf16.gmra.mrb[0].mxu0 %v2210
      %v2314 = vpop.f32.mrb[0].mxu0
      %v2315 = vadd.f32 0.0, %v2314
      %v2316 = vpop.f32.mrb[0].mxu0
      %v2317 = vpop.f32.mrb[0].mxu0
      %v2318 = vadd.f32 0.0, %v2317
      %v2319 = vpop.f32.mrb[0].mxu0
      %2320 = vmatprep.mubr.bf16.mxu0 0
      %2321 = vmatmul.mubr.bf16.gmra.mrb[0].mxu0 %v2213
      %v2322 = vpop.f32.mrb[0].mxu0
      %v2323 = vadd.f32 0.0, %v2322
      %v2324 = vpop.f32.mrb[0].mxu0
      %v2325 = vpop.f32.mrb[0].mxu0
      %v2326 = vadd.f32 0.0, %v2325
      %v2327 = vpop.f32.mrb[0].mxu0
      %2328 = vmatprep.mubr.bf16.mxu0 0
      %2329 = vmatmul.mubr.bf16.gmra.mrb[0].mxu0 %v2216
      %v2330 = vpop.f32.mrb[0].mxu0
      %v2331 = vadd.f32 0.0, %v2330
      %v2332 = vpop.f32.mrb[0].mxu0
      %v2333 = vpop.f32.mrb[0].mxu0
      %v2334 = vadd.f32 0.0, %v2333
      %v2335 = vpop.f32.mrb[0].mxu0
      %2336 = vmatprep.mubr.bf16.mxu0 0
      %2337 = vmatmul.mubr.bf16.gmra.mrb[0].mxu0 %v2219
      %v2338 = vpop.f32.mrb[0].mxu0
      %v2339 = vadd.f32 0.0, %v2338
      %v2340 = vpop.f32.mrb[0].mxu0
      %v2341 = vpop.f32.mrb[0].mxu0
      %v2342 = vadd.f32 0.0, %v2341
      %v2343 = vpop.f32.mrb[0].mxu0
      %2344 = vmatprep.mubr.bf16.mxu0 0
      %2345 = vmatmul.mubr.bf16.gmra.mrb[0].mxu0 %v2222
      %v2346 = vpop.f32.mrb[0].mxu0
      %v2347 = vadd.f32 0.0, %v2346
      %v2348 = vpop.f32.mrb[0].mxu0
      %v2349 = vpop.f32.mrb[0].mxu0
      %v2350 = vadd.f32 0.0, %v2349
      %v2351 = vpop.f32.mrb[0].mxu0
      %2352 = vmatprep.mubr.bf16.mxu0 0
      %2353 = vmatmul.mubr.bf16.gmra.mrb[0].mxu0 %v2225
      %v2354 = vpop.f32.mrb[0].mxu0
      %v2355 = vadd.f32 0.0, %v2354
      %v2356 = vpop.f32.mrb[0].mxu0
      %v2357 = vpop.f32.mrb[0].mxu0
      %v2358 = vadd.f32 0.0, %v2357
      %v2359 = vpop.f32.mrb[0].mxu0
      %2360 = vmatprep.mubr.bf16.mxu0 0
      %2361 = vmatmul.mubr.bf16.gmra.mrb[0].mxu0 %v2228
      %v2362 = vpop.f32.mrb[0].mxu0
      %v2363 = vadd.f32 0.0, %v2362
      %v2364 = vpop.f32.mrb[0].mxu0
      %v2365 = vpop.f32.mrb[0].mxu0
      %v2366 = vadd.f32 0.0, %v2365
      %v2367 = vpop.f32.mrb[0].mxu0
      %2368 = vmatprep.mubr.bf16.mxu0 0
      %2369 = vmatmul.mubr.bf16.gmra.mrb[0].mxu0 %v2231
      %v2370 = vpop.f32.mrb[0].mxu0
      %v2371 = vadd.f32 0.0, %v2370
      %v2372 = vpop.f32.mrb[0].mxu0
      %v2373 = vpop.f32.mrb[0].mxu0
      %v2374 = vadd.f32 0.0, %v2373
      %v2375 = vpop.f32.mrb[0].mxu0
      %2376 = vmatprep.mubr.bf16.mxu0 0
      %2377 = vmatmul.mubr.bf16.gmra.mrb[0].mxu0 %v2234
      %v2378 = vpop.f32.mrb[0].mxu0
      %v2379 = vadd.f32 0.0, %v2378
      %v2380 = vpop.f32.mrb[0].mxu0
      %v2381 = vpop.f32.mrb[0].mxu0
      %v2382 = vadd.f32 0.0, %v2381
      %v2383 = vpop.f32.mrb[0].mxu0
      %2384 = vmatprep.mubr.bf16.mxu0 0
      %2385 = vmatmul.mubr.bf16.gmra.mrb[0].mxu0 %v2237
      %v2386 = vpop.f32.mrb[0].mxu0
      %v2387 = vadd.f32 0.0, %v2386
      %v2388 = vpop.f32.mrb[0].mxu0
      %v2389 = vpop.f32.mrb[0].mxu0
      %v2390 = vadd.f32 0.0, %v2389
      %v2391 = vpop.f32.mrb[0].mxu0
      %2392 = vmatprep.mubr.bf16.mxu0 0
      %2393 = vmatmul.mubr.bf16.gmra.mrb[0].mxu0 %v2240
      %v2394 = vpop.f32.mrb[0].mxu0
      %v2395 = vadd.f32 0.0, %v2394
      %v2396 = vpop.f32.mrb[0].mxu0
      %v2397 = vpop.f32.mrb[0].mxu0
      %v2398 = vadd.f32 0.0, %v2397
      %v2399 = vpop.f32.mrb[0].mxu0
      %2400 = vmatprep.mubr.bf16.mxu0 0
      %2401 = vmatmul.mubr.bf16.gmra.mrb[0].mxu0 %v2243
      %v2402 = vpop.f32.mrb[0].mxu0
      %v2403 = vadd.f32 0.0, %v2402
      %v2404 = vpop.f32.mrb[0].mxu0
      %v2405 = vpop.f32.mrb[0].mxu0
      %v2406 = vadd.f32 0.0, %v2405
      %v2407 = vpop.f32.mrb[0].mxu0
      %2408 = vdwg.mxu0
      %v2409 = vadd.f32 %v1861, %v2283
      %v2410 = vadd.f32 %v1862, %v2286
      %v2411 = vadd.f32 %v1863, %v2291
      %v2412 = vadd.f32 %v1864, %v2294
      %v2413 = vadd.f32 %v1865, %v2299
      %v2414 = vadd.f32 %v1866, %v2302
      %v2415 = vadd.f32 %v1867, %v2307
      %v2416 = vadd.f32 %v1868, %v2310
      %v2417 = vadd.f32 %v1869, %v2315
      %v2418 = vadd.f32 %v1870, %v2318
      %v2419 = vadd.f32 %v1871, %v2323
      %v2420 = vadd.f32 %v1872, %v2326
      %v2421 = vadd.f32 %v1873, %v2331
      %v2422 = vadd.f32 %v1874, %v2334
      %v2423 = vadd.f32 %v1875, %v2339
      %v2424 = vadd.f32 %v1876, %v2342
      %v2425 = vadd.f32 %v1877, %v2347
      %v2426 = vadd.f32 %v1878, %v2350
      %v2427 = vadd.f32 %v1879, %v2355
      %v2428 = vadd.f32 %v1880, %v2358
      %v2429 = vadd.f32 %v1881, %v2363
      %v2430 = vadd.f32 %v1882, %v2366
      %v2431 = vadd.f32 %v1883, %v2371
      %v2432 = vadd.f32 %v1884, %v2374
      %v2433 = vadd.f32 %v1885, %v2379
      %v2434 = vadd.f32 %v1886, %v2382
      %v2435 = vadd.f32 %v1887, %v2387
      %v2436 = vadd.f32 %v1888, %v2390
      %v2437 = vadd.f32 %v1889, %v2395
      %v2438 = vadd.f32 %v1890, %v2398
      %v2439 = vadd.f32 %v1891, %v2403
      %v2440 = vadd.f32 %v1892, %v2406
      %v2441 = vld [vmem:[%s490] sm:$0xf0]
      %v2442 = vld [vmem:[%s490 + $0x10] sm:$0xf0]
      %v2443 = vld [vmem:[%s490 + $0x20] sm:$0xf0]
      %v2444 = vld [vmem:[%s490 + $0x30] sm:$0xf0]
      %v2445 = vld [vmem:[%s490 + $0x40] sm:$0xf0]
      %v2446 = vld [vmem:[%s490 + $0x50] sm:$0xf0]
      %v2447 = vld [vmem:[%s490 + $0x60] sm:$0xf0]
      %v2448 = vld [vmem:[%s490 + $0x70] sm:$0xf0]
      %v2449 = vld [vmem:[%s490 + $0x80] sm:$0xf0]
      %v2450 = vld [vmem:[%s490 + $0x90] sm:$0xf0]
      %v2451 = vld [vmem:[%s490 + $0xa0] sm:$0xf0]
      %v2452 = vld [vmem:[%s490 + $0xb0] sm:$0xf0]
      %v2453 = vld [vmem:[%s490 + $0xc0] sm:$0xf0]
      %v2454 = vld [vmem:[%s490 + $0xd0] sm:$0xf0]
      %v2455 = vld [vmem:[%s490 + $0xe0] sm:$0xf0]
      %v2456 = vld [vmem:[%s490 + $0xf0] sm:$0xf0]
      %v2489 = vrot.slane %v2441, 4
      %v2490 = vrot.slane %v1894, 4
      %v2491 = vsel %vm885, %v2489, %v2490
      %v2492 = vrot.slane %v2442, 4
      %v2493 = vrot.slane %v1896, 4
      %v2494 = vsel %vm885, %v2492, %v2493
      %v2495 = vrot.slane %v2443, 4
      %v2496 = vrot.slane %v1898, 4
      %v2497 = vsel %vm885, %v2495, %v2496
      %v2498 = vrot.slane %v2444, 4
      %v2499 = vrot.slane %v1900, 4
      %v2500 = vsel %vm885, %v2498, %v2499
      %v2501 = vrot.slane %v2445, 4
      %v2502 = vrot.slane %v1902, 4
      %v2503 = vsel %vm885, %v2501, %v2502
      %v2504 = vrot.slane %v2446, 4
      %v2505 = vrot.slane %v1904, 4
      %v2506 = vsel %vm885, %v2504, %v2505
      %v2507 = vrot.slane %v2447, 4
      %v2508 = vrot.slane %v1906, 4
      %v2509 = vsel %vm885, %v2507, %v2508
      %v2510 = vrot.slane %v2448, 4
      %v2511 = vrot.slane %v1908, 4
      %v2512 = vsel %vm885, %v2510, %v2511
      %v2513 = vrot.slane %v2449, 4
      %v2514 = vrot.slane %v1910, 4
      %v2515 = vsel %vm885, %v2513, %v2514
      %v2516 = vrot.slane %v2450, 4
      %v2517 = vrot.slane %v1912, 4
      %v2518 = vsel %vm885, %v2516, %v2517
      %v2519 = vrot.slane %v2451, 4
      %v2520 = vrot.slane %v1914, 4
      %v2521 = vsel %vm885, %v2519, %v2520
      %v2522 = vrot.slane %v2452, 4
      %v2523 = vrot.slane %v1916, 4
      %v2524 = vsel %vm885, %v2522, %v2523
      %v2525 = vrot.slane %v2453, 4
      %v2526 = vrot.slane %v1918, 4
      %v2527 = vsel %vm885, %v2525, %v2526
      %v2528 = vrot.slane %v2454, 4
      %v2529 = vrot.slane %v1920, 4
      %v2530 = vsel %vm885, %v2528, %v2529
      %v2531 = vrot.slane %v2455, 4
      %v2532 = vrot.slane %v1922, 4
      %v2533 = vsel %vm885, %v2531, %v2532
      %v2534 = vrot.slane %v2456, 4
      %v2535 = vrot.slane %v1924, 4
      %v2536 = vsel %vm885, %v2534, %v2535
      %v2538 = vsel %vm934, %v2491, 0
      %v2541 = vsel %vm934, %v2494, 0
      %v2544 = vsel %vm934, %v2497, 0
      %v2547 = vsel %vm934, %v2500, 0
      %v2550 = vsel %vm934, %v2503, 0
      %v2553 = vsel %vm934, %v2506, 0
      %v2556 = vsel %vm934, %v2509, 0
      %v2559 = vsel %vm934, %v2512, 0
      %v2562 = vsel %vm934, %v2515, 0
      %v2565 = vsel %vm934, %v2518, 0
      %v2568 = vsel %vm934, %v2521, 0
      %v2571 = vsel %vm934, %v2524, 0
      %v2574 = vsel %vm934, %v2527, 0
      %v2577 = vsel %vm934, %v2530, 0
      %v2580 = vsel %vm934, %v2533, 0
      %v2583 = vsel %vm934, %v2536, 0
      %v2586 = vsel %vm983, %v527, 0
      %2588 = vmatprep.subr.bf16.mxu0 0
      %2589 = vmatpush1.bf16.msra.mxu0 %v2586
      %2590 = vmatprep.subr.bf16.mxu0 0
      %2591 = vmatpush1.bf16.msra.mxu0 0
      %2592 = vmatprep.subr.bf16.mxu0 0
      %2593 = vmatpush1.bf16.msra.mxu0 0
      %2594 = vmatprep.subr.bf16.mxu0 0
      %2595 = vmatpush1.bf16.msra.mxu0 0
      %2596 = vmatprep.subr.bf16.mxu0 0
      %2597 = vmatpush1.bf16.msra.mxu0 0
      %2598 = vmatprep.subr.bf16.mxu0 0
      %2599 = vmatpush1.bf16.msra.mxu0 0
      %2600 = vmatprep.subr.bf16.mxu0 0
      %2601 = vmatpush1.bf16.msra.mxu0 0
      %2602 = vmatprep.subr.bf16.mxu0 0
      %2603 = vmatpush1.bf16.msra.mxu0 0
      %2604 = vmatprep.subr.bf16.mxu0 0
      %2605 = vmatpush1.bf16.msra.mxu0 0
      %2606 = vmatprep.subr.bf16.mxu0 0
      %2607 = vmatpush1.bf16.msra.mxu0 0
      %2608 = vmatprep.subr.bf16.mxu0 0
      %2609 = vmatpush1.bf16.msra.mxu0 0
      %2610 = vmatprep.subr.bf16.mxu0 0
      %2611 = vmatpush1.bf16.msra.mxu0 0
      %2612 = vmatprep.subr.bf16.mxu0 0
      %2613 = vmatpush1.bf16.msra.mxu0 0
      %2614 = vmatprep.subr.bf16.mxu0 0
      %2615 = vmatpush1.bf16.msra.mxu0 0
      %2616 = vmatprep.subr.bf16.mxu0 0
      %2617 = vmatpush1.bf16.msra.mxu0 0
      %2618 = vmatprep.subr.bf16.mxu0 0
      %2619 = vmatpush1.bf16.msra.mxu0 0
      %2620 = vmatprep.mubr.bf16.mxu0 0
      %2621 = vmatmul.mubr.bf16.gmra.mrb[0].mxu0 %v2538
      %v2622 = vpop.f32.mrb[0].mxu0
      %v2623 = vadd.f32 0.0, %v2622
      %v2624 = vpop.f32.mrb[0].mxu0
      %v2625 = vpop.f32.mrb[0].mxu0
      %v2626 = vadd.f32 0.0, %v2625
      %v2627 = vpop.f32.mrb[0].mxu0
      %2628 = vmatprep.mubr.bf16.mxu0 0
      %2629 = vmatmul.mubr.bf16.gmra.mrb[0].mxu0 %v2541
      %v2630 = vpop.f32.mrb[0].mxu0
      %v2631 = vadd.f32 0.0, %v2630
      %v2632 = vpop.f32.mrb[0].mxu0
      %v2633 = vpop.f32.mrb[0].mxu0
      %v2634 = vadd.f32 0.0, %v2633
      %v2635 = vpop.f32.mrb[0].mxu0
      %2636 = vmatprep.mubr.bf16.mxu0 0
      %2637 = vmatmul.mubr.bf16.gmra.mrb[0].mxu0 %v2544
      %v2638 = vpop.f32.mrb[0].mxu0
      %v2639 = vadd.f32 0.0, %v2638
      %v2640 = vpop.f32.mrb[0].mxu0
      %v2641 = vpop.f32.mrb[0].mxu0
      %v2642 = vadd.f32 0.0, %v2641
      %v2643 = vpop.f32.mrb[0].mxu0
      %2644 = vmatprep.mubr.bf16.mxu0 0
      %2645 = vmatmul.mubr.bf16.gmra.mrb[0].mxu0 %v2547
      %v2646 = vpop.f32.mrb[0].mxu0
      %v2647 = vadd.f32 0.0, %v2646
      %v2648 = vpop.f32.mrb[0].mxu0
      %v2649 = vpop.f32.mrb[0].mxu0
      %v2650 = vadd.f32 0.0, %v2649
      %v2651 = vpop.f32.mrb[0].mxu0
      %2652 = vmatprep.mubr.bf16.mxu0 0
      %2653 = vmatmul.mubr.bf16.gmra.mrb[0].mxu0 %v2550
      %v2654 = vpop.f32.mrb[0].mxu0
      %v2655 = vadd.f32 0.0, %v2654
      %v2656 = vpop.f32.mrb[0].mxu0
      %v2657 = vpop.f32.mrb[0].mxu0
      %v2658 = vadd.f32 0.0, %v2657
      %v2659 = vpop.f32.mrb[0].mxu0
      %2660 = vmatprep.mubr.bf16.mxu0 0
      %2661 = vmatmul.mubr.bf16.gmra.mrb[0].mxu0 %v2553
      %v2662 = vpop.f32.mrb[0].mxu0
      %v2663 = vadd.f32 0.0, %v2662
      %v2664 = vpop.f32.mrb[0].mxu0
      %v2665 = vpop.f32.mrb[0].mxu0
      %v2666 = vadd.f32 0.0, %v2665
      %v2667 = vpop.f32.mrb[0].mxu0
      %2668 = vmatprep.mubr.bf16.mxu0 0
      %2669 = vmatmul.mubr.bf16.gmra.mrb[0].mxu0 %v2556
      %v2670 = vpop.f32.mrb[0].mxu0
      %v2671 = vadd.f32 0.0, %v2670
      %v2672 = vpop.f32.mrb[0].mxu0
      %v2673 = vpop.f32.mrb[0].mxu0
      %v2674 = vadd.f32 0.0, %v2673
      %v2675 = vpop.f32.mrb[0].mxu0
      %2676 = vmatprep.mubr.bf16.mxu0 0
      %2677 = vmatmul.mubr.bf16.gmra.mrb[0].mxu0 %v2559
      %v2678 = vpop.f32.mrb[0].mxu0
      %v2679 = vadd.f32 0.0, %v2678
      %v2680 = vpop.f32.mrb[0].mxu0
      %v2681 = vpop.f32.mrb[0].mxu0
      %v2682 = vadd.f32 0.0, %v2681
      %v2683 = vpop.f32.mrb[0].mxu0
      %2684 = vmatprep.mubr.bf16.mxu0 0
      %2685 = vmatmul.mubr.bf16.gmra.mrb[0].mxu0 %v2562
      %v2686 = vpop.f32.mrb[0].mxu0
      %v2687 = vadd.f32 0.0, %v2686
      %v2688 = vpop.f32.mrb[0].mxu0
      %v2689 = vpop.f32.mrb[0].mxu0
      %v2690 = vadd.f32 0.0, %v2689
      %v2691 = vpop.f32.mrb[0].mxu0
      %2692 = vmatprep.mubr.bf16.mxu0 0
      %2693 = vmatmul.mubr.bf16.gmra.mrb[0].mxu0 %v2565
      %v2694 = vpop.f32.mrb[0].mxu0
      %v2695 = vadd.f32 0.0, %v2694
      %v2696 = vpop.f32.mrb[0].mxu0
      %v2697 = vpop.f32.mrb[0].mxu0
      %v2698 = vadd.f32 0.0, %v2697
      %v2699 = vpop.f32.mrb[0].mxu0
      %2700 = vmatprep.mubr.bf16.mxu0 0
      %2701 = vmatmul.mubr.bf16.gmra.mrb[0].mxu0 %v2568
      %v2702 = vpop.f32.mrb[0].mxu0
      %v2703 = vadd.f32 0.0, %v2702
      %v2704 = vpop.f32.mrb[0].mxu0
      %v2705 = vpop.f32.mrb[0].mxu0
      %v2706 = vadd.f32 0.0, %v2705
      %v2707 = vpop.f32.mrb[0].mxu0
      %2708 = vmatprep.mubr.bf16.mxu0 0
      %2709 = vmatmul.mubr.bf16.gmra.mrb[0].mxu0 %v2571
      %v2710 = vpop.f32.mrb[0].mxu0
      %v2711 = vadd.f32 0.0, %v2710
      %v2712 = vpop.f32.mrb[0].mxu0
      %v2713 = vpop.f32.mrb[0].mxu0
      %v2714 = vadd.f32 0.0, %v2713
      %v2715 = vpop.f32.mrb[0].mxu0
      %2716 = vmatprep.mubr.bf16.mxu0 0
      %2717 = vmatmul.mubr.bf16.gmra.mrb[0].mxu0 %v2574
      %v2718 = vpop.f32.mrb[0].mxu0
      %v2719 = vadd.f32 0.0, %v2718
      %v2720 = vpop.f32.mrb[0].mxu0
      %v2721 = vpop.f32.mrb[0].mxu0
      %v2722 = vadd.f32 0.0, %v2721
      %v2723 = vpop.f32.mrb[0].mxu0
      %2724 = vmatprep.mubr.bf16.mxu0 0
      %2725 = vmatmul.mubr.bf16.gmra.mrb[0].mxu0 %v2577
      %v2726 = vpop.f32.mrb[0].mxu0
      %v2727 = vadd.f32 0.0, %v2726
      %v2728 = vpop.f32.mrb[0].mxu0
      %v2729 = vpop.f32.mrb[0].mxu0
      %v2730 = vadd.f32 0.0, %v2729
      %v2731 = vpop.f32.mrb[0].mxu0
      %2732 = vmatprep.mubr.bf16.mxu0 0
      %2733 = vmatmul.mubr.bf16.gmra.mrb[0].mxu0 %v2580
      %v2734 = vpop.f32.mrb[0].mxu0
      %v2735 = vadd.f32 0.0, %v2734
      %v2736 = vpop.f32.mrb[0].mxu0
      %v2737 = vpop.f32.mrb[0].mxu0
      %v2738 = vadd.f32 0.0, %v2737
      %v2739 = vpop.f32.mrb[0].mxu0
      %2740 = vmatprep.mubr.bf16.mxu0 0
      %2741 = vmatmul.mubr.bf16.gmra.mrb[0].mxu0 %v2583
      %v2742 = vpop.f32.mrb[0].mxu0
      %v2743 = vadd.f32 0.0, %v2742
      %v2744 = vpop.f32.mrb[0].mxu0
      %v2745 = vpop.f32.mrb[0].mxu0
      %v2746 = vadd.f32 0.0, %v2745
      %v2747 = vpop.f32.mrb[0].mxu0
      %2748 = vdwg.mxu0
      %v2749 = vadd.f32 %v2409, %v2623
      %v2750 = vadd.f32 %v2410, %v2626
      %v2751 = vadd.f32 %v2411, %v2631
      %v2752 = vadd.f32 %v2412, %v2634
      %v2753 = vadd.f32 %v2413, %v2639
      %v2754 = vadd.f32 %v2414, %v2642
      %v2755 = vadd.f32 %v2415, %v2647
      %v2756 = vadd.f32 %v2416, %v2650
      %v2757 = vadd.f32 %v2417, %v2655
      %v2758 = vadd.f32 %v2418, %v2658
      %v2759 = vadd.f32 %v2419, %v2663
      %v2760 = vadd.f32 %v2420, %v2666
      %v2761 = vadd.f32 %v2421, %v2671
      %v2762 = vadd.f32 %v2422, %v2674
      %v2763 = vadd.f32 %v2423, %v2679
      %v2764 = vadd.f32 %v2424, %v2682
      %v2765 = vadd.f32 %v2425, %v2687
      %v2766 = vadd.f32 %v2426, %v2690
      %v2767 = vadd.f32 %v2427, %v2695
      %v2768 = vadd.f32 %v2428, %v2698
      %v2769 = vadd.f32 %v2429, %v2703
      %v2770 = vadd.f32 %v2430, %v2706
      %v2771 = vadd.f32 %v2431, %v2711
      %v2772 = vadd.f32 %v2432, %v2714
      %v2773 = vadd.f32 %v2433, %v2719
      %v2774 = vadd.f32 %v2434, %v2722
      %v2775 = vadd.f32 %v2435, %v2727
      %v2776 = vadd.f32 %v2436, %v2730
      %v2777 = vadd.f32 %v2437, %v2735
      %v2778 = vadd.f32 %v2438, %v2738
      %v2779 = vadd.f32 %v2439, %v2743
      %v2780 = vadd.f32 %v2440, %v2746
      %v2781 = vld [vmem:[%s490 + $0x8] sm:$0x1f]
      %v2782 = vld [vmem:[%s490 + $0x18] sm:$0x1f]
      %v2783 = vld [vmem:[%s490 + $0x28] sm:$0x1f]
      %v2784 = vld [vmem:[%s490 + $0x38] sm:$0x1f]
      %v2785 = vld [vmem:[%s490 + $0x48] sm:$0x1f]
      %v2786 = vld [vmem:[%s490 + $0x58] sm:$0x1f]
      %v2787 = vld [vmem:[%s490 + $0x68] sm:$0x1f]
      %v2788 = vld [vmem:[%s490 + $0x78] sm:$0x1f]
      %v2789 = vld [vmem:[%s490 + $0x88] sm:$0x1f]
      %v2790 = vld [vmem:[%s490 + $0x98] sm:$0x1f]
      %v2791 = vld [vmem:[%s490 + $0xa8] sm:$0x1f]
      %v2792 = vld [vmem:[%s490 + $0xb8] sm:$0x1f]
      %v2793 = vld [vmem:[%s490 + $0xc8] sm:$0x1f]
      %v2794 = vld [vmem:[%s490 + $0xd8] sm:$0x1f]
      %v2795 = vld [vmem:[%s490 + $0xe8] sm:$0x1f]
      %v2796 = vld [vmem:[%s490 + $0xf8] sm:$0x1f]
      %v2798 = vshrl.u32 %v2441, 16
      %v2800 = vrot.slane %v2798, 4
      %v2801 = vshll.u32 %v2441, 16
      %v2803 = vrot.slane %v2801, 5
      %v2804 = vor.u32 %v2800, %v2803
      %v2806 = vshrl.u32 %v2781, 16
      %v2808 = vrot.slane %v2806, 4
      %v2809 = vshll.u32 %v2781, 16
      %v2811 = vrot.slane %v2809, 5
      %v2812 = vor.u32 %v2808, %v2811
      %v2813 = vsel %vm1376, %v2804, %v2812
      %v2815 = vshrl.u32 %v2442, 16
      %v2817 = vrot.slane %v2815, 4
      %v2818 = vshll.u32 %v2442, 16
      %v2820 = vrot.slane %v2818, 5
      %v2821 = vor.u32 %v2817, %v2820
      %v2823 = vshrl.u32 %v2782, 16
      %v2825 = vrot.slane %v2823, 4
      %v2826 = vshll.u32 %v2782, 16
      %v2828 = vrot.slane %v2826, 5
      %v2829 = vor.u32 %v2825, %v2828
      %v2830 = vsel %vm1376, %v2821, %v2829
      %v2832 = vshrl.u32 %v2443, 16
      %v2834 = vrot.slane %v2832, 4
      %v2835 = vshll.u32 %v2443, 16
      %v2837 = vrot.slane %v2835, 5
      %v2838 = vor.u32 %v2834, %v2837
      %v2840 = vshrl.u32 %v2783, 16
      %v2842 = vrot.slane %v2840, 4
      %v2843 = vshll.u32 %v2783, 16
      %v2845 = vrot.slane %v2843, 5
      %v2846 = vor.u32 %v2842, %v2845
      %v2847 = vsel %vm1376, %v2838, %v2846
      %v2849 = vshrl.u32 %v2444, 16
      %v2851 = vrot.slane %v2849, 4
      %v2852 = vshll.u32 %v2444, 16
      %v2854 = vrot.slane %v2852, 5
      %v2855 = vor.u32 %v2851, %v2854
      %v2857 = vshrl.u32 %v2784, 16
      %v2859 = vrot.slane %v2857, 4
      %v2860 = vshll.u32 %v2784, 16
      %v2862 = vrot.slane %v2860, 5
      %v2863 = vor.u32 %v2859, %v2862
      %v2864 = vsel %vm1376, %v2855, %v2863
      %v2866 = vshrl.u32 %v2445, 16
      %v2868 = vrot.slane %v2866, 4
      %v2869 = vshll.u32 %v2445, 16
      %v2871 = vrot.slane %v2869, 5
      %v2872 = vor.u32 %v2868, %v2871
      %v2874 = vshrl.u32 %v2785, 16
      %v2876 = vrot.slane %v2874, 4
      %v2877 = vshll.u32 %v2785, 16
      %v2879 = vrot.slane %v2877, 5
      %v2880 = vor.u32 %v2876, %v2879
      %v2881 = vsel %vm1376, %v2872, %v2880
      %v2883 = vshrl.u32 %v2446, 16
      %v2885 = vrot.slane %v2883, 4
      %v2886 = vshll.u32 %v2446, 16
      %v2888 = vrot.slane %v2886, 5
      %v2889 = vor.u32 %v2885, %v2888
      %v2891 = vshrl.u32 %v2786, 16
      %v2893 = vrot.slane %v2891, 4
      %v2894 = vshll.u32 %v2786, 16
      %v2896 = vrot.slane %v2894, 5
      %v2897 = vor.u32 %v2893, %v2896
      %v2898 = vsel %vm1376, %v2889, %v2897
      %v2900 = vshrl.u32 %v2447, 16
      %v2902 = vrot.slane %v2900, 4
      %v2903 = vshll.u32 %v2447, 16
      %v2905 = vrot.slane %v2903, 5
      %v2906 = vor.u32 %v2902, %v2905
      %v2908 = vshrl.u32 %v2787, 16
      %v2910 = vrot.slane %v2908, 4
      %v2911 = vshll.u32 %v2787, 16
      %v2913 = vrot.slane %v2911, 5
      %v2914 = vor.u32 %v2910, %v2913
      %v2915 = vsel %vm1376, %v2906, %v2914
      %v2917 = vshrl.u32 %v2448, 16
      %v2919 = vrot.slane %v2917, 4
      %v2920 = vshll.u32 %v2448, 16
      %v2922 = vrot.slane %v2920, 5
      %v2923 = vor.u32 %v2919, %v2922
      %v2925 = vshrl.u32 %v2788, 16
      %v2927 = vrot.slane %v2925, 4
      %v2928 = vshll.u32 %v2788, 16
      %v2930 = vrot.slane %v2928, 5
      %v2931 = vor.u32 %v2927, %v2930
      %v2932 = vsel %vm1376, %v2923, %v2931
      %v2934 = vshrl.u32 %v2449, 16
      %v2936 = vrot.slane %v2934, 4
      %v2937 = vshll.u32 %v2449, 16
      %v2939 = vrot.slane %v2937, 5
      %v2940 = vor.u32 %v2936, %v2939
      %v2942 = vshrl.u32 %v2789, 16
      %v2944 = vrot.slane %v2942, 4
      %v2945 = vshll.u32 %v2789, 16
      %v2947 = vrot.slane %v2945, 5
      %v2948 = vor.u32 %v2944, %v2947
      %v2949 = vsel %vm1376, %v2940, %v2948
      %v2951 = vshrl.u32 %v2450, 16
      %v2953 = vrot.slane %v2951, 4
      %v2954 = vshll.u32 %v2450, 16
      %v2956 = vrot.slane %v2954, 5
      %v2957 = vor.u32 %v2953, %v2956
      %v2959 = vshrl.u32 %v2790, 16
      %v2961 = vrot.slane %v2959, 4
      %v2962 = vshll.u32 %v2790, 16
      %v2964 = vrot.slane %v2962, 5
      %v2965 = vor.u32 %v2961, %v2964
      %v2966 = vsel %vm1376, %v2957, %v2965
      %v2968 = vshrl.u32 %v2451, 16
      %v2970 = vrot.slane %v2968, 4
      %v2971 = vshll.u32 %v2451, 16
      %v2973 = vrot.slane %v2971, 5
      %v2974 = vor.u32 %v2970, %v2973
      %v2976 = vshrl.u32 %v2791, 16
      %v2978 = vrot.slane %v2976, 4
      %v2979 = vshll.u32 %v2791, 16
      %v2981 = vrot.slane %v2979, 5
      %v2982 = vor.u32 %v2978, %v2981
      %v2983 = vsel %vm1376, %v2974, %v2982
      %v2985 = vshrl.u32 %v2452, 16
      %v2987 = vrot.slane %v2985, 4
      %v2988 = vshll.u32 %v2452, 16
      %v2990 = vrot.slane %v2988, 5
      %v2991 = vor.u32 %v2987, %v2990
      %v2993 = vshrl.u32 %v2792, 16
      %v2995 = vrot.slane %v2993, 4
      %v2996 = vshll.u32 %v2792, 16
      %v2998 = vrot.slane %v2996, 5
      %v2999 = vor.u32 %v2995, %v2998
      %v3000 = vsel %vm1376, %v2991, %v2999
      %v3002 = vshrl.u32 %v2453, 16
      %v3004 = vrot.slane %v3002, 4
      %v3005 = vshll.u32 %v2453, 16
      %v3007 = vrot.slane %v3005, 5
      %v3008 = vor.u32 %v3004, %v3007
      %v3010 = vshrl.u32 %v2793, 16
      %v3012 = vrot.slane %v3010, 4
      %v3013 = vshll.u32 %v2793, 16
      %v3015 = vrot.slane %v3013, 5
      %v3016 = vor.u32 %v3012, %v3015
      %v3017 = vsel %vm1376, %v3008, %v3016
      %v3019 = vshrl.u32 %v2454, 16
      %v3021 = vrot.slane %v3019, 4
      %v3022 = vshll.u32 %v2454, 16
      %v3024 = vrot.slane %v3022, 5
      %v3025 = vor.u32 %v3021, %v3024
      %v3027 = vshrl.u32 %v2794, 16
      %v3029 = vrot.slane %v3027, 4
      %v3030 = vshll.u32 %v2794, 16
      %v3032 = vrot.slane %v3030, 5
      %v3033 = vor.u32 %v3029, %v3032
      %v3034 = vsel %vm1376, %v3025, %v3033
      %v3036 = vshrl.u32 %v2455, 16
      %v3038 = vrot.slane %v3036, 4
      %v3039 = vshll.u32 %v2455, 16
      %v3041 = vrot.slane %v3039, 5
      %v3042 = vor.u32 %v3038, %v3041
      %v3044 = vshrl.u32 %v2795, 16
      %v3046 = vrot.slane %v3044, 4
      %v3047 = vshll.u32 %v2795, 16
      %v3049 = vrot.slane %v3047, 5
      %v3050 = vor.u32 %v3046, %v3049
      %v3051 = vsel %vm1376, %v3042, %v3050
      %v3053 = vshrl.u32 %v2456, 16
      %v3055 = vrot.slane %v3053, 4
      %v3056 = vshll.u32 %v2456, 16
      %v3058 = vrot.slane %v3056, 5
      %v3059 = vor.u32 %v3055, %v3058
      %v3061 = vshrl.u32 %v2796, 16
      %v3063 = vrot.slane %v3061, 4
      %v3064 = vshll.u32 %v2796, 16
      %v3066 = vrot.slane %v3064, 5
      %v3067 = vor.u32 %v3063, %v3066
      %v3068 = vsel %vm1376, %v3059, %v3067
      %v3070 = vsel %vm934, %v2813, 0
      %v3073 = vsel %vm934, %v2830, 0
      %v3076 = vsel %vm934, %v2847, 0
      %v3079 = vsel %vm934, %v2864, 0
      %v3082 = vsel %vm934, %v2881, 0
      %v3085 = vsel %vm934, %v2898, 0
      %v3088 = vsel %vm934, %v2915, 0
      %v3091 = vsel %vm934, %v2932, 0
      %v3094 = vsel %vm934, %v2949, 0
      %v3097 = vsel %vm934, %v2966, 0
      %v3100 = vsel %vm934, %v2983, 0
      %v3103 = vsel %vm934, %v3000, 0
      %v3106 = vsel %vm934, %v3017, 0
      %v3109 = vsel %vm934, %v3034, 0
      %v3112 = vsel %vm934, %v3051, 0
      %v3115 = vsel %vm934, %v3068, 0
      %v3118 = vsel %vm983, %v528, 0
      %3120 = vmatprep.subr.bf16.mxu0 0
      %3121 = vmatpush1.bf16.msra.mxu0 %v3118
      %3122 = vmatprep.subr.bf16.mxu0 0
      %3123 = vmatpush1.bf16.msra.mxu0 0
      %3124 = vmatprep.subr.bf16.mxu0 0
      %3125 = vmatpush1.bf16.msra.mxu0 0
      %3126 = vmatprep.subr.bf16.mxu0 0
      %3127 = vmatpush1.bf16.msra.mxu0 0
      %3128 = vmatprep.subr.bf16.mxu0 0
      %3129 = vmatpush1.bf16.msra.mxu0 0
      %3130 = vmatprep.subr.bf16.mxu0 0
      %3131 = vmatpush1.bf16.msra.mxu0 0
      %3132 = vmatprep.subr.bf16.mxu0 0
      %3133 = vmatpush1.bf16.msra.mxu0 0
      %3134 = vmatprep.subr.bf16.mxu0 0
      %3135 = vmatpush1.bf16.msra.mxu0 0
      %3136 = vmatprep.subr.bf16.mxu0 0
      %3137 = vmatpush1.bf16.msra.mxu0 0
      %3138 = vmatprep.subr.bf16.mxu0 0
      %3139 = vmatpush1.bf16.msra.mxu0 0
      %3140 = vmatprep.subr.bf16.mxu0 0
      %3141 = vmatpush1.bf16.msra.mxu0 0
      %3142 = vmatprep.subr.bf16.mxu0 0
      %3143 = vmatpush1.bf16.msra.mxu0 0
      %3144 = vmatprep.subr.bf16.mxu0 0
      %3145 = vmatpush1.bf16.msra.mxu0 0
      %3146 = vmatprep.subr.bf16.mxu0 0
      %3147 = vmatpush1.bf16.msra.mxu0 0
      %3148 = vmatprep.subr.bf16.mxu0 0
      %3149 = vmatpush1.bf16.msra.mxu0 0
      %3150 = vmatprep.subr.bf16.mxu0 0
      %3151 = vmatpush1.bf16.msra.mxu0 0
      %3152 = vmatprep.mubr.bf16.mxu0 0
      %3153 = vmatmul.mubr.bf16.gmra.mrb[0].mxu0 %v3070
      %v3154 = vpop.f32.mrb[0].mxu0
      %v3155 = vadd.f32 0.0, %v3154
      %v3156 = vpop.f32.mrb[0].mxu0
      %v3157 = vpop.f32.mrb[0].mxu0
      %v3158 = vadd.f32 0.0, %v3157
      %v3159 = vpop.f32.mrb[0].mxu0
      %3160 = vmatprep.mubr.bf16.mxu0 0
      %3161 = vmatmul.mubr.bf16.gmra.mrb[0].mxu0 %v3073
      %v3162 = vpop.f32.mrb[0].mxu0
      %v3163 = vadd.f32 0.0, %v3162
      %v3164 = vpop.f32.mrb[0].mxu0
      %v3165 = vpop.f32.mrb[0].mxu0
      %v3166 = vadd.f32 0.0, %v3165
      %v3167 = vpop.f32.mrb[0].mxu0
      %3168 = vmatprep.mubr.bf16.mxu0 0
      %3169 = vmatmul.mubr.bf16.gmra.mrb[0].mxu0 %v3076
      %v3170 = vpop.f32.mrb[0].mxu0
      %v3171 = vadd.f32 0.0, %v3170
      %v3172 = vpop.f32.mrb[0].mxu0
      %v3173 = vpop.f32.mrb[0].mxu0
      %v3174 = vadd.f32 0.0, %v3173
      %v3175 = vpop.f32.mrb[0].mxu0
      %3176 = vmatprep.mubr.bf16.mxu0 0
      %3177 = vmatmul.mubr.bf16.gmra.mrb[0].mxu0 %v3079
      %v3178 = vpop.f32.mrb[0].mxu0
      %v3179 = vadd.f32 0.0, %v3178
      %v3180 = vpop.f32.mrb[0].mxu0
      %v3181 = vpop.f32.mrb[0].mxu0
      %v3182 = vadd.f32 0.0, %v3181
      %v3183 = vpop.f32.mrb[0].mxu0
      %3184 = vmatprep.mubr.bf16.mxu0 0
      %3185 = vmatmul.mubr.bf16.gmra.mrb[0].mxu0 %v3082
      %v3186 = vpop.f32.mrb[0].mxu0
      %v3187 = vadd.f32 0.0, %v3186
      %v3188 = vpop.f32.mrb[0].mxu0
      %v3189 = vpop.f32.mrb[0].mxu0
      %v3190 = vadd.f32 0.0, %v3189
      %v3191 = vpop.f32.mrb[0].mxu0
      %3192 = vmatprep.mubr.bf16.mxu0 0
      %3193 = vmatmul.mubr.bf16.gmra.mrb[0].mxu0 %v3085
      %v3194 = vpop.f32.mrb[0].mxu0
      %v3195 = vadd.f32 0.0, %v3194
      %v3196 = vpop.f32.mrb[0].mxu0
      %v3197 = vpop.f32.mrb[0].mxu0
      %v3198 = vadd.f32 0.0, %v3197
      %v3199 = vpop.f32.mrb[0].mxu0
      %3200 = vmatprep.mubr.bf16.mxu0 0
      %3201 = vmatmul.mubr.bf16.gmra.mrb[0].mxu0 %v3088
      %v3202 = vpop.f32.mrb[0].mxu0
      %v3203 = vadd.f32 0.0, %v3202
      %v3204 = vpop.f32.mrb[0].mxu0
      %v3205 = vpop.f32.mrb[0].mxu0
      %v3206 = vadd.f32 0.0, %v3205
      %v3207 = vpop.f32.mrb[0].mxu0
      %3208 = vmatprep.mubr.bf16.mxu0 0
      %3209 = vmatmul.mubr.bf16.gmra.mrb[0].mxu0 %v3091
      %v3210 = vpop.f32.mrb[0].mxu0
      %v3211 = vadd.f32 0.0, %v3210
      %v3212 = vpop.f32.mrb[0].mxu0
      %v3213 = vpop.f32.mrb[0].mxu0
      %v3214 = vadd.f32 0.0, %v3213
      %v3215 = vpop.f32.mrb[0].mxu0
      %3216 = vmatprep.mubr.bf16.mxu0 0
      %3217 = vmatmul.mubr.bf16.gmra.mrb[0].mxu0 %v3094
      %v3218 = vpop.f32.mrb[0].mxu0
      %v3219 = vadd.f32 0.0, %v3218
      %v3220 = vpop.f32.mrb[0].mxu0
      %v3221 = vpop.f32.mrb[0].mxu0
      %v3222 = vadd.f32 0.0, %v3221
      %v3223 = vpop.f32.mrb[0].mxu0
      %3224 = vmatprep.mubr.bf16.mxu0 0
      %3225 = vmatmul.mubr.bf16.gmra.mrb[0].mxu0 %v3097
      %v3226 = vpop.f32.mrb[0].mxu0
      %v3227 = vadd.f32 0.0, %v3226
      %v3228 = vpop.f32.mrb[0].mxu0
      %v3229 = vpop.f32.mrb[0].mxu0
      %v3230 = vadd.f32 0.0, %v3229
      %v3231 = vpop.f32.mrb[0].mxu0
      %3232 = vmatprep.mubr.bf16.mxu0 0
      %3233 = vmatmul.mubr.bf16.gmra.mrb[0].mxu0 %v3100
      %v3234 = vpop.f32.mrb[0].mxu0
      %v3235 = vadd.f32 0.0, %v3234
      %v3236 = vpop.f32.mrb[0].mxu0
      %v3237 = vpop.f32.mrb[0].mxu0
      %v3238 = vadd.f32 0.0, %v3237
      %v3239 = vpop.f32.mrb[0].mxu0
      %3240 = vmatprep.mubr.bf16.mxu0 0
      %3241 = vmatmul.mubr.bf16.gmra.mrb[0].mxu0 %v3103
      %v3242 = vpop.f32.mrb[0].mxu0
      %v3243 = vadd.f32 0.0, %v3242
      %v3244 = vpop.f32.mrb[0].mxu0
      %v3245 = vpop.f32.mrb[0].mxu0
      %v3246 = vadd.f32 0.0, %v3245
      %v3247 = vpop.f32.mrb[0].mxu0
      %3248 = vmatprep.mubr.bf16.mxu0 0
      %3249 = vmatmul.mubr.bf16.gmra.mrb[0].mxu0 %v3106
      %v3250 = vpop.f32.mrb[0].mxu0
      %v3251 = vadd.f32 0.0, %v3250
      %v3252 = vpop.f32.mrb[0].mxu0
      %v3253 = vpop.f32.mrb[0].mxu0
      %v3254 = vadd.f32 0.0, %v3253
      %v3255 = vpop.f32.mrb[0].mxu0
      %3256 = vmatprep.mubr.bf16.mxu0 0
      %3257 = vmatmul.mubr.bf16.gmra.mrb[0].mxu0 %v3109
      %v3258 = vpop.f32.mrb[0].mxu0
      %v3259 = vadd.f32 0.0, %v3258
      %v3260 = vpop.f32.mrb[0].mxu0
      %v3261 = vpop.f32.mrb[0].mxu0
      %v3262 = vadd.f32 0.0, %v3261
      %v3263 = vpop.f32.mrb[0].mxu0
      %3264 = vmatprep.mubr.bf16.mxu0 0
      %3265 = vmatmul.mubr.bf16.gmra.mrb[0].mxu0 %v3112
      %v3266 = vpop.f32.mrb[0].mxu0
      %v3267 = vadd.f32 0.0, %v3266
      %v3268 = vpop.f32.mrb[0].mxu0
      %v3269 = vpop.f32.mrb[0].mxu0
      %v3270 = vadd.f32 0.0, %v3269
      %v3271 = vpop.f32.mrb[0].mxu0
      %3272 = vmatprep.mubr.bf16.mxu0 0
      %3273 = vmatmul.mubr.bf16.gmra.mrb[0].mxu0 %v3115
      %v3274 = vpop.f32.mrb[0].mxu0
      %v3275 = vadd.f32 0.0, %v3274
      %v3276 = vpop.f32.mrb[0].mxu0
      %v3277 = vpop.f32.mrb[0].mxu0
      %v3278 = vadd.f32 0.0, %v3277
      %v3279 = vpop.f32.mrb[0].mxu0
      %3280 = vdwg.mxu0
      %v3281 = vadd.f32 %v2749, %v3155
      %v3282 = vadd.f32 %v2750, %v3158
      %v3283 = vadd.f32 %v2751, %v3163
      %v3284 = vadd.f32 %v2752, %v3166
      %v3285 = vadd.f32 %v2753, %v3171
      %v3286 = vadd.f32 %v2754, %v3174
      %v3287 = vadd.f32 %v2755, %v3179
      %v3288 = vadd.f32 %v2756, %v3182
      %v3289 = vadd.f32 %v2757, %v3187
      %v3290 = vadd.f32 %v2758, %v3190
      %v3291 = vadd.f32 %v2759, %v3195
      %v3292 = vadd.f32 %v2760, %v3198
      %v3293 = vadd.f32 %v2761, %v3203
      %v3294 = vadd.f32 %v2762, %v3206
      %v3295 = vadd.f32 %v2763, %v3211
      %v3296 = vadd.f32 %v2764, %v3214
      %v3297 = vadd.f32 %v2765, %v3219
      %v3298 = vadd.f32 %v2766, %v3222
      %v3299 = vadd.f32 %v2767, %v3227
      %v3300 = vadd.f32 %v2768, %v3230
      %v3301 = vadd.f32 %v2769, %v3235
      %v3302 = vadd.f32 %v2770, %v3238
      %v3303 = vadd.f32 %v2771, %v3243
      %v3304 = vadd.f32 %v2772, %v3246
      %v3305 = vadd.f32 %v2773, %v3251
      %v3306 = vadd.f32 %v2774, %v3254
      %v3307 = vadd.f32 %v2775, %v3259
      %v3308 = vadd.f32 %v2776, %v3262
      %v3309 = vadd.f32 %v2777, %v3267
      %v3310 = vadd.f32 %v2778, %v3270
      %v3311 = vadd.f32 %v2779, %v3275
      %v3312 = vadd.f32 %v2780, %v3278
      %s3313 = scalar_lea.vmem [#allocation2], 32
      %v3314 = vld [vmem:[%s3313] sm:$0xf8]
      %v3315 = vld [vmem:[%s3313 + $0x8] sm:$0xf]
      %v3316 = vld [vmem:[%s3313 + $0x10] sm:$0xf8]
      %v3317 = vld [vmem:[%s3313 + $0x18] sm:$0xf]
      %v3318 = vld [vmem:[%s3313 + $0x20] sm:$0xf8]
      %v3319 = vld [vmem:[%s3313 + $0x28] sm:$0xf]
      %v3320 = vld [vmem:[%s3313 + $0x30] sm:$0xf8]
      %v3321 = vld [vmem:[%s3313 + $0x38] sm:$0xf]
      %v3322 = vld [vmem:[%s3313 + $0x40] sm:$0xf8]
      %v3323 = vld [vmem:[%s3313 + $0x48] sm:$0xf]
      %v3324 = vld [vmem:[%s3313 + $0x50] sm:$0xf8]
      %v3325 = vld [vmem:[%s3313 + $0x58] sm:$0xf]
      %v3326 = vld [vmem:[%s3313 + $0x60] sm:$0xf8]
      %v3327 = vld [vmem:[%s3313 + $0x68] sm:$0xf]
      %v3328 = vld [vmem:[%s3313 + $0x70] sm:$0xf8]
      %v3329 = vld [vmem:[%s3313 + $0x78] sm:$0xf]
      %v3330 = vld [vmem:[%s3313 + $0x80] sm:$0xf8]
      %v3331 = vld [vmem:[%s3313 + $0x88] sm:$0xf]
      %v3332 = vld [vmem:[%s3313 + $0x90] sm:$0xf8]
      %v3333 = vld [vmem:[%s3313 + $0x98] sm:$0xf]
      %v3334 = vld [vmem:[%s3313 + $0xa0] sm:$0xf8]
      %v3335 = vld [vmem:[%s3313 + $0xa8] sm:$0xf]
      %v3336 = vld [vmem:[%s3313 + $0xb0] sm:$0xf8]
      %v3337 = vld [vmem:[%s3313 + $0xb8] sm:$0xf]
      %v3338 = vld [vmem:[%s3313 + $0xc0] sm:$0xf8]
      %v3339 = vld [vmem:[%s3313 + $0xc8] sm:$0xf]
      %v3340 = vld [vmem:[%s3313 + $0xd0] sm:$0xf8]
      %v3341 = vld [vmem:[%s3313 + $0xd8] sm:$0xf]
      %v3342 = vld [vmem:[%s3313 + $0xe0] sm:$0xf8]
      %v3343 = vld [vmem:[%s3313 + $0xe8] sm:$0xf]
      %v3344 = vld [vmem:[%s3313 + $0xf0] sm:$0xf8]
      %v3345 = vld [vmem:[%s3313 + $0xf8] sm:$0xf]
      %v3347 = vshrl.u32 %v3314, 16
      %v3349 = vrot.slane %v3347, 3
      %v3350 = vshll.u32 %v3314, 16
      %v3352 = vrot.slane %v3350, 4
      %v3353 = vor.u32 %v3349, %v3352
      %v3355 = vshrl.u32 %v3315, 16
      %v3357 = vrot.slane %v3355, 3
      %v3358 = vshll.u32 %v3315, 16
      %v3360 = vrot.slane %v3358, 4
      %v3361 = vor.u32 %v3357, %v3360
      %v3362 = vsel %vm564, %v3353, %v3361
      %v3364 = vshrl.u32 %v3316, 16
      %v3366 = vrot.slane %v3364, 3
      %v3367 = vshll.u32 %v3316, 16
      %v3369 = vrot.slane %v3367, 4
      %v3370 = vor.u32 %v3366, %v3369
      %v3372 = vshrl.u32 %v3317, 16
      %v3374 = vrot.slane %v3372, 3
      %v3375 = vshll.u32 %v3317, 16
      %v3377 = vrot.slane %v3375, 4
      %v3378 = vor.u32 %v3374, %v3377
      %v3379 = vsel %vm564, %v3370, %v3378
      %v3381 = vshrl.u32 %v3318, 16
      %v3383 = vrot.slane %v3381, 3
      %v3384 = vshll.u32 %v3318, 16
      %v3386 = vrot.slane %v3384, 4
      %v3387 = vor.u32 %v3383, %v3386
      %v3389 = vshrl.u32 %v3319, 16
      %v3391 = vrot.slane %v3389, 3
      %v3392 = vshll.u32 %v3319, 16
      %v3394 = vrot.slane %v3392, 4
      %v3395 = vor.u32 %v3391, %v3394
      %v3396 = vsel %vm564, %v3387, %v3395
      %v3398 = vshrl.u32 %v3320, 16
      %v3400 = vrot.slane %v3398, 3
      %v3401 = vshll.u32 %v3320, 16
      %v3403 = vrot.slane %v3401, 4
      %v3404 = vor.u32 %v3400, %v3403
      %v3406 = vshrl.u32 %v3321, 16
      %v3408 = vrot.slane %v3406, 3
      %v3409 = vshll.u32 %v3321, 16
      %v3411 = vrot.slane %v3409, 4
      %v3412 = vor.u32 %v3408, %v3411
      %v3413 = vsel %vm564, %v3404, %v3412
      %v3415 = vshrl.u32 %v3322, 16
      %v3417 = vrot.slane %v3415, 3
      %v3418 = vshll.u32 %v3322, 16
      %v3420 = vrot.slane %v3418, 4
      %v3421 = vor.u32 %v3417, %v3420
      %v3423 = vshrl.u32 %v3323, 16
      %v3425 = vrot.slane %v3423, 3
      %v3426 = vshll.u32 %v3323, 16
      %v3428 = vrot.slane %v3426, 4
      %v3429 = vor.u32 %v3425, %v3428
      %v3430 = vsel %vm564, %v3421, %v3429
      %v3432 = vshrl.u32 %v3324, 16
      %v3434 = vrot.slane %v3432, 3
      %v3435 = vshll.u32 %v3324, 16
      %v3437 = vrot.slane %v3435, 4
      %v3438 = vor.u32 %v3434, %v3437
      %v3440 = vshrl.u32 %v3325, 16
      %v3442 = vrot.slane %v3440, 3
      %v3443 = vshll.u32 %v3325, 16
      %v3445 = vrot.slane %v3443, 4
      %v3446 = vor.u32 %v3442, %v3445
      %v3447 = vsel %vm564, %v3438, %v3446
      %v3449 = vshrl.u32 %v3326, 16
      %v3451 = vrot.slane %v3449, 3
      %v3452 = vshll.u32 %v3326, 16
      %v3454 = vrot.slane %v3452, 4
      %v3455 = vor.u32 %v3451, %v3454
      %v3457 = vshrl.u32 %v3327, 16
      %v3459 = vrot.slane %v3457, 3
      %v3460 = vshll.u32 %v3327, 16
      %v3462 = vrot.slane %v3460, 4
      %v3463 = vor.u32 %v3459, %v3462
      %v3464 = vsel %vm564, %v3455, %v3463
      %v3466 = vshrl.u32 %v3328, 16
      %v3468 = vrot.slane %v3466, 3
      %v3469 = vshll.u32 %v3328, 16
      %v3471 = vrot.slane %v3469, 4
      %v3472 = vor.u32 %v3468, %v3471
      %v3474 = vshrl.u32 %v3329, 16
      %v3476 = vrot.slane %v3474, 3
      %v3477 = vshll.u32 %v3329, 16
      %v3479 = vrot.slane %v3477, 4
      %v3480 = vor.u32 %v3476, %v3479
      %v3481 = vsel %vm564, %v3472, %v3480
      %v3483 = vshrl.u32 %v3330, 16
      %v3485 = vrot.slane %v3483, 3
      %v3486 = vshll.u32 %v3330, 16
      %v3488 = vrot.slane %v3486, 4
      %v3489 = vor.u32 %v3485, %v3488
      %v3491 = vshrl.u32 %v3331, 16
      %v3493 = vrot.slane %v3491, 3
      %v3494 = vshll.u32 %v3331, 16
      %v3496 = vrot.slane %v3494, 4
      %v3497 = vor.u32 %v3493, %v3496
      %v3498 = vsel %vm564, %v3489, %v3497
      %v3500 = vshrl.u32 %v3332, 16
      %v3502 = vrot.slane %v3500, 3
      %v3503 = vshll.u32 %v3332, 16
      %v3505 = vrot.slane %v3503, 4
      %v3506 = vor.u32 %v3502, %v3505
      %v3508 = vshrl.u32 %v3333, 16
      %v3510 = vrot.slane %v3508, 3
      %v3511 = vshll.u32 %v3333, 16
      %v3513 = vrot.slane %v3511, 4
      %v3514 = vor.u32 %v3510, %v3513
      %v3515 = vsel %vm564, %v3506, %v3514
      %v3517 = vshrl.u32 %v3334, 16
      %v3519 = vrot.slane %v3517, 3
      %v3520 = vshll.u32 %v3334, 16
      %v3522 = vrot.slane %v3520, 4
      %v3523 = vor.u32 %v3519, %v3522
      %v3525 = vshrl.u32 %v3335, 16
      %v3527 = vrot.slane %v3525, 3
      %v3528 = vshll.u32 %v3335, 16
      %v3530 = vrot.slane %v3528, 4
      %v3531 = vor.u32 %v3527, %v3530
      %v3532 = vsel %vm564, %v3523, %v3531
      %v3534 = vshrl.u32 %v3336, 16
      %v3536 = vrot.slane %v3534, 3
      %v3537 = vshll.u32 %v3336, 16
      %v3539 = vrot.slane %v3537, 4
      %v3540 = vor.u32 %v3536, %v3539
      %v3542 = vshrl.u32 %v3337, 16
      %v3544 = vrot.slane %v3542, 3
      %v3545 = vshll.u32 %v3337, 16
      %v3547 = vrot.slane %v3545, 4
      %v3548 = vor.u32 %v3544, %v3547
      %v3549 = vsel %vm564, %v3540, %v3548
      %v3551 = vshrl.u32 %v3338, 16
      %v3553 = vrot.slane %v3551, 3
      %v3554 = vshll.u32 %v3338, 16
      %v3556 = vrot.slane %v3554, 4
      %v3557 = vor.u32 %v3553, %v3556
      %v3559 = vshrl.u32 %v3339, 16
      %v3561 = vrot.slane %v3559, 3
      %v3562 = vshll.u32 %v3339, 16
      %v3564 = vrot.slane %v3562, 4
      %v3565 = vor.u32 %v3561, %v3564
      %v3566 = vsel %vm564, %v3557, %v3565
      %v3568 = vshrl.u32 %v3340, 16
      %v3570 = vrot.slane %v3568, 3
      %v3571 = vshll.u32 %v3340, 16
      %v3573 = vrot.slane %v3571, 4
      %v3574 = vor.u32 %v3570, %v3573
      %v3576 = vshrl.u32 %v3341, 16
      %v3578 = vrot.slane %v3576, 3
      %v3579 = vshll.u32 %v3341, 16
      %v3581 = vrot.slane %v3579, 4
      %v3582 = vor.u32 %v3578, %v3581
      %v3583 = vsel %vm564, %v3574, %v3582
      %v3585 = vshrl.u32 %v3342, 16
      %v3587 = vrot.slane %v3585, 3
      %v3588 = vshll.u32 %v3342, 16
      %v3590 = vrot.slane %v3588, 4
      %v3591 = vor.u32 %v3587, %v3590
      %v3593 = vshrl.u32 %v3343, 16
      %v3595 = vrot.slane %v3593, 3
      %v3596 = vshll.u32 %v3343, 16
      %v3598 = vrot.slane %v3596, 4
      %v3599 = vor.u32 %v3595, %v3598
      %v3600 = vsel %vm564, %v3591, %v3599
      %v3602 = vshrl.u32 %v3344, 16
      %v3604 = vrot.slane %v3602, 3
      %v3605 = vshll.u32 %v3344, 16
      %v3607 = vrot.slane %v3605, 4
      %v3608 = vor.u32 %v3604, %v3607
      %v3610 = vshrl.u32 %v3345, 16
      %v3612 = vrot.slane %v3610, 3
      %v3613 = vshll.u32 %v3345, 16
      %v3615 = vrot.slane %v3613, 4
      %v3616 = vor.u32 %v3612, %v3615
      %v3617 = vsel %vm564, %v3608, %v3616
      %v3619 = vsel %vm934, %v3362, 0
      %v3622 = vsel %vm934, %v3379, 0
      %v3625 = vsel %vm934, %v3396, 0
      %v3628 = vsel %vm934, %v3413, 0
      %v3631 = vsel %vm934, %v3430, 0
      %v3634 = vsel %vm934, %v3447, 0
      %v3637 = vsel %vm934, %v3464, 0
      %v3640 = vsel %vm934, %v3481, 0
      %v3643 = vsel %vm934, %v3498, 0
      %v3646 = vsel %vm934, %v3515, 0
      %v3649 = vsel %vm934, %v3532, 0
      %v3652 = vsel %vm934, %v3549, 0
      %v3655 = vsel %vm934, %v3566, 0
      %v3658 = vsel %vm934, %v3583, 0
      %v3661 = vsel %vm934, %v3600, 0
      %v3664 = vsel %vm934, %v3617, 0
      %v3667 = vsel %vm983, %v529, 0
      %3669 = vmatprep.subr.bf16.mxu0 0
      %3670 = vmatpush1.bf16.msra.mxu0 %v3667
      %3671 = vmatprep.subr.bf16.mxu0 0
      %3672 = vmatpush1.bf16.msra.mxu0 0
      %3673 = vmatprep.subr.bf16.mxu0 0
      %3674 = vmatpush1.bf16.msra.mxu0 0
      %3675 = vmatprep.subr.bf16.mxu0 0
      %3676 = vmatpush1.bf16.msra.mxu0 0
      %3677 = vmatprep.subr.bf16.mxu0 0
      %3678 = vmatpush1.bf16.msra.mxu0 0
      %3679 = vmatprep.subr.bf16.mxu0 0
      %3680 = vmatpush1.bf16.msra.mxu0 0
      %3681 = vmatprep.subr.bf16.mxu0 0
      %3682 = vmatpush1.bf16.msra.mxu0 0
      %3683 = vmatprep.subr.bf16.mxu0 0
      %3684 = vmatpush1.bf16.msra.mxu0 0
      %3685 = vmatprep.subr.bf16.mxu0 0
      %3686 = vmatpush1.bf16.msra.mxu0 0
      %3687 = vmatprep.subr.bf16.mxu0 0
      %3688 = vmatpush1.bf16.msra.mxu0 0
      %3689 = vmatprep.subr.bf16.mxu0 0
      %3690 = vmatpush1.bf16.msra.mxu0 0
      %3691 = vmatprep.subr.bf16.mxu0 0
      %3692 = vmatpush1.bf16.msra.mxu0 0
      %3693 = vmatprep.subr.bf16.mxu0 0
      %3694 = vmatpush1.bf16.msra.mxu0 0
      %3695 = vmatprep.subr.bf16.mxu0 0
      %3696 = vmatpush1.bf16.msra.mxu0 0
      %3697 = vmatprep.subr.bf16.mxu0 0
      %3698 = vmatpush1.bf16.msra.mxu0 0
      %3699 = vmatprep.subr.bf16.mxu0 0
      %3700 = vmatpush1.bf16.msra.mxu0 0
      %3701 = vmatprep.mubr.bf16.mxu0 0
      %3702 = vmatmul.mubr.bf16.gmra.mrb[0].mxu0 %v3619
      %v3703 = vpop.f32.mrb[0].mxu0
      %v3704 = vadd.f32 0.0, %v3703
      %v3705 = vpop.f32.mrb[0].mxu0
      %v3706 = vpop.f32.mrb[0].mxu0
      %v3707 = vadd.f32 0.0, %v3706
      %v3708 = vpop.f32.mrb[0].mxu0
      %3709 = vmatprep.mubr.bf16.mxu0 0
      %3710 = vmatmul.mubr.bf16.gmra.mrb[0].mxu0 %v3622
      %v3711 = vpop.f32.mrb[0].mxu0
      %v3712 = vadd.f32 0.0, %v3711
      %v3713 = vpop.f32.mrb[0].mxu0
      %v3714 = vpop.f32.mrb[0].mxu0
      %v3715 = vadd.f32 0.0, %v3714
      %v3716 = vpop.f32.mrb[0].mxu0
      %3717 = vmatprep.mubr.bf16.mxu0 0
      %3718 = vmatmul.mubr.bf16.gmra.mrb[0].mxu0 %v3625
      %v3719 = vpop.f32.mrb[0].mxu0
      %v3720 = vadd.f32 0.0, %v3719
      %v3721 = vpop.f32.mrb[0].mxu0
      %v3722 = vpop.f32.mrb[0].mxu0
      %v3723 = vadd.f32 0.0, %v3722
      %v3724 = vpop.f32.mrb[0].mxu0
      %3725 = vmatprep.mubr.bf16.mxu0 0
      %3726 = vmatmul.mubr.bf16.gmra.mrb[0].mxu0 %v3628
      %v3727 = vpop.f32.mrb[0].mxu0
      %v3728 = vadd.f32 0.0, %v3727
      %v3729 = vpop.f32.mrb[0].mxu0
      %v3730 = vpop.f32.mrb[0].mxu0
      %v3731 = vadd.f32 0.0, %v3730
      %v3732 = vpop.f32.mrb[0].mxu0
      %3733 = vmatprep.mubr.bf16.mxu0 0
      %3734 = vmatmul.mubr.bf16.gmra.mrb[0].mxu0 %v3631
      %v3735 = vpop.f32.mrb[0].mxu0
      %v3736 = vadd.f32 0.0, %v3735
      %v3737 = vpop.f32.mrb[0].mxu0
      %v3738 = vpop.f32.mrb[0].mxu0
      %v3739 = vadd.f32 0.0, %v3738
      %v3740 = vpop.f32.mrb[0].mxu0
      %3741 = vmatprep.mubr.bf16.mxu0 0
      %3742 = vmatmul.mubr.bf16.gmra.mrb[0].mxu0 %v3634
      %v3743 = vpop.f32.mrb[0].mxu0
      %v3744 = vadd.f32 0.0, %v3743
      %v3745 = vpop.f32.mrb[0].mxu0
      %v3746 = vpop.f32.mrb[0].mxu0
      %v3747 = vadd.f32 0.0, %v3746
      %v3748 = vpop.f32.mrb[0].mxu0
      %3749 = vmatprep.mubr.bf16.mxu0 0
      %3750 = vmatmul.mubr.bf16.gmra.mrb[0].mxu0 %v3637
      %v3751 = vpop.f32.mrb[0].mxu0
      %v3752 = vadd.f32 0.0, %v3751
      %v3753 = vpop.f32.mrb[0].mxu0
      %v3754 = vpop.f32.mrb[0].mxu0
      %v3755 = vadd.f32 0.0, %v3754
      %v3756 = vpop.f32.mrb[0].mxu0
      %3757 = vmatprep.mubr.bf16.mxu0 0
      %3758 = vmatmul.mubr.bf16.gmra.mrb[0].mxu0 %v3640
      %v3759 = vpop.f32.mrb[0].mxu0
      %v3760 = vadd.f32 0.0, %v3759
      %v3761 = vpop.f32.mrb[0].mxu0
      %v3762 = vpop.f32.mrb[0].mxu0
      %v3763 = vadd.f32 0.0, %v3762
      %v3764 = vpop.f32.mrb[0].mxu0
      %3765 = vmatprep.mubr.bf16.mxu0 0
      %3766 = vmatmul.mubr.bf16.gmra.mrb[0].mxu0 %v3643
      %v3767 = vpop.f32.mrb[0].mxu0
      %v3768 = vadd.f32 0.0, %v3767
      %v3769 = vpop.f32.mrb[0].mxu0
      %v3770 = vpop.f32.mrb[0].mxu0
      %v3771 = vadd.f32 0.0, %v3770
      %v3772 = vpop.f32.mrb[0].mxu0
      %3773 = vmatprep.mubr.bf16.mxu0 0
      %3774 = vmatmul.mubr.bf16.gmra.mrb[0].mxu0 %v3646
      %v3775 = vpop.f32.mrb[0].mxu0
      %v3776 = vadd.f32 0.0, %v3775
      %v3777 = vpop.f32.mrb[0].mxu0
      %v3778 = vpop.f32.mrb[0].mxu0
      %v3779 = vadd.f32 0.0, %v3778
      %v3780 = vpop.f32.mrb[0].mxu0
      %3781 = vmatprep.mubr.bf16.mxu0 0
      %3782 = vmatmul.mubr.bf16.gmra.mrb[0].mxu0 %v3649
      %v3783 = vpop.f32.mrb[0].mxu0
      %v3784 = vadd.f32 0.0, %v3783
      %v3785 = vpop.f32.mrb[0].mxu0
      %v3786 = vpop.f32.mrb[0].mxu0
      %v3787 = vadd.f32 0.0, %v3786
      %v3788 = vpop.f32.mrb[0].mxu0
      %3789 = vmatprep.mubr.bf16.mxu0 0
      %3790 = vmatmul.mubr.bf16.gmra.mrb[0].mxu0 %v3652
      %v3791 = vpop.f32.mrb[0].mxu0
      %v3792 = vadd.f32 0.0, %v3791
      %v3793 = vpop.f32.mrb[0].mxu0
      %v3794 = vpop.f32.mrb[0].mxu0
      %v3795 = vadd.f32 0.0, %v3794
      %v3796 = vpop.f32.mrb[0].mxu0
      %3797 = vmatprep.mubr.bf16.mxu0 0
      %3798 = vmatmul.mubr.bf16.gmra.mrb[0].mxu0 %v3655
      %v3799 = vpop.f32.mrb[0].mxu0
      %v3800 = vadd.f32 0.0, %v3799
      %v3801 = vpop.f32.mrb[0].mxu0
      %v3802 = vpop.f32.mrb[0].mxu0
      %v3803 = vadd.f32 0.0, %v3802
      %v3804 = vpop.f32.mrb[0].mxu0
      %3805 = vmatprep.mubr.bf16.mxu0 0
      %3806 = vmatmul.mubr.bf16.gmra.mrb[0].mxu0 %v3658
      %v3807 = vpop.f32.mrb[0].mxu0
      %v3808 = vadd.f32 0.0, %v3807
      %v3809 = vpop.f32.mrb[0].mxu0
      %v3810 = vpop.f32.mrb[0].mxu0
      %v3811 = vadd.f32 0.0, %v3810
      %v3812 = vpop.f32.mrb[0].mxu0
      %3813 = vmatprep.mubr.bf16.mxu0 0
      %3814 = vmatmul.mubr.bf16.gmra.mrb[0].mxu0 %v3661
      %v3815 = vpop.f32.mrb[0].mxu0
      %v3816 = vadd.f32 0.0, %v3815
      %v3817 = vpop.f32.mrb[0].mxu0
      %v3818 = vpop.f32.mrb[0].mxu0
      %v3819 = vadd.f32 0.0, %v3818
      %v3820 = vpop.f32.mrb[0].mxu0
      %3821 = vmatprep.mubr.bf16.mxu0 0
      %3822 = vmatmul.mubr.bf16.gmra.mrb[0].mxu0 %v3664
      %v3823 = vpop.f32.mrb[0].mxu0
      %v3824 = vadd.f32 0.0, %v3823
      %v3825 = vpop.f32.mrb[0].mxu0
      %v3826 = vpop.f32.mrb[0].mxu0
      %v3827 = vadd.f32 0.0, %v3826
      %v3828 = vpop.f32.mrb[0].mxu0
      %3829 = vdwg.mxu0
      %v3830 = vadd.f32 %v3281, %v3704
      %v3831 = vadd.f32 %v3282, %v3707
      %v3832 = vadd.f32 %v3283, %v3712
      %v3833 = vadd.f32 %v3284, %v3715
      %v3834 = vadd.f32 %v3285, %v3720
      %v3835 = vadd.f32 %v3286, %v3723
      %v3836 = vadd.f32 %v3287, %v3728
      %v3837 = vadd.f32 %v3288, %v3731
      %v3838 = vadd.f32 %v3289, %v3736
      %v3839 = vadd.f32 %v3290, %v3739
      %v3840 = vadd.f32 %v3291, %v3744
      %v3841 = vadd.f32 %v3292, %v3747
      %v3842 = vadd.f32 %v3293, %v3752
      %v3843 = vadd.f32 %v3294, %v3755
      %v3844 = vadd.f32 %v3295, %v3760
      %v3845 = vadd.f32 %v3296, %v3763
      %v3846 = vadd.f32 %v3297, %v3768
      %v3847 = vadd.f32 %v3298, %v3771
      %v3848 = vadd.f32 %v3299, %v3776
      %v3849 = vadd.f32 %v3300, %v3779
      %v3850 = vadd.f32 %v3301, %v3784
      %v3851 = vadd.f32 %v3302, %v3787
      %v3852 = vadd.f32 %v3303, %v3792
      %v3853 = vadd.f32 %v3304, %v3795
      %v3854 = vadd.f32 %v3305, %v3800
      %v3855 = vadd.f32 %v3306, %v3803
      %v3856 = vadd.f32 %v3307, %v3808
      %v3857 = vadd.f32 %v3308, %v3811
      %v3858 = vadd.f32 %v3309, %v3816
      %v3859 = vadd.f32 %v3310, %v3819
      %v3860 = vadd.f32 %v3311, %v3824
      %v3861 = vadd.f32 %v3312, %v3827
      %v3862 = vld [vmem:[%s3313] sm:$0xf0]
      %v3863 = vld [vmem:[%s3313 + $0x10] sm:$0xf0]
      %v3864 = vld [vmem:[%s3313 + $0x20] sm:$0xf0]
      %v3865 = vld [vmem:[%s3313 + $0x30] sm:$0xf0]
      %v3866 = vld [vmem:[%s3313 + $0x40] sm:$0xf0]
      %v3867 = vld [vmem:[%s3313 + $0x50] sm:$0xf0]
      %v3868 = vld [vmem:[%s3313 + $0x60] sm:$0xf0]
      %v3869 = vld [vmem:[%s3313 + $0x70] sm:$0xf0]
      %v3870 = vld [vmem:[%s3313 + $0x80] sm:$0xf0]
      %v3871 = vld [vmem:[%s3313 + $0x90] sm:$0xf0]
      %v3872 = vld [vmem:[%s3313 + $0xa0] sm:$0xf0]
      %v3873 = vld [vmem:[%s3313 + $0xb0] sm:$0xf0]
      %v3874 = vld [vmem:[%s3313 + $0xc0] sm:$0xf0]
      %v3875 = vld [vmem:[%s3313 + $0xd0] sm:$0xf0]
      %v3876 = vld [vmem:[%s3313 + $0xe0] sm:$0xf0]
      %v3877 = vld [vmem:[%s3313 + $0xf0] sm:$0xf0]
      %v3910 = vrot.slane %v3862, 4
      %v3911 = vrot.slane %v3315, 4
      %v3912 = vsel %vm885, %v3910, %v3911
      %v3913 = vrot.slane %v3863, 4
      %v3914 = vrot.slane %v3317, 4
      %v3915 = vsel %vm885, %v3913, %v3914
      %v3916 = vrot.slane %v3864, 4
      %v3917 = vrot.slane %v3319, 4
      %v3918 = vsel %vm885, %v3916, %v3917
      %v3919 = vrot.slane %v3865, 4
      %v3920 = vrot.slane %v3321, 4
      %v3921 = vsel %vm885, %v3919, %v3920
      %v3922 = vrot.slane %v3866, 4
      %v3923 = vrot.slane %v3323, 4
      %v3924 = vsel %vm885, %v3922, %v3923
      %v3925 = vrot.slane %v3867, 4
      %v3926 = vrot.slane %v3325, 4
      %v3927 = vsel %vm885, %v3925, %v3926
      %v3928 = vrot.slane %v3868, 4
      %v3929 = vrot.slane %v3327, 4
      %v3930 = vsel %vm885, %v3928, %v3929
      %v3931 = vrot.slane %v3869, 4
      %v3932 = vrot.slane %v3329, 4
      %v3933 = vsel %vm885, %v3931, %v3932
      %v3934 = vrot.slane %v3870, 4
      %v3935 = vrot.slane %v3331, 4
      %v3936 = vsel %vm885, %v3934, %v3935
      %v3937 = vrot.slane %v3871, 4
      %v3938 = vrot.slane %v3333, 4
      %v3939 = vsel %vm885, %v3937, %v3938
      %v3940 = vrot.slane %v3872, 4
      %v3941 = vrot.slane %v3335, 4
      %v3942 = vsel %vm885, %v3940, %v3941
      %v3943 = vrot.slane %v3873, 4
      %v3944 = vrot.slane %v3337, 4
      %v3945 = vsel %vm885, %v3943, %v3944
      %v3946 = vrot.slane %v3874, 4
      %v3947 = vrot.slane %v3339, 4
      %v3948 = vsel %vm885, %v3946, %v3947
      %v3949 = vrot.slane %v3875, 4
      %v3950 = vrot.slane %v3341, 4
      %v3951 = vsel %vm885, %v3949, %v3950
      %v3952 = vrot.slane %v3876, 4
      %v3953 = vrot.slane %v3343, 4
      %v3954 = vsel %vm885, %v3952, %v3953
      %v3955 = vrot.slane %v3877, 4
      %v3956 = vrot.slane %v3345, 4
      %v3957 = vsel %vm885, %v3955, %v3956
      %v3959 = vsel %vm934, %v3912, 0
      %v3962 = vsel %vm934, %v3915, 0
      %v3965 = vsel %vm934, %v3918, 0
      %v3968 = vsel %vm934, %v3921, 0
      %v3971 = vsel %vm934, %v3924, 0
      %v3974 = vsel %vm934, %v3927, 0
      %v3977 = vsel %vm934, %v3930, 0
      %v3980 = vsel %vm934, %v3933, 0
      %v3983 = vsel %vm934, %v3936, 0
      %v3986 = vsel %vm934, %v3939, 0
      %v3989 = vsel %vm934, %v3942, 0
      %v3992 = vsel %vm934, %v3945, 0
      %v3995 = vsel %vm934, %v3948, 0
      %v3998 = vsel %vm934, %v3951, 0
      %v4001 = vsel %vm934, %v3954, 0
      %v4004 = vsel %vm934, %v3957, 0
      %v4007 = vsel %vm983, %v530, 0
      %4009 = vmatprep.subr.bf16.mxu0 0
      %4010 = vmatpush1.bf16.msra.mxu0 %v4007
      %4011 = vmatprep.subr.bf16.mxu0 0
      %4012 = vmatpush1.bf16.msra.mxu0 0
      %4013 = vmatprep.subr.bf16.mxu0 0
      %4014 = vmatpush1.bf16.msra.mxu0 0
      %4015 = vmatprep.subr.bf16.mxu0 0
      %4016 = vmatpush1.bf16.msra.mxu0 0
      %4017 = vmatprep.subr.bf16.mxu0 0
      %4018 = vmatpush1.bf16.msra.mxu0 0
      %4019 = vmatprep.subr.bf16.mxu0 0
      %4020 = vmatpush1.bf16.msra.mxu0 0
      %4021 = vmatprep.subr.bf16.mxu0 0
      %4022 = vmatpush1.bf16.msra.mxu0 0
      %4023 = vmatprep.subr.bf16.mxu0 0
      %4024 = vmatpush1.bf16.msra.mxu0 0
      %4025 = vmatprep.subr.bf16.mxu0 0
      %4026 = vmatpush1.bf16.msra.mxu0 0
      %4027 = vmatprep.subr.bf16.mxu0 0
      %4028 = vmatpush1.bf16.msra.mxu0 0
      %4029 = vmatprep.subr.bf16.mxu0 0
      %4030 = vmatpush1.bf16.msra.mxu0 0
      %4031 = vmatprep.subr.bf16.mxu0 0
      %4032 = vmatpush1.bf16.msra.mxu0 0
      %4033 = vmatprep.subr.bf16.mxu0 0
      %4034 = vmatpush1.bf16.msra.mxu0 0
      %4035 = vmatprep.subr.bf16.mxu0 0
      %4036 = vmatpush1.bf16.msra.mxu0 0
      %4037 = vmatprep.subr.bf16.mxu0 0
      %4038 = vmatpush1.bf16.msra.mxu0 0
      %4039 = vmatprep.subr.bf16.mxu0 0
      %4040 = vmatpush1.bf16.msra.mxu0 0
      %4041 = vmatprep.mubr.bf16.mxu0 0
      %4042 = vmatmul.mubr.bf16.gmra.mrb[0].mxu0 %v3959
      %v4043 = vpop.f32.mrb[0].mxu0
      %v4044 = vadd.f32 0.0, %v4043
      %v4045 = vpop.f32.mrb[0].mxu0
      %v4046 = vpop.f32.mrb[0].mxu0
      %v4047 = vadd.f32 0.0, %v4046
      %v4048 = vpop.f32.mrb[0].mxu0
      %4049 = vmatprep.mubr.bf16.mxu0 0
      %4050 = vmatmul.mubr.bf16.gmra.mrb[0].mxu0 %v3962
      %v4051 = vpop.f32.mrb[0].mxu0
      %v4052 = vadd.f32 0.0, %v4051
      %v4053 = vpop.f32.mrb[0].mxu0
      %v4054 = vpop.f32.mrb[0].mxu0
      %v4055 = vadd.f32 0.0, %v4054
      %v4056 = vpop.f32.mrb[0].mxu0
      %4057 = vmatprep.mubr.bf16.mxu0 0
      %4058 = vmatmul.mubr.bf16.gmra.mrb[0].mxu0 %v3965
      %v4059 = vpop.f32.mrb[0].mxu0
      %v4060 = vadd.f32 0.0, %v4059
      %v4061 = vpop.f32.mrb[0].mxu0
      %v4062 = vpop.f32.mrb[0].mxu0
      %v4063 = vadd.f32 0.0, %v4062
      %v4064 = vpop.f32.mrb[0].mxu0
      %4065 = vmatprep.mubr.bf16.mxu0 0
      %4066 = vmatmul.mubr.bf16.gmra.mrb[0].mxu0 %v3968
      %v4067 = vpop.f32.mrb[0].mxu0
      %v4068 = vadd.f32 0.0, %v4067
      %v4069 = vpop.f32.mrb[0].mxu0
      %v4070 = vpop.f32.mrb[0].mxu0
      %v4071 = vadd.f32 0.0, %v4070
      %v4072 = vpop.f32.mrb[0].mxu0
      %4073 = vmatprep.mubr.bf16.mxu0 0
      %4074 = vmatmul.mubr.bf16.gmra.mrb[0].mxu0 %v3971
      %v4075 = vpop.f32.mrb[0].mxu0
      %v4076 = vadd.f32 0.0, %v4075
      %v4077 = vpop.f32.mrb[0].mxu0
      %v4078 = vpop.f32.mrb[0].mxu0
      %v4079 = vadd.f32 0.0, %v4078
      %v4080 = vpop.f32.mrb[0].mxu0
      %4081 = vmatprep.mubr.bf16.mxu0 0
      %4082 = vmatmul.mubr.bf16.gmra.mrb[0].mxu0 %v3974
      %v4083 = vpop.f32.mrb[0].mxu0
      %v4084 = vadd.f32 0.0, %v4083
      %v4085 = vpop.f32.mrb[0].mxu0
      %v4086 = vpop.f32.mrb[0].mxu0
      %v4087 = vadd.f32 0.0, %v4086
      %v4088 = vpop.f32.mrb[0].mxu0
      %4089 = vmatprep.mubr.bf16.mxu0 0
      %4090 = vmatmul.mubr.bf16.gmra.mrb[0].mxu0 %v3977
      %v4091 = vpop.f32.mrb[0].mxu0
      %v4092 = vadd.f32 0.0, %v4091
      %v4093 = vpop.f32.mrb[0].mxu0
      %v4094 = vpop.f32.mrb[0].mxu0
      %v4095 = vadd.f32 0.0, %v4094
      %v4096 = vpop.f32.mrb[0].mxu0
      %4097 = vmatprep.mubr.bf16.mxu0 0
      %4098 = vmatmul.mubr.bf16.gmra.mrb[0].mxu0 %v3980
      %v4099 = vpop.f32.mrb[0].mxu0
      %v4100 = vadd.f32 0.0, %v4099
      %v4101 = vpop.f32.mrb[0].mxu0
      %v4102 = vpop.f32.mrb[0].mxu0
      %v4103 = vadd.f32 0.0, %v4102
      %v4104 = vpop.f32.mrb[0].mxu0
      %4105 = vmatprep.mubr.bf16.mxu0 0
      %4106 = vmatmul.mubr.bf16.gmra.mrb[0].mxu0 %v3983
      %v4107 = vpop.f32.mrb[0].mxu0
      %v4108 = vadd.f32 0.0, %v4107
      %v4109 = vpop.f32.mrb[0].mxu0
      %v4110 = vpop.f32.mrb[0].mxu0
      %v4111 = vadd.f32 0.0, %v4110
      %v4112 = vpop.f32.mrb[0].mxu0
      %4113 = vmatprep.mubr.bf16.mxu0 0
      %4114 = vmatmul.mubr.bf16.gmra.mrb[0].mxu0 %v3986
      %v4115 = vpop.f32.mrb[0].mxu0
      %v4116 = vadd.f32 0.0, %v4115
      %v4117 = vpop.f32.mrb[0].mxu0
      %v4118 = vpop.f32.mrb[0].mxu0
      %v4119 = vadd.f32 0.0, %v4118
      %v4120 = vpop.f32.mrb[0].mxu0
      %4121 = vmatprep.mubr.bf16.mxu0 0
      %4122 = vmatmul.mubr.bf16.gmra.mrb[0].mxu0 %v3989
      %v4123 = vpop.f32.mrb[0].mxu0
      %v4124 = vadd.f32 0.0, %v4123
      %v4125 = vpop.f32.mrb[0].mxu0
      %v4126 = vpop.f32.mrb[0].mxu0
      %v4127 = vadd.f32 0.0, %v4126
      %v4128 = vpop.f32.mrb[0].mxu0
      %4129 = vmatprep.mubr.bf16.mxu0 0
      %4130 = vmatmul.mubr.bf16.gmra.mrb[0].mxu0 %v3992
      %v4131 = vpop.f32.mrb[0].mxu0
      %v4132 = vadd.f32 0.0, %v4131
      %v4133 = vpop.f32.mrb[0].mxu0
      %v4134 = vpop.f32.mrb[0].mxu0
      %v4135 = vadd.f32 0.0, %v4134
      %v4136 = vpop.f32.mrb[0].mxu0
      %4137 = vmatprep.mubr.bf16.mxu0 0
      %4138 = vmatmul.mubr.bf16.gmra.mrb[0].mxu0 %v3995
      %v4139 = vpop.f32.mrb[0].mxu0
      %v4140 = vadd.f32 0.0, %v4139
      %v4141 = vpop.f32.mrb[0].mxu0
      %v4142 = vpop.f32.mrb[0].mxu0
      %v4143 = vadd.f32 0.0, %v4142
      %v4144 = vpop.f32.mrb[0].mxu0
      %4145 = vmatprep.mubr.bf16.mxu0 0
      %4146 = vmatmul.mubr.bf16.gmra.mrb[0].mxu0 %v3998
      %v4147 = vpop.f32.mrb[0].mxu0
      %v4148 = vadd.f32 0.0, %v4147
      %v4149 = vpop.f32.mrb[0].mxu0
      %v4150 = vpop.f32.mrb[0].mxu0
      %v4151 = vadd.f32 0.0, %v4150
      %v4152 = vpop.f32.mrb[0].mxu0
      %4153 = vmatprep.mubr.bf16.mxu0 0
      %4154 = vmatmul.mubr.bf16.gmra.mrb[0].mxu0 %v4001
      %v4155 = vpop.f32.mrb[0].mxu0
      %v4156 = vadd.f32 0.0, %v4155
      %v4157 = vpop.f32.mrb[0].mxu0
      %v4158 = vpop.f32.mrb[0].mxu0
      %v4159 = vadd.f32 0.0, %v4158
      %v4160 = vpop.f32.mrb[0].mxu0
      %4161 = vmatprep.mubr.bf16.mxu0 0
      %4162 = vmatmul.mubr.bf16.gmra.mrb[0].mxu0 %v4004
      %v4163 = vpop.f32.mrb[0].mxu0
      %v4164 = vadd.f32 0.0, %v4163
      %v4165 = vpop.f32.mrb[0].mxu0
      %v4166 = vpop.f32.mrb[0].mxu0
      %v4167 = vadd.f32 0.0, %v4166
      %v4168 = vpop.f32.mrb[0].mxu0
      %4169 = vdwg.mxu0
      %v4170 = vadd.f32 %v3830, %v4044
      %v4171 = vadd.f32 %v3831, %v4047
      %v4172 = vadd.f32 %v3832, %v4052
      %v4173 = vadd.f32 %v3833, %v4055
      %v4174 = vadd.f32 %v3834, %v4060
      %v4175 = vadd.f32 %v3835, %v4063
      %v4176 = vadd.f32 %v3836, %v4068
      %v4177 = vadd.f32 %v3837, %v4071
      %v4178 = vadd.f32 %v3838, %v4076
      %v4179 = vadd.f32 %v3839, %v4079
      %v4180 = vadd.f32 %v3840, %v4084
      %v4181 = vadd.f32 %v3841, %v4087
      %v4182 = vadd.f32 %v3842, %v4092
      %v4183 = vadd.f32 %v3843, %v4095
      %v4184 = vadd.f32 %v3844, %v4100
      %v4185 = vadd.f32 %v3845, %v4103
      %v4186 = vadd.f32 %v3846, %v4108
      %v4187 = vadd.f32 %v3847, %v4111
      %v4188 = vadd.f32 %v3848, %v4116
      %v4189 = vadd.f32 %v3849, %v4119
      %v4190 = vadd.f32 %v3850, %v4124
      %v4191 = vadd.f32 %v3851, %v4127
      %v4192 = vadd.f32 %v3852, %v4132
      %v4193 = vadd.f32 %v3853, %v4135
      %v4194 = vadd.f32 %v3854, %v4140
      %v4195 = vadd.f32 %v3855, %v4143
      %v4196 = vadd.f32 %v3856, %v4148
      %v4197 = vadd.f32 %v3857, %v4151
      %v4198 = vadd.f32 %v3858, %v4156
      %v4199 = vadd.f32 %v3859, %v4159
      %v4200 = vadd.f32 %v3860, %v4164
      %v4201 = vadd.f32 %v3861, %v4167
      %v4202 = vld [vmem:[%s3313 + $0x8] sm:$0x1f]
      %v4203 = vld [vmem:[%s3313 + $0x18] sm:$0x1f]
      %v4204 = vld [vmem:[%s3313 + $0x28] sm:$0x1f]
      %v4205 = vld [vmem:[%s3313 + $0x38] sm:$0x1f]
      %v4206 = vld [vmem:[%s3313 + $0x48] sm:$0x1f]
      %v4207 = vld [vmem:[%s3313 + $0x58] sm:$0x1f]
      %v4208 = vld [vmem:[%s3313 + $0x68] sm:$0x1f]
      %v4209 = vld [vmem:[%s3313 + $0x78] sm:$0x1f]
      %v4210 = vld [vmem:[%s3313 + $0x88] sm:$0x1f]
      %v4211 = vld [vmem:[%s3313 + $0x98] sm:$0x1f]
      %v4212 = vld [vmem:[%s3313 + $0xa8] sm:$0x1f]
      %v4213 = vld [vmem:[%s3313 + $0xb8] sm:$0x1f]
      %v4214 = vld [vmem:[%s3313 + $0xc8] sm:$0x1f]
      %v4215 = vld [vmem:[%s3313 + $0xd8] sm:$0x1f]
      %v4216 = vld [vmem:[%s3313 + $0xe8] sm:$0x1f]
      %v4217 = vld [vmem:[%s3313 + $0xf8] sm:$0x1f]
      %v4219 = vshrl.u32 %v3862, 16
      %v4221 = vrot.slane %v4219, 4
      %v4222 = vshll.u32 %v3862, 16
      %v4224 = vrot.slane %v4222, 5
      %v4225 = vor.u32 %v4221, %v4224
      %v4227 = vshrl.u32 %v4202, 16
      %v4229 = vrot.slane %v4227, 4
      %v4230 = vshll.u32 %v4202, 16
      %v4232 = vrot.slane %v4230, 5
      %v4233 = vor.u32 %v4229, %v4232
      %v4234 = vsel %vm1376, %v4225, %v4233
      %v4236 = vshrl.u32 %v3863, 16
      %v4238 = vrot.slane %v4236, 4
      %v4239 = vshll.u32 %v3863, 16
      %v4241 = vrot.slane %v4239, 5
      %v4242 = vor.u32 %v4238, %v4241
      %v4244 = vshrl.u32 %v4203, 16
      %v4246 = vrot.slane %v4244, 4
      %v4247 = vshll.u32 %v4203, 16
      %v4249 = vrot.slane %v4247, 5
      %v4250 = vor.u32 %v4246, %v4249
      %v4251 = vsel %vm1376, %v4242, %v4250
      %v4253 = vshrl.u32 %v3864, 16
      %v4255 = vrot.slane %v4253, 4
      %v4256 = vshll.u32 %v3864, 16
      %v4258 = vrot.slane %v4256, 5
      %v4259 = vor.u32 %v4255, %v4258
      %v4261 = vshrl.u32 %v4204, 16
      %v4263 = vrot.slane %v4261, 4
      %v4264 = vshll.u32 %v4204, 16
      %v4266 = vrot.slane %v4264, 5
      %v4267 = vor.u32 %v4263, %v4266
      %v4268 = vsel %vm1376, %v4259, %v4267
      %v4270 = vshrl.u32 %v3865, 16
      %v4272 = vrot.slane %v4270, 4
      %v4273 = vshll.u32 %v3865, 16
      %v4275 = vrot.slane %v4273, 5
      %v4276 = vor.u32 %v4272, %v4275
      %v4278 = vshrl.u32 %v4205, 16
      %v4280 = vrot.slane %v4278, 4
      %v4281 = vshll.u32 %v4205, 16
      %v4283 = vrot.slane %v4281, 5
      %v4284 = vor.u32 %v4280, %v4283
      %v4285 = vsel %vm1376, %v4276, %v4284
      %v4287 = vshrl.u32 %v3866, 16
      %v4289 = vrot.slane %v4287, 4
      %v4290 = vshll.u32 %v3866, 16
      %v4292 = vrot.slane %v4290, 5
      %v4293 = vor.u32 %v4289, %v4292
      %v4295 = vshrl.u32 %v4206, 16
      %v4297 = vrot.slane %v4295, 4
      %v4298 = vshll.u32 %v4206, 16
      %v4300 = vrot.slane %v4298, 5
      %v4301 = vor.u32 %v4297, %v4300
      %v4302 = vsel %vm1376, %v4293, %v4301
      %v4304 = vshrl.u32 %v3867, 16
      %v4306 = vrot.slane %v4304, 4
      %v4307 = vshll.u32 %v3867, 16
      %v4309 = vrot.slane %v4307, 5
      %v4310 = vor.u32 %v4306, %v4309
      %v4312 = vshrl.u32 %v4207, 16
      %v4314 = vrot.slane %v4312, 4
      %v4315 = vshll.u32 %v4207, 16
      %v4317 = vrot.slane %v4315, 5
      %v4318 = vor.u32 %v4314, %v4317
      %v4319 = vsel %vm1376, %v4310, %v4318
      %v4321 = vshrl.u32 %v3868, 16
      %v4323 = vrot.slane %v4321, 4
      %v4324 = vshll.u32 %v3868, 16
      %v4326 = vrot.slane %v4324, 5
      %v4327 = vor.u32 %v4323, %v4326
      %v4329 = vshrl.u32 %v4208, 16
      %v4331 = vrot.slane %v4329, 4
      %v4332 = vshll.u32 %v4208, 16
      %v4334 = vrot.slane %v4332, 5
      %v4335 = vor.u32 %v4331, %v4334
      %v4336 = vsel %vm1376, %v4327, %v4335
      %v4338 = vshrl.u32 %v3869, 16
      %v4340 = vrot.slane %v4338, 4
      %v4341 = vshll.u32 %v3869, 16
      %v4343 = vrot.slane %v4341, 5
      %v4344 = vor.u32 %v4340, %v4343
      %v4346 = vshrl.u32 %v4209, 16
      %v4348 = vrot.slane %v4346, 4
      %v4349 = vshll.u32 %v4209, 16
      %v4351 = vrot.slane %v4349, 5
      %v4352 = vor.u32 %v4348, %v4351
      %v4353 = vsel %vm1376, %v4344, %v4352
      %v4355 = vshrl.u32 %v3870, 16
      %v4357 = vrot.slane %v4355, 4
      %v4358 = vshll.u32 %v3870, 16
      %v4360 = vrot.slane %v4358, 5
      %v4361 = vor.u32 %v4357, %v4360
      %v4363 = vshrl.u32 %v4210, 16
      %v4365 = vrot.slane %v4363, 4
      %v4366 = vshll.u32 %v4210, 16
      %v4368 = vrot.slane %v4366, 5
      %v4369 = vor.u32 %v4365, %v4368
      %v4370 = vsel %vm1376, %v4361, %v4369
      %v4372 = vshrl.u32 %v3871, 16
      %v4374 = vrot.slane %v4372, 4
      %v4375 = vshll.u32 %v3871, 16
      %v4377 = vrot.slane %v4375, 5
      %v4378 = vor.u32 %v4374, %v4377
      %v4380 = vshrl.u32 %v4211, 16
      %v4382 = vrot.slane %v4380, 4
      %v4383 = vshll.u32 %v4211, 16
      %v4385 = vrot.slane %v4383, 5
      %v4386 = vor.u32 %v4382, %v4385
      %v4387 = vsel %vm1376, %v4378, %v4386
      %v4389 = vshrl.u32 %v3872, 16
      %v4391 = vrot.slane %v4389, 4
      %v4392 = vshll.u32 %v3872, 16
      %v4394 = vrot.slane %v4392, 5
      %v4395 = vor.u32 %v4391, %v4394
      %v4397 = vshrl.u32 %v4212, 16
      %v4399 = vrot.slane %v4397, 4
      %v4400 = vshll.u32 %v4212, 16
      %v4402 = vrot.slane %v4400, 5
      %v4403 = vor.u32 %v4399, %v4402
      %v4404 = vsel %vm1376, %v4395, %v4403
      %v4406 = vshrl.u32 %v3873, 16
      %v4408 = vrot.slane %v4406, 4
      %v4409 = vshll.u32 %v3873, 16
      %v4411 = vrot.slane %v4409, 5
      %v4412 = vor.u32 %v4408, %v4411
      %v4414 = vshrl.u32 %v4213, 16
      %v4416 = vrot.slane %v4414, 4
      %v4417 = vshll.u32 %v4213, 16
      %v4419 = vrot.slane %v4417, 5
      %v4420 = vor.u32 %v4416, %v4419
      %v4421 = vsel %vm1376, %v4412, %v4420
      %v4423 = vshrl.u32 %v3874, 16
      %v4425 = vrot.slane %v4423, 4
      %v4426 = vshll.u32 %v3874, 16
      %v4428 = vrot.slane %v4426, 5
      %v4429 = vor.u32 %v4425, %v4428
      %v4431 = vshrl.u32 %v4214, 16
      %v4433 = vrot.slane %v4431, 4
      %v4434 = vshll.u32 %v4214, 16
      %v4436 = vrot.slane %v4434, 5
      %v4437 = vor.u32 %v4433, %v4436
      %v4438 = vsel %vm1376, %v4429, %v4437
      %v4440 = vshrl.u32 %v3875, 16
      %v4442 = vrot.slane %v4440, 4
      %v4443 = vshll.u32 %v3875, 16
      %v4445 = vrot.slane %v4443, 5
      %v4446 = vor.u32 %v4442, %v4445
      %v4448 = vshrl.u32 %v4215, 16
      %v4450 = vrot.slane %v4448, 4
      %v4451 = vshll.u32 %v4215, 16
      %v4453 = vrot.slane %v4451, 5
      %v4454 = vor.u32 %v4450, %v4453
      %v4455 = vsel %vm1376, %v4446, %v4454
      %v4457 = vshrl.u32 %v3876, 16
      %v4459 = vrot.slane %v4457, 4
      %v4460 = vshll.u32 %v3876, 16
      %v4462 = vrot.slane %v4460, 5
      %v4463 = vor.u32 %v4459, %v4462
      %v4465 = vshrl.u32 %v4216, 16
      %v4467 = vrot.slane %v4465, 4
      %v4468 = vshll.u32 %v4216, 16
      %v4470 = vrot.slane %v4468, 5
      %v4471 = vor.u32 %v4467, %v4470
      %v4472 = vsel %vm1376, %v4463, %v4471
      %v4474 = vshrl.u32 %v3877, 16
      %v4476 = vrot.slane %v4474, 4
      %v4477 = vshll.u32 %v3877, 16
      %v4479 = vrot.slane %v4477, 5
      %v4480 = vor.u32 %v4476, %v4479
      %v4482 = vshrl.u32 %v4217, 16
      %v4484 = vrot.slane %v4482, 4
      %v4485 = vshll.u32 %v4217, 16
      %v4487 = vrot.slane %v4485, 5
      %v4488 = vor.u32 %v4484, %v4487
      %v4489 = vsel %vm1376, %v4480, %v4488
      %v4491 = vsel %vm934, %v4234, 0
      %v4494 = vsel %vm934, %v4251, 0
      %v4497 = vsel %vm934, %v4268, 0
      %v4500 = vsel %vm934, %v4285, 0
      %v4503 = vsel %vm934, %v4302, 0
      %v4506 = vsel %vm934, %v4319, 0
      %v4509 = vsel %vm934, %v4336, 0
      %v4512 = vsel %vm934, %v4353, 0
      %v4515 = vsel %vm934, %v4370, 0
      %v4518 = vsel %vm934, %v4387, 0
      %v4521 = vsel %vm934, %v4404, 0
      %v4524 = vsel %vm934, %v4421, 0
      %v4527 = vsel %vm934, %v4438, 0
      %v4530 = vsel %vm934, %v4455, 0
      %v4533 = vsel %vm934, %v4472, 0
      %v4536 = vsel %vm934, %v4489, 0
      %v4539 = vsel %vm983, %v531, 0
      %4541 = vmatprep.subr.bf16.mxu0 0
      %4542 = vmatpush1.bf16.msra.mxu0 %v4539
      %4543 = vmatprep.subr.bf16.mxu0 0
      %4544 = vmatpush1.bf16.msra.mxu0 0
      %4545 = vmatprep.subr.bf16.mxu0 0
      %4546 = vmatpush1.bf16.msra.mxu0 0
      %4547 = vmatprep.subr.bf16.mxu0 0
      %4548 = vmatpush1.bf16.msra.mxu0 0
      %4549 = vmatprep.subr.bf16.mxu0 0
      %4550 = vmatpush1.bf16.msra.mxu0 0
      %4551 = vmatprep.subr.bf16.mxu0 0
      %4552 = vmatpush1.bf16.msra.mxu0 0
      %4553 = vmatprep.subr.bf16.mxu0 0
      %4554 = vmatpush1.bf16.msra.mxu0 0
      %4555 = vmatprep.subr.bf16.mxu0 0
      %4556 = vmatpush1.bf16.msra.mxu0 0
      %4557 = vmatprep.subr.bf16.mxu0 0
      %4558 = vmatpush1.bf16.msra.mxu0 0
      %4559 = vmatprep.subr.bf16.mxu0 0
      %4560 = vmatpush1.bf16.msra.mxu0 0
      %4561 = vmatprep.subr.bf16.mxu0 0
      %4562 = vmatpush1.bf16.msra.mxu0 0
      %4563 = vmatprep.subr.bf16.mxu0 0
      %4564 = vmatpush1.bf16.msra.mxu0 0
      %4565 = vmatprep.subr.bf16.mxu0 0
      %4566 = vmatpush1.bf16.msra.mxu0 0
      %4567 = vmatprep.subr.bf16.mxu0 0
      %4568 = vmatpush1.bf16.msra.mxu0 0
      %4569 = vmatprep.subr.bf16.mxu0 0
      %4570 = vmatpush1.bf16.msra.mxu0 0
      %4571 = vmatprep.subr.bf16.mxu0 0
      %4572 = vmatpush1.bf16.msra.mxu0 0
      %4573 = vmatprep.mubr.bf16.mxu0 0
      %4574 = vmatmul.mubr.bf16.gmra.mrb[0].mxu0 %v4491
      %v4575 = vpop.f32.mrb[0].mxu0
      %v4576 = vadd.f32 0.0, %v4575
      %v4577 = vpop.f32.mrb[0].mxu0
      %v4578 = vpop.f32.mrb[0].mxu0
      %v4579 = vadd.f32 0.0, %v4578
      %v4580 = vpop.f32.mrb[0].mxu0
      %4581 = vmatprep.mubr.bf16.mxu0 0
      %4582 = vmatmul.mubr.bf16.gmra.mrb[0].mxu0 %v4494
      %v4583 = vpop.f32.mrb[0].mxu0
      %v4584 = vadd.f32 0.0, %v4583
      %v4585 = vpop.f32.mrb[0].mxu0
      %v4586 = vpop.f32.mrb[0].mxu0
      %v4587 = vadd.f32 0.0, %v4586
      %v4588 = vpop.f32.mrb[0].mxu0
      %4589 = vmatprep.mubr.bf16.mxu0 0
      %4590 = vmatmul.mubr.bf16.gmra.mrb[0].mxu0 %v4497
      %v4591 = vpop.f32.mrb[0].mxu0
      %v4592 = vadd.f32 0.0, %v4591
      %v4593 = vpop.f32.mrb[0].mxu0
      %v4594 = vpop.f32.mrb[0].mxu0
      %v4595 = vadd.f32 0.0, %v4594
      %v4596 = vpop.f32.mrb[0].mxu0
      %4597 = vmatprep.mubr.bf16.mxu0 0
      %4598 = vmatmul.mubr.bf16.gmra.mrb[0].mxu0 %v4500
      %v4599 = vpop.f32.mrb[0].mxu0
      %v4600 = vadd.f32 0.0, %v4599
      %v4601 = vpop.f32.mrb[0].mxu0
      %v4602 = vpop.f32.mrb[0].mxu0
      %v4603 = vadd.f32 0.0, %v4602
      %v4604 = vpop.f32.mrb[0].mxu0
      %4605 = vmatprep.mubr.bf16.mxu0 0
      %4606 = vmatmul.mubr.bf16.gmra.mrb[0].mxu0 %v4503
      %v4607 = vpop.f32.mrb[0].mxu0
      %v4608 = vadd.f32 0.0, %v4607
      %v4609 = vpop.f32.mrb[0].mxu0
      %v4610 = vpop.f32.mrb[0].mxu0
      %v4611 = vadd.f32 0.0, %v4610
      %v4612 = vpop.f32.mrb[0].mxu0
      %4613 = vmatprep.mubr.bf16.mxu0 0
      %4614 = vmatmul.mubr.bf16.gmra.mrb[0].mxu0 %v4506
      %v4615 = vpop.f32.mrb[0].mxu0
      %v4616 = vadd.f32 0.0, %v4615
      %v4617 = vpop.f32.mrb[0].mxu0
      %v4618 = vpop.f32.mrb[0].mxu0
      %v4619 = vadd.f32 0.0, %v4618
      %v4620 = vpop.f32.mrb[0].mxu0
      %4621 = vmatprep.mubr.bf16.mxu0 0
      %4622 = vmatmul.mubr.bf16.gmra.mrb[0].mxu0 %v4509
      %v4623 = vpop.f32.mrb[0].mxu0
      %v4624 = vadd.f32 0.0, %v4623
      %v4625 = vpop.f32.mrb[0].mxu0
      %v4626 = vpop.f32.mrb[0].mxu0
      %v4627 = vadd.f32 0.0, %v4626
      %v4628 = vpop.f32.mrb[0].mxu0
      %4629 = vmatprep.mubr.bf16.mxu0 0
      %4630 = vmatmul.mubr.bf16.gmra.mrb[0].mxu0 %v4512
      %v4631 = vpop.f32.mrb[0].mxu0
      %v4632 = vadd.f32 0.0, %v4631
      %v4633 = vpop.f32.mrb[0].mxu0
      %v4634 = vpop.f32.mrb[0].mxu0
      %v4635 = vadd.f32 0.0, %v4634
      %v4636 = vpop.f32.mrb[0].mxu0
      %4637 = vmatprep.mubr.bf16.mxu0 0
      %4638 = vmatmul.mubr.bf16.gmra.mrb[0].mxu0 %v4515
      %v4639 = vpop.f32.mrb[0].mxu0
      %v4640 = vadd.f32 0.0, %v4639
      %v4641 = vpop.f32.mrb[0].mxu0
      %v4642 = vpop.f32.mrb[0].mxu0
      %v4643 = vadd.f32 0.0, %v4642
      %v4644 = vpop.f32.mrb[0].mxu0
      %4645 = vmatprep.mubr.bf16.mxu0 0
      %4646 = vmatmul.mubr.bf16.gmra.mrb[0].mxu0 %v4518
      %v4647 = vpop.f32.mrb[0].mxu0
      %v4648 = vadd.f32 0.0, %v4647
      %v4649 = vpop.f32.mrb[0].mxu0
      %v4650 = vpop.f32.mrb[0].mxu0
      %v4651 = vadd.f32 0.0, %v4650
      %v4652 = vpop.f32.mrb[0].mxu0
      %4653 = vmatprep.mubr.bf16.mxu0 0
      %4654 = vmatmul.mubr.bf16.gmra.mrb[0].mxu0 %v4521
      %v4655 = vpop.f32.mrb[0].mxu0
      %v4656 = vadd.f32 0.0, %v4655
      %v4657 = vpop.f32.mrb[0].mxu0
      %v4658 = vpop.f32.mrb[0].mxu0
      %v4659 = vadd.f32 0.0, %v4658
      %v4660 = vpop.f32.mrb[0].mxu0
      %4661 = vmatprep.mubr.bf16.mxu0 0
      %4662 = vmatmul.mubr.bf16.gmra.mrb[0].mxu0 %v4524
      %v4663 = vpop.f32.mrb[0].mxu0
      %v4664 = vadd.f32 0.0, %v4663
      %v4665 = vpop.f32.mrb[0].mxu0
      %v4666 = vpop.f32.mrb[0].mxu0
      %v4667 = vadd.f32 0.0, %v4666
      %v4668 = vpop.f32.mrb[0].mxu0
      %4669 = vmatprep.mubr.bf16.mxu0 0
      %4670 = vmatmul.mubr.bf16.gmra.mrb[0].mxu0 %v4527
      %v4671 = vpop.f32.mrb[0].mxu0
      %v4672 = vadd.f32 0.0, %v4671
      %v4673 = vpop.f32.mrb[0].mxu0
      %v4674 = vpop.f32.mrb[0].mxu0
      %v4675 = vadd.f32 0.0, %v4674
      %v4676 = vpop.f32.mrb[0].mxu0
      %4677 = vmatprep.mubr.bf16.mxu0 0
      %4678 = vmatmul.mubr.bf16.gmra.mrb[0].mxu0 %v4530
      %v4679 = vpop.f32.mrb[0].mxu0
      %v4680 = vadd.f32 0.0, %v4679
      %v4681 = vpop.f32.mrb[0].mxu0
      %v4682 = vpop.f32.mrb[0].mxu0
      %v4683 = vadd.f32 0.0, %v4682
      %v4684 = vpop.f32.mrb[0].mxu0
      %4685 = vmatprep.mubr.bf16.mxu0 0
      %4686 = vmatmul.mubr.bf16.gmra.mrb[0].mxu0 %v4533
      %v4687 = vpop.f32.mrb[0].mxu0
      %v4688 = vadd.f32 0.0, %v4687
      %v4689 = vpop.f32.mrb[0].mxu0
      %v4690 = vpop.f32.mrb[0].mxu0
      %v4691 = vadd.f32 0.0, %v4690
      %v4692 = vpop.f32.mrb[0].mxu0
      %4693 = vmatprep.mubr.bf16.mxu0 0
      %4694 = vmatmul.mubr.bf16.gmra.mrb[0].mxu0 %v4536
      %v4695 = vpop.f32.mrb[0].mxu0
      %v4696 = vadd.f32 0.0, %v4695
      %v4697 = vpop.f32.mrb[0].mxu0
      %v4698 = vpop.f32.mrb[0].mxu0
      %v4699 = vadd.f32 0.0, %v4698
      %v4700 = vpop.f32.mrb[0].mxu0
      %4701 = vdwg.mxu0
      %v4702 = vadd.f32 %v4170, %v4576
      %v4703 = vadd.f32 %v4171, %v4579
      %v4704 = vadd.f32 %v4172, %v4584
      %v4705 = vadd.f32 %v4173, %v4587
      %v4706 = vadd.f32 %v4174, %v4592
      %v4707 = vadd.f32 %v4175, %v4595
      %v4708 = vadd.f32 %v4176, %v4600
      %v4709 = vadd.f32 %v4177, %v4603
      %v4710 = vadd.f32 %v4178, %v4608
      %v4711 = vadd.f32 %v4179, %v4611
      %v4712 = vadd.f32 %v4180, %v4616
      %v4713 = vadd.f32 %v4181, %v4619
      %v4714 = vadd.f32 %v4182, %v4624
      %v4715 = vadd.f32 %v4183, %v4627
      %v4716 = vadd.f32 %v4184, %v4632
      %v4717 = vadd.f32 %v4185, %v4635
      %v4718 = vadd.f32 %v4186, %v4640
      %v4719 = vadd.f32 %v4187, %v4643
      %v4720 = vadd.f32 %v4188, %v4648
      %v4721 = vadd.f32 %v4189, %v4651
      %v4722 = vadd.f32 %v4190, %v4656
      %v4723 = vadd.f32 %v4191, %v4659
      %v4724 = vadd.f32 %v4192, %v4664
      %v4725 = vadd.f32 %v4193, %v4667
      %v4726 = vadd.f32 %v4194, %v4672
      %v4727 = vadd.f32 %v4195, %v4675
      %v4728 = vadd.f32 %v4196, %v4680
      %v4729 = vadd.f32 %v4197, %v4683
      %v4730 = vadd.f32 %v4198, %v4688
      %v4731 = vadd.f32 %v4199, %v4691
      %v4732 = vadd.f32 %v4200, %v4696
      %v4733 = vadd.f32 %v4201, %v4699
      %v4734 = vpack.c.bf16 %v4703, %v4702
      %v4735 = vpack.c.bf16 %v4705, %v4704
      %v4736 = vpack.c.bf16 %v4707, %v4706
      %v4737 = vpack.c.bf16 %v4709, %v4708
      %v4738 = vpack.c.bf16 %v4711, %v4710
      %v4739 = vpack.c.bf16 %v4713, %v4712
      %v4740 = vpack.c.bf16 %v4715, %v4714
      %v4741 = vpack.c.bf16 %v4717, %v4716
      %v4742 = vpack.c.bf16 %v4719, %v4718
      %v4743 = vpack.c.bf16 %v4721, %v4720
      %v4744 = vpack.c.bf16 %v4723, %v4722
      %v4745 = vpack.c.bf16 %v4725, %v4724
      %v4746 = vpack.c.bf16 %v4727, %v4726
      %v4747 = vpack.c.bf16 %v4729, %v4728
      %v4748 = vpack.c.bf16 %v4731, %v4730
      %v4749 = vpack.c.bf16 %v4733, %v4732
      %v4766 = vunpack.c.l.b16 %v4734
      %v4767 = vunpack.c.h.b16 %v4734
      %v4768 = vunpack.c.l.b16 %v4735
      %v4769 = vunpack.c.h.b16 %v4735
      %v4770 = vunpack.c.l.b16 %v4736
      %v4771 = vunpack.c.h.b16 %v4736
      %v4772 = vunpack.c.l.b16 %v4737
      %v4773 = vunpack.c.h.b16 %v4737
      %v4774 = vunpack.c.l.b16 %v4738
      %v4775 = vunpack.c.h.b16 %v4738
      %v4776 = vunpack.c.l.b16 %v4739
      %v4777 = vunpack.c.h.b16 %v4739
      %v4778 = vunpack.c.l.b16 %v4740
      %v4779 = vunpack.c.h.b16 %v4740
      %v4780 = vunpack.c.l.b16 %v4741
      %v4781 = vunpack.c.h.b16 %v4741
      %v4782 = vunpack.c.l.b16 %v4742
      %v4783 = vunpack.c.h.b16 %v4742
      %v4784 = vunpack.c.l.b16 %v4743
      %v4785 = vunpack.c.h.b16 %v4743
      %v4786 = vunpack.c.l.b16 %v4744
      %v4787 = vunpack.c.h.b16 %v4744
      %v4788 = vunpack.c.l.b16 %v4745
      %v4789 = vunpack.c.h.b16 %v4745
      %v4790 = vunpack.c.l.b16 %v4746
      %v4791 = vunpack.c.h.b16 %v4746
      %v4792 = vunpack.c.l.b16 %v4747
      %v4793 = vunpack.c.h.b16 %v4747
      %v4794 = vunpack.c.l.b16 %v4748
      %v4795 = vunpack.c.h.b16 %v4748
      %v4796 = vunpack.c.l.b16 %v4749
      %v4797 = vunpack.c.h.b16 %v4749
      %v4798 = vpack.c.b16 %v4766, %v4766
      %v4799 = vpack.c.b16 %v4767, %v4767
      %v4800 = vpack.c.b16 %v4768, %v4768
      %v4801 = vpack.c.b16 %v4769, %v4769
      %v4802 = vpack.c.b16 %v4770, %v4770
      %v4803 = vpack.c.b16 %v4771, %v4771
      %v4804 = vpack.c.b16 %v4772, %v4772
      %v4805 = vpack.c.b16 %v4773, %v4773
      %v4806 = vpack.c.b16 %v4774, %v4774
      %v4807 = vpack.c.b16 %v4775, %v4775
      %v4808 = vpack.c.b16 %v4776, %v4776
      %v4809 = vpack.c.b16 %v4777, %v4777
      %v4810 = vpack.c.b16 %v4778, %v4778
      %v4811 = vpack.c.b16 %v4779, %v4779
      %v4812 = vpack.c.b16 %v4780, %v4780
      %v4813 = vpack.c.b16 %v4781, %v4781
      %v4814 = vpack.c.b16 %v4782, %v4782
      %v4815 = vpack.c.b16 %v4783, %v4783
      %v4816 = vpack.c.b16 %v4784, %v4784
      %v4817 = vpack.c.b16 %v4785, %v4785
      %v4818 = vpack.c.b16 %v4786, %v4786
      %v4819 = vpack.c.b16 %v4787, %v4787
      %v4820 = vpack.c.b16 %v4788, %v4788
      %v4821 = vpack.c.b16 %v4789, %v4789
      %v4822 = vpack.c.b16 %v4790, %v4790
      %v4823 = vpack.c.b16 %v4791, %v4791
      %v4824 = vpack.c.b16 %v4792, %v4792
      %v4825 = vpack.c.b16 %v4793, %v4793
      %v4826 = vpack.c.b16 %v4794, %v4794
      %v4827 = vpack.c.b16 %v4795, %v4795
      %v4828 = vpack.c.b16 %v4796, %v4796
      %v4829 = vpack.c.b16 %v4797, %v4797
      %4862 = vst.msk [vmem:[%s206] sm:$0xf] %vm213, %v4798
      %4863 = vst.msk [vmem:[%s206 + $0x4] sm:$0xf] %vm213, %v4799
      %4864 = vst.msk [vmem:[%s206 + $0x8] sm:$0xf] %vm213, %v4800
      %4865 = vst.msk [vmem:[%s206 + $0xc] sm:$0xf] %vm213, %v4801
      %4866 = vst.msk [vmem:[%s206 + $0x10] sm:$0xf] %vm213, %v4802
      %4867 = vst.msk [vmem:[%s206 + $0x14] sm:$0xf] %vm213, %v4803
      %4868 = vst.msk [vmem:[%s206 + $0x18] sm:$0xf] %vm213, %v4804
      %4869 = vst.msk [vmem:[%s206 + $0x1c] sm:$0xf] %vm213, %v4805
      %4870 = vst.msk [vmem:[%s206 + $0x20] sm:$0xf] %vm213, %v4806
      %4871 = vst.msk [vmem:[%s206 + $0x24] sm:$0xf] %vm213, %v4807
      %4872 = vst.msk [vmem:[%s206 + $0x28] sm:$0xf] %vm213, %v4808
      %4873 = vst.msk [vmem:[%s206 + $0x2c] sm:$0xf] %vm213, %v4809
      %4874 = vst.msk [vmem:[%s206 + $0x30] sm:$0xf] %vm213, %v4810
      %4875 = vst.msk [vmem:[%s206 + $0x34] sm:$0xf] %vm213, %v4811
      %4876 = vst.msk [vmem:[%s206 + $0x38] sm:$0xf] %vm213, %v4812
      %4877 = vst.msk [vmem:[%s206 + $0x3c] sm:$0xf] %vm213, %v4813
      %4878 = vst.msk [vmem:[%s206 + $0x40] sm:$0xf] %vm213, %v4814
      %4879 = vst.msk [vmem:[%s206 + $0x44] sm:$0xf] %vm213, %v4815
      %4880 = vst.msk [vmem:[%s206 + $0x48] sm:$0xf] %vm213, %v4816
      %4881 = vst.msk [vmem:[%s206 + $0x4c] sm:$0xf] %vm213, %v4817
      %4882 = vst.msk [vmem:[%s206 + $0x50] sm:$0xf] %vm213, %v4818
      %4883 = vst.msk [vmem:[%s206 + $0x54] sm:$0xf] %vm213, %v4819
      %4884 = vst.msk [vmem:[%s206 + $0x58] sm:$0xf] %vm213, %v4820
      %4885 = vst.msk [vmem:[%s206 + $0x5c] sm:$0xf] %vm213, %v4821
      %4886 = vst.msk [vmem:[%s206 + $0x60] sm:$0xf] %vm213, %v4822
      %4887 = vst.msk [vmem:[%s206 + $0x64] sm:$0xf] %vm213, %v4823
      %4888 = vst.msk [vmem:[%s206 + $0x68] sm:$0xf] %vm213, %v4824
      %4889 = vst.msk [vmem:[%s206 + $0x6c] sm:$0xf] %vm213, %v4825
      %4890 = vst.msk [vmem:[%s206 + $0x70] sm:$0xf] %vm213, %v4826
      %4891 = vst.msk [vmem:[%s206 + $0x74] sm:$0xf] %vm213, %v4827
      %4892 = vst.msk [vmem:[%s206 + $0x78] sm:$0xf] %vm213, %v4828
      %4893 = vst.msk [vmem:[%s206 + $0x7c] sm:$0xf] %vm213, %v4829
      %v4894 = vsel %vm934, %v4702, 0.0
      %v4895 = vsel %vm934, %v4703, 0.0
      %v4896 = vadd.f32 %v4894, %v4895
      %v4897 = vsel %vm934, %v4704, 0.0
      %v4898 = vadd.f32 %v4896, %v4897
      %v4899 = vsel %vm934, %v4705, 0.0
      %v4900 = vadd.f32 %v4898, %v4899
      %v4901 = vsel %vm934, %v4706, 0.0
      %v4902 = vadd.f32 %v4900, %v4901
      %v4903 = vsel %vm934, %v4707, 0.0
      %v4904 = vadd.f32 %v4902, %v4903
      %v4905 = vsel %vm934, %v4708, 0.0
      %v4906 = vadd.f32 %v4904, %v4905
      %v4907 = vsel %vm934, %v4709, 0.0
      %v4908 = vadd.f32 %v4906, %v4907
      %v4909 = vsel %vm934, %v4710, 0.0
      %v4910 = vadd.f32 %v4908, %v4909
      %v4911 = vsel %vm934, %v4711, 0.0
      %v4912 = vadd.f32 %v4910, %v4911
      %v4913 = vsel %vm934, %v4712, 0.0
      %v4914 = vadd.f32 %v4912, %v4913
      %v4915 = vsel %vm934, %v4713, 0.0
      %v4916 = vadd.f32 %v4914, %v4915
      %v4917 = vsel %vm934, %v4714, 0.0
      %v4918 = vadd.f32 %v4916, %v4917
      %v4919 = vsel %vm934, %v4715, 0.0
      %v4920 = vadd.f32 %v4918, %v4919
      %v4921 = vsel %vm934, %v4716, 0.0
      %v4922 = vadd.f32 %v4920, %v4921
      %v4923 = vsel %vm934, %v4717, 0.0
      %v4924 = vadd.f32 %v4922, %v4923
      %v4925 = vsel %vm934, %v4718, 0.0
      %v4926 = vadd.f32 %v4924, %v4925
      %v4927 = vsel %vm934, %v4719, 0.0
      %v4928 = vadd.f32 %v4926, %v4927
      %v4929 = vsel %vm934, %v4720, 0.0
      %v4930 = vadd.f32 %v4928, %v4929
      %v4931 = vsel %vm934, %v4721, 0.0
      %v4932 = vadd.f32 %v4930, %v4931
      %v4933 = vsel %vm934, %v4722, 0.0
      %v4934 = vadd.f32 %v4932, %v4933
      %v4935 = vsel %vm934, %v4723, 0.0
      %v4936 = vadd.f32 %v4934, %v4935
      %v4937 = vsel %vm934, %v4724, 0.0
      %v4938 = vadd.f32 %v4936, %v4937
      %v4939 = vsel %vm934, %v4725, 0.0
      %v4940 = vadd.f32 %v4938, %v4939
      %v4941 = vsel %vm934, %v4726, 0.0
      %v4942 = vadd.f32 %v4940, %v4941
      %v4943 = vsel %vm934, %v4727, 0.0
      %v4944 = vadd.f32 %v4942, %v4943
      %v4945 = vsel %vm934, %v4728, 0.0
      %v4946 = vadd.f32 %v4944, %v4945
      %v4947 = vsel %vm934, %v4729, 0.0
      %v4948 = vadd.f32 %v4946, %v4947
      %v4949 = vsel %vm934, %v4730, 0.0
      %v4950 = vadd.f32 %v4948, %v4949
      %v4951 = vsel %vm934, %v4731, 0.0
      %v4952 = vadd.f32 %v4950, %v4951
      %v4953 = vsel %vm934, %v4732, 0.0
      %v4954 = vadd.f32 %v4952, %v4953
      %v4955 = vsel %vm934, %v4733, 0.0
      %v4956 = vadd.f32 %v4954, %v4955
      %v4957 = vrot.slane %v4956, 4
      %v4958 = vadd.f32 %v4956, %v4957
      %v4959 = vrot.slane %v4958, 2
      %v4960 = vadd.f32 %v4958, %v4959
      %v4961 = vrot.slane %v4960, 1
      %v4962 = vadd.f32 %v4960, %v4961
      %vm4963 = vcmask 24576
      %4964 = vst.msk [vmem:[%s211] sm:$0x1] %vm4963, %v4962
      %v4965 = vmul.f32 %v4702, %v4702
      %v4966 = vmul.f32 %v4703, %v4703
      %v4967 = vmul.f32 %v4704, %v4704
      %v4968 = vmul.f32 %v4705, %v4705
      %v4969 = vmul.f32 %v4706, %v4706
      %v4970 = vmul.f32 %v4707, %v4707
      %v4971 = vmul.f32 %v4708, %v4708
      %v4972 = vmul.f32 %v4709, %v4709
      %v4973 = vmul.f32 %v4710, %v4710
      %v4974 = vmul.f32 %v4711, %v4711
      %v4975 = vmul.f32 %v4712, %v4712
      %v4976 = vmul.f32 %v4713, %v4713
      %v4977 = vmul.f32 %v4714, %v4714
      %v4978 = vmul.f32 %v4715, %v4715
      %v4979 = vmul.f32 %v4716, %v4716
      %v4980 = vmul.f32 %v4717, %v4717
      %v4981 = vmul.f32 %v4718, %v4718
      %v4982 = vmul.f32 %v4719, %v4719
      %v4983 = vmul.f32 %v4720, %v4720
      %v4984 = vmul.f32 %v4721, %v4721
      %v4985 = vmul.f32 %v4722, %v4722
      %v4986 = vmul.f32 %v4723, %v4723
      %v4987 = vmul.f32 %v4724, %v4724
      %v4988 = vmul.f32 %v4725, %v4725
      %v4989 = vmul.f32 %v4726, %v4726
      %v4990 = vmul.f32 %v4727, %v4727
      %v4991 = vmul.f32 %v4728, %v4728
      %v4992 = vmul.f32 %v4729, %v4729
      %v4993 = vmul.f32 %v4730, %v4730
      %v4994 = vmul.f32 %v4731, %v4731
      %v4995 = vmul.f32 %v4732, %v4732
      %v4996 = vmul.f32 %v4733, %v4733
      %v4997 = vsel %vm934, %v4965, 0.0
      %v4998 = vsel %vm934, %v4966, 0.0
      %v4999 = vadd.f32 %v4997, %v4998
      %v5000 = vsel %vm934, %v4967, 0.0
      %v5001 = vadd.f32 %v4999, %v5000
      %v5002 = vsel %vm934, %v4968, 0.0
      %v5003 = vadd.f32 %v5001, %v5002
      %v5004 = vsel %vm934, %v4969, 0.0
      %v5005 = vadd.f32 %v5003, %v5004
      %v5006 = vsel %vm934, %v4970, 0.0
      %v5007 = vadd.f32 %v5005, %v5006
      %v5008 = vsel %vm934, %v4971, 0.0
      %v5009 = vadd.f32 %v5007, %v5008
      %v5010 = vsel %vm934, %v4972, 0.0
      %v5011 = vadd.f32 %v5009, %v5010
      %v5012 = vsel %vm934, %v4973, 0.0
      %v5013 = vadd.f32 %v5011, %v5012
      %v5014 = vsel %vm934, %v4974, 0.0
      %v5015 = vadd.f32 %v5013, %v5014
      %v5016 = vsel %vm934, %v4975, 0.0
      %v5017 = vadd.f32 %v5015, %v5016
      %v5018 = vsel %vm934, %v4976, 0.0
      %v5019 = vadd.f32 %v5017, %v5018
      %v5020 = vsel %vm934, %v4977, 0.0
      %v5021 = vadd.f32 %v5019, %v5020
      %v5022 = vsel %vm934, %v4978, 0.0
      %v5023 = vadd.f32 %v5021, %v5022
      %v5024 = vsel %vm934, %v4979, 0.0
      %v5025 = vadd.f32 %v5023, %v5024
      %v5026 = vsel %vm934, %v4980, 0.0
      %v5027 = vadd.f32 %v5025, %v5026
      %v5028 = vsel %vm934, %v4981, 0.0
      %v5029 = vadd.f32 %v5027, %v5028
      %v5030 = vsel %vm934, %v4982, 0.0
      %v5031 = vadd.f32 %v5029, %v5030
      %v5032 = vsel %vm934, %v4983, 0.0
      %v5033 = vadd.f32 %v5031, %v5032
      %v5034 = vsel %vm934, %v4984, 0.0
      %v5035 = vadd.f32 %v5033, %v5034
      %v5036 = vsel %vm934, %v4985, 0.0
      %v5037 = vadd.f32 %v5035, %v5036
      %v5038 = vsel %vm934, %v4986, 0.0
      %v5039 = vadd.f32 %v5037, %v5038
      %v5040 = vsel %vm934, %v4987, 0.0
      %v5041 = vadd.f32 %v5039, %v5040
      %v5042 = vsel %vm934, %v4988, 0.0
      %v5043 = vadd.f32 %v5041, %v5042
      %v5044 = vsel %vm934, %v4989, 0.0
      %v5045 = vadd.f32 %v5043, %v5044
      %v5046 = vsel %vm934, %v4990, 0.0
      %v5047 = vadd.f32 %v5045, %v5046
      %v5048 = vsel %vm934, %v4991, 0.0
      %v5049 = vadd.f32 %v5047, %v5048
      %v5050 = vsel %vm934, %v4992, 0.0
      %v5051 = vadd.f32 %v5049, %v5050
      %v5052 = vsel %vm934, %v4993, 0.0
      %v5053 = vadd.f32 %v5051, %v5052
      %v5054 = vsel %vm934, %v4994, 0.0
      %v5055 = vadd.f32 %v5053, %v5054
      %v5056 = vsel %vm934, %v4995, 0.0
      %v5057 = vadd.f32 %v5055, %v5056
      %v5058 = vsel %vm934, %v4996, 0.0
      %v5059 = vadd.f32 %v5057, %v5058
      %v5060 = vrot.slane %v5059, 4
      %v5061 = vadd.f32 %v5059, %v5060
      %v5062 = vrot.slane %v5061, 2
      %v5063 = vadd.f32 %v5061, %v5062
      %v5064 = vrot.slane %v5063, 1
      %v5065 = vadd.f32 %v5063, %v5064
      %5066 = vst.msk [vmem:[%s211 + $0x1] sm:$0x1] %vm4963, %v5065
      %s5067 = smul.u32 32, %s16
      %p5068 = scmp.lt.s32.totalorder %s5067, 63
      %s5069 = scalar_select %p5068, %s5067, 63
      %s5070 = smul.addr %s5069, 4
      %s5071 = scalar_lea.vmem %s3, %s5070
      %p5072 = scmp.lt.s32.totalorder %s16, 1
      %s5073 = scalar_select %p5072, %s16, 1
      %s5074 = smul.addr %s5073, 2
      %s5075 = scalar_lea.vmem %s4, %s5074
      // Predicated region
      $region33: #{bottleneck_pallas.5} parent=31 // pred_check
        %p5076 = pneg %p102
      $region34: #{bottleneck_pallas.5} parent=31 // pred_check_branch
        %5078 = sbr.rel (%p5076) target = $region36
      $region35: #{bottleneck_pallas.5} parent=31 // pred_region
        %s5079 = smul.u32 32, %s16
      $region36: #{bottleneck_pallas.5} parent=31 // pred_fallthru
        _
      // Predicated region
      $region37: #{bottleneck_pallas.5} parent=31 // pred_check
        %p5080 = pneg %p128
      $region38: #{bottleneck_pallas.5} parent=31 // pred_check_branch
        %5082 = sbr.rel (%p5080) target = $region40
      $region39: #{bottleneck_pallas.5} parent=31 // pred_region
        _
      $region40: #{bottleneck_pallas.5} parent=31 // pred_fallthru
        _
    $region32: #{bottleneck_pallas.5} parent=5 // pred_fallthru
      _
    %p5083 = scmp.le.s32.totalorder 2, %s11
    // Predicated region
    $region41: #{bottleneck_pallas.5} parent=5 // pred_check
      %p5084 = pneg %p5083
    $region42: #{bottleneck_pallas.5} parent=5 // pred_check_branch
      %5086 = sbr.rel (%p5084) target = $region44
    $region43: #{bottleneck_pallas.5} parent=5 // pred_region
      %s5087 = ssub.s32 %s11, 2
      // Predicated region
      $region45: #{bottleneck_pallas.5} parent=43 // pred_check
        %p5088 = pneg %p108
      $region46: #{bottleneck_pallas.5} parent=43 // pred_check_branch
        %5090 = sbr.rel (%p5088) target = $region48
      $region47: #{bottleneck_pallas.5} parent=43 // pred_region
        %s5091 = smul.u32 32, %s17
        %p5092 = scmp.lt.s32.totalorder %s5091, 63
        %s5093 = scalar_select %p5092, %s5091, 63
        %s5094 = smul.addr %s5093, 4
        %s5095 = scalar_lea.vmem %s3, %s5094
      $region48: #{bottleneck_pallas.5} parent=43 // pred_fallthru
        _
      // Predicated region
      $region49: #{bottleneck_pallas.5} parent=43 // pred_check
        %p5096 = pneg %p134
      $region50: #{bottleneck_pallas.5} parent=43 // pred_check_branch
        %5098 = sbr.rel (%p5096) target = $region52
      $region51: #{bottleneck_pallas.5} parent=43 // pred_region
        %p5099 = scmp.lt.s32.totalorder %s17, 1
        %s5100 = scalar_select %p5099, %s17, 1
        %s5101 = smul.addr %s5100, 2
        %s5102 = scalar_lea.vmem %s4, %s5101
      $region52: #{bottleneck_pallas.5} parent=43 // pred_fallthru
        _
    $region44: #{bottleneck_pallas.5} parent=5 // pred_fallthru
      _
  $region6: #{bottleneck_pallas.5} parent=0 // loop_footer
    %s15 = sadd.s32 1, %s11
  $region7: #{bottleneck_pallas.5} parent=0 // loop_footer_branch
    %10 = sbr.rel target = $region3
  $region8: #{bottleneck_pallas.5} parent=0 // loop_exit
    _

</llo_original>
